<compile_context>
chip_gen: v6e
topology: v6e:2x2x1
jax: 0.10.0
libtpu: 0.0.40
codegen_flags: <defaults>
</compile_context>

<pallas_src>
import functools

import jax
import jax.numpy as jnp
from jax.experimental import pallas as pl
from jax.experimental.pallas import tpu as pltpu


def _round_up(x, m):
    return (x + m - 1) // m * m


# ----------------------------------------------------------------------------
# Pallas kernels
# ----------------------------------------------------------------------------
def _matmul_bias_kernel(a_ref, b_ref, bias_ref, o_ref):
    # (TM, K) bf16 @ (K, N) bf16 -> f32 on the MXU, bias fused in the epilogue.
    o_ref[...] = jnp.dot(a_ref[...], b_ref[...],
                         preferred_element_type=jnp.float32) + bias_ref[...]


def matmul_bias(a_bf16, b_bf16, bias_f32):
    """(M, K)bf16 @ (K, N)bf16 + bias[N] -> (M, N)f32, tiled over rows only.

    No M/N/K zero-padding: TK = K and TN = N use the full-dim BlockSpec rule,
    TM adapts to M (rounded to the 8-sublane granule, capped at 256).
    """
    M, K = a_bf16.shape
    K2, N = b_bf16.shape
    assert K == K2
    TM = min(256, _round_up(M, 8))
    grid_m = (M + TM - 1) // TM
    bias2 = bias_f32.reshape(1, N).astype(jnp.float32)

    out = pl.pallas_call(
        _matmul_bias_kernel,
        out_shape=jax.ShapeDtypeStruct((M, N), jnp.float32),
        grid_spec=pltpu.PrefetchScalarGridSpec(
            num_scalar_prefetch=0,
            grid=(grid_m,),
            in_specs=[
                pl.BlockSpec((TM, K), lambda i: (i, 0)),
                pl.BlockSpec((K, N), lambda i: (0, 0)),   # weights stay resident
                pl.BlockSpec((1, N), lambda i: (0, 0)),
            ],
            out_specs=pl.BlockSpec((TM, N), lambda i: (i, 0)),
        ),
        compiler_params=pltpu.CompilerParams(
            dimension_semantics=("parallel",)),
    )(a_bf16, b_bf16, bias2)
    return out


def _bn_apply_kernel(x_ref, scale_ref, shift_ref, o_ref, *, relu):
    y = x_ref[...] * scale_ref[...] + shift_ref[...]
    if relu:
        y = jnp.maximum(y, 0.0)
    o_ref[...] = y


def _bn_apply_res_kernel(x_ref, scale_ref, shift_ref, res_ref, o_ref, *, relu):
    y = x_ref[...] * scale_ref[...] + shift_ref[...] + res_ref[...]
    if relu:
        y = jnp.maximum(y, 0.0)
    o_ref[...] = y


def batchnorm(x_nhwc, gamma, beta, relu, residual=None, eps=1e-5):
    """Training-mode BatchNorm2d (batch statistics) + optional ReLU/residual.

    Stats reduction is plain-JAX glue; the elementwise apply is a tiled Pallas
    kernel over a lane-dense (N*H, W*C) view of the activation.
    """
    N, H, W, C = x_nhwc.shape
    mean = jnp.mean(x_nhwc, axis=(0, 1, 2))
    var = jnp.var(x_nhwc, axis=(0, 1, 2))     # biased, matches PyTorch BN
    invstd = jax.lax.rsqrt(var + eps)
    scale = (gamma * invstd).astype(jnp.float32)
    shift = (beta - mean * gamma * invstd).astype(jnp.float32)

    rows, cols = N * H, W * C                 # lane-dense last dim (W*C >= 128)
    xr = x_nhwc.reshape(rows, cols)
    scale_r = jnp.tile(scale, W).reshape(1, cols)   # column index = w*C + c
    shift_r = jnp.tile(shift, W).reshape(1, cols)

    # Row tile: multiple of 8, capped so one f32 block stays ~<= 2 MiB.
    rt_cap = max(8, ((2 * 1024 * 1024) // (cols * 4)) // 8 * 8)
    RT = min(256, rt_cap, _round_up(rows, 8))
    grid = ((rows + RT - 1) // RT,)

    x_spec = pl.BlockSpec((RT, cols), lambda i: (i, 0))
    s_spec = pl.BlockSpec((1, cols), lambda i: (0, 0))
    out_shape = jax.ShapeDtypeStruct((rows, cols), jnp.float32)
    cparams = pltpu.CompilerParams(dimension_semantics=("parallel",))

    if residual is None:
        out = pl.pallas_call(
            functools.partial(_bn_apply_kernel, relu=relu),
            out_shape=out_shape,
            grid_spec=pltpu.PrefetchScalarGridSpec(
                num_scalar_prefetch=0, grid=grid,
                in_specs=[x_spec, s_spec, s_spec],
                out_specs=x_spec),
            compiler_params=cparams,
        )(xr, scale_r, shift_r)
    else:
        rr = residual.reshape(rows, cols)
        out = pl.pallas_call(
            functools.partial(_bn_apply_res_kernel, relu=relu),
            out_shape=out_shape,
            grid_spec=pltpu.PrefetchScalarGridSpec(
                num_scalar_prefetch=0, grid=grid,
                in_specs=[x_spec, s_spec, s_spec, x_spec],
                out_specs=x_spec),
            compiler_params=cparams,
        )(xr, scale_r, shift_r, rr)
    return out.reshape(N, H, W, C)


# ----------------------------------------------------------------------------
# Convolution wrappers (im2col glue + Pallas GEMM)
# ----------------------------------------------------------------------------
def _im2col(x_nhwc, kh, kw, stride, pad4):
    """pad4 = (pad_top, pad_bottom, pad_left, pad_right). Returns bf16
    (N*Ho*Wo, C*kh*kw) patches with (c_in, kh, kw) fastest-index ordering,
    matching torch weight.reshape(C_out, C_in*kh*kw)."""
    pt, pb, pl_, pr = pad4
    N, H, W, C = x_nhwc.shape
    xp = jnp.pad(x_nhwc, ((0, 0), (pt, pb), (pl_, pr), (0, 0)))
    xp = xp.astype(jnp.bfloat16)              # build + store patches in bf16
    Hp, Wp = H + pt + pb, W + pl_ + pr
    Ho = (Hp - kh) // stride + 1
    Wo = (Wp - kw) // stride + 1
    cols = []
    for i in range(kh):
        for j in range(kw):
            cols.append(xp[:, i:i + stride * Ho:stride,
                           j:j + stride * Wo:stride, :])
    patches = jnp.stack(cols, axis=-1)        # (N, Ho, Wo, C, kh*kw)
    return patches.reshape(N * Ho * Wo, C * kh * kw), Ho, Wo


def conv2d(x_nhwc, w_gemm, bias, k, stride, pad):
    """w_gemm: precomputed (C_in*k*k, C_out) bf16 GEMM weight."""
    N = x_nhwc.shape[0]
    c_out = w_gemm.shape[1]
    cols, Ho, Wo = _im2col(x_nhwc, k, k, stride, (pad, pad, pad, pad))
    out = matmul_bias(cols, w_gemm, bias)
    return out.reshape(N, Ho, Wo, c_out)


def conv_transpose2d(x_nhwc, w_gemm, bias, k, stride, pad, out_hw):
    """w_gemm: precomputed flipped/transposed (C_in*k*k, C_out) bf16 weight.
    out_hw mimics PyTorch's output_size handling (derives output_padding)."""
    N, H, W, _ = x_nhwc.shape
    c_out = w_gemm.shape[1]
    Ho_t, Wo_t = out_hw
    op_h = Ho_t - ((H - 1) * stride - 2 * pad + k)
    op_w = Wo_t - ((W - 1) * stride - 2 * pad + k)
    assert 0 <= op_h <= max(stride - 1, 0) and 0 <= op_w <= max(stride - 1, 0)

    if stride > 1:
        # zero-dilate the input by `stride`
        # TODO(synk): the stride-2 deconvs still run the GEMM on the 75%-zero
        # dilated input; a sub-pixel (phase) decomposition would cut their MXU
        # work and patch traffic ~4x.
        Hd, Wd = (H - 1) * stride + 1, (W - 1) * stride + 1
        xd = jnp.zeros((N, Hd, Wd, x_nhwc.shape[3]), x_nhwc.dtype)
        xd = xd.at[:, ::stride, ::stride, :].set(x_nhwc)
    else:
        xd = x_nhwc

    pad4 = (k - 1 - pad, k - 1 - pad + op_h,
            k - 1 - pad, k - 1 - pad + op_w)
    cols, Ho, Wo = _im2col(xd, k, k, 1, pad4)
    out = matmul_bias(cols, w_gemm, bias)
    return out.reshape(N, Ho, Wo, c_out)


# ----------------------------------------------------------------------------
# Parameter init (deterministic, synthetic) — GEMM-ready bf16 weights built once
# ----------------------------------------------------------------------------
def _init_conv_gemm(key, c_out, c_in, k):
    k1, k2 = jax.random.split(key)
    fan_in = c_in * k * k
    w = jax.random.normal(k1, (c_out, c_in, k, k), jnp.float32) / jnp.sqrt(fan_in)
    b = jax.random.normal(k2, (c_out,), jnp.float32) * 0.01
    w_gemm = w.reshape(c_out, c_in * k * k).T.astype(jnp.bfloat16)   # (K, N)
    return w_gemm, b


def _init_tconv_gemm(key, c_in, c_out, k):
    k1, k2 = jax.random.split(key)
    fan_in = c_in * k * k
    w = jax.random.normal(k1, (c_in, c_out, k, k), jnp.float32) / jnp.sqrt(fan_in)
    b = jax.random.normal(k2, (c_out,), jnp.float32) * 0.01
    # equivalent forward-conv weight: flip spatially, swap in/out channels
    w_eq = jnp.flip(w, axis=(2, 3)).transpose(1, 0, 2, 3)   # (C_out, C_in, k, k)
    w_gemm = w_eq.reshape(c_out, c_in * k * k).T.astype(jnp.bfloat16)
    return w_gemm, b


def init_params(key):
    ks = jax.random.split(key, 8)
    return {
        'conv0': _init_conv_gemm(ks[0], 32, 3, 9),
        'conv1': _init_conv_gemm(ks[1], 64, 32, 3),
        'conv2': _init_conv_gemm(ks[2], 128, 64, 3),
        'conv3': _init_tconv_gemm(ks[3], 128, 64, 3),
        'conv4': _init_tconv_gemm(ks[4], 64, 32, 3),
        'conv5': _init_tconv_gemm(ks[5], 32, 3, 9),
        'bn': [(jnp.ones((c,), jnp.float32), jnp.zeros((c,), jnp.float32))
               for c in (32, 64, 128, 64, 32)],
        'res_conv0': _init_conv_gemm(ks[6], 128, 128, 3),
        'res_conv1': _init_conv_gemm(ks[7], 128, 128, 3),
        'res_bn0': (jnp.ones((128,), jnp.float32), jnp.zeros((128,), jnp.float32)),
        'res_bn1': (jnp.ones((128,), jnp.float32), jnp.zeros((128,), jnp.float32)),
    }


# Static architectural configs (kernel size, stride, pad) — not traced.
_DOWN_CFG = [('conv0', 9, 1, 4), ('conv1', 3, 2, 1), ('conv2', 3, 2, 1)]


# ----------------------------------------------------------------------------
# Forward pass (mirrors RTST_ImgTfNetPadding.forward)
# ----------------------------------------------------------------------------
def forward(x_nchw, params):
    x = jnp.transpose(x_nchw, (0, 2, 3, 1)).astype(jnp.float32)  # NHWC
    spatial = [x.shape[1:3]]

    # Convolution (downsampling) stack
    for i, (name, k, s, p) in enumerate(_DOWN_CFG):
        w, b = params[name]
        x = conv2d(x, w, b, k, s, p)
        g, be = params['bn'][i]
        x = batchnorm(x, g, be, relu=True)
        spatial.append(x.shape[1:3])

    # 5 residual blocks sharing the same weights (as in the PyTorch module)
    h = x
    for _ in range(5):
        w, b = params['res_conv0']
        x = conv2d(x, w, b, 3, 1, 1)
        x = batchnorm(x, *params['res_bn0'], relu=True)
        w, b = params['res_conv1']
        x = conv2d(x, w, b, 3, 1, 1)
        x = batchnorm(x, *params['res_bn1'], relu=False, residual=h)  # BN then +h
        h = x

    # Transposed convolutions with output_size taken from the encoder shapes
    w, b = params['conv3']
    x = conv_transpose2d(x, w, b, 3, 2, 1, spatial[2])
    x = batchnorm(x, *params['bn'][3], relu=True)
    w, b = params['conv4']
    x = conv_transpose2d(x, w, b, 3, 2, 1, spatial[1])
    x = batchnorm(x, *params['bn'][4], relu=True)

    # Last step: transposed conv, no BN / no ReLU
    w, b = params['conv5']
    x = conv_transpose2d(x, w, b, 9, 1, 4, spatial[0])

    return jnp.transpose(x, (0, 3, 1, 2))  # back to NCHW


if __name__ == "__main__":
    key_x = jax.random.PRNGKey(0)
    x = jax.random.normal(key_x, (2, 3, 16, 16), jnp.float32)  # NCHW, like torch
    params = init_params(jax.random.PRNGKey(42))

    fwd = jax.jit(forward)
    out = fwd(x, params)
    out = jax.block_until_ready(out)

    assert out.shape == (2, 3, 16, 16), out.shape
    assert bool(jnp.all(jnp.isfinite(out)))
    print("KERNEL_OK")
</pallas_src>

<mosaic_0001>
module attributes {stable_mosaic.version = 11 : i64} {
  func.func @_matmul_bias_kernel(%arg0: i32, %arg1: memref<256x243xbf16, #tpu.memory_space<vmem>>, %arg2: memref<243x32xbf16, #tpu.memory_space<vmem>>, %arg3: memref<1x32xf32, #tpu.memory_space<vmem>>, %arg4: memref<256x32xf32, #tpu.memory_space<vmem>>) attributes {dimension_semantics = [#tpu.dimension_semantics<parallel>], iteration_bounds = array<i64: 2>, scalar_prefetch = 0 : i64, scratch_operands = 0 : i64, tpu.core_type = #tpu.core_type<tc>, window_params = [{transform_indices = @transform_0, window_bounds = array<i64: 256, 243>}, {pipeline_mode = #tpu.pipeline_mode<synchronous>, transform_indices = @transform_1, window_bounds = array<i64: 243, 32>}, {pipeline_mode = #tpu.pipeline_mode<synchronous>, transform_indices = @transform_2, window_bounds = array<i64: 1, 32>}, {transform_indices = @transform_3, window_bounds = array<i64: 256, 32>}]} {
    %c0 = arith.constant 0 : index
    %c0_0 = arith.constant 0 : index
    %0 = vector.load %arg1[%c0, %c0_0] : memref<256x243xbf16, #tpu.memory_space<vmem>>, vector<256x243xbf16>
    %c0_1 = arith.constant 0 : index
    %c0_2 = arith.constant 0 : index
    %1 = vector.load %arg2[%c0_1, %c0_2] : memref<243x32xbf16, #tpu.memory_space<vmem>>, vector<243x32xbf16>
    %cst = arith.constant dense<0.000000e+00> : vector<256x32xf32>
    %2 = tpu.matmul %0, %1, %cst {dimension_numbers = #tpu.dot_dimension_numbers<[1], [0], [0], [1], [0, 0, 1, 1], [], []>} : vector<256x243xbf16>, vector<243x32xbf16>, vector<256x32xf32> -> vector<256x32xf32>
    %c0_3 = arith.constant 0 : index
    %c0_4 = arith.constant 0 : index
    %3 = vector.load %arg3[%c0_3, %c0_4] : memref<1x32xf32, #tpu.memory_space<vmem>>, vector<1x32xf32>
    %4 = vector.broadcast %3 : vector<1x32xf32> to vector<256x32xf32>
    %5 = arith.addf %2, %4 : vector<256x32xf32>
    %c0_5 = arith.constant 0 : index
    %c0_6 = arith.constant 0 : index
    %6 = vector.load %arg4[%c0_5, %c0_6] : memref<256x32xf32, #tpu.memory_space<vmem>>, vector<256x32xf32>
    tpu.vector_store %arg4[%c0_5, %c0_6], %5 {strides = array<i32>} : memref<256x32xf32, #tpu.memory_space<vmem>>, vector<256x32xf32>,
    return
  }
  func.func @transform_0(%arg0: i32) -> (i32, i32) {
    %c0_i32 = arith.constant 0 : i32
    %c0_i32_0 = arith.constant 0 : i32
    return %arg0, %c0_i32 : i32, i32
  }
  func.func @transform_1(%arg0: i32) -> (i32, i32) {
    %c0_i32 = arith.constant 0 : i32
    %c0_i32_0 = arith.constant 0 : i32
    %c0_i32_1 = arith.constant 0 : i32
    return %c0_i32, %c0_i32_0 : i32, i32
  }
  func.func @transform_2(%arg0: i32) -> (i32, i32) {
    %c0_i32 = arith.constant 0 : i32
    %c0_i32_0 = arith.constant 0 : i32
    %c0_i32_1 = arith.constant 0 : i32
    return %c0_i32, %c0_i32_0 : i32, i32
  }
  func.func @transform_3(%arg0: i32) -> (i32, i32) {
    %c0_i32 = arith.constant 0 : i32
    %c0_i32_0 = arith.constant 0 : i32
    return %arg0, %c0_i32 : i32, i32
  }
}

module attributes {stable_mosaic.version = 11 : i64} {
  func.func @_bn_apply_kernel(%arg0: i32, %arg1: memref<32x512xf32, #tpu.memory_space<vmem>>, %arg2: memref<1x512xf32, #tpu.memory_space<vmem>>, %arg3: memref<1x512xf32, #tpu.memory_space<vmem>>, %arg4: memref<32x512xf32, #tpu.memory_space<vmem>>) attributes {dimension_semantics = [#tpu.dimension_semantics<parallel>], iteration_bounds = array<i64: 1>, scalar_prefetch = 0 : i64, scratch_operands = 0 : i64, tpu.core_type = #tpu.core_type<tc>, window_params = [{transform_indices = @transform_0, window_bounds = array<i64: 32, 512>}, {pipeline_mode = #tpu.pipeline_mode<synchronous>, transform_indices = @transform_1, window_bounds = array<i64: 1, 512>}, {pipeline_mode = #tpu.pipeline_mode<synchronous>, transform_indices = @transform_2, window_bounds = array<i64: 1, 512>}, {transform_indices = @transform_3, window_bounds = array<i64: 32, 512>}]} {
    %c0 = arith.constant 0 : index
    %c0_0 = arith.constant 0 : index
    %0 = vector.load %arg1[%c0, %c0_0] : memref<32x512xf32, #tpu.memory_space<vmem>>, vector<32x512xf32>
    %c0_1 = arith.constant 0 : index
    %c0_2 = arith.constant 0 : index
    %1 = vector.load %arg2[%c0_1, %c0_2] : memref<1x512xf32, #tpu.memory_space<vmem>>, vector<1x512xf32>
    %2 = vector.broadcast %1 : vector<1x512xf32> to vector<32x512xf32>
    %3 = arith.mulf %0, %2 : vector<32x512xf32>
    %c0_3 = arith.constant 0 : index
    %c0_4 = arith.constant 0 : index
    %4 = vector.load %arg3[%c0_3, %c0_4] : memref<1x512xf32, #tpu.memory_space<vmem>>, vector<1x512xf32>
    %5 = vector.broadcast %4 : vector<1x512xf32> to vector<32x512xf32>
    %6 = arith.addf %3, %5 : vector<32x512xf32>
    %cst = arith.constant 0.000000e+00 : f32
    %7 = vector.broadcast %cst : f32 to vector<32x512xf32>
    %8 = arith.maximumf %6, %7 : vector<32x512xf32>
    %c0_5 = arith.constant 0 : index
    %c0_6 = arith.constant 0 : index
    %9 = vector.load %arg4[%c0_5, %c0_6] : memref<32x512xf32, #tpu.memory_space<vmem>>, vector<32x512xf32>
    tpu.vector_store %arg4[%c0_5, %c0_6], %8 {strides = array<i32>} : memref<32x512xf32, #tpu.memory_space<vmem>>, vector<32x512xf32>,
    return
  }
  func.func @transform_0(%arg0: i32) -> (i32, i32) {
    %c0_i32 = arith.constant 0 : i32
    %c0_i32_0 = arith.constant 0 : i32
    return %arg0, %c0_i32 : i32, i32
  }
  func.func @transform_1(%arg0: i32) -> (i32, i32) {
    %c0_i32 = arith.constant 0 : i32
    %c0_i32_0 = arith.constant 0 : i32
    %c0_i32_1 = arith.constant 0 : i32
    return %c0_i32, %c0_i32_0 : i32, i32
  }
  func.func @transform_2(%arg0: i32) -> (i32, i32) {
    %c0_i32 = arith.constant 0 : i32
    %c0_i32_0 = arith.constant 0 : i32
    %c0_i32_1 = arith.constant 0 : i32
    return %c0_i32, %c0_i32_0 : i32, i32
  }
  func.func @transform_3(%arg0: i32) -> (i32, i32) {
    %c0_i32 = arith.constant 0 : i32
    %c0_i32_0 = arith.constant 0 : i32
    return %arg0, %c0_i32 : i32, i32
  }
}

module attributes {stable_mosaic.version = 11 : i64} {
  func.func @_matmul_bias_kernel(%arg0: i32, %arg1: memref<128x288xbf16, #tpu.memory_space<vmem>>, %arg2: memref<288x64xbf16, #tpu.memory_space<vmem>>, %arg3: memref<1x64xf32, #tpu.memory_space<vmem>>, %arg4: memref<128x64xf32, #tpu.memory_space<vmem>>) attributes {dimension_semantics = [#tpu.dimension_semantics<parallel>], iteration_bounds = array<i64: 1>, scalar_prefetch = 0 : i64, scratch_operands = 0 : i64, tpu.core_type = #tpu.core_type<tc>, window_params = [{transform_indices = @transform_0, window_bounds = array<i64: 128, 288>}, {pipeline_mode = #tpu.pipeline_mode<synchronous>, transform_indices = @transform_1, window_bounds = array<i64: 288, 64>}, {pipeline_mode = #tpu.pipeline_mode<synchronous>, transform_indices = @transform_2, window_bounds = array<i64: 1, 64>}, {transform_indices = @transform_3, window_bounds = array<i64: 128, 64>}]} {
    %c0 = arith.constant 0 : index
    %c0_0 = arith.constant 0 : index
    %0 = vector.load %arg1[%c0, %c0_0] : memref<128x288xbf16, #tpu.memory_space<vmem>>, vector<128x288xbf16>
    %c0_1 = arith.constant 0 : index
    %c0_2 = arith.constant 0 : index
    %1 = vector.load %arg2[%c0_1, %c0_2] : memref<288x64xbf16, #tpu.memory_space<vmem>>, vector<288x64xbf16>
    %cst = arith.constant dense<0.000000e+00> : vector<128x64xf32>
    %2 = tpu.matmul %0, %1, %cst {dimension_numbers = #tpu.dot_dimension_numbers<[1], [0], [0], [1], [0, 0, 1, 1], [], []>} : vector<128x288xbf16>, vector<288x64xbf16>, vector<128x64xf32> -> vector<128x64xf32>
    %c0_3 = arith.constant 0 : index
    %c0_4 = arith.constant 0 : index
    %3 = vector.load %arg3[%c0_3, %c0_4] : memref<1x64xf32, #tpu.memory_space<vmem>>, vector<1x64xf32>
    %4 = vector.broadcast %3 : vector<1x64xf32> to vector<128x64xf32>
    %5 = arith.addf %2, %4 : vector<128x64xf32>
    %c0_5 = arith.constant 0 : index
    %c0_6 = arith.constant 0 : index
    %6 = vector.load %arg4[%c0_5, %c0_6] : memref<128x64xf32, #tpu.memory_space<vmem>>, vector<128x64xf32>
    tpu.vector_store %arg4[%c0_5, %c0_6], %5 {strides = array<i32>} : memref<128x64xf32, #tpu.memory_space<vmem>>, vector<128x64xf32>,
    return
  }
  func.func @transform_0(%arg0: i32) -> (i32, i32) {
    %c0_i32 = arith.constant 0 : i32
    %c0_i32_0 = arith.constant 0 : i32
    return %arg0, %c0_i32 : i32, i32
  }
  func.func @transform_1(%arg0: i32) -> (i32, i32) {
    %c0_i32 = arith.constant 0 : i32
    %c0_i32_0 = arith.constant 0 : i32
    %c0_i32_1 = arith.constant 0 : i32
    return %c0_i32, %c0_i32_0 : i32, i32
  }
  func.func @transform_2(%arg0: i32) -> (i32, i32) {
    %c0_i32 = arith.constant 0 : i32
    %c0_i32_0 = arith.constant 0 : i32
    %c0_i32_1 = arith.constant 0 : i32
    return %c0_i32, %c0_i32_0 : i32, i32
  }
  func.func @transform_3(%arg0: i32) -> (i32, i32) {
    %c0_i32 = arith.constant 0 : i32
    %c0_i32_0 = arith.constant 0 : i32
    return %arg0, %c0_i32 : i32, i32
  }
}

module attributes {stable_mosaic.version = 11 : i64} {
  func.func @_bn_apply_kernel(%arg0: i32, %arg1: memref<16x512xf32, #tpu.memory_space<vmem>>, %arg2: memref<1x512xf32, #tpu.memory_space<vmem>>, %arg3: memref<1x512xf32, #tpu.memory_space<vmem>>, %arg4: memref<16x512xf32, #tpu.memory_space<vmem>>) attributes {dimension_semantics = [#tpu.dimension_semantics<parallel>], iteration_bounds = array<i64: 1>, scalar_prefetch = 0 : i64, scratch_operands = 0 : i64, tpu.core_type = #tpu.core_type<tc>, window_params = [{transform_indices = @transform_0, window_bounds = array<i64: 16, 512>}, {pipeline_mode = #tpu.pipeline_mode<synchronous>, transform_indices = @transform_1, window_bounds = array<i64: 1, 512>}, {pipeline_mode = #tpu.pipeline_mode<synchronous>, transform_indices = @transform_2, window_bounds = array<i64: 1, 512>}, {transform_indices = @transform_3, window_bounds = array<i64: 16, 512>}]} {
    %c0 = arith.constant 0 : index
    %c0_0 = arith.constant 0 : index
    %0 = vector.load %arg1[%c0, %c0_0] : memref<16x512xf32, #tpu.memory_space<vmem>>, vector<16x512xf32>
    %c0_1 = arith.constant 0 : index
    %c0_2 = arith.constant 0 : index
    %1 = vector.load %arg2[%c0_1, %c0_2] : memref<1x512xf32, #tpu.memory_space<vmem>>, vector<1x512xf32>
    %2 = vector.broadcast %1 : vector<1x512xf32> to vector<16x512xf32>
    %3 = arith.mulf %0, %2 : vector<16x512xf32>
    %c0_3 = arith.constant 0 : index
    %c0_4 = arith.constant 0 : index
    %4 = vector.load %arg3[%c0_3, %c0_4] : memref<1x512xf32, #tpu.memory_space<vmem>>, vector<1x512xf32>
    %5 = vector.broadcast %4 : vector<1x512xf32> to vector<16x512xf32>
    %6 = arith.addf %3, %5 : vector<16x512xf32>
    %cst = arith.constant 0.000000e+00 : f32
    %7 = vector.broadcast %cst : f32 to vector<16x512xf32>
    %8 = arith.maximumf %6, %7 : vector<16x512xf32>
    %c0_5 = arith.constant 0 : index
    %c0_6 = arith.constant 0 : index
    %9 = vector.load %arg4[%c0_5, %c0_6] : memref<16x512xf32, #tpu.memory_space<vmem>>, vector<16x512xf32>
    tpu.vector_store %arg4[%c0_5, %c0_6], %8 {strides = array<i32>} : memref<16x512xf32, #tpu.memory_space<vmem>>, vector<16x512xf32>,
    return
  }
  func.func @transform_0(%arg0: i32) -> (i32, i32) {
    %c0_i32 = arith.constant 0 : i32
    %c0_i32_0 = arith.constant 0 : i32
    return %arg0, %c0_i32 : i32, i32
  }
  func.func @transform_1(%arg0: i32) -> (i32, i32) {
    %c0_i32 = arith.constant 0 : i32
    %c0_i32_0 = arith.constant 0 : i32
    %c0_i32_1 = arith.constant 0 : i32
    return %c0_i32, %c0_i32_0 : i32, i32
  }
  func.func @transform_2(%arg0: i32) -> (i32, i32) {
    %c0_i32 = arith.constant 0 : i32
    %c0_i32_0 = arith.constant 0 : i32
    %c0_i32_1 = arith.constant 0 : i32
    return %c0_i32, %c0_i32_0 : i32, i32
  }
  func.func @transform_3(%arg0: i32) -> (i32, i32) {
    %c0_i32 = arith.constant 0 : i32
    %c0_i32_0 = arith.constant 0 : i32
    return %arg0, %c0_i32 : i32, i32
  }
}

module attributes {stable_mosaic.version = 11 : i64} {
  func.func @_matmul_bias_kernel(%arg0: i32, %arg1: memref<32x576xbf16, #tpu.memory_space<vmem>>, %arg2: memref<576x128xbf16, #tpu.memory_space<vmem>>, %arg3: memref<1x128xf32, #tpu.memory_space<vmem>>, %arg4: memref<32x128xf32, #tpu.memory_space<vmem>>) attributes {dimension_semantics = [#tpu.dimension_semantics<parallel>], iteration_bounds = array<i64: 1>, scalar_prefetch = 0 : i64, scratch_operands = 0 : i64, tpu.core_type = #tpu.core_type<tc>, window_params = [{transform_indices = @transform_0, window_bounds = array<i64: 32, 576>}, {pipeline_mode = #tpu.pipeline_mode<synchronous>, transform_indices = @transform_1, window_bounds = array<i64: 576, 128>}, {pipeline_mode = #tpu.pipeline_mode<synchronous>, transform_indices = @transform_2, window_bounds = array<i64: 1, 128>}, {transform_indices = @transform_3, window_bounds = array<i64: 32, 128>}]} {
    %c0 = arith.constant 0 : index
    %c0_0 = arith.constant 0 : index
    %0 = vector.load %arg1[%c0, %c0_0] : memref<32x576xbf16, #tpu.memory_space<vmem>>, vector<32x576xbf16>
    %c0_1 = arith.constant 0 : index
    %c0_2 = arith.constant 0 : index
    %1 = vector.load %arg2[%c0_1, %c0_2] : memref<576x128xbf16, #tpu.memory_space<vmem>>, vector<576x128xbf16>
    %cst = arith.constant dense<0.000000e+00> : vector<32x128xf32>
    %2 = tpu.matmul %0, %1, %cst {dimension_numbers = #tpu.dot_dimension_numbers<[1], [0], [0], [1], [0, 0, 1, 1], [], []>} : vector<32x576xbf16>, vector<576x128xbf16>, vector<32x128xf32> -> vector<32x128xf32>
    %c0_3 = arith.constant 0 : index
    %c0_4 = arith.constant 0 : index
    %3 = vector.load %arg3[%c0_3, %c0_4] : memref<1x128xf32, #tpu.memory_space<vmem>>, vector<1x128xf32>
    %4 = vector.broadcast %3 : vector<1x128xf32> to vector<32x128xf32>
    %5 = arith.addf %2, %4 : vector<32x128xf32>
    %c0_5 = arith.constant 0 : index
    %c0_6 = arith.constant 0 : index
    %6 = vector.load %arg4[%c0_5, %c0_6] : memref<32x128xf32, #tpu.memory_space<vmem>>, vector<32x128xf32>
    tpu.vector_store %arg4[%c0_5, %c0_6], %5 {strides = array<i32>} : memref<32x128xf32, #tpu.memory_space<vmem>>, vector<32x128xf32>,
    return
  }
  func.func @transform_0(%arg0: i32) -> (i32, i32) {
    %c0_i32 = arith.constant 0 : i32
    %c0_i32_0 = arith.constant 0 : i32
    return %arg0, %c0_i32 : i32, i32
  }
  func.func @transform_1(%arg0: i32) -> (i32, i32) {
    %c0_i32 = arith.constant 0 : i32
    %c0_i32_0 = arith.constant 0 : i32
    %c0_i32_1 = arith.constant 0 : i32
    return %c0_i32, %c0_i32_0 : i32, i32
  }
  func.func @transform_2(%arg0: i32) -> (i32, i32) {
    %c0_i32 = arith.constant 0 : i32
    %c0_i32_0 = arith.constant 0 : i32
    %c0_i32_1 = arith.constant 0 : i32
    return %c0_i32, %c0_i32_0 : i32, i32
  }
  func.func @transform_3(%arg0: i32) -> (i32, i32) {
    %c0_i32 = arith.constant 0 : i32
    %c0_i32_0 = arith.constant 0 : i32
    return %arg0, %c0_i32 : i32, i32
  }
}

module attributes {stable_mosaic.version = 11 : i64} {
  func.func @_bn_apply_kernel(%arg0: i32, %arg1: memref<8x512xf32, #tpu.memory_space<vmem>>, %arg2: memref<1x512xf32, #tpu.memory_space<vmem>>, %arg3: memref<1x512xf32, #tpu.memory_space<vmem>>, %arg4: memref<8x512xf32, #tpu.memory_space<vmem>>) attributes {dimension_semantics = [#tpu.dimension_semantics<parallel>], iteration_bounds = array<i64: 1>, scalar_prefetch = 0 : i64, scratch_operands = 0 : i64, tpu.core_type = #tpu.core_type<tc>, window_params = [{transform_indices = @transform_0, window_bounds = array<i64: 8, 512>}, {pipeline_mode = #tpu.pipeline_mode<synchronous>, transform_indices = @transform_1, window_bounds = array<i64: 1, 512>}, {pipeline_mode = #tpu.pipeline_mode<synchronous>, transform_indices = @transform_2, window_bounds = array<i64: 1, 512>}, {transform_indices = @transform_3, window_bounds = array<i64: 8, 512>}]} {
    %c0 = arith.constant 0 : index
    %c0_0 = arith.constant 0 : index
    %0 = vector.load %arg1[%c0, %c0_0] : memref<8x512xf32, #tpu.memory_space<vmem>>, vector<8x512xf32>
    %c0_1 = arith.constant 0 : index
    %c0_2 = arith.constant 0 : index
    %1 = vector.load %arg2[%c0_1, %c0_2] : memref<1x512xf32, #tpu.memory_space<vmem>>, vector<1x512xf32>
    %2 = vector.broadcast %1 : vector<1x512xf32> to vector<8x512xf32>
    %3 = arith.mulf %0, %2 : vector<8x512xf32>
    %c0_3 = arith.constant 0 : index
    %c0_4 = arith.constant 0 : index
    %4 = vector.load %arg3[%c0_3, %c0_4] : memref<1x512xf32, #tpu.memory_space<vmem>>, vector<1x512xf32>
    %5 = vector.broadcast %4 : vector<1x512xf32> to vector<8x512xf32>
    %6 = arith.addf %3, %5 : vector<8x512xf32>
    %cst = arith.constant 0.000000e+00 : f32
    %7 = vector.broadcast %cst : f32 to vector<8x512xf32>
    %8 = arith.maximumf %6, %7 : vector<8x512xf32>
    %c0_5 = arith.constant 0 : index
    %c0_6 = arith.constant 0 : index
    %9 = vector.load %arg4[%c0_5, %c0_6] : memref<8x512xf32, #tpu.memory_space<vmem>>, vector<8x512xf32>
    tpu.vector_store %arg4[%c0_5, %c0_6], %8 {strides = array<i32>} : memref<8x512xf32, #tpu.memory_space<vmem>>, vector<8x512xf32>,
    return
  }
  func.func @transform_0(%arg0: i32) -> (i32, i32) {
    %c0_i32 = arith.constant 0 : i32
    %c0_i32_0 = arith.constant 0 : i32
    return %arg0, %c0_i32 : i32, i32
  }
  func.func @transform_1(%arg0: i32) -> (i32, i32) {
    %c0_i32 = arith.constant 0 : i32
    %c0_i32_0 = arith.constant 0 : i32
    %c0_i32_1 = arith.constant 0 : i32
    return %c0_i32, %c0_i32_0 : i32, i32
  }
  func.func @transform_2(%arg0: i32) -> (i32, i32) {
    %c0_i32 = arith.constant 0 : i32
    %c0_i32_0 = arith.constant 0 : i32
    %c0_i32_1 = arith.constant 0 : i32
    return %c0_i32, %c0_i32_0 : i32, i32
  }
  func.func @transform_3(%arg0: i32) -> (i32, i32) {
    %c0_i32 = arith.constant 0 : i32
    %c0_i32_0 = arith.constant 0 : i32
    return %arg0, %c0_i32 : i32, i32
  }
}

module attributes {stable_mosaic.version = 11 : i64} {
  func.func @_matmul_bias_kernel(%arg0: i32, %arg1: memref<32x1152xbf16, #tpu.memory_space<vmem>>, %arg2: memref<1152x128xbf16, #tpu.memory_space<vmem>>, %arg3: memref<1x128xf32, #tpu.memory_space<vmem>>, %arg4: memref<32x128xf32, #tpu.memory_space<vmem>>) attributes {dimension_semantics = [#tpu.dimension_semantics<parallel>], iteration_bounds = array<i64: 1>, scalar_prefetch = 0 : i64, scratch_operands = 0 : i64, tpu.core_type = #tpu.core_type<tc>, window_params = [{transform_indices = @transform_0, window_bounds = array<i64: 32, 1152>}, {pipeline_mode = #tpu.pipeline_mode<synchronous>, transform_indices = @transform_1, window_bounds = array<i64: 1152, 128>}, {pipeline_mode = #tpu.pipeline_mode<synchronous>, transform_indices = @transform_2, window_bounds = array<i64: 1, 128>}, {transform_indices = @transform_3, window_bounds = array<i64: 32, 128>}]} {
    %c0 = arith.constant 0 : index
    %c0_0 = arith.constant 0 : index
    %0 = vector.load %arg1[%c0, %c0_0] : memref<32x1152xbf16, #tpu.memory_space<vmem>>, vector<32x1152xbf16>
    %c0_1 = arith.constant 0 : index
    %c0_2 = arith.constant 0 : index
    %1 = vector.load %arg2[%c0_1, %c0_2] : memref<1152x128xbf16, #tpu.memory_space<vmem>>, vector<1152x128xbf16>
    %cst = arith.constant dense<0.000000e+00> : vector<32x128xf32>
    %2 = tpu.matmul %0, %1, %cst {dimension_numbers = #tpu.dot_dimension_numbers<[1], [0], [0], [1], [0, 0, 1, 1], [], []>} : vector<32x1152xbf16>, vector<1152x128xbf16>, vector<32x128xf32> -> vector<32x128xf32>
    %c0_3 = arith.constant 0 : index
    %c0_4 = arith.constant 0 : index
    %3 = vector.load %arg3[%c0_3, %c0_4] : memref<1x128xf32, #tpu.memory_space<vmem>>, vector<1x128xf32>
    %4 = vector.broadcast %3 : vector<1x128xf32> to vector<32x128xf32>
    %5 = arith.addf %2, %4 : vector<32x128xf32>
    %c0_5 = arith.constant 0 : index
    %c0_6 = arith.constant 0 : index
    %6 = vector.load %arg4[%c0_5, %c0_6] : memref<32x128xf32, #tpu.memory_space<vmem>>, vector<32x128xf32>
    tpu.vector_store %arg4[%c0_5, %c0_6], %5 {strides = array<i32>} : memref<32x128xf32, #tpu.memory_space<vmem>>, vector<32x128xf32>,
    return
  }
  func.func @transform_0(%arg0: i32) -> (i32, i32) {
    %c0_i32 = arith.constant 0 : i32
    %c0_i32_0 = arith.constant 0 : i32
    return %arg0, %c0_i32 : i32, i32
  }
  func.func @transform_1(%arg0: i32) -> (i32, i32) {
    %c0_i32 = arith.constant 0 : i32
    %c0_i32_0 = arith.constant 0 : i32
    %c0_i32_1 = arith.constant 0 : i32
    return %c0_i32, %c0_i32_0 : i32, i32
  }
  func.func @transform_2(%arg0: i32) -> (i32, i32) {
    %c0_i32 = arith.constant 0 : i32
    %c0_i32_0 = arith.constant 0 : i32
    %c0_i32_1 = arith.constant 0 : i32
    return %c0_i32, %c0_i32_0 : i32, i32
  }
  func.func @transform_3(%arg0: i32) -> (i32, i32) {
    %c0_i32 = arith.constant 0 : i32
    %c0_i32_0 = arith.constant 0 : i32
    return %arg0, %c0_i32 : i32, i32
  }
}

module attributes {stable_mosaic.version = 11 : i64} {
  func.func @_bn_apply_res_kernel(%arg0: i32, %arg1: memref<8x512xf32, #tpu.memory_space<vmem>>, %arg2: memref<1x512xf32, #tpu.memory_space<vmem>>, %arg3: memref<1x512xf32, #tpu.memory_space<vmem>>, %arg4: memref<8x512xf32, #tpu.memory_space<vmem>>, %arg5: memref<8x512xf32, #tpu.memory_space<vmem>>) attributes {dimension_semantics = [#tpu.dimension_semantics<parallel>], iteration_bounds = array<i64: 1>, scalar_prefetch = 0 : i64, scratch_operands = 0 : i64, tpu.core_type = #tpu.core_type<tc>, window_params = [{transform_indices = @transform_0, window_bounds = array<i64: 8, 512>}, {pipeline_mode = #tpu.pipeline_mode<synchronous>, transform_indices = @transform_1, window_bounds = array<i64: 1, 512>}, {pipeline_mode = #tpu.pipeline_mode<synchronous>, transform_indices = @transform_2, window_bounds = array<i64: 1, 512>}, {transform_indices = @transform_3, window_bounds = array<i64: 8, 512>}, {transform_indices = @transform_4, window_bounds = array<i64: 8, 512>}]} {
    %c0 = arith.constant 0 : index
    %c0_0 = arith.constant 0 : index
    %0 = vector.load %arg1[%c0, %c0_0] : memref<8x512xf32, #tpu.memory_space<vmem>>, vector<8x512xf32>
    %c0_1 = arith.constant 0 : index
    %c0_2 = arith.constant 0 : index
    %1 = vector.load %arg2[%c0_1, %c0_2] : memref<1x512xf32, #tpu.memory_space<vmem>>, vector<1x512xf32>
    %2 = vector.broadcast %1 : vector<1x512xf32> to vector<8x512xf32>
    %3 = arith.mulf %0, %2 : vector<8x512xf32>
    %c0_3 = arith.constant 0 : index
    %c0_4 = arith.constant 0 : index
    %4 = vector.load %arg3[%c0_3, %c0_4] : memref<1x512xf32, #tpu.memory_space<vmem>>, vector<1x512xf32>
    %5 = vector.broadcast %4 : vector<1x512xf32> to vector<8x512xf32>
    %6 = arith.addf %3, %5 : vector<8x512xf32>
    %c0_5 = arith.constant 0 : index
    %c0_6 = arith.constant 0 : index
    %7 = vector.load %arg4[%c0_5, %c0_6] : memref<8x512xf32, #tpu.memory_space<vmem>>, vector<8x512xf32>
    %8 = arith.addf %6, %7 : vector<8x512xf32>
    %c0_7 = arith.constant 0 : index
    %c0_8 = arith.constant 0 : index
    %9 = vector.load %arg5[%c0_7, %c0_8] : memref<8x512xf32, #tpu.memory_space<vmem>>, vector<8x512xf32>
    tpu.vector_store %arg5[%c0_7, %c0_8], %8 {strides = array<i32>} : memref<8x512xf32, #tpu.memory_space<vmem>>, vector<8x512xf32>,
    return
  }
  func.func @transform_0(%arg0: i32) -> (i32, i32) {
    %c0_i32 = arith.constant 0 : i32
    %c0_i32_0 = arith.constant 0 : i32
    return %arg0, %c0_i32 : i32, i32
  }
  func.func @transform_1(%arg0: i32) -> (i32, i32) {
    %c0_i32 = arith.constant 0 : i32
    %c0_i32_0 = arith.constant 0 : i32
    %c0_i32_1 = arith.constant 0 : i32
    return %c0_i32, %c0_i32_0 : i32, i32
  }
  func.func @transform_2(%arg0: i32) -> (i32, i32) {
    %c0_i32 = arith.constant 0 : i32
    %c0_i32_0 = arith.constant 0 : i32
    %c0_i32_1 = arith.constant 0 : i32
    return %c0_i32, %c0_i32_0 : i32, i32
  }
  func.func @transform_3(%arg0: i32) -> (i32, i32) {
    %c0_i32 = arith.constant 0 : i32
    %c0_i32_0 = arith.constant 0 : i32
    return %arg0, %c0_i32 : i32, i32
  }
  func.func @transform_4(%arg0: i32) -> (i32, i32) {
    %c0_i32 = arith.constant 0 : i32
    %c0_i32_0 = arith.constant 0 : i32
    return %arg0, %c0_i32 : i32, i32
  }
}

module attributes {stable_mosaic.version = 11 : i64} {
  func.func @_matmul_bias_kernel(%arg0: i32, %arg1: memref<128x1152xbf16, #tpu.memory_space<vmem>>, %arg2: memref<1152x64xbf16, #tpu.memory_space<vmem>>, %arg3: memref<1x64xf32, #tpu.memory_space<vmem>>, %arg4: memref<128x64xf32, #tpu.memory_space<vmem>>) attributes {dimension_semantics = [#tpu.dimension_semantics<parallel>], iteration_bounds = array<i64: 1>, scalar_prefetch = 0 : i64, scratch_operands = 0 : i64, tpu.core_type = #tpu.core_type<tc>, window_params = [{transform_indices = @transform_0, window_bounds = array<i64: 128, 1152>}, {pipeline_mode = #tpu.pipeline_mode<synchronous>, transform_indices = @transform_1, window_bounds = array<i64: 1152, 64>}, {pipeline_mode = #tpu.pipeline_mode<synchronous>, transform_indices = @transform_2, window_bounds = array<i64: 1, 64>}, {transform_indices = @transform_3, window_bounds = array<i64: 128, 64>}]} {
    %c0 = arith.constant 0 : index
    %c0_0 = arith.constant 0 : index
    %0 = vector.load %arg1[%c0, %c0_0] : memref<128x1152xbf16, #tpu.memory_space<vmem>>, vector<128x1152xbf16>
    %c0_1 = arith.constant 0 : index
    %c0_2 = arith.constant 0 : index
    %1 = vector.load %arg2[%c0_1, %c0_2] : memref<1152x64xbf16, #tpu.memory_space<vmem>>, vector<1152x64xbf16>
    %cst = arith.constant dense<0.000000e+00> : vector<128x64xf32>
    %2 = tpu.matmul %0, %1, %cst {dimension_numbers = #tpu.dot_dimension_numbers<[1], [0], [0], [1], [0, 0, 1, 1], [], []>} : vector<128x1152xbf16>, vector<1152x64xbf16>, vector<128x64xf32> -> vector<128x64xf32>
    %c0_3 = arith.constant 0 : index
    %c0_4 = arith.constant 0 : index
    %3 = vector.load %arg3[%c0_3, %c0_4] : memref<1x64xf32, #tpu.memory_space<vmem>>, vector<1x64xf32>
    %4 = vector.broadcast %3 : vector<1x64xf32> to vector<128x64xf32>
    %5 = arith.addf %2, %4 : vector<128x64xf32>
    %c0_5 = arith.constant 0 : index
    %c0_6 = arith.constant 0 : index
    %6 = vector.load %arg4[%c0_5, %c0_6] : memref<128x64xf32, #tpu.memory_space<vmem>>, vector<128x64xf32>
    tpu.vector_store %arg4[%c0_5, %c0_6], %5 {strides = array<i32>} : memref<128x64xf32, #tpu.memory_space<vmem>>, vector<128x64xf32>,
    return
  }
  func.func @transform_0(%arg0: i32) -> (i32, i32) {
    %c0_i32 = arith.constant 0 : i32
    %c0_i32_0 = arith.constant 0 : i32
    return %arg0, %c0_i32 : i32, i32
  }
  func.func @transform_1(%arg0: i32) -> (i32, i32) {
    %c0_i32 = arith.constant 0 : i32
    %c0_i32_0 = arith.constant 0 : i32
    %c0_i32_1 = arith.constant 0 : i32
    return %c0_i32, %c0_i32_0 : i32, i32
  }
  func.func @transform_2(%arg0: i32) -> (i32, i32) {
    %c0_i32 = arith.constant 0 : i32
    %c0_i32_0 = arith.constant 0 : i32
    %c0_i32_1 = arith.constant 0 : i32
    return %c0_i32, %c0_i32_0 : i32, i32
  }
  func.func @transform_3(%arg0: i32) -> (i32, i32) {
    %c0_i32 = arith.constant 0 : i32
    %c0_i32_0 = arith.constant 0 : i32
    return %arg0, %c0_i32 : i32, i32
  }
}

module attributes {stable_mosaic.version = 11 : i64} {
  func.func @_matmul_bias_kernel(%arg0: i32, %arg1: memref<256x576xbf16, #tpu.memory_space<vmem>>, %arg2: memref<576x32xbf16, #tpu.memory_space<vmem>>, %arg3: memref<1x32xf32, #tpu.memory_space<vmem>>, %arg4: memref<256x32xf32, #tpu.memory_space<vmem>>) attributes {dimension_semantics = [#tpu.dimension_semantics<parallel>], iteration_bounds = array<i64: 2>, scalar_prefetch = 0 : i64, scratch_operands = 0 : i64, tpu.core_type = #tpu.core_type<tc>, window_params = [{transform_indices = @transform_0, window_bounds = array<i64: 256, 576>}, {pipeline_mode = #tpu.pipeline_mode<synchronous>, transform_indices = @transform_1, window_bounds = array<i64: 576, 32>}, {pipeline_mode = #tpu.pipeline_mode<synchronous>, transform_indices = @transform_2, window_bounds = array<i64: 1, 32>}, {transform_indices = @transform_3, window_bounds = array<i64: 256, 32>}]} {
    %c0 = arith.constant 0 : index
    %c0_0 = arith.constant 0 : index
    %0 = vector.load %arg1[%c0, %c0_0] : memref<256x576xbf16, #tpu.memory_space<vmem>>, vector<256x576xbf16>
    %c0_1 = arith.constant 0 : index
    %c0_2 = arith.constant 0 : index
    %1 = vector.load %arg2[%c0_1, %c0_2] : memref<576x32xbf16, #tpu.memory_space<vmem>>, vector<576x32xbf16>
    %cst = arith.constant dense<0.000000e+00> : vector<256x32xf32>
    %2 = tpu.matmul %0, %1, %cst {dimension_numbers = #tpu.dot_dimension_numbers<[1], [0], [0], [1], [0, 0, 1, 1], [], []>} : vector<256x576xbf16>, vector<576x32xbf16>, vector<256x32xf32> -> vector<256x32xf32>
    %c0_3 = arith.constant 0 : index
    %c0_4 = arith.constant 0 : index
    %3 = vector.load %arg3[%c0_3, %c0_4] : memref<1x32xf32, #tpu.memory_space<vmem>>, vector<1x32xf32>
    %4 = vector.broadcast %3 : vector<1x32xf32> to vector<256x32xf32>
    %5 = arith.addf %2, %4 : vector<256x32xf32>
    %c0_5 = arith.constant 0 : index
    %c0_6 = arith.constant 0 : index
    %6 = vector.load %arg4[%c0_5, %c0_6] : memref<256x32xf32, #tpu.memory_space<vmem>>, vector<256x32xf32>
    tpu.vector_store %arg4[%c0_5, %c0_6], %5 {strides = array<i32>} : memref<256x32xf32, #tpu.memory_space<vmem>>, vector<256x32xf32>,
    return
  }
  func.func @transform_0(%arg0: i32) -> (i32, i32) {
    %c0_i32 = arith.constant 0 : i32
    %c0_i32_0 = arith.constant 0 : i32
    return %arg0, %c0_i32 : i32, i32
  }
  func.func @transform_1(%arg0: i32) -> (i32, i32) {
    %c0_i32 = arith.constant 0 : i32
    %c0_i32_0 = arith.constant 0 : i32
    %c0_i32_1 = arith.constant 0 : i32
    return %c0_i32, %c0_i32_0 : i32, i32
  }
  func.func @transform_2(%arg0: i32) -> (i32, i32) {
    %c0_i32 = arith.constant 0 : i32
    %c0_i32_0 = arith.constant 0 : i32
    %c0_i32_1 = arith.constant 0 : i32
    return %c0_i32, %c0_i32_0 : i32, i32
  }
  func.func @transform_3(%arg0: i32) -> (i32, i32) {
    %c0_i32 = arith.constant 0 : i32
    %c0_i32_0 = arith.constant 0 : i32
    return %arg0, %c0_i32 : i32, i32
  }
}

module attributes {stable_mosaic.version = 11 : i64} {
  func.func @_matmul_bias_kernel(%arg0: i32, %arg1: memref<256x2592xbf16, #tpu.memory_space<vmem>>, %arg2: memref<2592x3xbf16, #tpu.memory_space<vmem>>, %arg3: memref<1x3xf32, #tpu.memory_space<vmem>>, %arg4: memref<256x3xf32, #tpu.memory_space<vmem>>) attributes {dimension_semantics = [#tpu.dimension_semantics<parallel>], iteration_bounds = array<i64: 2>, scalar_prefetch = 0 : i64, scratch_operands = 0 : i64, tpu.core_type = #tpu.core_type<tc>, window_params = [{transform_indices = @transform_0, window_bounds = array<i64: 256, 2592>}, {pipeline_mode = #tpu.pipeline_mode<synchronous>, transform_indices = @transform_1, window_bounds = array<i64: 2592, 3>}, {pipeline_mode = #tpu.pipeline_mode<synchronous>, transform_indices = @transform_2, window_bounds = array<i64: 1, 3>}, {transform_indices = @transform_3, window_bounds = array<i64: 256, 3>}]} {
    %c0 = arith.constant 0 : index
    %c0_0 = arith.constant 0 : index
    %0 = vector.load %arg1[%c0, %c0_0] : memref<256x2592xbf16, #tpu.memory_space<vmem>>, vector<256x2592xbf16>
    %c0_1 = arith.constant 0 : index
    %c0_2 = arith.constant 0 : index
    %1 = vector.load %arg2[%c0_1, %c0_2] : memref<2592x3xbf16, #tpu.memory_space<vmem>>, vector<2592x3xbf16>
    %cst = arith.constant dense<0.000000e+00> : vector<256x3xf32>
    %2 = tpu.matmul %0, %1, %cst {dimension_numbers = #tpu.dot_dimension_numbers<[1], [0], [0], [1], [0, 0, 1, 1], [], []>} : vector<256x2592xbf16>, vector<2592x3xbf16>, vector<256x3xf32> -> vector<256x3xf32>
    %c0_3 = arith.constant 0 : index
    %c0_4 = arith.constant 0 : index
    %3 = vector.load %arg3[%c0_3, %c0_4] : memref<1x3xf32, #tpu.memory_space<vmem>>, vector<1x3xf32>
    %4 = vector.broadcast %3 : vector<1x3xf32> to vector<256x3xf32>
    %5 = arith.addf %2, %4 : vector<256x3xf32>
    %c0_5 = arith.constant 0 : index
    %c0_6 = arith.constant 0 : index
    %6 = vector.load %arg4[%c0_5, %c0_6] : memref<256x3xf32, #tpu.memory_space<vmem>>, vector<256x3xf32>
    tpu.vector_store %arg4[%c0_5, %c0_6], %5 {strides = array<i32>} : memref<256x3xf32, #tpu.memory_space<vmem>>, vector<256x3xf32>,
    return
  }
  func.func @transform_0(%arg0: i32) -> (i32, i32) {
    %c0_i32 = arith.constant 0 : i32
    %c0_i32_0 = arith.constant 0 : i32
    return %arg0, %c0_i32 : i32, i32
  }
  func.func @transform_1(%arg0: i32) -> (i32, i32) {
    %c0_i32 = arith.constant 0 : i32
    %c0_i32_0 = arith.constant 0 : i32
    %c0_i32_1 = arith.constant 0 : i32
    return %c0_i32, %c0_i32_0 : i32, i32
  }
  func.func @transform_2(%arg0: i32) -> (i32, i32) {
    %c0_i32 = arith.constant 0 : i32
    %c0_i32_0 = arith.constant 0 : i32
    %c0_i32_1 = arith.constant 0 : i32
    return %c0_i32, %c0_i32_0 : i32, i32
  }
  func.func @transform_3(%arg0: i32) -> (i32, i32) {
    %c0_i32 = arith.constant 0 : i32
    %c0_i32_0 = arith.constant 0 : i32
    return %arg0, %c0_i32 : i32, i32
  }
}

</mosaic_0001>

<llo_original>
// kernel: tile.153
$region0: #{tile.153}
  #allocation0 [shape = 's32[1]{0}', space=sflag, size = 0x4, scoped, tag = 'scoped memory for tile.153']
  %s0 = inlined_call_operand.vmem [shape: f32[32], index: 0, kind: input, shape index: {}]
  %s1 = inlined_call_operand.vmem [shape: f32[16,32], index: 1, kind: output, shape index: {}]
  // Predicated region
  $region2: #{tile.153} parent=0 // pred_check
    _
  $region3: #{tile.153} parent=0 // pred_check_branch
    %3 = sbr.rel (0) target = $region5
  $region4: #{tile.153} parent=0 // pred_region
    _
  $region5: #{tile.153} parent=0 // pred_fallthru
    _
  %v4 = vld [vmem:[%s0] ss:$0 sm:$0xff]
  %5 = vst [vmem:[%s1] sm:$0xff] %v4
  %s6 = scalar_lea.vmem %s1, 8
  %7 = vst [vmem:[%s6] sm:$0xff] %v4

// kernel: tile.154
$region0: #{tile.154}
  %s0 = inlined_call_operand.vmem [shape: f32[16,32], index: 0, kind: input, shape index: {}]
  %s1 = inlined_call_operand.vmem [shape: f32[1,512], index: 1, kind: output, shape index: {}]
  $region1: #{tile.154} parent=0
    #allocation0 [shape = 'u8[16384]{0}', space=vmem, size = 0x4000, scoped, tag = 'scoped mem for output reshape']
    %v2 = vld [vmem:[%s0] ss:$4 sm:$0xf]
    %vm3 = vcmask 261120
    %4 = vst.msk [vmem:[#allocation0] ss:$8 sm:$0xf] %vm3, %v2
    %s5 = scalar_lea.vmem %s0, 3
    %v6 = vld [vmem:[%s5] ss:$4 sm:$0xf]
    %7 = vrot.lane.b32.xlu0 %v6, 96
    %v8 = vpop.permute.xlu0 %7
    %vm9 = vcmask 1048320
    %10 = vst.msk [vmem:[#allocation0] ss:$8 sm:$0xf] %vm9, %v8
    %s11 = scalar_lea.vmem %s0, 2
    %v12 = vld [vmem:[%s11] ss:$4 sm:$0xf]
    %13 = vrot.lane.b32.xlu0 %v12, 64
    %v14 = vpop.permute.xlu0 %13
    %vm15 = vcmask 785920
    %16 = vst.msk [vmem:[#allocation0] ss:$8 sm:$0xf] %vm15, %v14
    %s17 = scalar_lea.vmem %s0, 1
    %v18 = vld [vmem:[%s17] ss:$4 sm:$0xf]
    %19 = vrot.lane.b32.xlu0 %v18, 32
    %v20 = vpop.permute.xlu0 %19
    %vm21 = vcmask 523520
    %22 = vst.msk [vmem:[#allocation0] ss:$8 sm:$0xf] %vm21, %v20
    %s24 = sshll.u32 1, 1
    %s25 = ssub.s32 %s24, 1
    %v27 = vld [vmem:[#allocation0] sm:%s25]
    %s28 = sshll.u32 1, 1
    %s29 = ssub.s32 %s28, 1
    %30 = vst [vmem:[%s1] sm:%s29] %v27
    %s31 = scalar_lea.vmem [#allocation0], 8
    %v32 = vld [vmem:[%s31] sm:%s25]
    %s33 = sshll.u32 1, 1
    %s34 = ssub.s32 %s33, 1
    %s35 = scalar_lea.vmem %s1, 1
    %36 = vst [vmem:[%s35] sm:%s34] %v32
    %s37 = scalar_lea.vmem [#allocation0], 16
    %v38 = vld [vmem:[%s37] sm:%s25]
    %s39 = sshll.u32 1, 1
    %s40 = ssub.s32 %s39, 1
    %s41 = smul.addr 1, 2
    %s42 = scalar_lea.vmem %s1, %s41
    %43 = vst [vmem:[%s42] sm:%s40] %v38
    %s44 = scalar_lea.vmem [#allocation0], 24
    %v45 = vld [vmem:[%s44] sm:%s25]
    %s46 = sshll.u32 1, 1
    %s47 = ssub.s32 %s46, 1
    %s48 = smul.addr 1, 3
    %s49 = scalar_lea.vmem %s1, %s48
    %50 = vst [vmem:[%s49] sm:%s47] %v45

// kernel: forward.31
$region0: #{forward.31}
  #allocation0 [shape = 'u32[]', space=smem, size = 0x4, offset = 0x4, fixed_abs, tag = 'smem constant byte address 0x4 - core index']
  #allocation1 [shape = 'u32[144,128]{1,0:T(1,128)}', space=vmem, size = 0x12000, scoped, tag = 'internal scratch']
  %s0 = inlined_call_operand.vmem [shape: bf16[512,243], index: 0, kind: input, shape index: {}]
  %s1 = inlined_call_operand.vmem [shape: bf16[243,32], index: 1, kind: input, shape index: {}]
  %s2 = inlined_call_operand.vmem [shape: f32[1,32], index: 2, kind: input, shape index: {}]
  %s3 = inlined_call_operand.vmem [shape: f32[512,32], index: 3, kind: output, shape index: {}]
  %s4 = sld [smem:[#allocation0]]
  $region45: #{forward.31} parent=0
    _
  %s6 = ssub.s32 1, %s4
  %s7 = scalar_select 0, %s6, %s4
  loop: start=0, step=1, limit=4
  $region2: #{forward.31} parent=0 // loop_pre_header
    _
  $region3: #{forward.31} parent=0 // loop_header
    %s9 = sphi 0, %s13
    %p10 = scmp.ge.s32.totalorder %s9, 4
    %s19 = sphi 0, %s21
    %s22 = sphi 0, %s19
    %s23 = sphi 0, %s22
    %s39 = sphi 0, %s23
    %s43 = sphi 0, %s43
    %s45 = sphi 0, %s43
    %s46 = sphi 0, %s45
    %s60 = sphi 0, %s46
    %s64 = sphi 0, %s64
    %s66 = sphi 0, %s64
    %s67 = sphi 0, %s66
    %s81 = sphi 0, %s67
    %s87 = sphi 0, %s89
    %s90 = sphi 0, %s87
    %s91 = sphi 0, %s90
    %s107 = sphi 0, %s91
  $region4: #{forward.31} parent=0 // loop_header_branch
    %12 = sbr.rel (%p10) target = $region8
  $region5: #{forward.31} parent=0 // loop_body
    %s14 = ssub.s32 %s9, 1
    %s15 = ssub.s32 %s9, 2
    %s16 = sadd.s32 %s9, 1
    %s17 = ssub.s32 %s9, %s16
    %p18 = scmp.eq.s32.totalorder %s17, 0
    %s20 = sadd.s32 %s19, 1
    %s21 = scalar_select %p18, %s19, %s20
    %p24 = pneg %p18
    %p25 = scmp.eq.s32.totalorder %s9, 1
    %p26 = por %p24, %p25
    %p27 = scmp.ne.s32.totalorder %s19, %s22
    %p28 = scmp.eq.s32.totalorder %s9, 0
    %p29 = por %p27, %p28
    %p30 = scmp.ne.s32.totalorder %s19, %s22
    %p31 = scmp.eq.s32.totalorder %s14, 1
    %p32 = por %p30, %p31
    %p33 = scmp.ne.s32.totalorder %s22, %s23
    %p34 = scmp.eq.s32.totalorder %s14, 0
    %p35 = por %p33, %p34
    %p36 = scmp.ne.s32.totalorder %s22, %s23
    %p37 = scmp.eq.s32.totalorder %s15, 1
    %p38 = por %p36, %p37
    %p40 = scmp.ne.s32.totalorder %s23, %s39
    %p41 = scmp.eq.s32.totalorder %s15, 0
    %p42 = por %p40, %p41
    %s44 = sadd.s32 %s43, 1
    %p47 = scmp.eq.s32.totalorder %s9, 1
    %p48 = scmp.ne.s32.totalorder %s43, %s45
    %p49 = scmp.eq.s32.totalorder %s9, 0
    %p50 = por %p48, %p49
    %p51 = scmp.ne.s32.totalorder %s43, %s45
    %p52 = scmp.eq.s32.totalorder %s14, 1
    %p53 = por %p51, %p52
    %p54 = scmp.ne.s32.totalorder %s45, %s46
    %p55 = scmp.eq.s32.totalorder %s14, 0
    %p56 = por %p54, %p55
    %p57 = scmp.ne.s32.totalorder %s45, %s46
    %p58 = scmp.eq.s32.totalorder %s15, 1
    %p59 = por %p57, %p58
    %p61 = scmp.ne.s32.totalorder %s46, %s60
    %p62 = scmp.eq.s32.totalorder %s15, 0
    %p63 = por %p61, %p62
    %s65 = sadd.s32 %s64, 1
    %p68 = scmp.eq.s32.totalorder %s9, 1
    %p69 = scmp.ne.s32.totalorder %s64, %s66
    %p70 = scmp.eq.s32.totalorder %s9, 0
    %p71 = por %p69, %p70
    %p72 = scmp.ne.s32.totalorder %s64, %s66
    %p73 = scmp.eq.s32.totalorder %s14, 1
    %p74 = por %p72, %p73
    %p75 = scmp.ne.s32.totalorder %s66, %s67
    %p76 = scmp.eq.s32.totalorder %s14, 0
    %p77 = por %p75, %p76
    %p78 = scmp.ne.s32.totalorder %s66, %s67
    %p79 = scmp.eq.s32.totalorder %s15, 1
    %p80 = por %p78, %p79
    %p82 = scmp.ne.s32.totalorder %s67, %s81
    %p83 = scmp.eq.s32.totalorder %s15, 0
    %p84 = por %p82, %p83
    %s85 = ssub.s32 %s9, %s16
    %p86 = scmp.eq.s32.totalorder %s85, 0
    %s88 = sadd.s32 %s87, 1
    %s89 = scalar_select %p86, %s87, %s88
    %p92 = pneg %p86
    %p93 = scmp.eq.s32.totalorder %s9, 1
    %p94 = por %p92, %p93
    %p95 = scmp.ne.s32.totalorder %s87, %s90
    %p96 = scmp.eq.s32.totalorder %s9, 0
    %p97 = por %p95, %p96
    %p98 = scmp.ne.s32.totalorder %s87, %s90
    %p99 = scmp.eq.s32.totalorder %s14, 1
    %p100 = por %p98, %p99
    %p101 = scmp.ne.s32.totalorder %s90, %s91
    %p102 = scmp.eq.s32.totalorder %s14, 0
    %p103 = por %p101, %p102
    %p104 = scmp.ne.s32.totalorder %s90, %s91
    %p105 = scmp.eq.s32.totalorder %s15, 1
    %p106 = por %p104, %p105
    %p108 = scmp.ne.s32.totalorder %s91, %s107
    %p109 = scmp.eq.s32.totalorder %s15, 0
    %p110 = por %p108, %p109
    %p111 = scmp.le.s32.totalorder 1, %s9
    %p112 = scmp.lt.s32.totalorder %s9, 3
    %p113 = pnand %p111, %p112
    %p114 = pneg %p113
    // Predicated region
    $region9: #{forward.31} parent=5 // pred_check
      _
    $region10: #{forward.31} parent=5 // pred_check_branch
      %116 = sbr.rel (%p113) target = $region12
    $region11: #{forward.31} parent=5 // pred_region
      %s117 = ssub.s32 %s9, 1
      // Predicated region
      $region13: #{forward.31} parent=11 // pred_check
        %p118 = pneg %p56
      $region14: #{forward.31} parent=11 // pred_check_branch
        %120 = sbr.rel (%p118) target = $region16
      $region15: #{forward.31} parent=11 // pred_region
        _
      $region16: #{forward.31} parent=11 // pred_fallthru
        _
      // Predicated region
      $region17: #{forward.31} parent=11 // pred_check
        %p121 = pneg %p77
      $region18: #{forward.31} parent=11 // pred_check_branch
        %123 = sbr.rel (%p121) target = $region20
      $region19: #{forward.31} parent=11 // pred_region
        _
      $region20: #{forward.31} parent=11 // pred_fallthru
        _
    $region12: #{forward.31} parent=5 // pred_fallthru
      _
    %p124 = scmp.lt.s32.totalorder %s9, 2
    // Predicated region
    $region21: #{forward.31} parent=5 // pred_check
      %p125 = pneg %p124
    $region22: #{forward.31} parent=5 // pred_check_branch
      %127 = sbr.rel (%p125) target = $region24
    $region23: #{forward.31} parent=5 // pred_region
      // Predicated region
      $region25: #{forward.31} parent=23 // pred_check
        %p128 = pneg %p29
      $region26: #{forward.31} parent=23 // pred_check_branch
        %130 = sbr.rel (%p128) target = $region28
      $region27: #{forward.31} parent=23 // pred_region
        %s131 = smul.u32 32, %s9
        %p132 = scmp.lt.s32.totalorder %s131, 63
        %s133 = scalar_select %p132, %s131, 63
        %s134 = smul.addr %s133, 2
        %s135 = smul.addr %s134, 4
        %s136 = scalar_lea.vmem %s0, %s135
        %s137 = smul.u32 32, %s9
      $region28: #{forward.31} parent=23 // pred_fallthru
        _
    $region24: #{forward.31} parent=5 // pred_fallthru
      _
    %p138 = scmp.le.s32.totalorder 1, %s9
    %p139 = scmp.lt.s32.totalorder %s9, 3
    %p140 = pnand %p138, %p139
    %p141 = pneg %p140
    // Predicated region
    $region29: #{forward.31} parent=5 // pred_check
      _
    $region30: #{forward.31} parent=5 // pred_check_branch
      %143 = sbr.rel (%p140) target = $region32
    $region31: #{forward.31} parent=5 // pred_region
      %s144 = ssub.s32 %s9, 1
      %s145 = smul.u32 32, %s14
      %p146 = scmp.lt.s32.totalorder %s145, 63
      %s147 = scalar_select %p146, %s145, 63
      %s148 = smul.addr %s147, 2
      %s149 = smul.addr %s148, 4
      %s150 = scalar_lea.vmem %s0, %s149
      %p151 = pneg %p35
      %p152 = pneg %p32
      %p153 = pneg %p56
      %p154 = pneg %p53
      %p155 = pneg %p77
      %p156 = pneg %p74
      %p157 = pneg %p103
      %p158 = pneg %p100
      %s159 = smul.u32 32, %s14
      %p160 = scmp.lt.s32.totalorder %s159, 63
      %s161 = scalar_select %p160, %s159, 63
      %s162 = smul.addr %s161, 8
      %s163 = scalar_lea.vmem %s3, %s162
      %s164 = smul.u32 32, %s14
      %p165 = scmp.lt.s32.totalorder %s164, 63
      %s166 = scalar_select %p165, %s164, 63
      %s167 = smul.addr %s166, 2
      %s168 = smul.addr %s167, 4
      %s169 = scalar_lea.vmem %s0, %s168
      %s170 = smul.u32 32, %s14
      %s171 = smul.u32 32, %s14
      %p172 = scmp.lt.s32.totalorder %s171, 63
      %s173 = scalar_select %p172, %s171, 63
      %s174 = smul.addr %s173, 8
      %s175 = scalar_lea.vmem %s3, %s174
      %s176 = smul.u32 32, %s14
      %v178 = vld [vmem:[%s169] sm:$0xff]
      %v179 = vld [vmem:[%s169 + $0x8] sm:$0xff]
      %v180 = vld [vmem:[%s169 + $0x10] sm:$0xff]
      %v181 = vld [vmem:[%s169 + $0x18] sm:$0xff]
      %v182 = vld [vmem:[%s169 + $0x20] sm:$0xff]
      %v183 = vld [vmem:[%s169 + $0x28] sm:$0xff]
      %v184 = vld [vmem:[%s169 + $0x30] sm:$0xff]
      %v185 = vld [vmem:[%s169 + $0x38] sm:$0xff]
      %v186 = vld [vmem:[%s169 + $0x40] sm:$0xff]
      %v187 = vld [vmem:[%s169 + $0x48] sm:$0xff]
      %v188 = vld [vmem:[%s169 + $0x50] sm:$0xff]
      %v189 = vld [vmem:[%s169 + $0x58] sm:$0xff]
      %v190 = vld [vmem:[%s169 + $0x60] sm:$0xff]
      %v191 = vld [vmem:[%s169 + $0x68] sm:$0xff]
      %v192 = vld [vmem:[%s169 + $0x70] sm:$0xff]
      %v193 = vld [vmem:[%s169 + $0x78] sm:$0xff]
      %v194 = vld [vmem:[%s169 + $0x80] sm:$0xff]
      %v195 = vld [vmem:[%s169 + $0x88] sm:$0xff]
      %v196 = vld [vmem:[%s169 + $0x90] sm:$0xff]
      %v197 = vld [vmem:[%s169 + $0x98] sm:$0xff]
      %v198 = vld [vmem:[%s169 + $0xa0] sm:$0xff]
      %v199 = vld [vmem:[%s169 + $0xa8] sm:$0xff]
      %v200 = vld [vmem:[%s169 + $0xb0] sm:$0xff]
      %v201 = vld [vmem:[%s169 + $0xb8] sm:$0xff]
      %v202 = vld [vmem:[%s169 + $0xc0] sm:$0xff]
      %v203 = vld [vmem:[%s169 + $0xc8] sm:$0xff]
      %v204 = vld [vmem:[%s169 + $0xd0] sm:$0xff]
      %v205 = vld [vmem:[%s169 + $0xd8] sm:$0xff]
      %v206 = vld [vmem:[%s169 + $0xe0] sm:$0xff]
      %v207 = vld [vmem:[%s169 + $0xe8] sm:$0xff]
      %v208 = vld [vmem:[%s169 + $0xf0] sm:$0xff]
      %v209 = vld [vmem:[%s169 + $0xf8] sm:$0xff]
      %v210 = vld [vmem:[%s1] sm:$0xf]
      %v211 = vld [vmem:[%s1 + $0x4] sm:$0xf]
      %v212 = vld [vmem:[%s1 + $0x8] sm:$0xf]
      %v213 = vld [vmem:[%s1 + $0xc] sm:$0xf]
      %v214 = vld [vmem:[%s1 + $0x10] sm:$0xf]
      %v215 = vld [vmem:[%s1 + $0x14] sm:$0xf]
      %v216 = vld [vmem:[%s1 + $0x18] sm:$0xf]
      %v217 = vld [vmem:[%s1 + $0x1c] sm:$0xf]
      %v218 = vld [vmem:[%s1 + $0x20] sm:$0xf]
      %v219 = vld [vmem:[%s1 + $0x24] sm:$0xf]
      %v220 = vld [vmem:[%s1 + $0x28] sm:$0xf]
      %v221 = vld [vmem:[%s1 + $0x2c] sm:$0xf]
      %v222 = vld [vmem:[%s1 + $0x30] sm:$0xf]
      %v223 = vld [vmem:[%s1 + $0x34] sm:$0xf]
      %v224 = vld [vmem:[%s1 + $0x38] sm:$0xf]
      %v225 = vld [vmem:[%s1 + $0x3c] sm:$0xf]
      %v226 = vld [vmem:[%s1 + $0x40] sm:$0xf]
      %v227 = vld [vmem:[%s1 + $0x44] sm:$0xf]
      %v228 = vld [vmem:[%s1 + $0x48] sm:$0xf]
      %v229 = vld [vmem:[%s1 + $0x4c] sm:$0xf]
      %v230 = vld [vmem:[%s1 + $0x50] sm:$0xf]
      %v231 = vld [vmem:[%s1 + $0x54] sm:$0xf]
      %v232 = vld [vmem:[%s1 + $0x58] sm:$0xf]
      %v233 = vld [vmem:[%s1 + $0x5c] sm:$0xf]
      %v234 = vld [vmem:[%s1 + $0x60] sm:$0xf]
      %v235 = vld [vmem:[%s1 + $0x64] sm:$0xf]
      %v236 = vld [vmem:[%s1 + $0x68] sm:$0xf]
      %v237 = vld [vmem:[%s1 + $0x6c] sm:$0xf]
      %v238 = vld [vmem:[%s1 + $0x70] sm:$0xf]
      %v239 = vld [vmem:[%s1 + $0x74] sm:$0xf]
      %v240 = vld [vmem:[%s1 + $0x78] sm:$0x3]
      %v241 = vld [vmem:[%s2] sm:$0x1]
      %v243 = vlaneseq
      %v244 = vshrl.u32 %v243, 7
      %v245 = vsub.s32 0, %v244
      %v246 = vrot.slane %v241, %v245
      %v280 = vunpack.c.l.b16 %v178
      %v281 = vunpack.c.h.b16 %v178
      %v282 = vunpack.c.l.b16 %v179
      %v283 = vunpack.c.h.b16 %v179
      %v284 = vunpack.c.l.b16 %v180
      %v285 = vunpack.c.h.b16 %v180
      %v286 = vunpack.c.l.b16 %v181
      %v287 = vunpack.c.h.b16 %v181
      %v288 = vunpack.c.l.b16 %v182
      %v289 = vunpack.c.h.b16 %v182
      %v290 = vunpack.c.l.b16 %v183
      %v291 = vunpack.c.h.b16 %v183
      %v292 = vunpack.c.l.b16 %v184
      %v293 = vunpack.c.h.b16 %v184
      %v294 = vunpack.c.l.b16 %v185
      %v295 = vunpack.c.h.b16 %v185
      %v296 = vunpack.c.l.b16 %v186
      %v297 = vunpack.c.h.b16 %v186
      %v298 = vunpack.c.l.b16 %v187
      %v299 = vunpack.c.h.b16 %v187
      %v300 = vunpack.c.l.b16 %v188
      %v301 = vunpack.c.h.b16 %v188
      %v302 = vunpack.c.l.b16 %v189
      %v303 = vunpack.c.h.b16 %v189
      %v304 = vunpack.c.l.b16 %v190
      %v305 = vunpack.c.h.b16 %v190
      %v306 = vunpack.c.l.b16 %v191
      %v307 = vunpack.c.h.b16 %v191
      %v308 = vunpack.c.l.b16 %v192
      %v309 = vunpack.c.h.b16 %v192
      %v310 = vunpack.c.l.b16 %v193
      %v311 = vunpack.c.h.b16 %v193
      %v312 = vunpack.c.l.b16 %v194
      %v313 = vunpack.c.h.b16 %v194
      %v314 = vunpack.c.l.b16 %v195
      %v315 = vunpack.c.h.b16 %v195
      %v316 = vunpack.c.l.b16 %v196
      %v317 = vunpack.c.h.b16 %v196
      %v318 = vunpack.c.l.b16 %v197
      %v319 = vunpack.c.h.b16 %v197
      %v320 = vunpack.c.l.b16 %v198
      %v321 = vunpack.c.h.b16 %v198
      %v322 = vunpack.c.l.b16 %v199
      %v323 = vunpack.c.h.b16 %v199
      %v324 = vunpack.c.l.b16 %v200
      %v325 = vunpack.c.h.b16 %v200
      %v326 = vunpack.c.l.b16 %v201
      %v327 = vunpack.c.h.b16 %v201
      %v328 = vunpack.c.l.b16 %v202
      %v329 = vunpack.c.h.b16 %v202
      %v330 = vunpack.c.l.b16 %v203
      %v331 = vunpack.c.h.b16 %v203
      %v332 = vunpack.c.l.b16 %v204
      %v333 = vunpack.c.h.b16 %v204
      %v334 = vunpack.c.l.b16 %v205
      %v335 = vunpack.c.h.b16 %v205
      %v336 = vunpack.c.l.b16 %v206
      %v337 = vunpack.c.h.b16 %v206
      %v338 = vunpack.c.l.b16 %v207
      %v339 = vunpack.c.h.b16 %v207
      %v340 = vunpack.c.l.b16 %v208
      %v341 = vunpack.c.h.b16 %v208
      %v342 = vunpack.c.l.b16 %v209
      %v343 = vunpack.c.h.b16 %v209
      %v344 = vpack.c.b16 %v282, %v280
      %v345 = vpack.c.b16 %v283, %v281
      %v346 = vpack.c.b16 %v286, %v284
      %v347 = vpack.c.b16 %v287, %v285
      %v348 = vpack.c.b16 %v290, %v288
      %v349 = vpack.c.b16 %v291, %v289
      %v350 = vpack.c.b16 %v294, %v292
      %v351 = vpack.c.b16 %v295, %v293
      %v352 = vpack.c.b16 %v298, %v296
      %v353 = vpack.c.b16 %v299, %v297
      %v354 = vpack.c.b16 %v302, %v300
      %v355 = vpack.c.b16 %v303, %v301
      %v356 = vpack.c.b16 %v306, %v304
      %v357 = vpack.c.b16 %v307, %v305
      %v358 = vpack.c.b16 %v310, %v308
      %v359 = vpack.c.b16 %v311, %v309
      %v360 = vpack.c.b16 %v314, %v312
      %v361 = vpack.c.b16 %v315, %v313
      %v362 = vpack.c.b16 %v318, %v316
      %v363 = vpack.c.b16 %v319, %v317
      %v364 = vpack.c.b16 %v322, %v320
      %v365 = vpack.c.b16 %v323, %v321
      %v366 = vpack.c.b16 %v326, %v324
      %v367 = vpack.c.b16 %v327, %v325
      %v368 = vpack.c.b16 %v330, %v328
      %v369 = vpack.c.b16 %v331, %v329
      %v370 = vpack.c.b16 %v334, %v332
      %v371 = vpack.c.b16 %v335, %v333
      %v372 = vpack.c.b16 %v338, %v336
      %v373 = vpack.c.b16 %v339, %v337
      %v374 = vpack.c.b16 %v342, %v340
      %v375 = vpack.c.b16 %v343, %v341
      %v423 = vunpack.c.l.b16 %v210
      %v424 = vunpack.c.l.b16 %v211
      %v425 = vunpack.c.l.b16 %v212
      %v426 = vunpack.c.l.b16 %v213
      %v427 = vunpack.c.l.b16 %v214
      %v428 = vunpack.c.l.b16 %v215
      %v429 = vunpack.c.l.b16 %v216
      %v430 = vunpack.c.l.b16 %v217
      %v431 = vunpack.c.l.b16 %v218
      %v432 = vunpack.c.l.b16 %v219
      %v433 = vunpack.c.l.b16 %v220
      %v434 = vunpack.c.l.b16 %v221
      %v435 = vunpack.c.l.b16 %v222
      %v436 = vunpack.c.l.b16 %v223
      %v437 = vunpack.c.l.b16 %v224
      %v438 = vunpack.c.l.b16 %v225
      %v439 = vunpack.c.l.b16 %v226
      %v440 = vunpack.c.l.b16 %v227
      %v441 = vunpack.c.l.b16 %v228
      %v442 = vunpack.c.l.b16 %v229
      %v443 = vunpack.c.l.b16 %v230
      %v444 = vunpack.c.l.b16 %v231
      %v445 = vunpack.c.l.b16 %v232
      %v446 = vunpack.c.l.b16 %v233
      %v447 = vunpack.c.l.b16 %v234
      %v448 = vunpack.c.l.b16 %v235
      %v449 = vunpack.c.l.b16 %v236
      %v450 = vunpack.c.l.b16 %v237
      %v451 = vunpack.c.l.b16 %v238
      %v452 = vunpack.c.l.b16 %v239
      %v453 = vunpack.c.l.b16 %v240
      %v454 = vpack.c.b16 %v424, %v423
      %v455 = vpack.c.b16 %v426, %v425
      %v456 = vpack.c.b16 %v428, %v427
      %v457 = vpack.c.b16 %v430, %v429
      %v458 = vpack.c.b16 %v432, %v431
      %v459 = vpack.c.b16 %v434, %v433
      %v460 = vpack.c.b16 %v436, %v435
      %v461 = vpack.c.b16 %v438, %v437
      %v462 = vpack.c.b16 %v440, %v439
      %v463 = vpack.c.b16 %v442, %v441
      %v464 = vpack.c.b16 %v444, %v443
      %v465 = vpack.c.b16 %v446, %v445
      %v466 = vpack.c.b16 %v448, %v447
      %v467 = vpack.c.b16 %v450, %v449
      %v468 = vpack.c.b16 %v452, %v451
      %v469 = vpack.c.b16 %v453, %v453
      %vm485 = vcmask 941056
      %v487 = vsel %vm485, %v345, 0
      %v490 = vsel %vm485, %v347, 0
      %v493 = vsel %vm485, %v349, 0
      %v496 = vsel %vm485, %v351, 0
      %v499 = vsel %vm485, %v353, 0
      %v502 = vsel %vm485, %v355, 0
      %v505 = vsel %vm485, %v357, 0
      %v508 = vsel %vm485, %v359, 0
      %v511 = vsel %vm485, %v361, 0
      %v514 = vsel %vm485, %v363, 0
      %v517 = vsel %vm485, %v365, 0
      %v520 = vsel %vm485, %v367, 0
      %v523 = vsel %vm485, %v369, 0
      %v526 = vsel %vm485, %v371, 0
      %v529 = vsel %vm485, %v373, 0
      %v532 = vsel %vm485, %v375, 0
      %vm534 = vcmask 1040384
      %vm535 = vcmask 1041408
      %v536 = vsel %vm534, 4294967295, 65535
      %v537 = vsel %vm535, %v536, 0
      %v539 = vand.u32 %v469, %v537
      %541 = vmatprep.subr.bf16.mxu0 0
      %542 = vmatpush1.bf16.msra.mxu0 %v461
      %543 = vmatprep.subr.bf16.mxu0 0
      %544 = vmatpush1.bf16.msra.mxu0 %v460
      %545 = vmatprep.subr.bf16.mxu0 0
      %546 = vmatpush1.bf16.msra.mxu0 %v459
      %547 = vmatprep.subr.bf16.mxu0 0
      %548 = vmatpush1.bf16.msra.mxu0 %v458
      %549 = vmatprep.subr.bf16.mxu0 0
      %550 = vmatpush1.bf16.msra.mxu0 %v457
      %551 = vmatprep.subr.bf16.mxu0 0
      %552 = vmatpush1.bf16.msra.mxu0 %v456
      %553 = vmatprep.subr.bf16.mxu0 0
      %554 = vmatpush1.bf16.msra.mxu0 %v455
      %555 = vmatprep.subr.bf16.mxu0 0
      %556 = vmatpush1.bf16.msra.mxu0 %v454
      %557 = vmatprep.subr.bf16.mxu0 0
      %558 = vmatpush2.bf16.msra.mxu0 %v539
      %559 = vmatprep.subr.bf16.mxu0 0
      %560 = vmatpush2.bf16.msra.mxu0 %v468
      %561 = vmatprep.subr.bf16.mxu0 0
      %562 = vmatpush2.bf16.msra.mxu0 %v467
      %563 = vmatprep.subr.bf16.mxu0 0
      %564 = vmatpush2.bf16.msra.mxu0 %v466
      %565 = vmatprep.subr.bf16.mxu0 0
      %566 = vmatpush2.bf16.msra.mxu0 %v465
      %567 = vmatprep.subr.bf16.mxu0 0
      %568 = vmatpush2.bf16.msra.mxu0 %v464
      %569 = vmatprep.subr.bf16.mxu0 0
      %570 = vmatpush2.bf16.msra.mxu0 %v463
      %571 = vmatprep.subr.bf16.mxu0 0
      %572 = vmatpush2.bf16.msra.mxu0 %v462
      %573 = vmatprep.mubr.bf16.mxu0 %v487
      %574 = vmatmul.mubr.bf16.gmra.mxu0 %v344
      %v575 = vpop.f32.mrf.mxu0
      %v576 = vadd.f32 %v246, %v575
      %v577 = vpop.f32.mrf.mxu0
      %v578 = vpop.f32.mrf.mxu0
      %v579 = vadd.f32 %v246, %v578
      %v580 = vpop.f32.mrf.mxu0
      %581 = vmatprep.mubr.bf16.mxu0 %v490
      %582 = vmatmul.mubr.bf16.gmra.mxu0 %v346
      %v583 = vpop.f32.mrf.mxu0
      %v584 = vadd.f32 %v246, %v583
      %v585 = vpop.f32.mrf.mxu0
      %v586 = vpop.f32.mrf.mxu0
      %v587 = vadd.f32 %v246, %v586
      %v588 = vpop.f32.mrf.mxu0
      %589 = vmatprep.mubr.bf16.mxu0 %v493
      %590 = vmatmul.mubr.bf16.gmra.mxu0 %v348
      %v591 = vpop.f32.mrf.mxu0
      %v592 = vadd.f32 %v246, %v591
      %v593 = vpop.f32.mrf.mxu0
      %v594 = vpop.f32.mrf.mxu0
      %v595 = vadd.f32 %v246, %v594
      %v596 = vpop.f32.mrf.mxu0
      %597 = vmatprep.mubr.bf16.mxu0 %v496
      %598 = vmatmul.mubr.bf16.gmra.mxu0 %v350
      %v599 = vpop.f32.mrf.mxu0
      %v600 = vadd.f32 %v246, %v599
      %v601 = vpop.f32.mrf.mxu0
      %v602 = vpop.f32.mrf.mxu0
      %v603 = vadd.f32 %v246, %v602
      %v604 = vpop.f32.mrf.mxu0
      %605 = vmatprep.mubr.bf16.mxu0 %v499
      %606 = vmatmul.mubr.bf16.gmra.mxu0 %v352
      %v607 = vpop.f32.mrf.mxu0
      %v608 = vadd.f32 %v246, %v607
      %v609 = vpop.f32.mrf.mxu0
      %v610 = vpop.f32.mrf.mxu0
      %v611 = vadd.f32 %v246, %v610
      %v612 = vpop.f32.mrf.mxu0
      %613 = vmatprep.mubr.bf16.mxu0 %v502
      %614 = vmatmul.mubr.bf16.gmra.mxu0 %v354
      %v615 = vpop.f32.mrf.mxu0
      %v616 = vadd.f32 %v246, %v615
      %v617 = vpop.f32.mrf.mxu0
      %v618 = vpop.f32.mrf.mxu0
      %v619 = vadd.f32 %v246, %v618
      %v620 = vpop.f32.mrf.mxu0
      %621 = vmatprep.mubr.bf16.mxu0 %v505
      %622 = vmatmul.mubr.bf16.gmra.mxu0 %v356
      %v623 = vpop.f32.mrf.mxu0
      %v624 = vadd.f32 %v246, %v623
      %v625 = vpop.f32.mrf.mxu0
      %v626 = vpop.f32.mrf.mxu0
      %v627 = vadd.f32 %v246, %v626
      %v628 = vpop.f32.mrf.mxu0
      %629 = vmatprep.mubr.bf16.mxu0 %v508
      %630 = vmatmul.mubr.bf16.gmra.mxu0 %v358
      %v631 = vpop.f32.mrf.mxu0
      %v632 = vadd.f32 %v246, %v631
      %v633 = vpop.f32.mrf.mxu0
      %v634 = vpop.f32.mrf.mxu0
      %v635 = vadd.f32 %v246, %v634
      %v636 = vpop.f32.mrf.mxu0
      %637 = vmatprep.mubr.bf16.mxu0 %v511
      %638 = vmatmul.mubr.bf16.gmra.mxu0 %v360
      %v639 = vpop.f32.mrf.mxu0
      %v640 = vadd.f32 %v246, %v639
      %v641 = vpop.f32.mrf.mxu0
      %v642 = vpop.f32.mrf.mxu0
      %v643 = vadd.f32 %v246, %v642
      %v644 = vpop.f32.mrf.mxu0
      %645 = vmatprep.mubr.bf16.mxu0 %v514
      %646 = vmatmul.mubr.bf16.gmra.mxu0 %v362
      %v647 = vpop.f32.mrf.mxu0
      %v648 = vadd.f32 %v246, %v647
      %v649 = vpop.f32.mrf.mxu0
      %v650 = vpop.f32.mrf.mxu0
      %v651 = vadd.f32 %v246, %v650
      %v652 = vpop.f32.mrf.mxu0
      %653 = vmatprep.mubr.bf16.mxu0 %v517
      %654 = vmatmul.mubr.bf16.gmra.mxu0 %v364
      %v655 = vpop.f32.mrf.mxu0
      %v656 = vadd.f32 %v246, %v655
      %v657 = vpop.f32.mrf.mxu0
      %v658 = vpop.f32.mrf.mxu0
      %v659 = vadd.f32 %v246, %v658
      %v660 = vpop.f32.mrf.mxu0
      %661 = vmatprep.mubr.bf16.mxu0 %v520
      %662 = vmatmul.mubr.bf16.gmra.mxu0 %v366
      %v663 = vpop.f32.mrf.mxu0
      %v664 = vadd.f32 %v246, %v663
      %v665 = vpop.f32.mrf.mxu0
      %v666 = vpop.f32.mrf.mxu0
      %v667 = vadd.f32 %v246, %v666
      %v668 = vpop.f32.mrf.mxu0
      %669 = vmatprep.mubr.bf16.mxu0 %v523
      %670 = vmatmul.mubr.bf16.gmra.mxu0 %v368
      %v671 = vpop.f32.mrf.mxu0
      %v672 = vadd.f32 %v246, %v671
      %v673 = vpop.f32.mrf.mxu0
      %v674 = vpop.f32.mrf.mxu0
      %v675 = vadd.f32 %v246, %v674
      %v676 = vpop.f32.mrf.mxu0
      %677 = vmatprep.mubr.bf16.mxu0 %v526
      %678 = vmatmul.mubr.bf16.gmra.mxu0 %v370
      %v679 = vpop.f32.mrf.mxu0
      %v680 = vadd.f32 %v246, %v679
      %v681 = vpop.f32.mrf.mxu0
      %v682 = vpop.f32.mrf.mxu0
      %v683 = vadd.f32 %v246, %v682
      %v684 = vpop.f32.mrf.mxu0
      %685 = vmatprep.mubr.bf16.mxu0 %v529
      %686 = vmatmul.mubr.bf16.gmra.mxu0 %v372
      %v687 = vpop.f32.mrf.mxu0
      %v688 = vadd.f32 %v246, %v687
      %v689 = vpop.f32.mrf.mxu0
      %v690 = vpop.f32.mrf.mxu0
      %v691 = vadd.f32 %v246, %v690
      %v692 = vpop.f32.mrf.mxu0
      %693 = vmatprep.mubr.bf16.mxu0 %v532
      %694 = vmatmul.mubr.bf16.gmra.mxu0 %v374
      %v695 = vpop.f32.mrf.mxu0
      %v696 = vadd.f32 %v246, %v695
      %v697 = vpop.f32.mrf.mxu0
      %v698 = vpop.f32.mrf.mxu0
      %v699 = vadd.f32 %v246, %v698
      %v700 = vpop.f32.mrf.mxu0
      %701 = vdwg.mxu0
      %vm702 = vcmask 261120
      %703 = vst.msk [vmem:[%s175] sm:$0xff] %vm702, %v576
      %704 = vst.msk [vmem:[%s175 + $0x8] sm:$0xff] %vm702, %v579
      %705 = vst.msk [vmem:[%s175 + $0x10] sm:$0xff] %vm702, %v584
      %706 = vst.msk [vmem:[%s175 + $0x18] sm:$0xff] %vm702, %v587
      %707 = vst.msk [vmem:[%s175 + $0x20] sm:$0xff] %vm702, %v592
      %708 = vst.msk [vmem:[%s175 + $0x28] sm:$0xff] %vm702, %v595
      %709 = vst.msk [vmem:[%s175 + $0x30] sm:$0xff] %vm702, %v600
      %710 = vst.msk [vmem:[%s175 + $0x38] sm:$0xff] %vm702, %v603
      %711 = vst.msk [vmem:[%s175 + $0x40] sm:$0xff] %vm702, %v608
      %712 = vst.msk [vmem:[%s175 + $0x48] sm:$0xff] %vm702, %v611
      %713 = vst.msk [vmem:[%s175 + $0x50] sm:$0xff] %vm702, %v616
      %714 = vst.msk [vmem:[%s175 + $0x58] sm:$0xff] %vm702, %v619
      %715 = vst.msk [vmem:[%s175 + $0x60] sm:$0xff] %vm702, %v624
      %716 = vst.msk [vmem:[%s175 + $0x68] sm:$0xff] %vm702, %v627
      %717 = vst.msk [vmem:[%s175 + $0x70] sm:$0xff] %vm702, %v632
      %718 = vst.msk [vmem:[%s175 + $0x78] sm:$0xff] %vm702, %v635
      %719 = vst.msk [vmem:[%s175 + $0x80] sm:$0xff] %vm702, %v640
      %720 = vst.msk [vmem:[%s175 + $0x88] sm:$0xff] %vm702, %v643
      %721 = vst.msk [vmem:[%s175 + $0x90] sm:$0xff] %vm702, %v648
      %722 = vst.msk [vmem:[%s175 + $0x98] sm:$0xff] %vm702, %v651
      %723 = vst.msk [vmem:[%s175 + $0xa0] sm:$0xff] %vm702, %v656
      %724 = vst.msk [vmem:[%s175 + $0xa8] sm:$0xff] %vm702, %v659
      %725 = vst.msk [vmem:[%s175 + $0xb0] sm:$0xff] %vm702, %v664
      %726 = vst.msk [vmem:[%s175 + $0xb8] sm:$0xff] %vm702, %v667
      %727 = vst.msk [vmem:[%s175 + $0xc0] sm:$0xff] %vm702, %v672
      %728 = vst.msk [vmem:[%s175 + $0xc8] sm:$0xff] %vm702, %v675
      %729 = vst.msk [vmem:[%s175 + $0xd0] sm:$0xff] %vm702, %v680
      %730 = vst.msk [vmem:[%s175 + $0xd8] sm:$0xff] %vm702, %v683
      %731 = vst.msk [vmem:[%s175 + $0xe0] sm:$0xff] %vm702, %v688
      %732 = vst.msk [vmem:[%s175 + $0xe8] sm:$0xff] %vm702, %v691
      %733 = vst.msk [vmem:[%s175 + $0xf0] sm:$0xff] %vm702, %v696
      %734 = vst.msk [vmem:[%s175 + $0xf8] sm:$0xff] %vm702, %v699
      %s735 = smul.u32 32, %s14
      %p736 = scmp.lt.s32.totalorder %s735, 63
      %s737 = scalar_select %p736, %s735, 63
      %s738 = smul.addr %s737, 8
      %s739 = scalar_lea.vmem %s3, %s738
      // Predicated region
      $region33: #{forward.31} parent=31 // pred_check
        %p740 = pneg %p100
      $region34: #{forward.31} parent=31 // pred_check_branch
        %742 = sbr.rel (%p740) target = $region36
      $region35: #{forward.31} parent=31 // pred_region
        %s743 = smul.u32 32, %s14
      $region36: #{forward.31} parent=31 // pred_fallthru
        _
    $region32: #{forward.31} parent=5 // pred_fallthru
      _
    %p744 = scmp.le.s32.totalorder 2, %s9
    // Predicated region
    $region37: #{forward.31} parent=5 // pred_check
      %p745 = pneg %p744
    $region38: #{forward.31} parent=5 // pred_check_branch
      %747 = sbr.rel (%p745) target = $region40
    $region39: #{forward.31} parent=5 // pred_region
      %s748 = ssub.s32 %s9, 2
      // Predicated region
      $region41: #{forward.31} parent=39 // pred_check
        %p749 = pneg %p106
      $region42: #{forward.31} parent=39 // pred_check_branch
        %751 = sbr.rel (%p749) target = $region44
      $region43: #{forward.31} parent=39 // pred_region
        %s752 = smul.u32 32, %s15
        %p753 = scmp.lt.s32.totalorder %s752, 63
        %s754 = scalar_select %p753, %s752, 63
        %s755 = smul.addr %s754, 8
        %s756 = scalar_lea.vmem %s3, %s755
      $region44: #{forward.31} parent=39 // pred_fallthru
        _
    $region40: #{forward.31} parent=5 // pred_fallthru
      _
  $region6: #{forward.31} parent=0 // loop_footer
    %s13 = sadd.s32 1, %s9
  $region7: #{forward.31} parent=0 // loop_footer_branch
    %8 = sbr.rel target = $region3
  $region8: #{forward.31} parent=0 // loop_exit
    _

// kernel: forward.32
$region0: #{forward.32}
  #allocation0 [shape = 'u32[]', space=smem, size = 0x4, offset = 0x4, fixed_abs, tag = 'smem constant byte address 0x4 - core index']
  #allocation1 [shape = 'u32[144,128]{1,0:T(1,128)}', space=vmem, size = 0x12000, scoped, tag = 'internal scratch']
  %s0 = inlined_call_operand.vmem [shape: f32[32,512], index: 0, kind: input, shape index: {}]
  %s1 = inlined_call_operand.vmem [shape: f32[1,512], index: 1, kind: input, shape index: {}]
  %s2 = inlined_call_operand.vmem [shape: f32[1,512], index: 2, kind: input, shape index: {}]
  %s3 = inlined_call_operand.vmem [shape: f32[32,512], index: 3, kind: output, shape index: {}]
  %s4 = sld [smem:[#allocation0]]
  $region22: #{forward.32} parent=0
    _
  %s6 = ssub.s32 1, %s4
  %s7 = scalar_select 0, %s6, %s4
  // Predicated region
  $region2: #{forward.32} parent=0 // pred_check
    _
  $region3: #{forward.32} parent=0 // pred_check_branch
    %9 = sbr.rel (0) target = $region5
  $region4: #{forward.32} parent=0 // pred_region
    _
  $region5: #{forward.32} parent=0 // pred_fallthru
    _
  // Predicated region
  $region6: #{forward.32} parent=0 // pred_check
    _
  $region7: #{forward.32} parent=0 // pred_check_branch
    %11 = sbr.rel (0) target = $region9
  $region8: #{forward.32} parent=0 // pred_region
    _
  $region9: #{forward.32} parent=0 // pred_fallthru
    _
  // Predicated region
  $region10: #{forward.32} parent=0 // pred_check
    _
  $region11: #{forward.32} parent=0 // pred_check_branch
    %13 = sbr.rel (0) target = $region13
  $region12: #{forward.32} parent=0 // pred_region
    _
  $region13: #{forward.32} parent=0 // pred_fallthru
    _
  %v14 = vld [vmem:[%s0] sm:$0xff]
  %v15 = vld [vmem:[%s0 + $0x8] sm:$0xff]
  %v16 = vld [vmem:[%s0 + $0x10] sm:$0xff]
  %v17 = vld [vmem:[%s0 + $0x18] sm:$0xff]
  %v18 = vld [vmem:[%s0 + $0x20] sm:$0xff]
  %v19 = vld [vmem:[%s0 + $0x28] sm:$0xff]
  %v20 = vld [vmem:[%s0 + $0x30] sm:$0xff]
  %v21 = vld [vmem:[%s0 + $0x38] sm:$0xff]
  %v22 = vld [vmem:[%s0 + $0x40] sm:$0xff]
  %v23 = vld [vmem:[%s0 + $0x48] sm:$0xff]
  %v24 = vld [vmem:[%s0 + $0x50] sm:$0xff]
  %v25 = vld [vmem:[%s0 + $0x58] sm:$0xff]
  %v26 = vld [vmem:[%s0 + $0x60] sm:$0xff]
  %v27 = vld [vmem:[%s0 + $0x68] sm:$0xff]
  %v28 = vld [vmem:[%s0 + $0x70] sm:$0xff]
  %v29 = vld [vmem:[%s0 + $0x78] sm:$0xff]
  %v30 = vld [vmem:[%s1] sm:$0xf]
  %v32 = vlaneseq
  %v33 = vshrl.u32 %v32, 7
  %v34 = vsub.s32 0, %v33
  %v35 = vrot.slane %v30, %v34
  %v36 = vlaneseq
  %v37 = vshrl.u32 %v36, 7
  %v38 = vsub.s32 1, %v37
  %v39 = vrot.slane %v30, %v38
  %v40 = vlaneseq
  %v41 = vshrl.u32 %v40, 7
  %v42 = vsub.s32 2, %v41
  %v43 = vrot.slane %v30, %v42
  %v44 = vlaneseq
  %v45 = vshrl.u32 %v44, 7
  %v46 = vsub.s32 3, %v45
  %v47 = vrot.slane %v30, %v46
  %v52 = vmul.f32 %v14, %v35
  %v53 = vmul.f32 %v15, %v39
  %v54 = vmul.f32 %v16, %v43
  %v55 = vmul.f32 %v17, %v47
  %v56 = vmul.f32 %v18, %v35
  %v57 = vmul.f32 %v19, %v39
  %v58 = vmul.f32 %v20, %v43
  %v59 = vmul.f32 %v21, %v47
  %v60 = vmul.f32 %v22, %v35
  %v61 = vmul.f32 %v23, %v39
  %v62 = vmul.f32 %v24, %v43
  %v63 = vmul.f32 %v25, %v47
  %v64 = vmul.f32 %v26, %v35
  %v65 = vmul.f32 %v27, %v39
  %v66 = vmul.f32 %v28, %v43
  %v67 = vmul.f32 %v29, %v47
  %v68 = vld [vmem:[%s2] sm:$0xf]
  %v70 = vlaneseq
  %v71 = vshrl.u32 %v70, 7
  %v72 = vsub.s32 0, %v71
  %v73 = vrot.slane %v68, %v72
  %v74 = vlaneseq
  %v75 = vshrl.u32 %v74, 7
  %v76 = vsub.s32 1, %v75
  %v77 = vrot.slane %v68, %v76
  %v78 = vlaneseq
  %v79 = vshrl.u32 %v78, 7
  %v80 = vsub.s32 2, %v79
  %v81 = vrot.slane %v68, %v80
  %v82 = vlaneseq
  %v83 = vshrl.u32 %v82, 7
  %v84 = vsub.s32 3, %v83
  %v85 = vrot.slane %v68, %v84
  %v90 = vadd.f32 %v52, %v73
  %v91 = vadd.f32 %v53, %v77
  %v92 = vadd.f32 %v54, %v81
  %v93 = vadd.f32 %v55, %v85
  %v94 = vadd.f32 %v56, %v73
  %v95 = vadd.f32 %v57, %v77
  %v96 = vadd.f32 %v58, %v81
  %v97 = vadd.f32 %v59, %v85
  %v98 = vadd.f32 %v60, %v73
  %v99 = vadd.f32 %v61, %v77
  %v100 = vadd.f32 %v62, %v81
  %v101 = vadd.f32 %v63, %v85
  %v102 = vadd.f32 %v64, %v73
  %v103 = vadd.f32 %v65, %v77
  %v104 = vadd.f32 %v66, %v81
  %v105 = vadd.f32 %v67, %v85
  %v106 = vmax.f32 %v90, 0.0
  %v107 = vmax.f32 %v91, 0.0
  %v108 = vmax.f32 %v92, 0.0
  %v109 = vmax.f32 %v93, 0.0
  %v110 = vmax.f32 %v94, 0.0
  %v111 = vmax.f32 %v95, 0.0
  %v112 = vmax.f32 %v96, 0.0
  %v113 = vmax.f32 %v97, 0.0
  %v114 = vmax.f32 %v98, 0.0
  %v115 = vmax.f32 %v99, 0.0
  %v116 = vmax.f32 %v100, 0.0
  %v117 = vmax.f32 %v101, 0.0
  %v118 = vmax.f32 %v102, 0.0
  %v119 = vmax.f32 %v103, 0.0
  %v120 = vmax.f32 %v104, 0.0
  %v121 = vmax.f32 %v105, 0.0
  %122 = vst [vmem:[%s3] sm:$0xff] %v106
  %123 = vst [vmem:[%s3 + $0x8] sm:$0xff] %v107
  %124 = vst [vmem:[%s3 + $0x10] sm:$0xff] %v108
  %125 = vst [vmem:[%s3 + $0x18] sm:$0xff] %v109
  %126 = vst [vmem:[%s3 + $0x20] sm:$0xff] %v110
  %127 = vst [vmem:[%s3 + $0x28] sm:$0xff] %v111
  %128 = vst [vmem:[%s3 + $0x30] sm:$0xff] %v112
  %129 = vst [vmem:[%s3 + $0x38] sm:$0xff] %v113
  %130 = vst [vmem:[%s3 + $0x40] sm:$0xff] %v114
  %131 = vst [vmem:[%s3 + $0x48] sm:$0xff] %v115
  %132 = vst [vmem:[%s3 + $0x50] sm:$0xff] %v116
  %133 = vst [vmem:[%s3 + $0x58] sm:$0xff] %v117
  %134 = vst [vmem:[%s3 + $0x60] sm:$0xff] %v118
  %135 = vst [vmem:[%s3 + $0x68] sm:$0xff] %v119
  %136 = vst [vmem:[%s3 + $0x70] sm:$0xff] %v120
  %137 = vst [vmem:[%s3 + $0x78] sm:$0xff] %v121
  // Predicated region
  $region14: #{forward.32} parent=0 // pred_check
    _
  $region15: #{forward.32} parent=0 // pred_check_branch
    %139 = sbr.rel (0) target = $region17
  $region16: #{forward.32} parent=0 // pred_region
    _
  $region17: #{forward.32} parent=0 // pred_fallthru
    _
  // Predicated region
  $region18: #{forward.32} parent=0 // pred_check
    _
  $region19: #{forward.32} parent=0 // pred_check_branch
    %141 = sbr.rel (0) target = $region21
  $region20: #{forward.32} parent=0 // pred_region
    _
  $region21: #{forward.32} parent=0 // pred_fallthru
    _

// kernel: forward.33
$region0: #{forward.33}
  #allocation0 [shape = 'u32[]', space=smem, size = 0x4, offset = 0x4, fixed_abs, tag = 'smem constant byte address 0x4 - core index']
  #allocation1 [shape = 'u32[144,128]{1,0:T(1,128)}', space=vmem, size = 0x12000, scoped, tag = 'internal scratch']
  %s0 = inlined_call_operand.vmem [shape: bf16[128,288], index: 0, kind: input, shape index: {}]
  %s1 = inlined_call_operand.vmem [shape: bf16[288,64], index: 1, kind: input, shape index: {}]
  %s2 = inlined_call_operand.vmem [shape: f32[1,64], index: 2, kind: input, shape index: {}]
  %s3 = inlined_call_operand.vmem [shape: f32[128,64], index: 3, kind: output, shape index: {}]
  %s4 = sld [smem:[#allocation0]]
  $region22: #{forward.33} parent=0
    _
  %s6 = ssub.s32 1, %s4
  %s7 = scalar_select 0, %s6, %s4
  // Predicated region
  $region2: #{forward.33} parent=0 // pred_check
    _
  $region3: #{forward.33} parent=0 // pred_check_branch
    %9 = sbr.rel (0) target = $region5
  $region4: #{forward.33} parent=0 // pred_region
    _
  $region5: #{forward.33} parent=0 // pred_fallthru
    _
  // Predicated region
  $region6: #{forward.33} parent=0 // pred_check
    _
  $region7: #{forward.33} parent=0 // pred_check_branch
    %11 = sbr.rel (0) target = $region9
  $region8: #{forward.33} parent=0 // pred_region
    _
  $region9: #{forward.33} parent=0 // pred_fallthru
    _
  // Predicated region
  $region10: #{forward.33} parent=0 // pred_check
    _
  $region11: #{forward.33} parent=0 // pred_check_branch
    %13 = sbr.rel (0) target = $region13
  $region12: #{forward.33} parent=0 // pred_region
    _
  $region13: #{forward.33} parent=0 // pred_fallthru
    _
  %v15 = vld [vmem:[%s0] sm:$0xff]
  %v16 = vld [vmem:[%s0 + $0x8] sm:$0xf]
  %v17 = vld [vmem:[%s0 + $0xc] sm:$0xff]
  %v18 = vld [vmem:[%s0 + $0x14] sm:$0xf]
  %v19 = vld [vmem:[%s0 + $0x18] sm:$0xff]
  %v20 = vld [vmem:[%s0 + $0x20] sm:$0xf]
  %v21 = vld [vmem:[%s0 + $0x24] sm:$0xff]
  %v22 = vld [vmem:[%s0 + $0x2c] sm:$0xf]
  %v23 = vld [vmem:[%s0 + $0x30] sm:$0xff]
  %v24 = vld [vmem:[%s0 + $0x38] sm:$0xf]
  %v25 = vld [vmem:[%s0 + $0x3c] sm:$0xff]
  %v26 = vld [vmem:[%s0 + $0x44] sm:$0xf]
  %v27 = vld [vmem:[%s0 + $0x48] sm:$0xff]
  %v28 = vld [vmem:[%s0 + $0x50] sm:$0xf]
  %v29 = vld [vmem:[%s0 + $0x54] sm:$0xff]
  %v30 = vld [vmem:[%s0 + $0x5c] sm:$0xf]
  %v31 = vld [vmem:[%s0 + $0x60] sm:$0xff]
  %v32 = vld [vmem:[%s0 + $0x68] sm:$0xf]
  %v33 = vld [vmem:[%s0 + $0x6c] sm:$0xff]
  %v34 = vld [vmem:[%s0 + $0x74] sm:$0xf]
  %v35 = vld [vmem:[%s0 + $0x78] sm:$0xff]
  %v36 = vld [vmem:[%s0 + $0x80] sm:$0xf]
  %v37 = vld [vmem:[%s0 + $0x84] sm:$0xff]
  %v38 = vld [vmem:[%s0 + $0x8c] sm:$0xf]
  %v39 = vld [vmem:[%s0 + $0x90] sm:$0xff]
  %v40 = vld [vmem:[%s0 + $0x98] sm:$0xf]
  %v41 = vld [vmem:[%s0 + $0x9c] sm:$0xff]
  %v42 = vld [vmem:[%s0 + $0xa4] sm:$0xf]
  %v43 = vld [vmem:[%s0 + $0xa8] sm:$0xff]
  %v44 = vld [vmem:[%s0 + $0xb0] sm:$0xf]
  %v45 = vld [vmem:[%s0 + $0xb4] sm:$0xff]
  %v46 = vld [vmem:[%s0 + $0xbc] sm:$0xf]
  %v47 = vld [vmem:[%s1] sm:$0xf]
  %v48 = vld [vmem:[%s1 + $0x4] sm:$0xf]
  %v49 = vld [vmem:[%s1 + $0x8] sm:$0xf]
  %v50 = vld [vmem:[%s1 + $0xc] sm:$0xf]
  %v51 = vld [vmem:[%s1 + $0x10] sm:$0xf]
  %v52 = vld [vmem:[%s1 + $0x14] sm:$0xf]
  %v53 = vld [vmem:[%s1 + $0x18] sm:$0xf]
  %v54 = vld [vmem:[%s1 + $0x1c] sm:$0xf]
  %v55 = vld [vmem:[%s1 + $0x20] sm:$0xf]
  %v56 = vld [vmem:[%s1 + $0x24] sm:$0xf]
  %v57 = vld [vmem:[%s1 + $0x28] sm:$0xf]
  %v58 = vld [vmem:[%s1 + $0x2c] sm:$0xf]
  %v59 = vld [vmem:[%s1 + $0x30] sm:$0xf]
  %v60 = vld [vmem:[%s1 + $0x34] sm:$0xf]
  %v61 = vld [vmem:[%s1 + $0x38] sm:$0xf]
  %v62 = vld [vmem:[%s1 + $0x3c] sm:$0xf]
  %v63 = vld [vmem:[%s1 + $0x40] sm:$0xf]
  %v64 = vld [vmem:[%s1 + $0x44] sm:$0xf]
  %v65 = vld [vmem:[%s1 + $0x48] sm:$0xf]
  %v66 = vld [vmem:[%s1 + $0x4c] sm:$0xf]
  %v67 = vld [vmem:[%s1 + $0x50] sm:$0xf]
  %v68 = vld [vmem:[%s1 + $0x54] sm:$0xf]
  %v69 = vld [vmem:[%s1 + $0x58] sm:$0xf]
  %v70 = vld [vmem:[%s1 + $0x5c] sm:$0xf]
  %v71 = vld [vmem:[%s1 + $0x60] sm:$0xf]
  %v72 = vld [vmem:[%s1 + $0x64] sm:$0xf]
  %v73 = vld [vmem:[%s1 + $0x68] sm:$0xf]
  %v74 = vld [vmem:[%s1 + $0x6c] sm:$0xf]
  %v75 = vld [vmem:[%s1 + $0x70] sm:$0xf]
  %v76 = vld [vmem:[%s1 + $0x74] sm:$0xf]
  %v77 = vld [vmem:[%s1 + $0x78] sm:$0xf]
  %v78 = vld [vmem:[%s1 + $0x7c] sm:$0xf]
  %v79 = vld [vmem:[%s1 + $0x80] sm:$0xf]
  %v80 = vld [vmem:[%s1 + $0x84] sm:$0xf]
  %v81 = vld [vmem:[%s1 + $0x88] sm:$0xf]
  %v82 = vld [vmem:[%s1 + $0x8c] sm:$0xf]
  %v83 = vld [vmem:[%s2] sm:$0x1]
  %v85 = vlaneseq
  %v86 = vshrl.u32 %v85, 7
  %v87 = vsub.s32 0, %v86
  %v88 = vrot.slane %v83, %v87
  %v122 = vunpack.c.l.b16 %v15
  %v123 = vunpack.c.h.b16 %v15
  %v124 = vunpack.c.l.b16 %v16
  %v125 = vunpack.c.l.b16 %v17
  %v126 = vunpack.c.h.b16 %v17
  %v127 = vunpack.c.l.b16 %v18
  %v128 = vunpack.c.l.b16 %v19
  %v129 = vunpack.c.h.b16 %v19
  %v130 = vunpack.c.l.b16 %v20
  %v131 = vunpack.c.l.b16 %v21
  %v132 = vunpack.c.h.b16 %v21
  %v133 = vunpack.c.l.b16 %v22
  %v134 = vunpack.c.l.b16 %v23
  %v135 = vunpack.c.h.b16 %v23
  %v136 = vunpack.c.l.b16 %v24
  %v137 = vunpack.c.l.b16 %v25
  %v138 = vunpack.c.h.b16 %v25
  %v139 = vunpack.c.l.b16 %v26
  %v140 = vunpack.c.l.b16 %v27
  %v141 = vunpack.c.h.b16 %v27
  %v142 = vunpack.c.l.b16 %v28
  %v143 = vunpack.c.l.b16 %v29
  %v144 = vunpack.c.h.b16 %v29
  %v145 = vunpack.c.l.b16 %v30
  %v146 = vunpack.c.l.b16 %v31
  %v147 = vunpack.c.h.b16 %v31
  %v148 = vunpack.c.l.b16 %v32
  %v149 = vunpack.c.l.b16 %v33
  %v150 = vunpack.c.h.b16 %v33
  %v151 = vunpack.c.l.b16 %v34
  %v152 = vunpack.c.l.b16 %v35
  %v153 = vunpack.c.h.b16 %v35
  %v154 = vunpack.c.l.b16 %v36
  %v155 = vunpack.c.l.b16 %v37
  %v156 = vunpack.c.h.b16 %v37
  %v157 = vunpack.c.l.b16 %v38
  %v158 = vunpack.c.l.b16 %v39
  %v159 = vunpack.c.h.b16 %v39
  %v160 = vunpack.c.l.b16 %v40
  %v161 = vunpack.c.l.b16 %v41
  %v162 = vunpack.c.h.b16 %v41
  %v163 = vunpack.c.l.b16 %v42
  %v164 = vunpack.c.l.b16 %v43
  %v165 = vunpack.c.h.b16 %v43
  %v166 = vunpack.c.l.b16 %v44
  %v167 = vunpack.c.l.b16 %v45
  %v168 = vunpack.c.h.b16 %v45
  %v169 = vunpack.c.l.b16 %v46
  %v170 = vpack.c.b16 %v125, %v122
  %v171 = vpack.c.b16 %v126, %v123
  %v172 = vpack.c.b16 %v127, %v124
  %v173 = vpack.c.b16 %v131, %v128
  %v174 = vpack.c.b16 %v132, %v129
  %v175 = vpack.c.b16 %v133, %v130
  %v176 = vpack.c.b16 %v137, %v134
  %v177 = vpack.c.b16 %v138, %v135
  %v178 = vpack.c.b16 %v139, %v136
  %v179 = vpack.c.b16 %v143, %v140
  %v180 = vpack.c.b16 %v144, %v141
  %v181 = vpack.c.b16 %v145, %v142
  %v182 = vpack.c.b16 %v149, %v146
  %v183 = vpack.c.b16 %v150, %v147
  %v184 = vpack.c.b16 %v151, %v148
  %v185 = vpack.c.b16 %v155, %v152
  %v186 = vpack.c.b16 %v156, %v153
  %v187 = vpack.c.b16 %v157, %v154
  %v188 = vpack.c.b16 %v161, %v158
  %v189 = vpack.c.b16 %v162, %v159
  %v190 = vpack.c.b16 %v163, %v160
  %v191 = vpack.c.b16 %v167, %v164
  %v192 = vpack.c.b16 %v168, %v165
  %v193 = vpack.c.b16 %v169, %v166
  %v246 = vunpack.c.l.b16 %v47
  %v247 = vunpack.c.l.b16 %v48
  %v248 = vunpack.c.l.b16 %v49
  %v249 = vunpack.c.l.b16 %v50
  %v250 = vunpack.c.l.b16 %v51
  %v251 = vunpack.c.l.b16 %v52
  %v252 = vunpack.c.l.b16 %v53
  %v253 = vunpack.c.l.b16 %v54
  %v254 = vunpack.c.l.b16 %v55
  %v255 = vunpack.c.l.b16 %v56
  %v256 = vunpack.c.l.b16 %v57
  %v257 = vunpack.c.l.b16 %v58
  %v258 = vunpack.c.l.b16 %v59
  %v259 = vunpack.c.l.b16 %v60
  %v260 = vunpack.c.l.b16 %v61
  %v261 = vunpack.c.l.b16 %v62
  %v262 = vunpack.c.l.b16 %v63
  %v263 = vunpack.c.l.b16 %v64
  %v264 = vunpack.c.l.b16 %v65
  %v265 = vunpack.c.l.b16 %v66
  %v266 = vunpack.c.l.b16 %v67
  %v267 = vunpack.c.l.b16 %v68
  %v268 = vunpack.c.l.b16 %v69
  %v269 = vunpack.c.l.b16 %v70
  %v270 = vunpack.c.l.b16 %v71
  %v271 = vunpack.c.l.b16 %v72
  %v272 = vunpack.c.l.b16 %v73
  %v273 = vunpack.c.l.b16 %v74
  %v274 = vunpack.c.l.b16 %v75
  %v275 = vunpack.c.l.b16 %v76
  %v276 = vunpack.c.l.b16 %v77
  %v277 = vunpack.c.l.b16 %v78
  %v278 = vunpack.c.l.b16 %v79
  %v279 = vunpack.c.l.b16 %v80
  %v280 = vunpack.c.l.b16 %v81
  %v281 = vunpack.c.l.b16 %v82
  %v282 = vpack.c.b16 %v247, %v246
  %v283 = vpack.c.b16 %v249, %v248
  %v284 = vpack.c.b16 %v251, %v250
  %v285 = vpack.c.b16 %v253, %v252
  %v286 = vpack.c.b16 %v255, %v254
  %v287 = vpack.c.b16 %v257, %v256
  %v288 = vpack.c.b16 %v259, %v258
  %v289 = vpack.c.b16 %v261, %v260
  %v290 = vpack.c.b16 %v263, %v262
  %v291 = vpack.c.b16 %v265, %v264
  %v292 = vpack.c.b16 %v267, %v266
  %v293 = vpack.c.b16 %v269, %v268
  %v294 = vpack.c.b16 %v271, %v270
  %v295 = vpack.c.b16 %v273, %v272
  %v296 = vpack.c.b16 %v275, %v274
  %v297 = vpack.c.b16 %v277, %v276
  %v298 = vpack.c.b16 %v279, %v278
  %v299 = vpack.c.b16 %v281, %v280
  %vm318 = vcmask 261120
  %v320 = vsel %vm318, %v172, 0
  %v323 = vsel %vm318, %v175, 0
  %v326 = vsel %vm318, %v178, 0
  %v329 = vsel %vm318, %v181, 0
  %v332 = vsel %vm318, %v184, 0
  %v335 = vsel %vm318, %v187, 0
  %v338 = vsel %vm318, %v190, 0
  %v341 = vsel %vm318, %v193, 0
  %343 = vmatprep.subr.bf16.mxu0 0
  %344 = vmatpush1.bf16.msra.mxu0 %v289
  %345 = vmatprep.subr.bf16.mxu0 0
  %346 = vmatpush1.bf16.msra.mxu0 %v288
  %347 = vmatprep.subr.bf16.mxu0 0
  %348 = vmatpush1.bf16.msra.mxu0 %v287
  %349 = vmatprep.subr.bf16.mxu0 0
  %350 = vmatpush1.bf16.msra.mxu0 %v286
  %351 = vmatprep.subr.bf16.mxu0 0
  %352 = vmatpush1.bf16.msra.mxu0 %v285
  %353 = vmatprep.subr.bf16.mxu0 0
  %354 = vmatpush1.bf16.msra.mxu0 %v284
  %355 = vmatprep.subr.bf16.mxu0 0
  %356 = vmatpush1.bf16.msra.mxu0 %v283
  %357 = vmatprep.subr.bf16.mxu0 0
  %358 = vmatpush1.bf16.msra.mxu0 %v282
  %359 = vmatprep.subr.bf16.mxu0 0
  %360 = vmatpush2.bf16.msra.mxu0 %v297
  %361 = vmatprep.subr.bf16.mxu0 0
  %362 = vmatpush2.bf16.msra.mxu0 %v296
  %363 = vmatprep.subr.bf16.mxu0 0
  %364 = vmatpush2.bf16.msra.mxu0 %v295
  %365 = vmatprep.subr.bf16.mxu0 0
  %366 = vmatpush2.bf16.msra.mxu0 %v294
  %367 = vmatprep.subr.bf16.mxu0 0
  %368 = vmatpush2.bf16.msra.mxu0 %v293
  %369 = vmatprep.subr.bf16.mxu0 0
  %370 = vmatpush2.bf16.msra.mxu0 %v292
  %371 = vmatprep.subr.bf16.mxu0 0
  %372 = vmatpush2.bf16.msra.mxu0 %v291
  %373 = vmatprep.subr.bf16.mxu0 0
  %374 = vmatpush2.bf16.msra.mxu0 %v290
  %375 = vmatprep.mubr.bf16.mxu0 %v171
  %376 = vmatmul.mubr.bf16.gmra.mxu0 %v170
  %v377 = vpop.f32.mrf.mxu0
  %v378 = vadd.f32 %v88, %v377
  %v379 = vpop.f32.mrf.mxu0
  %v380 = vpop.f32.mrf.mxu0
  %v381 = vadd.f32 %v88, %v380
  %v382 = vpop.f32.mrf.mxu0
  %383 = vmatprep.mubr.bf16.mxu0 %v174
  %384 = vmatmul.mubr.bf16.gmra.mxu0 %v173
  %v385 = vpop.f32.mrf.mxu0
  %v386 = vadd.f32 %v88, %v385
  %v387 = vpop.f32.mrf.mxu0
  %v388 = vpop.f32.mrf.mxu0
  %v389 = vadd.f32 %v88, %v388
  %v390 = vpop.f32.mrf.mxu0
  %391 = vmatprep.mubr.bf16.mxu0 %v177
  %392 = vmatmul.mubr.bf16.gmra.mxu0 %v176
  %v393 = vpop.f32.mrf.mxu0
  %v394 = vadd.f32 %v88, %v393
  %v395 = vpop.f32.mrf.mxu0
  %v396 = vpop.f32.mrf.mxu0
  %v397 = vadd.f32 %v88, %v396
  %v398 = vpop.f32.mrf.mxu0
  %399 = vmatprep.mubr.bf16.mxu0 %v180
  %400 = vmatmul.mubr.bf16.gmra.mxu0 %v179
  %v401 = vpop.f32.mrf.mxu0
  %v402 = vadd.f32 %v88, %v401
  %v403 = vpop.f32.mrf.mxu0
  %v404 = vpop.f32.mrf.mxu0
  %v405 = vadd.f32 %v88, %v404
  %v406 = vpop.f32.mrf.mxu0
  %407 = vmatprep.mubr.bf16.mxu0 %v183
  %408 = vmatmul.mubr.bf16.gmra.mxu0 %v182
  %v409 = vpop.f32.mrf.mxu0
  %v410 = vadd.f32 %v88, %v409
  %v411 = vpop.f32.mrf.mxu0
  %v412 = vpop.f32.mrf.mxu0
  %v413 = vadd.f32 %v88, %v412
  %v414 = vpop.f32.mrf.mxu0
  %415 = vmatprep.mubr.bf16.mxu0 %v186
  %416 = vmatmul.mubr.bf16.gmra.mxu0 %v185
  %v417 = vpop.f32.mrf.mxu0
  %v418 = vadd.f32 %v88, %v417
  %v419 = vpop.f32.mrf.mxu0
  %v420 = vpop.f32.mrf.mxu0
  %v421 = vadd.f32 %v88, %v420
  %v422 = vpop.f32.mrf.mxu0
  %423 = vmatprep.mubr.bf16.mxu0 %v189
  %424 = vmatmul.mubr.bf16.gmra.mxu0 %v188
  %v425 = vpop.f32.mrf.mxu0
  %v426 = vadd.f32 %v88, %v425
  %v427 = vpop.f32.mrf.mxu0
  %v428 = vpop.f32.mrf.mxu0
  %v429 = vadd.f32 %v88, %v428
  %v430 = vpop.f32.mrf.mxu0
  %431 = vmatprep.mubr.bf16.mxu0 %v192
  %432 = vmatmul.mubr.bf16.gmra.mxu0 %v191
  %v433 = vpop.f32.mrf.mxu0
  %v434 = vadd.f32 %v88, %v433
  %v435 = vpop.f32.mrf.mxu0
  %v436 = vpop.f32.mrf.mxu0
  %v437 = vadd.f32 %v88, %v436
  %v438 = vpop.f32.mrf.mxu0
  %439 = vdwg.mxu0
  %440 = vmatprep.subr.bf16.mxu0 0
  %441 = vmatpush1.bf16.msra.mxu0 0
  %442 = vmatprep.subr.bf16.mxu0 0
  %443 = vmatpush1.bf16.msra.mxu0 0
  %444 = vmatprep.subr.bf16.mxu0 0
  %445 = vmatpush1.bf16.msra.mxu0 0
  %446 = vmatprep.subr.bf16.mxu0 0
  %447 = vmatpush1.bf16.msra.mxu0 0
  %448 = vmatprep.subr.bf16.mxu0 0
  %449 = vmatpush1.bf16.msra.mxu0 0
  %450 = vmatprep.subr.bf16.mxu0 0
  %451 = vmatpush1.bf16.msra.mxu0 0
  %452 = vmatprep.subr.bf16.mxu0 0
  %453 = vmatpush1.bf16.msra.mxu0 %v299
  %454 = vmatprep.subr.bf16.mxu0 0
  %455 = vmatpush1.bf16.msra.mxu0 %v298
  %456 = vmatprep.subr.bf16.mxu0 0
  %457 = vmatpush2.bf16.msra.mxu0 0
  %458 = vmatprep.subr.bf16.mxu0 0
  %459 = vmatpush2.bf16.msra.mxu0 0
  %460 = vmatprep.subr.bf16.mxu0 0
  %461 = vmatpush2.bf16.msra.mxu0 0
  %462 = vmatprep.subr.bf16.mxu0 0
  %463 = vmatpush2.bf16.msra.mxu0 0
  %464 = vmatprep.subr.bf16.mxu0 0
  %465 = vmatpush2.bf16.msra.mxu0 0
  %466 = vmatprep.subr.bf16.mxu0 0
  %467 = vmatpush2.bf16.msra.mxu0 0
  %468 = vmatprep.subr.bf16.mxu0 0
  %469 = vmatpush2.bf16.msra.mxu0 0
  %470 = vmatprep.subr.bf16.mxu0 0
  %471 = vmatpush2.bf16.msra.mxu0 0
  %472 = vmatprep.mubr.bf16.mxu0 0
  %473 = vmatmul.mubr.bf16.gmra.mxu0 %v320
  %v474 = vpop.f32.mrf.mxu0
  %v475 = vadd.f32 %v378, %v474
  %v476 = vpop.f32.mrf.mxu0
  %v477 = vpop.f32.mrf.mxu0
  %v478 = vadd.f32 %v381, %v477
  %v479 = vpop.f32.mrf.mxu0
  %480 = vmatprep.mubr.bf16.mxu0 0
  %481 = vmatmul.mubr.bf16.gmra.mxu0 %v323
  %v482 = vpop.f32.mrf.mxu0
  %v483 = vadd.f32 %v386, %v482
  %v484 = vpop.f32.mrf.mxu0
  %v485 = vpop.f32.mrf.mxu0
  %v486 = vadd.f32 %v389, %v485
  %v487 = vpop.f32.mrf.mxu0
  %488 = vmatprep.mubr.bf16.mxu0 0
  %489 = vmatmul.mubr.bf16.gmra.mxu0 %v326
  %v490 = vpop.f32.mrf.mxu0
  %v491 = vadd.f32 %v394, %v490
  %v492 = vpop.f32.mrf.mxu0
  %v493 = vpop.f32.mrf.mxu0
  %v494 = vadd.f32 %v397, %v493
  %v495 = vpop.f32.mrf.mxu0
  %496 = vmatprep.mubr.bf16.mxu0 0
  %497 = vmatmul.mubr.bf16.gmra.mxu0 %v329
  %v498 = vpop.f32.mrf.mxu0
  %v499 = vadd.f32 %v402, %v498
  %v500 = vpop.f32.mrf.mxu0
  %v501 = vpop.f32.mrf.mxu0
  %v502 = vadd.f32 %v405, %v501
  %v503 = vpop.f32.mrf.mxu0
  %504 = vmatprep.mubr.bf16.mxu0 0
  %505 = vmatmul.mubr.bf16.gmra.mxu0 %v332
  %v506 = vpop.f32.mrf.mxu0
  %v507 = vadd.f32 %v410, %v506
  %v508 = vpop.f32.mrf.mxu0
  %v509 = vpop.f32.mrf.mxu0
  %v510 = vadd.f32 %v413, %v509
  %v511 = vpop.f32.mrf.mxu0
  %512 = vmatprep.mubr.bf16.mxu0 0
  %513 = vmatmul.mubr.bf16.gmra.mxu0 %v335
  %v514 = vpop.f32.mrf.mxu0
  %v515 = vadd.f32 %v418, %v514
  %v516 = vpop.f32.mrf.mxu0
  %v517 = vpop.f32.mrf.mxu0
  %v518 = vadd.f32 %v421, %v517
  %v519 = vpop.f32.mrf.mxu0
  %520 = vmatprep.mubr.bf16.mxu0 0
  %521 = vmatmul.mubr.bf16.gmra.mxu0 %v338
  %v522 = vpop.f32.mrf.mxu0
  %v523 = vadd.f32 %v426, %v522
  %v524 = vpop.f32.mrf.mxu0
  %v525 = vpop.f32.mrf.mxu0
  %v526 = vadd.f32 %v429, %v525
  %v527 = vpop.f32.mrf.mxu0
  %528 = vmatprep.mubr.bf16.mxu0 0
  %529 = vmatmul.mubr.bf16.gmra.mxu0 %v341
  %v530 = vpop.f32.mrf.mxu0
  %v531 = vadd.f32 %v434, %v530
  %v532 = vpop.f32.mrf.mxu0
  %v533 = vpop.f32.mrf.mxu0
  %v534 = vadd.f32 %v437, %v533
  %v535 = vpop.f32.mrf.mxu0
  %536 = vdwg.mxu0
  %vm537 = vcmask 523264
  %538 = vst.msk [vmem:[%s3] sm:$0xff] %vm537, %v475
  %539 = vst.msk [vmem:[%s3 + $0x8] sm:$0xff] %vm537, %v478
  %540 = vst.msk [vmem:[%s3 + $0x10] sm:$0xff] %vm537, %v483
  %541 = vst.msk [vmem:[%s3 + $0x18] sm:$0xff] %vm537, %v486
  %542 = vst.msk [vmem:[%s3 + $0x20] sm:$0xff] %vm537, %v491
  %543 = vst.msk [vmem:[%s3 + $0x28] sm:$0xff] %vm537, %v494
  %544 = vst.msk [vmem:[%s3 + $0x30] sm:$0xff] %vm537, %v499
  %545 = vst.msk [vmem:[%s3 + $0x38] sm:$0xff] %vm537, %v502
  %546 = vst.msk [vmem:[%s3 + $0x40] sm:$0xff] %vm537, %v507
  %547 = vst.msk [vmem:[%s3 + $0x48] sm:$0xff] %vm537, %v510
  %548 = vst.msk [vmem:[%s3 + $0x50] sm:$0xff] %vm537, %v515
  %549 = vst.msk [vmem:[%s3 + $0x58] sm:$0xff] %vm537, %v518
  %550 = vst.msk [vmem:[%s3 + $0x60] sm:$0xff] %vm537, %v523
  %551 = vst.msk [vmem:[%s3 + $0x68] sm:$0xff] %vm537, %v526
  %552 = vst.msk [vmem:[%s3 + $0x70] sm:$0xff] %vm537, %v531
  %553 = vst.msk [vmem:[%s3 + $0x78] sm:$0xff] %vm537, %v534
  // Predicated region
  $region14: #{forward.33} parent=0 // pred_check
    _
  $region15: #{forward.33} parent=0 // pred_check_branch
    %555 = sbr.rel (0) target = $region17
  $region16: #{forward.33} parent=0 // pred_region
    _
  $region17: #{forward.33} parent=0 // pred_fallthru
    _
  // Predicated region
  $region18: #{forward.33} parent=0 // pred_check
    _
  $region19: #{forward.33} parent=0 // pred_check_branch
    %557 = sbr.rel (0) target = $region21
  $region20: #{forward.33} parent=0 // pred_region
    _
  $region21: #{forward.33} parent=0 // pred_fallthru
    _

// kernel: tile.163
$region0: #{tile.163}
  #allocation0 [shape = 's32[1]{0}', space=sflag, size = 0x4, scoped, tag = 'scoped memory for tile.163']
  %s0 = inlined_call_operand.vmem [shape: f32[64], index: 0, kind: input, shape index: {}]
  %s1 = inlined_call_operand.vmem [shape: f32[8,64], index: 1, kind: output, shape index: {}]
  // Predicated region
  $region2: #{tile.163} parent=0 // pred_check
    _
  $region3: #{tile.163} parent=0 // pred_check_branch
    %3 = sbr.rel (0) target = $region5
  $region4: #{tile.163} parent=0 // pred_region
    _
  $region5: #{tile.163} parent=0 // pred_fallthru
    _
  %v4 = vld [vmem:[%s0] ss:$0 sm:$0xff]
  %5 = vst [vmem:[%s1] sm:$0xff] %v4

// kernel: tile.164
$region0: #{tile.164}
  %s0 = inlined_call_operand.vmem [shape: f32[8,64], index: 0, kind: input, shape index: {}]
  %s1 = inlined_call_operand.vmem [shape: f32[1,512], index: 1, kind: output, shape index: {}]
  $region1: #{tile.164} parent=0
    #allocation0 [shape = 'u8[16384]{0}', space=vmem, size = 0x4000, scoped, tag = 'scoped mem for output reshape']
    %v2 = vld [vmem:[%s0] ss:$2 sm:$0xf]
    %vm3 = vcmask 523264
    %4 = vst.msk [vmem:[#allocation0] ss:$8 sm:$0xf] %vm3, %v2
    %s5 = scalar_lea.vmem %s0, 1
    %v6 = vld [vmem:[%s5] ss:$2 sm:$0xf]
    %7 = vrot.lane.b32.xlu0 %v6, 64
    %v8 = vpop.permute.xlu0 %7
    %vm9 = vcmask 1048064
    %10 = vst.msk [vmem:[#allocation0] ss:$8 sm:$0xf] %vm9, %v8
    %s12 = sshll.u32 1, 1
    %s13 = ssub.s32 %s12, 1
    %v15 = vld [vmem:[#allocation0] sm:%s13]
    %s16 = sshll.u32 1, 1
    %s17 = ssub.s32 %s16, 1
    %18 = vst [vmem:[%s1] sm:%s17] %v15
    %s19 = scalar_lea.vmem [#allocation0], 8
    %v20 = vld [vmem:[%s19] sm:%s13]
    %s21 = sshll.u32 1, 1
    %s22 = ssub.s32 %s21, 1
    %s23 = scalar_lea.vmem %s1, 1
    %24 = vst [vmem:[%s23] sm:%s22] %v20
    %s25 = scalar_lea.vmem [#allocation0], 16
    %v26 = vld [vmem:[%s25] sm:%s13]
    %s27 = sshll.u32 1, 1
    %s28 = ssub.s32 %s27, 1
    %s29 = smul.addr 1, 2
    %s30 = scalar_lea.vmem %s1, %s29
    %31 = vst [vmem:[%s30] sm:%s28] %v26
    %s32 = scalar_lea.vmem [#allocation0], 24
    %v33 = vld [vmem:[%s32] sm:%s13]
    %s34 = sshll.u32 1, 1
    %s35 = ssub.s32 %s34, 1
    %s36 = smul.addr 1, 3
    %s37 = scalar_lea.vmem %s1, %s36
    %38 = vst [vmem:[%s37] sm:%s35] %v33

// kernel: forward.34
$region0: #{forward.34}
  #allocation0 [shape = 'u32[]', space=smem, size = 0x4, offset = 0x4, fixed_abs, tag = 'smem constant byte address 0x4 - core index']
  #allocation1 [shape = 'u32[144,128]{1,0:T(1,128)}', space=vmem, size = 0x12000, scoped, tag = 'internal scratch']
  %s0 = inlined_call_operand.vmem [shape: f32[16,512], index: 0, kind: input, shape index: {}]
  %s1 = inlined_call_operand.vmem [shape: f32[1,512], index: 1, kind: input, shape index: {}]
  %s2 = inlined_call_operand.vmem [shape: f32[1,512], index: 2, kind: input, shape index: {}]
  %s3 = inlined_call_operand.vmem [shape: f32[16,512], index: 3, kind: output, shape index: {}]
  %s4 = sld [smem:[#allocation0]]
  $region22: #{forward.34} parent=0
    _
  %s6 = ssub.s32 1, %s4
  %s7 = scalar_select 0, %s6, %s4
  // Predicated region
  $region2: #{forward.34} parent=0 // pred_check
    _
  $region3: #{forward.34} parent=0 // pred_check_branch
    %9 = sbr.rel (0) target = $region5
  $region4: #{forward.34} parent=0 // pred_region
    _
  $region5: #{forward.34} parent=0 // pred_fallthru
    _
  // Predicated region
  $region6: #{forward.34} parent=0 // pred_check
    _
  $region7: #{forward.34} parent=0 // pred_check_branch
    %11 = sbr.rel (0) target = $region9
  $region8: #{forward.34} parent=0 // pred_region
    _
  $region9: #{forward.34} parent=0 // pred_fallthru
    _
  // Predicated region
  $region10: #{forward.34} parent=0 // pred_check
    _
  $region11: #{forward.34} parent=0 // pred_check_branch
    %13 = sbr.rel (0) target = $region13
  $region12: #{forward.34} parent=0 // pred_region
    _
  $region13: #{forward.34} parent=0 // pred_fallthru
    _
  %v14 = vld [vmem:[%s0] sm:$0xff]
  %v15 = vld [vmem:[%s0 + $0x8] sm:$0xff]
  %v16 = vld [vmem:[%s0 + $0x10] sm:$0xff]
  %v17 = vld [vmem:[%s0 + $0x18] sm:$0xff]
  %v18 = vld [vmem:[%s0 + $0x20] sm:$0xff]
  %v19 = vld [vmem:[%s0 + $0x28] sm:$0xff]
  %v20 = vld [vmem:[%s0 + $0x30] sm:$0xff]
  %v21 = vld [vmem:[%s0 + $0x38] sm:$0xff]
  %v22 = vld [vmem:[%s1] sm:$0xf]
  %v24 = vlaneseq
  %v25 = vshrl.u32 %v24, 7
  %v26 = vsub.s32 0, %v25
  %v27 = vrot.slane %v22, %v26
  %v28 = vlaneseq
  %v29 = vshrl.u32 %v28, 7
  %v30 = vsub.s32 1, %v29
  %v31 = vrot.slane %v22, %v30
  %v32 = vlaneseq
  %v33 = vshrl.u32 %v32, 7
  %v34 = vsub.s32 2, %v33
  %v35 = vrot.slane %v22, %v34
  %v36 = vlaneseq
  %v37 = vshrl.u32 %v36, 7
  %v38 = vsub.s32 3, %v37
  %v39 = vrot.slane %v22, %v38
  %v44 = vmul.f32 %v14, %v27
  %v45 = vmul.f32 %v15, %v31
  %v46 = vmul.f32 %v16, %v35
  %v47 = vmul.f32 %v17, %v39
  %v48 = vmul.f32 %v18, %v27
  %v49 = vmul.f32 %v19, %v31
  %v50 = vmul.f32 %v20, %v35
  %v51 = vmul.f32 %v21, %v39
  %v52 = vld [vmem:[%s2] sm:$0xf]
  %v54 = vlaneseq
  %v55 = vshrl.u32 %v54, 7
  %v56 = vsub.s32 0, %v55
  %v57 = vrot.slane %v52, %v56
  %v58 = vlaneseq
  %v59 = vshrl.u32 %v58, 7
  %v60 = vsub.s32 1, %v59
  %v61 = vrot.slane %v52, %v60
  %v62 = vlaneseq
  %v63 = vshrl.u32 %v62, 7
  %v64 = vsub.s32 2, %v63
  %v65 = vrot.slane %v52, %v64
  %v66 = vlaneseq
  %v67 = vshrl.u32 %v66, 7
  %v68 = vsub.s32 3, %v67
  %v69 = vrot.slane %v52, %v68
  %v74 = vadd.f32 %v44, %v57
  %v75 = vadd.f32 %v45, %v61
  %v76 = vadd.f32 %v46, %v65
  %v77 = vadd.f32 %v47, %v69
  %v78 = vadd.f32 %v48, %v57
  %v79 = vadd.f32 %v49, %v61
  %v80 = vadd.f32 %v50, %v65
  %v81 = vadd.f32 %v51, %v69
  %v82 = vmax.f32 %v74, 0.0
  %v83 = vmax.f32 %v75, 0.0
  %v84 = vmax.f32 %v76, 0.0
  %v85 = vmax.f32 %v77, 0.0
  %v86 = vmax.f32 %v78, 0.0
  %v87 = vmax.f32 %v79, 0.0
  %v88 = vmax.f32 %v80, 0.0
  %v89 = vmax.f32 %v81, 0.0
  %90 = vst [vmem:[%s3] sm:$0xff] %v82
  %91 = vst [vmem:[%s3 + $0x8] sm:$0xff] %v83
  %92 = vst [vmem:[%s3 + $0x10] sm:$0xff] %v84
  %93 = vst [vmem:[%s3 + $0x18] sm:$0xff] %v85
  %94 = vst [vmem:[%s3 + $0x20] sm:$0xff] %v86
  %95 = vst [vmem:[%s3 + $0x28] sm:$0xff] %v87
  %96 = vst [vmem:[%s3 + $0x30] sm:$0xff] %v88
  %97 = vst [vmem:[%s3 + $0x38] sm:$0xff] %v89
  // Predicated region
  $region14: #{forward.34} parent=0 // pred_check
    _
  $region15: #{forward.34} parent=0 // pred_check_branch
    %99 = sbr.rel (0) target = $region17
  $region16: #{forward.34} parent=0 // pred_region
    _
  $region17: #{forward.34} parent=0 // pred_fallthru
    _
  // Predicated region
  $region18: #{forward.34} parent=0 // pred_check
    _
  $region19: #{forward.34} parent=0 // pred_check_branch
    %101 = sbr.rel (0) target = $region21
  $region20: #{forward.34} parent=0 // pred_region
    _
  $region21: #{forward.34} parent=0 // pred_fallthru
    _

// kernel: forward.35
$region0: #{forward.35}
  #allocation0 [shape = 'u32[]', space=smem, size = 0x4, offset = 0x4, fixed_abs, tag = 'smem constant byte address 0x4 - core index']
  #allocation1 [shape = 'u32[144,128]{1,0:T(1,128)}', space=vmem, size = 0x12000, scoped, tag = 'internal scratch']
  %s0 = inlined_call_operand.vmem [shape: bf16[32,576], index: 0, kind: input, shape index: {}]
  %s1 = inlined_call_operand.vmem [shape: bf16[576,128], index: 1, kind: input, shape index: {}]
  %s2 = inlined_call_operand.vmem [shape: f32[1,128], index: 2, kind: input, shape index: {}]
  %s3 = inlined_call_operand.vmem [shape: f32[32,128], index: 3, kind: output, shape index: {}]
  %s4 = sld [smem:[#allocation0]]
  $region22: #{forward.35} parent=0
    _
  %s6 = ssub.s32 1, %s4
  %s7 = scalar_select 0, %s6, %s4
  // Predicated region
  $region2: #{forward.35} parent=0 // pred_check
    _
  $region3: #{forward.35} parent=0 // pred_check_branch
    %9 = sbr.rel (0) target = $region5
  $region4: #{forward.35} parent=0 // pred_region
    _
  $region5: #{forward.35} parent=0 // pred_fallthru
    _
  // Predicated region
  $region6: #{forward.35} parent=0 // pred_check
    _
  $region7: #{forward.35} parent=0 // pred_check_branch
    %11 = sbr.rel (0) target = $region9
  $region8: #{forward.35} parent=0 // pred_region
    _
  $region9: #{forward.35} parent=0 // pred_fallthru
    _
  // Predicated region
  $region10: #{forward.35} parent=0 // pred_check
    _
  $region11: #{forward.35} parent=0 // pred_check_branch
    %13 = sbr.rel (0) target = $region13
  $region12: #{forward.35} parent=0 // pred_region
    _
  $region13: #{forward.35} parent=0 // pred_fallthru
    _
  %v15 = vld [vmem:[%s0] sm:$0xff]
  %v16 = vld [vmem:[%s0 + $0x8] sm:$0xff]
  %v17 = vld [vmem:[%s0 + $0x10] sm:$0xf]
  %v18 = vld [vmem:[%s0 + $0x14] sm:$0xff]
  %v19 = vld [vmem:[%s0 + $0x1c] sm:$0xff]
  %v20 = vld [vmem:[%s0 + $0x24] sm:$0xf]
  %v21 = vld [vmem:[%s0 + $0x28] sm:$0xff]
  %v22 = vld [vmem:[%s0 + $0x30] sm:$0xff]
  %v23 = vld [vmem:[%s0 + $0x38] sm:$0xf]
  %v24 = vld [vmem:[%s0 + $0x3c] sm:$0xff]
  %v25 = vld [vmem:[%s0 + $0x44] sm:$0xff]
  %v26 = vld [vmem:[%s0 + $0x4c] sm:$0xf]
  %v27 = vld [vmem:[%s1] sm:$0xf]
  %v28 = vld [vmem:[%s1 + $0x4] sm:$0xf]
  %v29 = vld [vmem:[%s1 + $0x8] sm:$0xf]
  %v30 = vld [vmem:[%s1 + $0xc] sm:$0xf]
  %v31 = vld [vmem:[%s1 + $0x10] sm:$0xf]
  %v32 = vld [vmem:[%s1 + $0x14] sm:$0xf]
  %v33 = vld [vmem:[%s1 + $0x18] sm:$0xf]
  %v34 = vld [vmem:[%s1 + $0x1c] sm:$0xf]
  %v35 = vld [vmem:[%s1 + $0x20] sm:$0xf]
  %v36 = vld [vmem:[%s1 + $0x24] sm:$0xf]
  %v37 = vld [vmem:[%s1 + $0x28] sm:$0xf]
  %v38 = vld [vmem:[%s1 + $0x2c] sm:$0xf]
  %v39 = vld [vmem:[%s1 + $0x30] sm:$0xf]
  %v40 = vld [vmem:[%s1 + $0x34] sm:$0xf]
  %v41 = vld [vmem:[%s1 + $0x38] sm:$0xf]
  %v42 = vld [vmem:[%s1 + $0x3c] sm:$0xf]
  %v43 = vld [vmem:[%s1 + $0x40] sm:$0xf]
  %v44 = vld [vmem:[%s1 + $0x44] sm:$0xf]
  %v45 = vld [vmem:[%s1 + $0x48] sm:$0xf]
  %v46 = vld [vmem:[%s1 + $0x4c] sm:$0xf]
  %v47 = vld [vmem:[%s1 + $0x50] sm:$0xf]
  %v48 = vld [vmem:[%s1 + $0x54] sm:$0xf]
  %v49 = vld [vmem:[%s1 + $0x58] sm:$0xf]
  %v50 = vld [vmem:[%s1 + $0x5c] sm:$0xf]
  %v51 = vld [vmem:[%s1 + $0x60] sm:$0xf]
  %v52 = vld [vmem:[%s1 + $0x64] sm:$0xf]
  %v53 = vld [vmem:[%s1 + $0x68] sm:$0xf]
  %v54 = vld [vmem:[%s1 + $0x6c] sm:$0xf]
  %v55 = vld [vmem:[%s1 + $0x70] sm:$0xf]
  %v56 = vld [vmem:[%s1 + $0x74] sm:$0xf]
  %v57 = vld [vmem:[%s1 + $0x78] sm:$0xf]
  %v58 = vld [vmem:[%s1 + $0x7c] sm:$0xf]
  %v59 = vld [vmem:[%s1 + $0x80] sm:$0xf]
  %v60 = vld [vmem:[%s1 + $0x84] sm:$0xf]
  %v61 = vld [vmem:[%s1 + $0x88] sm:$0xf]
  %v62 = vld [vmem:[%s1 + $0x8c] sm:$0xf]
  %v63 = vld [vmem:[%s1 + $0x90] sm:$0xf]
  %v64 = vld [vmem:[%s1 + $0x94] sm:$0xf]
  %v65 = vld [vmem:[%s1 + $0x98] sm:$0xf]
  %v66 = vld [vmem:[%s1 + $0x9c] sm:$0xf]
  %v67 = vld [vmem:[%s1 + $0xa0] sm:$0xf]
  %v68 = vld [vmem:[%s1 + $0xa4] sm:$0xf]
  %v69 = vld [vmem:[%s1 + $0xa8] sm:$0xf]
  %v70 = vld [vmem:[%s1 + $0xac] sm:$0xf]
  %v71 = vld [vmem:[%s1 + $0xb0] sm:$0xf]
  %v72 = vld [vmem:[%s1 + $0xb4] sm:$0xf]
  %v73 = vld [vmem:[%s1 + $0xb8] sm:$0xf]
  %v74 = vld [vmem:[%s1 + $0xbc] sm:$0xf]
  %v75 = vld [vmem:[%s1 + $0xc0] sm:$0xf]
  %v76 = vld [vmem:[%s1 + $0xc4] sm:$0xf]
  %v77 = vld [vmem:[%s1 + $0xc8] sm:$0xf]
  %v78 = vld [vmem:[%s1 + $0xcc] sm:$0xf]
  %v79 = vld [vmem:[%s1 + $0xd0] sm:$0xf]
  %v80 = vld [vmem:[%s1 + $0xd4] sm:$0xf]
  %v81 = vld [vmem:[%s1 + $0xd8] sm:$0xf]
  %v82 = vld [vmem:[%s1 + $0xdc] sm:$0xf]
  %v83 = vld [vmem:[%s1 + $0xe0] sm:$0xf]
  %v84 = vld [vmem:[%s1 + $0xe4] sm:$0xf]
  %v85 = vld [vmem:[%s1 + $0xe8] sm:$0xf]
  %v86 = vld [vmem:[%s1 + $0xec] sm:$0xf]
  %v87 = vld [vmem:[%s1 + $0xf0] sm:$0xf]
  %v88 = vld [vmem:[%s1 + $0xf4] sm:$0xf]
  %v89 = vld [vmem:[%s1 + $0xf8] sm:$0xf]
  %v90 = vld [vmem:[%s1 + $0xfc] sm:$0xf]
  %v91 = vld [vmem:[%s1 + $0x100] sm:$0xf]
  %v92 = vld [vmem:[%s1 + $0x104] sm:$0xf]
  %v93 = vld [vmem:[%s1 + $0x108] sm:$0xf]
  %v94 = vld [vmem:[%s1 + $0x10c] sm:$0xf]
  %v95 = vld [vmem:[%s1 + $0x110] sm:$0xf]
  %v96 = vld [vmem:[%s1 + $0x114] sm:$0xf]
  %v97 = vld [vmem:[%s1 + $0x118] sm:$0xf]
  %v98 = vld [vmem:[%s1 + $0x11c] sm:$0xf]
  %v99 = vld [vmem:[%s2] sm:$0x1]
  %v101 = vlaneseq
  %v102 = vshrl.u32 %v101, 7
  %v103 = vsub.s32 0, %v102
  %v104 = vrot.slane %v99, %v103
  %v118 = vunpack.c.l.b16 %v15
  %v119 = vunpack.c.h.b16 %v15
  %v120 = vunpack.c.l.b16 %v16
  %v121 = vunpack.c.h.b16 %v16
  %v122 = vunpack.c.l.b16 %v17
  %v123 = vunpack.c.l.b16 %v18
  %v124 = vunpack.c.h.b16 %v18
  %v125 = vunpack.c.l.b16 %v19
  %v126 = vunpack.c.h.b16 %v19
  %v127 = vunpack.c.l.b16 %v20
  %v128 = vunpack.c.l.b16 %v21
  %v129 = vunpack.c.h.b16 %v21
  %v130 = vunpack.c.l.b16 %v22
  %v131 = vunpack.c.h.b16 %v22
  %v132 = vunpack.c.l.b16 %v23
  %v133 = vunpack.c.l.b16 %v24
  %v134 = vunpack.c.h.b16 %v24
  %v135 = vunpack.c.l.b16 %v25
  %v136 = vunpack.c.h.b16 %v25
  %v137 = vunpack.c.l.b16 %v26
  %v138 = vpack.c.b16 %v123, %v118
  %v139 = vpack.c.b16 %v124, %v119
  %v140 = vpack.c.b16 %v125, %v120
  %v141 = vpack.c.b16 %v126, %v121
  %v142 = vpack.c.b16 %v127, %v122
  %v143 = vpack.c.b16 %v133, %v128
  %v144 = vpack.c.b16 %v134, %v129
  %v145 = vpack.c.b16 %v135, %v130
  %v146 = vpack.c.b16 %v136, %v131
  %v147 = vpack.c.b16 %v137, %v132
  %v228 = vunpack.c.l.b16 %v27
  %v229 = vunpack.c.l.b16 %v28
  %v230 = vunpack.c.l.b16 %v29
  %v231 = vunpack.c.l.b16 %v30
  %v232 = vunpack.c.l.b16 %v31
  %v233 = vunpack.c.l.b16 %v32
  %v234 = vunpack.c.l.b16 %v33
  %v235 = vunpack.c.l.b16 %v34
  %v236 = vunpack.c.l.b16 %v35
  %v237 = vunpack.c.l.b16 %v36
  %v238 = vunpack.c.l.b16 %v37
  %v239 = vunpack.c.l.b16 %v38
  %v240 = vunpack.c.l.b16 %v39
  %v241 = vunpack.c.l.b16 %v40
  %v242 = vunpack.c.l.b16 %v41
  %v243 = vunpack.c.l.b16 %v42
  %v244 = vunpack.c.l.b16 %v43
  %v245 = vunpack.c.l.b16 %v44
  %v246 = vunpack.c.l.b16 %v45
  %v247 = vunpack.c.l.b16 %v46
  %v248 = vunpack.c.l.b16 %v47
  %v249 = vunpack.c.l.b16 %v48
  %v250 = vunpack.c.l.b16 %v49
  %v251 = vunpack.c.l.b16 %v50
  %v252 = vunpack.c.l.b16 %v51
  %v253 = vunpack.c.l.b16 %v52
  %v254 = vunpack.c.l.b16 %v53
  %v255 = vunpack.c.l.b16 %v54
  %v256 = vunpack.c.l.b16 %v55
  %v257 = vunpack.c.l.b16 %v56
  %v258 = vunpack.c.l.b16 %v57
  %v259 = vunpack.c.l.b16 %v58
  %v260 = vunpack.c.l.b16 %v59
  %v261 = vunpack.c.l.b16 %v60
  %v262 = vunpack.c.l.b16 %v61
  %v263 = vunpack.c.l.b16 %v62
  %v264 = vunpack.c.l.b16 %v63
  %v265 = vunpack.c.l.b16 %v64
  %v266 = vunpack.c.l.b16 %v65
  %v267 = vunpack.c.l.b16 %v66
  %v268 = vunpack.c.l.b16 %v67
  %v269 = vunpack.c.l.b16 %v68
  %v270 = vunpack.c.l.b16 %v69
  %v271 = vunpack.c.l.b16 %v70
  %v272 = vunpack.c.l.b16 %v71
  %v273 = vunpack.c.l.b16 %v72
  %v274 = vunpack.c.l.b16 %v73
  %v275 = vunpack.c.l.b16 %v74
  %v276 = vunpack.c.l.b16 %v75
  %v277 = vunpack.c.l.b16 %v76
  %v278 = vunpack.c.l.b16 %v77
  %v279 = vunpack.c.l.b16 %v78
  %v280 = vunpack.c.l.b16 %v79
  %v281 = vunpack.c.l.b16 %v80
  %v282 = vunpack.c.l.b16 %v81
  %v283 = vunpack.c.l.b16 %v82
  %v284 = vunpack.c.l.b16 %v83
  %v285 = vunpack.c.l.b16 %v84
  %v286 = vunpack.c.l.b16 %v85
  %v287 = vunpack.c.l.b16 %v86
  %v288 = vunpack.c.l.b16 %v87
  %v289 = vunpack.c.l.b16 %v88
  %v290 = vunpack.c.l.b16 %v89
  %v291 = vunpack.c.l.b16 %v90
  %v292 = vunpack.c.l.b16 %v91
  %v293 = vunpack.c.l.b16 %v92
  %v294 = vunpack.c.l.b16 %v93
  %v295 = vunpack.c.l.b16 %v94
  %v296 = vunpack.c.l.b16 %v95
  %v297 = vunpack.c.l.b16 %v96
  %v298 = vunpack.c.l.b16 %v97
  %v299 = vunpack.c.l.b16 %v98
  %v300 = vpack.c.b16 %v229, %v228
  %v301 = vpack.c.b16 %v231, %v230
  %v302 = vpack.c.b16 %v233, %v232
  %v303 = vpack.c.b16 %v235, %v234
  %v304 = vpack.c.b16 %v237, %v236
  %v305 = vpack.c.b16 %v239, %v238
  %v306 = vpack.c.b16 %v241, %v240
  %v307 = vpack.c.b16 %v243, %v242
  %v308 = vpack.c.b16 %v245, %v244
  %v309 = vpack.c.b16 %v247, %v246
  %v310 = vpack.c.b16 %v249, %v248
  %v311 = vpack.c.b16 %v251, %v250
  %v312 = vpack.c.b16 %v253, %v252
  %v313 = vpack.c.b16 %v255, %v254
  %v314 = vpack.c.b16 %v257, %v256
  %v315 = vpack.c.b16 %v259, %v258
  %v316 = vpack.c.b16 %v261, %v260
  %v317 = vpack.c.b16 %v263, %v262
  %v318 = vpack.c.b16 %v265, %v264
  %v319 = vpack.c.b16 %v267, %v266
  %v320 = vpack.c.b16 %v269, %v268
  %v321 = vpack.c.b16 %v271, %v270
  %v322 = vpack.c.b16 %v273, %v272
  %v323 = vpack.c.b16 %v275, %v274
  %v324 = vpack.c.b16 %v277, %v276
  %v325 = vpack.c.b16 %v279, %v278
  %v326 = vpack.c.b16 %v281, %v280
  %v327 = vpack.c.b16 %v283, %v282
  %v328 = vpack.c.b16 %v285, %v284
  %v329 = vpack.c.b16 %v287, %v286
  %v330 = vpack.c.b16 %v289, %v288
  %v331 = vpack.c.b16 %v291, %v290
  %v332 = vpack.c.b16 %v293, %v292
  %v333 = vpack.c.b16 %v295, %v294
  %v334 = vpack.c.b16 %v297, %v296
  %v335 = vpack.c.b16 %v299, %v298
  %vm372 = vcmask 523264
  %v374 = vsel %vm372, %v142, 0
  %v377 = vsel %vm372, %v147, 0
  %379 = vmatprep.subr.bf16.mxu0 0
  %380 = vmatpush1.bf16.msra.mxu0 %v307
  %381 = vmatprep.subr.bf16.mxu0 0
  %382 = vmatpush1.bf16.msra.mxu0 %v306
  %383 = vmatprep.subr.bf16.mxu0 0
  %384 = vmatpush1.bf16.msra.mxu0 %v305
  %385 = vmatprep.subr.bf16.mxu0 0
  %386 = vmatpush1.bf16.msra.mxu0 %v304
  %387 = vmatprep.subr.bf16.mxu0 0
  %388 = vmatpush1.bf16.msra.mxu0 %v303
  %389 = vmatprep.subr.bf16.mxu0 0
  %390 = vmatpush1.bf16.msra.mxu0 %v302
  %391 = vmatprep.subr.bf16.mxu0 0
  %392 = vmatpush1.bf16.msra.mxu0 %v301
  %393 = vmatprep.subr.bf16.mxu0 0
  %394 = vmatpush1.bf16.msra.mxu0 %v300
  %395 = vmatprep.subr.bf16.mxu0 0
  %396 = vmatpush2.bf16.msra.mxu0 %v315
  %397 = vmatprep.subr.bf16.mxu0 0
  %398 = vmatpush2.bf16.msra.mxu0 %v314
  %399 = vmatprep.subr.bf16.mxu0 0
  %400 = vmatpush2.bf16.msra.mxu0 %v313
  %401 = vmatprep.subr.bf16.mxu0 0
  %402 = vmatpush2.bf16.msra.mxu0 %v312
  %403 = vmatprep.subr.bf16.mxu0 0
  %404 = vmatpush2.bf16.msra.mxu0 %v311
  %405 = vmatprep.subr.bf16.mxu0 0
  %406 = vmatpush2.bf16.msra.mxu0 %v310
  %407 = vmatprep.subr.bf16.mxu0 0
  %408 = vmatpush2.bf16.msra.mxu0 %v309
  %409 = vmatprep.subr.bf16.mxu0 0
  %410 = vmatpush2.bf16.msra.mxu0 %v308
  %411 = vmatprep.mubr.bf16.mxu0 %v139
  %412 = vmatmul.mubr.bf16.gmra.mxu0 %v138
  %v413 = vpop.f32.mrf.mxu0
  %v414 = vadd.f32 %v104, %v413
  %v415 = vpop.f32.mrf.mxu0
  %v416 = vpop.f32.mrf.mxu0
  %v417 = vadd.f32 %v104, %v416
  %v418 = vpop.f32.mrf.mxu0
  %419 = vmatprep.mubr.bf16.mxu0 %v144
  %420 = vmatmul.mubr.bf16.gmra.mxu0 %v143
  %v421 = vpop.f32.mrf.mxu0
  %v422 = vadd.f32 %v104, %v421
  %v423 = vpop.f32.mrf.mxu0
  %v424 = vpop.f32.mrf.mxu0
  %v425 = vadd.f32 %v104, %v424
  %v426 = vpop.f32.mrf.mxu0
  %427 = vdwg.mxu0
  %428 = vmatprep.subr.bf16.mxu0 0
  %429 = vmatpush1.bf16.msra.mxu0 %v323
  %430 = vmatprep.subr.bf16.mxu0 0
  %431 = vmatpush1.bf16.msra.mxu0 %v322
  %432 = vmatprep.subr.bf16.mxu0 0
  %433 = vmatpush1.bf16.msra.mxu0 %v321
  %434 = vmatprep.subr.bf16.mxu0 0
  %435 = vmatpush1.bf16.msra.mxu0 %v320
  %436 = vmatprep.subr.bf16.mxu0 0
  %437 = vmatpush1.bf16.msra.mxu0 %v319
  %438 = vmatprep.subr.bf16.mxu0 0
  %439 = vmatpush1.bf16.msra.mxu0 %v318
  %440 = vmatprep.subr.bf16.mxu0 0
  %441 = vmatpush1.bf16.msra.mxu0 %v317
  %442 = vmatprep.subr.bf16.mxu0 0
  %443 = vmatpush1.bf16.msra.mxu0 %v316
  %444 = vmatprep.subr.bf16.mxu0 0
  %445 = vmatpush2.bf16.msra.mxu0 %v331
  %446 = vmatprep.subr.bf16.mxu0 0
  %447 = vmatpush2.bf16.msra.mxu0 %v330
  %448 = vmatprep.subr.bf16.mxu0 0
  %449 = vmatpush2.bf16.msra.mxu0 %v329
  %450 = vmatprep.subr.bf16.mxu0 0
  %451 = vmatpush2.bf16.msra.mxu0 %v328
  %452 = vmatprep.subr.bf16.mxu0 0
  %453 = vmatpush2.bf16.msra.mxu0 %v327
  %454 = vmatprep.subr.bf16.mxu0 0
  %455 = vmatpush2.bf16.msra.mxu0 %v326
  %456 = vmatprep.subr.bf16.mxu0 0
  %457 = vmatpush2.bf16.msra.mxu0 %v325
  %458 = vmatprep.subr.bf16.mxu0 0
  %459 = vmatpush2.bf16.msra.mxu0 %v324
  %460 = vmatprep.mubr.bf16.mxu0 %v141
  %461 = vmatmul.mubr.bf16.gmra.mxu0 %v140
  %v462 = vpop.f32.mrf.mxu0
  %v463 = vadd.f32 %v414, %v462
  %v464 = vpop.f32.mrf.mxu0
  %v465 = vpop.f32.mrf.mxu0
  %v466 = vadd.f32 %v417, %v465
  %v467 = vpop.f32.mrf.mxu0
  %468 = vmatprep.mubr.bf16.mxu0 %v146
  %469 = vmatmul.mubr.bf16.gmra.mxu0 %v145
  %v470 = vpop.f32.mrf.mxu0
  %v471 = vadd.f32 %v422, %v470
  %v472 = vpop.f32.mrf.mxu0
  %v473 = vpop.f32.mrf.mxu0
  %v474 = vadd.f32 %v425, %v473
  %v475 = vpop.f32.mrf.mxu0
  %476 = vdwg.mxu0
  %477 = vmatprep.subr.bf16.mxu0 0
  %478 = vmatpush1.bf16.msra.mxu0 0
  %479 = vmatprep.subr.bf16.mxu0 0
  %480 = vmatpush1.bf16.msra.mxu0 0
  %481 = vmatprep.subr.bf16.mxu0 0
  %482 = vmatpush1.bf16.msra.mxu0 0
  %483 = vmatprep.subr.bf16.mxu0 0
  %484 = vmatpush1.bf16.msra.mxu0 0
  %485 = vmatprep.subr.bf16.mxu0 0
  %486 = vmatpush1.bf16.msra.mxu0 %v335
  %487 = vmatprep.subr.bf16.mxu0 0
  %488 = vmatpush1.bf16.msra.mxu0 %v334
  %489 = vmatprep.subr.bf16.mxu0 0
  %490 = vmatpush1.bf16.msra.mxu0 %v333
  %491 = vmatprep.subr.bf16.mxu0 0
  %492 = vmatpush1.bf16.msra.mxu0 %v332
  %493 = vmatprep.subr.bf16.mxu0 0
  %494 = vmatpush2.bf16.msra.mxu0 0
  %495 = vmatprep.subr.bf16.mxu0 0
  %496 = vmatpush2.bf16.msra.mxu0 0
  %497 = vmatprep.subr.bf16.mxu0 0
  %498 = vmatpush2.bf16.msra.mxu0 0
  %499 = vmatprep.subr.bf16.mxu0 0
  %500 = vmatpush2.bf16.msra.mxu0 0
  %501 = vmatprep.subr.bf16.mxu0 0
  %502 = vmatpush2.bf16.msra.mxu0 0
  %503 = vmatprep.subr.bf16.mxu0 0
  %504 = vmatpush2.bf16.msra.mxu0 0
  %505 = vmatprep.subr.bf16.mxu0 0
  %506 = vmatpush2.bf16.msra.mxu0 0
  %507 = vmatprep.subr.bf16.mxu0 0
  %508 = vmatpush2.bf16.msra.mxu0 0
  %509 = vmatprep.mubr.bf16.mxu0 0
  %510 = vmatmul.mubr.bf16.gmra.mxu0 %v374
  %v511 = vpop.f32.mrf.mxu0
  %v512 = vadd.f32 %v463, %v511
  %v513 = vpop.f32.mrf.mxu0
  %v514 = vpop.f32.mrf.mxu0
  %v515 = vadd.f32 %v466, %v514
  %v516 = vpop.f32.mrf.mxu0
  %517 = vmatprep.mubr.bf16.mxu0 0
  %518 = vmatmul.mubr.bf16.gmra.mxu0 %v377
  %v519 = vpop.f32.mrf.mxu0
  %v520 = vadd.f32 %v471, %v519
  %v521 = vpop.f32.mrf.mxu0
  %v522 = vpop.f32.mrf.mxu0
  %v523 = vadd.f32 %v474, %v522
  %v524 = vpop.f32.mrf.mxu0
  %525 = vdwg.mxu0
  %526 = vst [vmem:[%s3] sm:$0xff] %v512
  %527 = vst [vmem:[%s3 + $0x8] sm:$0xff] %v515
  %528 = vst [vmem:[%s3 + $0x10] sm:$0xff] %v520
  %529 = vst [vmem:[%s3 + $0x18] sm:$0xff] %v523
  // Predicated region
  $region14: #{forward.35} parent=0 // pred_check
    _
  $region15: #{forward.35} parent=0 // pred_check_branch
    %531 = sbr.rel (0) target = $region17
  $region16: #{forward.35} parent=0 // pred_region
    _
  $region17: #{forward.35} parent=0 // pred_fallthru
    _
  // Predicated region
  $region18: #{forward.35} parent=0 // pred_check
    _
  $region19: #{forward.35} parent=0 // pred_check_branch
    %533 = sbr.rel (0) target = $region21
  $region20: #{forward.35} parent=0 // pred_region
    _
  $region21: #{forward.35} parent=0 // pred_fallthru
    _

// kernel: tile.173
$region0: #{tile.173}
  #allocation0 [shape = 's32[1]{0}', space=sflag, size = 0x4, scoped, tag = 'scoped memory for tile.173']
  %s0 = inlined_call_operand.vmem [shape: f32[128], index: 0, kind: input, shape index: {}]
  %s1 = inlined_call_operand.vmem [shape: f32[4,128], index: 1, kind: output, shape index: {}]
  // Predicated region
  $region2: #{tile.173} parent=0 // pred_check
    _
  $region3: #{tile.173} parent=0 // pred_check_branch
    %3 = sbr.rel (0) target = $region5
  $region4: #{tile.173} parent=0 // pred_region
    _
  $region5: #{tile.173} parent=0 // pred_fallthru
    _
  %v4 = vld [vmem:[%s0] ss:$0 sm:$0xff]
  %5 = vst [vmem:[%s1] sm:$0xf] %v4

// kernel: forward.36
$region0: #{forward.36}
  #allocation0 [shape = 'u32[]', space=smem, size = 0x4, offset = 0x4, fixed_abs, tag = 'smem constant byte address 0x4 - core index']
  #allocation1 [shape = 'u32[144,128]{1,0:T(1,128)}', space=vmem, size = 0x12000, scoped, tag = 'internal scratch']
  %s0 = inlined_call_operand.vmem [shape: f32[8,512], index: 0, kind: input, shape index: {}]
  %s1 = inlined_call_operand.vmem [shape: f32[1,512], index: 1, kind: input, shape index: {}]
  %s2 = inlined_call_operand.vmem [shape: f32[1,512], index: 2, kind: input, shape index: {}]
  %s3 = inlined_call_operand.vmem [shape: f32[8,512], index: 3, kind: output, shape index: {}]
  %s4 = sld [smem:[#allocation0]]
  $region22: #{forward.36} parent=0
    _
  %s6 = ssub.s32 1, %s4
  %s7 = scalar_select 0, %s6, %s4
  // Predicated region
  $region2: #{forward.36} parent=0 // pred_check
    _
  $region3: #{forward.36} parent=0 // pred_check_branch
    %9 = sbr.rel (0) target = $region5
  $region4: #{forward.36} parent=0 // pred_region
    _
  $region5: #{forward.36} parent=0 // pred_fallthru
    _
  // Predicated region
  $region6: #{forward.36} parent=0 // pred_check
    _
  $region7: #{forward.36} parent=0 // pred_check_branch
    %11 = sbr.rel (0) target = $region9
  $region8: #{forward.36} parent=0 // pred_region
    _
  $region9: #{forward.36} parent=0 // pred_fallthru
    _
  // Predicated region
  $region10: #{forward.36} parent=0 // pred_check
    _
  $region11: #{forward.36} parent=0 // pred_check_branch
    %13 = sbr.rel (0) target = $region13
  $region12: #{forward.36} parent=0 // pred_region
    _
  $region13: #{forward.36} parent=0 // pred_fallthru
    _
  %v14 = vld [vmem:[%s0] sm:$0xff]
  %v15 = vld [vmem:[%s0 + $0x8] sm:$0xff]
  %v16 = vld [vmem:[%s0 + $0x10] sm:$0xff]
  %v17 = vld [vmem:[%s0 + $0x18] sm:$0xff]
  %v18 = vld [vmem:[%s1] sm:$0xf]
  %v20 = vlaneseq
  %v21 = vshrl.u32 %v20, 7
  %v22 = vsub.s32 0, %v21
  %v23 = vrot.slane %v18, %v22
  %v24 = vlaneseq
  %v25 = vshrl.u32 %v24, 7
  %v26 = vsub.s32 1, %v25
  %v27 = vrot.slane %v18, %v26
  %v28 = vlaneseq
  %v29 = vshrl.u32 %v28, 7
  %v30 = vsub.s32 2, %v29
  %v31 = vrot.slane %v18, %v30
  %v32 = vlaneseq
  %v33 = vshrl.u32 %v32, 7
  %v34 = vsub.s32 3, %v33
  %v35 = vrot.slane %v18, %v34
  %v40 = vmul.f32 %v14, %v23
  %v41 = vmul.f32 %v15, %v27
  %v42 = vmul.f32 %v16, %v31
  %v43 = vmul.f32 %v17, %v35
  %v44 = vld [vmem:[%s2] sm:$0xf]
  %v46 = vlaneseq
  %v47 = vshrl.u32 %v46, 7
  %v48 = vsub.s32 0, %v47
  %v49 = vrot.slane %v44, %v48
  %v50 = vlaneseq
  %v51 = vshrl.u32 %v50, 7
  %v52 = vsub.s32 1, %v51
  %v53 = vrot.slane %v44, %v52
  %v54 = vlaneseq
  %v55 = vshrl.u32 %v54, 7
  %v56 = vsub.s32 2, %v55
  %v57 = vrot.slane %v44, %v56
  %v58 = vlaneseq
  %v59 = vshrl.u32 %v58, 7
  %v60 = vsub.s32 3, %v59
  %v61 = vrot.slane %v44, %v60
  %v66 = vadd.f32 %v40, %v49
  %v67 = vadd.f32 %v41, %v53
  %v68 = vadd.f32 %v42, %v57
  %v69 = vadd.f32 %v43, %v61
  %v70 = vmax.f32 %v66, 0.0
  %v71 = vmax.f32 %v67, 0.0
  %v72 = vmax.f32 %v68, 0.0
  %v73 = vmax.f32 %v69, 0.0
  %74 = vst [vmem:[%s3] sm:$0xff] %v70
  %75 = vst [vmem:[%s3 + $0x8] sm:$0xff] %v71
  %76 = vst [vmem:[%s3 + $0x10] sm:$0xff] %v72
  %77 = vst [vmem:[%s3 + $0x18] sm:$0xff] %v73
  // Predicated region
  $region14: #{forward.36} parent=0 // pred_check
    _
  $region15: #{forward.36} parent=0 // pred_check_branch
    %79 = sbr.rel (0) target = $region17
  $region16: #{forward.36} parent=0 // pred_region
    _
  $region17: #{forward.36} parent=0 // pred_fallthru
    _
  // Predicated region
  $region18: #{forward.36} parent=0 // pred_check
    _
  $region19: #{forward.36} parent=0 // pred_check_branch
    %81 = sbr.rel (0) target = $region21
  $region20: #{forward.36} parent=0 // pred_region
    _
  $region21: #{forward.36} parent=0 // pred_fallthru
    _

// kernel: forward.37
$region0: #{forward.37}
  #allocation0 [shape = 'u32[]', space=smem, size = 0x4, offset = 0x4, fixed_abs, tag = 'smem constant byte address 0x4 - core index']
  #allocation1 [shape = 'u32[144,128]{1,0:T(1,128)}', space=vmem, size = 0x12000, scoped, tag = 'internal scratch']
  %s0 = inlined_call_operand.vmem [shape: bf16[32,1152], index: 0, kind: input, shape index: {}]
  %s1 = inlined_call_operand.vmem [shape: bf16[1152,128], index: 1, kind: input, shape index: {}]
  %s2 = inlined_call_operand.vmem [shape: f32[1,128], index: 2, kind: input, shape index: {}]
  %s3 = inlined_call_operand.vmem [shape: f32[32,128], index: 3, kind: output, shape index: {}]
  %s4 = sld [smem:[#allocation0]]
  $region22: #{forward.37} parent=0
    _
  %s6 = ssub.s32 1, %s4
  %s7 = scalar_select 0, %s6, %s4
  // Predicated region
  $region2: #{forward.37} parent=0 // pred_check
    _
  $region3: #{forward.37} parent=0 // pred_check_branch
    %9 = sbr.rel (0) target = $region5
  $region4: #{forward.37} parent=0 // pred_region
    _
  $region5: #{forward.37} parent=0 // pred_fallthru
    _
  // Predicated region
  $region6: #{forward.37} parent=0 // pred_check
    _
  $region7: #{forward.37} parent=0 // pred_check_branch
    %11 = sbr.rel (0) target = $region9
  $region8: #{forward.37} parent=0 // pred_region
    _
  $region9: #{forward.37} parent=0 // pred_fallthru
    _
  // Predicated region
  $region10: #{forward.37} parent=0 // pred_check
    _
  $region11: #{forward.37} parent=0 // pred_check_branch
    %13 = sbr.rel (0) target = $region13
  $region12: #{forward.37} parent=0 // pred_region
    _
  $region13: #{forward.37} parent=0 // pred_fallthru
    _
  %v15 = vld [vmem:[%s0] sm:$0xff]
  %v16 = vld [vmem:[%s0 + $0x8] sm:$0xff]
  %v17 = vld [vmem:[%s0 + $0x10] sm:$0xff]
  %v18 = vld [vmem:[%s0 + $0x18] sm:$0xff]
  %v19 = vld [vmem:[%s0 + $0x20] sm:$0xf]
  %v20 = vld [vmem:[%s0 + $0x24] sm:$0xff]
  %v21 = vld [vmem:[%s0 + $0x2c] sm:$0xff]
  %v22 = vld [vmem:[%s0 + $0x34] sm:$0xff]
  %v23 = vld [vmem:[%s0 + $0x3c] sm:$0xff]
  %v24 = vld [vmem:[%s0 + $0x44] sm:$0xf]
  %v25 = vld [vmem:[%s0 + $0x48] sm:$0xff]
  %v26 = vld [vmem:[%s0 + $0x50] sm:$0xff]
  %v27 = vld [vmem:[%s0 + $0x58] sm:$0xff]
  %v28 = vld [vmem:[%s0 + $0x60] sm:$0xff]
  %v29 = vld [vmem:[%s0 + $0x68] sm:$0xf]
  %v30 = vld [vmem:[%s0 + $0x6c] sm:$0xff]
  %v31 = vld [vmem:[%s0 + $0x74] sm:$0xff]
  %v32 = vld [vmem:[%s0 + $0x7c] sm:$0xff]
  %v33 = vld [vmem:[%s0 + $0x84] sm:$0xff]
  %v34 = vld [vmem:[%s0 + $0x8c] sm:$0xf]
  %v35 = vld [vmem:[%s1] sm:$0xf]
  %v36 = vld [vmem:[%s1 + $0x4] sm:$0xf]
  %v37 = vld [vmem:[%s1 + $0x8] sm:$0xf]
  %v38 = vld [vmem:[%s1 + $0xc] sm:$0xf]
  %v39 = vld [vmem:[%s1 + $0x10] sm:$0xf]
  %v40 = vld [vmem:[%s1 + $0x14] sm:$0xf]
  %v41 = vld [vmem:[%s1 + $0x18] sm:$0xf]
  %v42 = vld [vmem:[%s1 + $0x1c] sm:$0xf]
  %v43 = vld [vmem:[%s1 + $0x20] sm:$0xf]
  %v44 = vld [vmem:[%s1 + $0x24] sm:$0xf]
  %v45 = vld [vmem:[%s1 + $0x28] sm:$0xf]
  %v46 = vld [vmem:[%s1 + $0x2c] sm:$0xf]
  %v47 = vld [vmem:[%s1 + $0x30] sm:$0xf]
  %v48 = vld [vmem:[%s1 + $0x34] sm:$0xf]
  %v49 = vld [vmem:[%s1 + $0x38] sm:$0xf]
  %v50 = vld [vmem:[%s1 + $0x3c] sm:$0xf]
  %v51 = vld [vmem:[%s1 + $0x40] sm:$0xf]
  %v52 = vld [vmem:[%s1 + $0x44] sm:$0xf]
  %v53 = vld [vmem:[%s1 + $0x48] sm:$0xf]
  %v54 = vld [vmem:[%s1 + $0x4c] sm:$0xf]
  %v55 = vld [vmem:[%s1 + $0x50] sm:$0xf]
  %v56 = vld [vmem:[%s1 + $0x54] sm:$0xf]
  %v57 = vld [vmem:[%s1 + $0x58] sm:$0xf]
  %v58 = vld [vmem:[%s1 + $0x5c] sm:$0xf]
  %v59 = vld [vmem:[%s1 + $0x60] sm:$0xf]
  %v60 = vld [vmem:[%s1 + $0x64] sm:$0xf]
  %v61 = vld [vmem:[%s1 + $0x68] sm:$0xf]
  %v62 = vld [vmem:[%s1 + $0x6c] sm:$0xf]
  %v63 = vld [vmem:[%s1 + $0x70] sm:$0xf]
  %v64 = vld [vmem:[%s1 + $0x74] sm:$0xf]
  %v65 = vld [vmem:[%s1 + $0x78] sm:$0xf]
  %v66 = vld [vmem:[%s1 + $0x7c] sm:$0xf]
  %v67 = vld [vmem:[%s1 + $0x80] sm:$0xf]
  %v68 = vld [vmem:[%s1 + $0x84] sm:$0xf]
  %v69 = vld [vmem:[%s1 + $0x88] sm:$0xf]
  %v70 = vld [vmem:[%s1 + $0x8c] sm:$0xf]
  %v71 = vld [vmem:[%s1 + $0x90] sm:$0xf]
  %v72 = vld [vmem:[%s1 + $0x94] sm:$0xf]
  %v73 = vld [vmem:[%s1 + $0x98] sm:$0xf]
  %v74 = vld [vmem:[%s1 + $0x9c] sm:$0xf]
  %v75 = vld [vmem:[%s1 + $0xa0] sm:$0xf]
  %v76 = vld [vmem:[%s1 + $0xa4] sm:$0xf]
  %v77 = vld [vmem:[%s1 + $0xa8] sm:$0xf]
  %v78 = vld [vmem:[%s1 + $0xac] sm:$0xf]
  %v79 = vld [vmem:[%s1 + $0xb0] sm:$0xf]
  %v80 = vld [vmem:[%s1 + $0xb4] sm:$0xf]
  %v81 = vld [vmem:[%s1 + $0xb8] sm:$0xf]
  %v82 = vld [vmem:[%s1 + $0xbc] sm:$0xf]
  %v83 = vld [vmem:[%s1 + $0xc0] sm:$0xf]
  %v84 = vld [vmem:[%s1 + $0xc4] sm:$0xf]
  %v85 = vld [vmem:[%s1 + $0xc8] sm:$0xf]
  %v86 = vld [vmem:[%s1 + $0xcc] sm:$0xf]
  %v87 = vld [vmem:[%s1 + $0xd0] sm:$0xf]
  %v88 = vld [vmem:[%s1 + $0xd4] sm:$0xf]
  %v89 = vld [vmem:[%s1 + $0xd8] sm:$0xf]
  %v90 = vld [vmem:[%s1 + $0xdc] sm:$0xf]
  %v91 = vld [vmem:[%s1 + $0xe0] sm:$0xf]
  %v92 = vld [vmem:[%s1 + $0xe4] sm:$0xf]
  %v93 = vld [vmem:[%s1 + $0xe8] sm:$0xf]
  %v94 = vld [vmem:[%s1 + $0xec] sm:$0xf]
  %v95 = vld [vmem:[%s1 + $0xf0] sm:$0xf]
  %v96 = vld [vmem:[%s1 + $0xf4] sm:$0xf]
  %v97 = vld [vmem:[%s1 + $0xf8] sm:$0xf]
  %v98 = vld [vmem:[%s1 + $0xfc] sm:$0xf]
  %v99 = vld [vmem:[%s1 + $0x100] sm:$0xf]
  %v100 = vld [vmem:[%s1 + $0x104] sm:$0xf]
  %v101 = vld [vmem:[%s1 + $0x108] sm:$0xf]
  %v102 = vld [vmem:[%s1 + $0x10c] sm:$0xf]
  %v103 = vld [vmem:[%s1 + $0x110] sm:$0xf]
  %v104 = vld [vmem:[%s1 + $0x114] sm:$0xf]
  %v105 = vld [vmem:[%s1 + $0x118] sm:$0xf]
  %v106 = vld [vmem:[%s1 + $0x11c] sm:$0xf]
  %v107 = vld [vmem:[%s1 + $0x120] sm:$0xf]
  %v108 = vld [vmem:[%s1 + $0x124] sm:$0xf]
  %v109 = vld [vmem:[%s1 + $0x128] sm:$0xf]
  %v110 = vld [vmem:[%s1 + $0x12c] sm:$0xf]
  %v111 = vld [vmem:[%s1 + $0x130] sm:$0xf]
  %v112 = vld [vmem:[%s1 + $0x134] sm:$0xf]
  %v113 = vld [vmem:[%s1 + $0x138] sm:$0xf]
  %v114 = vld [vmem:[%s1 + $0x13c] sm:$0xf]
  %v115 = vld [vmem:[%s1 + $0x140] sm:$0xf]
  %v116 = vld [vmem:[%s1 + $0x144] sm:$0xf]
  %v117 = vld [vmem:[%s1 + $0x148] sm:$0xf]
  %v118 = vld [vmem:[%s1 + $0x14c] sm:$0xf]
  %v119 = vld [vmem:[%s1 + $0x150] sm:$0xf]
  %v120 = vld [vmem:[%s1 + $0x154] sm:$0xf]
  %v121 = vld [vmem:[%s1 + $0x158] sm:$0xf]
  %v122 = vld [vmem:[%s1 + $0x15c] sm:$0xf]
  %v123 = vld [vmem:[%s1 + $0x160] sm:$0xf]
  %v124 = vld [vmem:[%s1 + $0x164] sm:$0xf]
  %v125 = vld [vmem:[%s1 + $0x168] sm:$0xf]
  %v126 = vld [vmem:[%s1 + $0x16c] sm:$0xf]
  %v127 = vld [vmem:[%s1 + $0x170] sm:$0xf]
  %v128 = vld [vmem:[%s1 + $0x174] sm:$0xf]
  %v129 = vld [vmem:[%s1 + $0x178] sm:$0xf]
  %v130 = vld [vmem:[%s1 + $0x17c] sm:$0xf]
  %v131 = vld [vmem:[%s1 + $0x180] sm:$0xf]
  %v132 = vld [vmem:[%s1 + $0x184] sm:$0xf]
  %v133 = vld [vmem:[%s1 + $0x188] sm:$0xf]
  %v134 = vld [vmem:[%s1 + $0x18c] sm:$0xf]
  %v135 = vld [vmem:[%s1 + $0x190] sm:$0xf]
  %v136 = vld [vmem:[%s1 + $0x194] sm:$0xf]
  %v137 = vld [vmem:[%s1 + $0x198] sm:$0xf]
  %v138 = vld [vmem:[%s1 + $0x19c] sm:$0xf]
  %v139 = vld [vmem:[%s1 + $0x1a0] sm:$0xf]
  %v140 = vld [vmem:[%s1 + $0x1a4] sm:$0xf]
  %v141 = vld [vmem:[%s1 + $0x1a8] sm:$0xf]
  %v142 = vld [vmem:[%s1 + $0x1ac] sm:$0xf]
  %v143 = vld [vmem:[%s1 + $0x1b0] sm:$0xf]
  %v144 = vld [vmem:[%s1 + $0x1b4] sm:$0xf]
  %v145 = vld [vmem:[%s1 + $0x1b8] sm:$0xf]
  %v146 = vld [vmem:[%s1 + $0x1bc] sm:$0xf]
  %v147 = vld [vmem:[%s1 + $0x1c0] sm:$0xf]
  %v148 = vld [vmem:[%s1 + $0x1c4] sm:$0xf]
  %v149 = vld [vmem:[%s1 + $0x1c8] sm:$0xf]
  %v150 = vld [vmem:[%s1 + $0x1cc] sm:$0xf]
  %v151 = vld [vmem:[%s1 + $0x1d0] sm:$0xf]
  %v152 = vld [vmem:[%s1 + $0x1d4] sm:$0xf]
  %v153 = vld [vmem:[%s1 + $0x1d8] sm:$0xf]
  %v154 = vld [vmem:[%s1 + $0x1dc] sm:$0xf]
  %v155 = vld [vmem:[%s1 + $0x1e0] sm:$0xf]
  %v156 = vld [vmem:[%s1 + $0x1e4] sm:$0xf]
  %v157 = vld [vmem:[%s1 + $0x1e8] sm:$0xf]
  %v158 = vld [vmem:[%s1 + $0x1ec] sm:$0xf]
  %v159 = vld [vmem:[%s1 + $0x1f0] sm:$0xf]
  %v160 = vld [vmem:[%s1 + $0x1f4] sm:$0xf]
  %v161 = vld [vmem:[%s1 + $0x1f8] sm:$0xf]
  %v162 = vld [vmem:[%s1 + $0x1fc] sm:$0xf]
  %v163 = vld [vmem:[%s1 + $0x200] sm:$0xf]
  %v164 = vld [vmem:[%s1 + $0x204] sm:$0xf]
  %v165 = vld [vmem:[%s1 + $0x208] sm:$0xf]
  %v166 = vld [vmem:[%s1 + $0x20c] sm:$0xf]
  %v167 = vld [vmem:[%s1 + $0x210] sm:$0xf]
  %v168 = vld [vmem:[%s1 + $0x214] sm:$0xf]
  %v169 = vld [vmem:[%s1 + $0x218] sm:$0xf]
  %v170 = vld [vmem:[%s1 + $0x21c] sm:$0xf]
  %v171 = vld [vmem:[%s1 + $0x220] sm:$0xf]
  %v172 = vld [vmem:[%s1 + $0x224] sm:$0xf]
  %v173 = vld [vmem:[%s1 + $0x228] sm:$0xf]
  %v174 = vld [vmem:[%s1 + $0x22c] sm:$0xf]
  %v175 = vld [vmem:[%s1 + $0x230] sm:$0xf]
  %v176 = vld [vmem:[%s1 + $0x234] sm:$0xf]
  %v177 = vld [vmem:[%s1 + $0x238] sm:$0xf]
  %v178 = vld [vmem:[%s1 + $0x23c] sm:$0xf]
  %v179 = vld [vmem:[%s2] sm:$0x1]
  %v181 = vlaneseq
  %v182 = vshrl.u32 %v181, 7
  %v183 = vsub.s32 0, %v182
  %v184 = vrot.slane %v179, %v183
  %v206 = vunpack.c.l.b16 %v15
  %v207 = vunpack.c.h.b16 %v15
  %v208 = vunpack.c.l.b16 %v16
  %v209 = vunpack.c.h.b16 %v16
  %v210 = vunpack.c.l.b16 %v17
  %v211 = vunpack.c.h.b16 %v17
  %v212 = vunpack.c.l.b16 %v18
  %v213 = vunpack.c.h.b16 %v18
  %v214 = vunpack.c.l.b16 %v19
  %v215 = vunpack.c.l.b16 %v20
  %v216 = vunpack.c.h.b16 %v20
  %v217 = vunpack.c.l.b16 %v21
  %v218 = vunpack.c.h.b16 %v21
  %v219 = vunpack.c.l.b16 %v22
  %v220 = vunpack.c.h.b16 %v22
  %v221 = vunpack.c.l.b16 %v23
  %v222 = vunpack.c.h.b16 %v23
  %v223 = vunpack.c.l.b16 %v24
  %v224 = vunpack.c.l.b16 %v25
  %v225 = vunpack.c.h.b16 %v25
  %v226 = vunpack.c.l.b16 %v26
  %v227 = vunpack.c.h.b16 %v26
  %v228 = vunpack.c.l.b16 %v27
  %v229 = vunpack.c.h.b16 %v27
  %v230 = vunpack.c.l.b16 %v28
  %v231 = vunpack.c.h.b16 %v28
  %v232 = vunpack.c.l.b16 %v29
  %v233 = vunpack.c.l.b16 %v30
  %v234 = vunpack.c.h.b16 %v30
  %v235 = vunpack.c.l.b16 %v31
  %v236 = vunpack.c.h.b16 %v31
  %v237 = vunpack.c.l.b16 %v32
  %v238 = vunpack.c.h.b16 %v32
  %v239 = vunpack.c.l.b16 %v33
  %v240 = vunpack.c.h.b16 %v33
  %v241 = vunpack.c.l.b16 %v34
  %v242 = vpack.c.b16 %v215, %v206
  %v243 = vpack.c.b16 %v216, %v207
  %v244 = vpack.c.b16 %v217, %v208
  %v245 = vpack.c.b16 %v218, %v209
  %v246 = vpack.c.b16 %v219, %v210
  %v247 = vpack.c.b16 %v220, %v211
  %v248 = vpack.c.b16 %v221, %v212
  %v249 = vpack.c.b16 %v222, %v213
  %v250 = vpack.c.b16 %v223, %v214
  %v251 = vpack.c.b16 %v233, %v224
  %v252 = vpack.c.b16 %v234, %v225
  %v253 = vpack.c.b16 %v235, %v226
  %v254 = vpack.c.b16 %v236, %v227
  %v255 = vpack.c.b16 %v237, %v228
  %v256 = vpack.c.b16 %v238, %v229
  %v257 = vpack.c.b16 %v239, %v230
  %v258 = vpack.c.b16 %v240, %v231
  %v259 = vpack.c.b16 %v241, %v232
  %v422 = vunpack.c.l.b16 %v35
  %v423 = vunpack.c.l.b16 %v36
  %v424 = vunpack.c.l.b16 %v37
  %v425 = vunpack.c.l.b16 %v38
  %v426 = vunpack.c.l.b16 %v39
  %v427 = vunpack.c.l.b16 %v40
  %v428 = vunpack.c.l.b16 %v41
  %v429 = vunpack.c.l.b16 %v42
  %v430 = vunpack.c.l.b16 %v43
  %v431 = vunpack.c.l.b16 %v44
  %v432 = vunpack.c.l.b16 %v45
  %v433 = vunpack.c.l.b16 %v46
  %v434 = vunpack.c.l.b16 %v47
  %v435 = vunpack.c.l.b16 %v48
  %v436 = vunpack.c.l.b16 %v49
  %v437 = vunpack.c.l.b16 %v50
  %v438 = vunpack.c.l.b16 %v51
  %v439 = vunpack.c.l.b16 %v52
  %v440 = vunpack.c.l.b16 %v53
  %v441 = vunpack.c.l.b16 %v54
  %v442 = vunpack.c.l.b16 %v55
  %v443 = vunpack.c.l.b16 %v56
  %v444 = vunpack.c.l.b16 %v57
  %v445 = vunpack.c.l.b16 %v58
  %v446 = vunpack.c.l.b16 %v59
  %v447 = vunpack.c.l.b16 %v60
  %v448 = vunpack.c.l.b16 %v61
  %v449 = vunpack.c.l.b16 %v62
  %v450 = vunpack.c.l.b16 %v63
  %v451 = vunpack.c.l.b16 %v64
  %v452 = vunpack.c.l.b16 %v65
  %v453 = vunpack.c.l.b16 %v66
  %v454 = vunpack.c.l.b16 %v67
  %v455 = vunpack.c.l.b16 %v68
  %v456 = vunpack.c.l.b16 %v69
  %v457 = vunpack.c.l.b16 %v70
  %v458 = vunpack.c.l.b16 %v71
  %v459 = vunpack.c.l.b16 %v72
  %v460 = vunpack.c.l.b16 %v73
  %v461 = vunpack.c.l.b16 %v74
  %v462 = vunpack.c.l.b16 %v75
  %v463 = vunpack.c.l.b16 %v76
  %v464 = vunpack.c.l.b16 %v77
  %v465 = vunpack.c.l.b16 %v78
  %v466 = vunpack.c.l.b16 %v79
  %v467 = vunpack.c.l.b16 %v80
  %v468 = vunpack.c.l.b16 %v81
  %v469 = vunpack.c.l.b16 %v82
  %v470 = vunpack.c.l.b16 %v83
  %v471 = vunpack.c.l.b16 %v84
  %v472 = vunpack.c.l.b16 %v85
  %v473 = vunpack.c.l.b16 %v86
  %v474 = vunpack.c.l.b16 %v87
  %v475 = vunpack.c.l.b16 %v88
  %v476 = vunpack.c.l.b16 %v89
  %v477 = vunpack.c.l.b16 %v90
  %v478 = vunpack.c.l.b16 %v91
  %v479 = vunpack.c.l.b16 %v92
  %v480 = vunpack.c.l.b16 %v93
  %v481 = vunpack.c.l.b16 %v94
  %v482 = vunpack.c.l.b16 %v95
  %v483 = vunpack.c.l.b16 %v96
  %v484 = vunpack.c.l.b16 %v97
  %v485 = vunpack.c.l.b16 %v98
  %v486 = vunpack.c.l.b16 %v99
  %v487 = vunpack.c.l.b16 %v100
  %v488 = vunpack.c.l.b16 %v101
  %v489 = vunpack.c.l.b16 %v102
  %v490 = vunpack.c.l.b16 %v103
  %v491 = vunpack.c.l.b16 %v104
  %v492 = vunpack.c.l.b16 %v105
  %v493 = vunpack.c.l.b16 %v106
  %v494 = vunpack.c.l.b16 %v107
  %v495 = vunpack.c.l.b16 %v108
  %v496 = vunpack.c.l.b16 %v109
  %v497 = vunpack.c.l.b16 %v110
  %v498 = vunpack.c.l.b16 %v111
  %v499 = vunpack.c.l.b16 %v112
  %v500 = vunpack.c.l.b16 %v113
  %v501 = vunpack.c.l.b16 %v114
  %v502 = vunpack.c.l.b16 %v115
  %v503 = vunpack.c.l.b16 %v116
  %v504 = vunpack.c.l.b16 %v117
  %v505 = vunpack.c.l.b16 %v118
  %v506 = vunpack.c.l.b16 %v119
  %v507 = vunpack.c.l.b16 %v120
  %v508 = vunpack.c.l.b16 %v121
  %v509 = vunpack.c.l.b16 %v122
  %v510 = vunpack.c.l.b16 %v123
  %v511 = vunpack.c.l.b16 %v124
  %v512 = vunpack.c.l.b16 %v125
  %v513 = vunpack.c.l.b16 %v126
  %v514 = vunpack.c.l.b16 %v127
  %v515 = vunpack.c.l.b16 %v128
  %v516 = vunpack.c.l.b16 %v129
  %v517 = vunpack.c.l.b16 %v130
  %v518 = vunpack.c.l.b16 %v131
  %v519 = vunpack.c.l.b16 %v132
  %v520 = vunpack.c.l.b16 %v133
  %v521 = vunpack.c.l.b16 %v134
  %v522 = vunpack.c.l.b16 %v135
  %v523 = vunpack.c.l.b16 %v136
  %v524 = vunpack.c.l.b16 %v137
  %v525 = vunpack.c.l.b16 %v138
  %v526 = vunpack.c.l.b16 %v139
  %v527 = vunpack.c.l.b16 %v140
  %v528 = vunpack.c.l.b16 %v141
  %v529 = vunpack.c.l.b16 %v142
  %v530 = vunpack.c.l.b16 %v143
  %v531 = vunpack.c.l.b16 %v144
  %v532 = vunpack.c.l.b16 %v145
  %v533 = vunpack.c.l.b16 %v146
  %v534 = vunpack.c.l.b16 %v147
  %v535 = vunpack.c.l.b16 %v148
  %v536 = vunpack.c.l.b16 %v149
  %v537 = vunpack.c.l.b16 %v150
  %v538 = vunpack.c.l.b16 %v151
  %v539 = vunpack.c.l.b16 %v152
  %v540 = vunpack.c.l.b16 %v153
  %v541 = vunpack.c.l.b16 %v154
  %v542 = vunpack.c.l.b16 %v155
  %v543 = vunpack.c.l.b16 %v156
  %v544 = vunpack.c.l.b16 %v157
  %v545 = vunpack.c.l.b16 %v158
  %v546 = vunpack.c.l.b16 %v159
  %v547 = vunpack.c.l.b16 %v160
  %v548 = vunpack.c.l.b16 %v161
  %v549 = vunpack.c.l.b16 %v162
  %v550 = vunpack.c.l.b16 %v163
  %v551 = vunpack.c.l.b16 %v164
  %v552 = vunpack.c.l.b16 %v165
  %v553 = vunpack.c.l.b16 %v166
  %v554 = vunpack.c.l.b16 %v167
  %v555 = vunpack.c.l.b16 %v168
  %v556 = vunpack.c.l.b16 %v169
  %v557 = vunpack.c.l.b16 %v170
  %v558 = vunpack.c.l.b16 %v171
  %v559 = vunpack.c.l.b16 %v172
  %v560 = vunpack.c.l.b16 %v173
  %v561 = vunpack.c.l.b16 %v174
  %v562 = vunpack.c.l.b16 %v175
  %v563 = vunpack.c.l.b16 %v176
  %v564 = vunpack.c.l.b16 %v177
  %v565 = vunpack.c.l.b16 %v178
  %v566 = vpack.c.b16 %v423, %v422
  %v567 = vpack.c.b16 %v425, %v424
  %v568 = vpack.c.b16 %v427, %v426
  %v569 = vpack.c.b16 %v429, %v428
  %v570 = vpack.c.b16 %v431, %v430
  %v571 = vpack.c.b16 %v433, %v432
  %v572 = vpack.c.b16 %v435, %v434
  %v573 = vpack.c.b16 %v437, %v436
  %v574 = vpack.c.b16 %v439, %v438
  %v575 = vpack.c.b16 %v441, %v440
  %v576 = vpack.c.b16 %v443, %v442
  %v577 = vpack.c.b16 %v445, %v444
  %v578 = vpack.c.b16 %v447, %v446
  %v579 = vpack.c.b16 %v449, %v448
  %v580 = vpack.c.b16 %v451, %v450
  %v581 = vpack.c.b16 %v453, %v452
  %v582 = vpack.c.b16 %v455, %v454
  %v583 = vpack.c.b16 %v457, %v456
  %v584 = vpack.c.b16 %v459, %v458
  %v585 = vpack.c.b16 %v461, %v460
  %v586 = vpack.c.b16 %v463, %v462
  %v587 = vpack.c.b16 %v465, %v464
  %v588 = vpack.c.b16 %v467, %v466
  %v589 = vpack.c.b16 %v469, %v468
  %v590 = vpack.c.b16 %v471, %v470
  %v591 = vpack.c.b16 %v473, %v472
  %v592 = vpack.c.b16 %v475, %v474
  %v593 = vpack.c.b16 %v477, %v476
  %v594 = vpack.c.b16 %v479, %v478
  %v595 = vpack.c.b16 %v481, %v480
  %v596 = vpack.c.b16 %v483, %v482
  %v597 = vpack.c.b16 %v485, %v484
  %v598 = vpack.c.b16 %v487, %v486
  %v599 = vpack.c.b16 %v489, %v488
  %v600 = vpack.c.b16 %v491, %v490
  %v601 = vpack.c.b16 %v493, %v492
  %v602 = vpack.c.b16 %v495, %v494
  %v603 = vpack.c.b16 %v497, %v496
  %v604 = vpack.c.b16 %v499, %v498
  %v605 = vpack.c.b16 %v501, %v500
  %v606 = vpack.c.b16 %v503, %v502
  %v607 = vpack.c.b16 %v505, %v504
  %v608 = vpack.c.b16 %v507, %v506
  %v609 = vpack.c.b16 %v509, %v508
  %v610 = vpack.c.b16 %v511, %v510
  %v611 = vpack.c.b16 %v513, %v512
  %v612 = vpack.c.b16 %v515, %v514
  %v613 = vpack.c.b16 %v517, %v516
  %v614 = vpack.c.b16 %v519, %v518
  %v615 = vpack.c.b16 %v521, %v520
  %v616 = vpack.c.b16 %v523, %v522
  %v617 = vpack.c.b16 %v525, %v524
  %v618 = vpack.c.b16 %v527, %v526
  %v619 = vpack.c.b16 %v529, %v528
  %v620 = vpack.c.b16 %v531, %v530
  %v621 = vpack.c.b16 %v533, %v532
  %v622 = vpack.c.b16 %v535, %v534
  %v623 = vpack.c.b16 %v537, %v536
  %v624 = vpack.c.b16 %v539, %v538
  %v625 = vpack.c.b16 %v541, %v540
  %v626 = vpack.c.b16 %v543, %v542
  %v627 = vpack.c.b16 %v545, %v544
  %v628 = vpack.c.b16 %v547, %v546
  %v629 = vpack.c.b16 %v549, %v548
  %v630 = vpack.c.b16 %v551, %v550
  %v631 = vpack.c.b16 %v553, %v552
  %v632 = vpack.c.b16 %v555, %v554
  %v633 = vpack.c.b16 %v557, %v556
  %v634 = vpack.c.b16 %v559, %v558
  %v635 = vpack.c.b16 %v561, %v560
  %v636 = vpack.c.b16 %v563, %v562
  %v637 = vpack.c.b16 %v565, %v564
  %710 = vmatprep.subr.bf16.mxu0 0
  %711 = vmatpush1.bf16.msra.mxu0 %v573
  %712 = vmatprep.subr.bf16.mxu0 0
  %713 = vmatpush1.bf16.msra.mxu0 %v572
  %714 = vmatprep.subr.bf16.mxu0 0
  %715 = vmatpush1.bf16.msra.mxu0 %v571
  %716 = vmatprep.subr.bf16.mxu0 0
  %717 = vmatpush1.bf16.msra.mxu0 %v570
  %718 = vmatprep.subr.bf16.mxu0 0
  %719 = vmatpush1.bf16.msra.mxu0 %v569
  %720 = vmatprep.subr.bf16.mxu0 0
  %721 = vmatpush1.bf16.msra.mxu0 %v568
  %722 = vmatprep.subr.bf16.mxu0 0
  %723 = vmatpush1.bf16.msra.mxu0 %v567
  %724 = vmatprep.subr.bf16.mxu0 0
  %725 = vmatpush1.bf16.msra.mxu0 %v566
  %726 = vmatprep.subr.bf16.mxu0 0
  %727 = vmatpush2.bf16.msra.mxu0 %v581
  %728 = vmatprep.subr.bf16.mxu0 0
  %729 = vmatpush2.bf16.msra.mxu0 %v580
  %730 = vmatprep.subr.bf16.mxu0 0
  %731 = vmatpush2.bf16.msra.mxu0 %v579
  %732 = vmatprep.subr.bf16.mxu0 0
  %733 = vmatpush2.bf16.msra.mxu0 %v578
  %734 = vmatprep.subr.bf16.mxu0 0
  %735 = vmatpush2.bf16.msra.mxu0 %v577
  %736 = vmatprep.subr.bf16.mxu0 0
  %737 = vmatpush2.bf16.msra.mxu0 %v576
  %738 = vmatprep.subr.bf16.mxu0 0
  %739 = vmatpush2.bf16.msra.mxu0 %v575
  %740 = vmatprep.subr.bf16.mxu0 0
  %741 = vmatpush2.bf16.msra.mxu0 %v574
  %742 = vmatprep.mubr.bf16.mxu0 %v243
  %743 = vmatmul.mubr.bf16.gmra.mxu0 %v242
  %v744 = vpop.f32.mrf.mxu0
  %v745 = vadd.f32 %v184, %v744
  %v746 = vpop.f32.mrf.mxu0
  %v747 = vpop.f32.mrf.mxu0
  %v748 = vadd.f32 %v184, %v747
  %v749 = vpop.f32.mrf.mxu0
  %750 = vmatprep.mubr.bf16.mxu0 %v252
  %751 = vmatmul.mubr.bf16.gmra.mxu0 %v251
  %v752 = vpop.f32.mrf.mxu0
  %v753 = vadd.f32 %v184, %v752
  %v754 = vpop.f32.mrf.mxu0
  %v755 = vpop.f32.mrf.mxu0
  %v756 = vadd.f32 %v184, %v755
  %v757 = vpop.f32.mrf.mxu0
  %758 = vdwg.mxu0
  %759 = vmatprep.subr.bf16.mxu0 0
  %760 = vmatpush1.bf16.msra.mxu0 %v589
  %761 = vmatprep.subr.bf16.mxu0 0
  %762 = vmatpush1.bf16.msra.mxu0 %v588
  %763 = vmatprep.subr.bf16.mxu0 0
  %764 = vmatpush1.bf16.msra.mxu0 %v587
  %765 = vmatprep.subr.bf16.mxu0 0
  %766 = vmatpush1.bf16.msra.mxu0 %v586
  %767 = vmatprep.subr.bf16.mxu0 0
  %768 = vmatpush1.bf16.msra.mxu0 %v585
  %769 = vmatprep.subr.bf16.mxu0 0
  %770 = vmatpush1.bf16.msra.mxu0 %v584
  %771 = vmatprep.subr.bf16.mxu0 0
  %772 = vmatpush1.bf16.msra.mxu0 %v583
  %773 = vmatprep.subr.bf16.mxu0 0
  %774 = vmatpush1.bf16.msra.mxu0 %v582
  %775 = vmatprep.subr.bf16.mxu0 0
  %776 = vmatpush2.bf16.msra.mxu0 %v597
  %777 = vmatprep.subr.bf16.mxu0 0
  %778 = vmatpush2.bf16.msra.mxu0 %v596
  %779 = vmatprep.subr.bf16.mxu0 0
  %780 = vmatpush2.bf16.msra.mxu0 %v595
  %781 = vmatprep.subr.bf16.mxu0 0
  %782 = vmatpush2.bf16.msra.mxu0 %v594
  %783 = vmatprep.subr.bf16.mxu0 0
  %784 = vmatpush2.bf16.msra.mxu0 %v593
  %785 = vmatprep.subr.bf16.mxu0 0
  %786 = vmatpush2.bf16.msra.mxu0 %v592
  %787 = vmatprep.subr.bf16.mxu0 0
  %788 = vmatpush2.bf16.msra.mxu0 %v591
  %789 = vmatprep.subr.bf16.mxu0 0
  %790 = vmatpush2.bf16.msra.mxu0 %v590
  %791 = vmatprep.mubr.bf16.mxu0 %v245
  %792 = vmatmul.mubr.bf16.gmra.mxu0 %v244
  %v793 = vpop.f32.mrf.mxu0
  %v794 = vadd.f32 %v745, %v793
  %v795 = vpop.f32.mrf.mxu0
  %v796 = vpop.f32.mrf.mxu0
  %v797 = vadd.f32 %v748, %v796
  %v798 = vpop.f32.mrf.mxu0
  %799 = vmatprep.mubr.bf16.mxu0 %v254
  %800 = vmatmul.mubr.bf16.gmra.mxu0 %v253
  %v801 = vpop.f32.mrf.mxu0
  %v802 = vadd.f32 %v753, %v801
  %v803 = vpop.f32.mrf.mxu0
  %v804 = vpop.f32.mrf.mxu0
  %v805 = vadd.f32 %v756, %v804
  %v806 = vpop.f32.mrf.mxu0
  %807 = vdwg.mxu0
  %808 = vmatprep.subr.bf16.mxu0 0
  %809 = vmatpush1.bf16.msra.mxu0 %v605
  %810 = vmatprep.subr.bf16.mxu0 0
  %811 = vmatpush1.bf16.msra.mxu0 %v604
  %812 = vmatprep.subr.bf16.mxu0 0
  %813 = vmatpush1.bf16.msra.mxu0 %v603
  %814 = vmatprep.subr.bf16.mxu0 0
  %815 = vmatpush1.bf16.msra.mxu0 %v602
  %816 = vmatprep.subr.bf16.mxu0 0
  %817 = vmatpush1.bf16.msra.mxu0 %v601
  %818 = vmatprep.subr.bf16.mxu0 0
  %819 = vmatpush1.bf16.msra.mxu0 %v600
  %820 = vmatprep.subr.bf16.mxu0 0
  %821 = vmatpush1.bf16.msra.mxu0 %v599
  %822 = vmatprep.subr.bf16.mxu0 0
  %823 = vmatpush1.bf16.msra.mxu0 %v598
  %824 = vmatprep.subr.bf16.mxu0 0
  %825 = vmatpush2.bf16.msra.mxu0 %v613
  %826 = vmatprep.subr.bf16.mxu0 0
  %827 = vmatpush2.bf16.msra.mxu0 %v612
  %828 = vmatprep.subr.bf16.mxu0 0
  %829 = vmatpush2.bf16.msra.mxu0 %v611
  %830 = vmatprep.subr.bf16.mxu0 0
  %831 = vmatpush2.bf16.msra.mxu0 %v610
  %832 = vmatprep.subr.bf16.mxu0 0
  %833 = vmatpush2.bf16.msra.mxu0 %v609
  %834 = vmatprep.subr.bf16.mxu0 0
  %835 = vmatpush2.bf16.msra.mxu0 %v608
  %836 = vmatprep.subr.bf16.mxu0 0
  %837 = vmatpush2.bf16.msra.mxu0 %v607
  %838 = vmatprep.subr.bf16.mxu0 0
  %839 = vmatpush2.bf16.msra.mxu0 %v606
  %840 = vmatprep.mubr.bf16.mxu0 %v247
  %841 = vmatmul.mubr.bf16.gmra.mxu0 %v246
  %v842 = vpop.f32.mrf.mxu0
  %v843 = vadd.f32 %v794, %v842
  %v844 = vpop.f32.mrf.mxu0
  %v845 = vpop.f32.mrf.mxu0
  %v846 = vadd.f32 %v797, %v845
  %v847 = vpop.f32.mrf.mxu0
  %848 = vmatprep.mubr.bf16.mxu0 %v256
  %849 = vmatmul.mubr.bf16.gmra.mxu0 %v255
  %v850 = vpop.f32.mrf.mxu0
  %v851 = vadd.f32 %v802, %v850
  %v852 = vpop.f32.mrf.mxu0
  %v853 = vpop.f32.mrf.mxu0
  %v854 = vadd.f32 %v805, %v853
  %v855 = vpop.f32.mrf.mxu0
  %856 = vdwg.mxu0
  %857 = vmatprep.subr.bf16.mxu0 0
  %858 = vmatpush1.bf16.msra.mxu0 %v621
  %859 = vmatprep.subr.bf16.mxu0 0
  %860 = vmatpush1.bf16.msra.mxu0 %v620
  %861 = vmatprep.subr.bf16.mxu0 0
  %862 = vmatpush1.bf16.msra.mxu0 %v619
  %863 = vmatprep.subr.bf16.mxu0 0
  %864 = vmatpush1.bf16.msra.mxu0 %v618
  %865 = vmatprep.subr.bf16.mxu0 0
  %866 = vmatpush1.bf16.msra.mxu0 %v617
  %867 = vmatprep.subr.bf16.mxu0 0
  %868 = vmatpush1.bf16.msra.mxu0 %v616
  %869 = vmatprep.subr.bf16.mxu0 0
  %870 = vmatpush1.bf16.msra.mxu0 %v615
  %871 = vmatprep.subr.bf16.mxu0 0
  %872 = vmatpush1.bf16.msra.mxu0 %v614
  %873 = vmatprep.subr.bf16.mxu0 0
  %874 = vmatpush2.bf16.msra.mxu0 %v629
  %875 = vmatprep.subr.bf16.mxu0 0
  %876 = vmatpush2.bf16.msra.mxu0 %v628
  %877 = vmatprep.subr.bf16.mxu0 0
  %878 = vmatpush2.bf16.msra.mxu0 %v627
  %879 = vmatprep.subr.bf16.mxu0 0
  %880 = vmatpush2.bf16.msra.mxu0 %v626
  %881 = vmatprep.subr.bf16.mxu0 0
  %882 = vmatpush2.bf16.msra.mxu0 %v625
  %883 = vmatprep.subr.bf16.mxu0 0
  %884 = vmatpush2.bf16.msra.mxu0 %v624
  %885 = vmatprep.subr.bf16.mxu0 0
  %886 = vmatpush2.bf16.msra.mxu0 %v623
  %887 = vmatprep.subr.bf16.mxu0 0
  %888 = vmatpush2.bf16.msra.mxu0 %v622
  %889 = vmatprep.mubr.bf16.mxu0 %v249
  %890 = vmatmul.mubr.bf16.gmra.mxu0 %v248
  %v891 = vpop.f32.mrf.mxu0
  %v892 = vadd.f32 %v843, %v891
  %v893 = vpop.f32.mrf.mxu0
  %v894 = vpop.f32.mrf.mxu0
  %v895 = vadd.f32 %v846, %v894
  %v896 = vpop.f32.mrf.mxu0
  %897 = vmatprep.mubr.bf16.mxu0 %v258
  %898 = vmatmul.mubr.bf16.gmra.mxu0 %v257
  %v899 = vpop.f32.mrf.mxu0
  %v900 = vadd.f32 %v851, %v899
  %v901 = vpop.f32.mrf.mxu0
  %v902 = vpop.f32.mrf.mxu0
  %v903 = vadd.f32 %v854, %v902
  %v904 = vpop.f32.mrf.mxu0
  %905 = vdwg.mxu0
  %906 = vmatprep.subr.bf16.mxu0 0
  %907 = vmatpush1.bf16.msra.mxu0 %v637
  %908 = vmatprep.subr.bf16.mxu0 0
  %909 = vmatpush1.bf16.msra.mxu0 %v636
  %910 = vmatprep.subr.bf16.mxu0 0
  %911 = vmatpush1.bf16.msra.mxu0 %v635
  %912 = vmatprep.subr.bf16.mxu0 0
  %913 = vmatpush1.bf16.msra.mxu0 %v634
  %914 = vmatprep.subr.bf16.mxu0 0
  %915 = vmatpush1.bf16.msra.mxu0 %v633
  %916 = vmatprep.subr.bf16.mxu0 0
  %917 = vmatpush1.bf16.msra.mxu0 %v632
  %918 = vmatprep.subr.bf16.mxu0 0
  %919 = vmatpush1.bf16.msra.mxu0 %v631
  %920 = vmatprep.subr.bf16.mxu0 0
  %921 = vmatpush1.bf16.msra.mxu0 %v630
  %922 = vmatprep.subr.bf16.mxu0 0
  %923 = vmatpush2.bf16.msra.mxu0 0
  %924 = vmatprep.subr.bf16.mxu0 0
  %925 = vmatpush2.bf16.msra.mxu0 0
  %926 = vmatprep.subr.bf16.mxu0 0
  %927 = vmatpush2.bf16.msra.mxu0 0
  %928 = vmatprep.subr.bf16.mxu0 0
  %929 = vmatpush2.bf16.msra.mxu0 0
  %930 = vmatprep.subr.bf16.mxu0 0
  %931 = vmatpush2.bf16.msra.mxu0 0
  %932 = vmatprep.subr.bf16.mxu0 0
  %933 = vmatpush2.bf16.msra.mxu0 0
  %934 = vmatprep.subr.bf16.mxu0 0
  %935 = vmatpush2.bf16.msra.mxu0 0
  %936 = vmatprep.subr.bf16.mxu0 0
  %937 = vmatpush2.bf16.msra.mxu0 0
  %938 = vmatprep.mubr.bf16.mxu0 0
  %939 = vmatmul.mubr.bf16.gmra.mxu0 %v250
  %v940 = vpop.f32.mrf.mxu0
  %v941 = vadd.f32 %v892, %v940
  %v942 = vpop.f32.mrf.mxu0
  %v943 = vpop.f32.mrf.mxu0
  %v944 = vadd.f32 %v895, %v943
  %v945 = vpop.f32.mrf.mxu0
  %946 = vmatprep.mubr.bf16.mxu0 0
  %947 = vmatmul.mubr.bf16.gmra.mxu0 %v259
  %v948 = vpop.f32.mrf.mxu0
  %v949 = vadd.f32 %v900, %v948
  %v950 = vpop.f32.mrf.mxu0
  %v951 = vpop.f32.mrf.mxu0
  %v952 = vadd.f32 %v903, %v951
  %v953 = vpop.f32.mrf.mxu0
  %954 = vdwg.mxu0
  %955 = vst [vmem:[%s3] sm:$0xff] %v941
  %956 = vst [vmem:[%s3 + $0x8] sm:$0xff] %v944
  %957 = vst [vmem:[%s3 + $0x10] sm:$0xff] %v949
  %958 = vst [vmem:[%s3 + $0x18] sm:$0xff] %v952
  // Predicated region
  $region14: #{forward.37} parent=0 // pred_check
    _
  $region15: #{forward.37} parent=0 // pred_check_branch
    %960 = sbr.rel (0) target = $region17
  $region16: #{forward.37} parent=0 // pred_region
    _
  $region17: #{forward.37} parent=0 // pred_fallthru
    _
  // Predicated region
  $region18: #{forward.37} parent=0 // pred_check
    _
  $region19: #{forward.37} parent=0 // pred_check_branch
    %962 = sbr.rel (0) target = $region21
  $region20: #{forward.37} parent=0 // pred_region
    _
  $region21: #{forward.37} parent=0 // pred_fallthru
    _

// kernel: forward.40
$region0: #{forward.40}
  #allocation0 [shape = 'u32[]', space=smem, size = 0x4, offset = 0x4, fixed_abs, tag = 'smem constant byte address 0x4 - core index']
  #allocation1 [shape = 'u32[144,128]{1,0:T(1,128)}', space=vmem, size = 0x12000, scoped, tag = 'internal scratch']
  %s0 = inlined_call_operand.vmem [shape: f32[8,512], index: 0, kind: input, shape index: {}]
  %s1 = inlined_call_operand.vmem [shape: f32[1,512], index: 1, kind: input, shape index: {}]
  %s2 = inlined_call_operand.vmem [shape: f32[1,512], index: 2, kind: input, shape index: {}]
  %s3 = inlined_call_operand.vmem [shape: f32[8,512], index: 3, kind: input, shape index: {}]
  %s4 = inlined_call_operand.vmem [shape: f32[8,512], index: 4, kind: output, shape index: {}]
  %s5 = sld [smem:[#allocation0]]
  $region26: #{forward.40} parent=0
    _
  %s7 = ssub.s32 1, %s5
  %s8 = scalar_select 0, %s7, %s5
  // Predicated region
  $region2: #{forward.40} parent=0 // pred_check
    _
  $region3: #{forward.40} parent=0 // pred_check_branch
    %10 = sbr.rel (0) target = $region5
  $region4: #{forward.40} parent=0 // pred_region
    _
  $region5: #{forward.40} parent=0 // pred_fallthru
    _
  // Predicated region
  $region6: #{forward.40} parent=0 // pred_check
    _
  $region7: #{forward.40} parent=0 // pred_check_branch
    %12 = sbr.rel (0) target = $region9
  $region8: #{forward.40} parent=0 // pred_region
    _
  $region9: #{forward.40} parent=0 // pred_fallthru
    _
  // Predicated region
  $region10: #{forward.40} parent=0 // pred_check
    _
  $region11: #{forward.40} parent=0 // pred_check_branch
    %14 = sbr.rel (0) target = $region13
  $region12: #{forward.40} parent=0 // pred_region
    _
  $region13: #{forward.40} parent=0 // pred_fallthru
    _
  // Predicated region
  $region14: #{forward.40} parent=0 // pred_check
    _
  $region15: #{forward.40} parent=0 // pred_check_branch
    %16 = sbr.rel (0) target = $region17
  $region16: #{forward.40} parent=0 // pred_region
    _
  $region17: #{forward.40} parent=0 // pred_fallthru
    _
  %v17 = vld [vmem:[%s0] sm:$0xff]
  %v18 = vld [vmem:[%s0 + $0x8] sm:$0xff]
  %v19 = vld [vmem:[%s0 + $0x10] sm:$0xff]
  %v20 = vld [vmem:[%s0 + $0x18] sm:$0xff]
  %v21 = vld [vmem:[%s1] sm:$0xf]
  %v23 = vlaneseq
  %v24 = vshrl.u32 %v23, 7
  %v25 = vsub.s32 0, %v24
  %v26 = vrot.slane %v21, %v25
  %v27 = vlaneseq
  %v28 = vshrl.u32 %v27, 7
  %v29 = vsub.s32 1, %v28
  %v30 = vrot.slane %v21, %v29
  %v31 = vlaneseq
  %v32 = vshrl.u32 %v31, 7
  %v33 = vsub.s32 2, %v32
  %v34 = vrot.slane %v21, %v33
  %v35 = vlaneseq
  %v36 = vshrl.u32 %v35, 7
  %v37 = vsub.s32 3, %v36
  %v38 = vrot.slane %v21, %v37
  %v43 = vmul.f32 %v17, %v26
  %v44 = vmul.f32 %v18, %v30
  %v45 = vmul.f32 %v19, %v34
  %v46 = vmul.f32 %v20, %v38
  %v47 = vld [vmem:[%s2] sm:$0xf]
  %v49 = vlaneseq
  %v50 = vshrl.u32 %v49, 7
  %v51 = vsub.s32 0, %v50
  %v52 = vrot.slane %v47, %v51
  %v53 = vlaneseq
  %v54 = vshrl.u32 %v53, 7
  %v55 = vsub.s32 1, %v54
  %v56 = vrot.slane %v47, %v55
  %v57 = vlaneseq
  %v58 = vshrl.u32 %v57, 7
  %v59 = vsub.s32 2, %v58
  %v60 = vrot.slane %v47, %v59
  %v61 = vlaneseq
  %v62 = vshrl.u32 %v61, 7
  %v63 = vsub.s32 3, %v62
  %v64 = vrot.slane %v47, %v63
  %v69 = vadd.f32 %v43, %v52
  %v70 = vadd.f32 %v44, %v56
  %v71 = vadd.f32 %v45, %v60
  %v72 = vadd.f32 %v46, %v64
  %v73 = vld [vmem:[%s3] sm:$0xff]
  %v74 = vld [vmem:[%s3 + $0x8] sm:$0xff]
  %v75 = vld [vmem:[%s3 + $0x10] sm:$0xff]
  %v76 = vld [vmem:[%s3 + $0x18] sm:$0xff]
  %v77 = vadd.f32 %v69, %v73
  %v78 = vadd.f32 %v70, %v74
  %v79 = vadd.f32 %v71, %v75
  %v80 = vadd.f32 %v72, %v76
  %81 = vst [vmem:[%s4] sm:$0xff] %v77
  %82 = vst [vmem:[%s4 + $0x8] sm:$0xff] %v78
  %83 = vst [vmem:[%s4 + $0x10] sm:$0xff] %v79
  %84 = vst [vmem:[%s4 + $0x18] sm:$0xff] %v80
  // Predicated region
  $region18: #{forward.40} parent=0 // pred_check
    _
  $region19: #{forward.40} parent=0 // pred_check_branch
    %86 = sbr.rel (0) target = $region21
  $region20: #{forward.40} parent=0 // pred_region
    _
  $region21: #{forward.40} parent=0 // pred_fallthru
    _
  // Predicated region
  $region22: #{forward.40} parent=0 // pred_check
    _
  $region23: #{forward.40} parent=0 // pred_check_branch
    %88 = sbr.rel (0) target = $region25
  $region24: #{forward.40} parent=0 // pred_region
    _
  $region25: #{forward.40} parent=0 // pred_fallthru
    _

// kernel: forward.57
$region0: #{forward.57}
  #allocation0 [shape = 'u32[]', space=smem, size = 0x4, offset = 0x4, fixed_abs, tag = 'smem constant byte address 0x4 - core index']
  #allocation1 [shape = 'u32[144,128]{1,0:T(1,128)}', space=vmem, size = 0x12000, scoped, tag = 'internal scratch']
  %s0 = inlined_call_operand.vmem [shape: bf16[128,1152], index: 0, kind: input, shape index: {}]
  %s1 = inlined_call_operand.vmem [shape: bf16[1152,64], index: 1, kind: input, shape index: {}]
  %s2 = inlined_call_operand.vmem [shape: f32[1,64], index: 2, kind: input, shape index: {}]
  %s3 = inlined_call_operand.vmem [shape: f32[128,64], index: 3, kind: output, shape index: {}]
  %s4 = sld [smem:[#allocation0]]
  $region22: #{forward.57} parent=0
    _
  %s6 = ssub.s32 1, %s4
  %s7 = scalar_select 0, %s6, %s4
  // Predicated region
  $region2: #{forward.57} parent=0 // pred_check
    _
  $region3: #{forward.57} parent=0 // pred_check_branch
    %9 = sbr.rel (0) target = $region5
  $region4: #{forward.57} parent=0 // pred_region
    _
  $region5: #{forward.57} parent=0 // pred_fallthru
    _
  // Predicated region
  $region6: #{forward.57} parent=0 // pred_check
    _
  $region7: #{forward.57} parent=0 // pred_check_branch
    %11 = sbr.rel (0) target = $region9
  $region8: #{forward.57} parent=0 // pred_region
    _
  $region9: #{forward.57} parent=0 // pred_fallthru
    _
  // Predicated region
  $region10: #{forward.57} parent=0 // pred_check
    _
  $region11: #{forward.57} parent=0 // pred_check_branch
    %13 = sbr.rel (0) target = $region13
  $region12: #{forward.57} parent=0 // pred_region
    _
  $region13: #{forward.57} parent=0 // pred_fallthru
    _
  %v15 = vld [vmem:[%s0] sm:$0xff]
  %v16 = vld [vmem:[%s0 + $0x8] sm:$0xff]
  %v17 = vld [vmem:[%s0 + $0x10] sm:$0xff]
  %v18 = vld [vmem:[%s0 + $0x18] sm:$0xff]
  %v19 = vld [vmem:[%s0 + $0x20] sm:$0xf]
  %v20 = vld [vmem:[%s0 + $0x24] sm:$0xff]
  %v21 = vld [vmem:[%s0 + $0x2c] sm:$0xff]
  %v22 = vld [vmem:[%s0 + $0x34] sm:$0xff]
  %v23 = vld [vmem:[%s0 + $0x3c] sm:$0xff]
  %v24 = vld [vmem:[%s0 + $0x44] sm:$0xf]
  %v25 = vld [vmem:[%s0 + $0x48] sm:$0xff]
  %v26 = vld [vmem:[%s0 + $0x50] sm:$0xff]
  %v27 = vld [vmem:[%s0 + $0x58] sm:$0xff]
  %v28 = vld [vmem:[%s0 + $0x60] sm:$0xff]
  %v29 = vld [vmem:[%s0 + $0x68] sm:$0xf]
  %v30 = vld [vmem:[%s0 + $0x6c] sm:$0xff]
  %v31 = vld [vmem:[%s0 + $0x74] sm:$0xff]
  %v32 = vld [vmem:[%s0 + $0x7c] sm:$0xff]
  %v33 = vld [vmem:[%s0 + $0x84] sm:$0xff]
  %v34 = vld [vmem:[%s0 + $0x8c] sm:$0xf]
  %v35 = vld [vmem:[%s0 + $0x90] sm:$0xff]
  %v36 = vld [vmem:[%s0 + $0x98] sm:$0xff]
  %v37 = vld [vmem:[%s0 + $0xa0] sm:$0xff]
  %v38 = vld [vmem:[%s0 + $0xa8] sm:$0xff]
  %v39 = vld [vmem:[%s0 + $0xb0] sm:$0xf]
  %v40 = vld [vmem:[%s0 + $0xb4] sm:$0xff]
  %v41 = vld [vmem:[%s0 + $0xbc] sm:$0xff]
  %v42 = vld [vmem:[%s0 + $0xc4] sm:$0xff]
  %v43 = vld [vmem:[%s0 + $0xcc] sm:$0xff]
  %v44 = vld [vmem:[%s0 + $0xd4] sm:$0xf]
  %v45 = vld [vmem:[%s0 + $0xd8] sm:$0xff]
  %v46 = vld [vmem:[%s0 + $0xe0] sm:$0xff]
  %v47 = vld [vmem:[%s0 + $0xe8] sm:$0xff]
  %v48 = vld [vmem:[%s0 + $0xf0] sm:$0xff]
  %v49 = vld [vmem:[%s0 + $0xf8] sm:$0xf]
  %v50 = vld [vmem:[%s0 + $0xfc] sm:$0xff]
  %v51 = vld [vmem:[%s0 + $0x104] sm:$0xff]
  %v52 = vld [vmem:[%s0 + $0x10c] sm:$0xff]
  %v53 = vld [vmem:[%s0 + $0x114] sm:$0xff]
  %v54 = vld [vmem:[%s0 + $0x11c] sm:$0xf]
  %v55 = vld [vmem:[%s0 + $0x120] sm:$0xff]
  %v56 = vld [vmem:[%s0 + $0x128] sm:$0xff]
  %v57 = vld [vmem:[%s0 + $0x130] sm:$0xff]
  %v58 = vld [vmem:[%s0 + $0x138] sm:$0xff]
  %v59 = vld [vmem:[%s0 + $0x140] sm:$0xf]
  %v60 = vld [vmem:[%s0 + $0x144] sm:$0xff]
  %v61 = vld [vmem:[%s0 + $0x14c] sm:$0xff]
  %v62 = vld [vmem:[%s0 + $0x154] sm:$0xff]
  %v63 = vld [vmem:[%s0 + $0x15c] sm:$0xff]
  %v64 = vld [vmem:[%s0 + $0x164] sm:$0xf]
  %v65 = vld [vmem:[%s0 + $0x168] sm:$0xff]
  %v66 = vld [vmem:[%s0 + $0x170] sm:$0xff]
  %v67 = vld [vmem:[%s0 + $0x178] sm:$0xff]
  %v68 = vld [vmem:[%s0 + $0x180] sm:$0xff]
  %v69 = vld [vmem:[%s0 + $0x188] sm:$0xf]
  %v70 = vld [vmem:[%s0 + $0x18c] sm:$0xff]
  %v71 = vld [vmem:[%s0 + $0x194] sm:$0xff]
  %v72 = vld [vmem:[%s0 + $0x19c] sm:$0xff]
  %v73 = vld [vmem:[%s0 + $0x1a4] sm:$0xff]
  %v74 = vld [vmem:[%s0 + $0x1ac] sm:$0xf]
  %v75 = vld [vmem:[%s0 + $0x1b0] sm:$0xff]
  %v76 = vld [vmem:[%s0 + $0x1b8] sm:$0xff]
  %v77 = vld [vmem:[%s0 + $0x1c0] sm:$0xff]
  %v78 = vld [vmem:[%s0 + $0x1c8] sm:$0xff]
  %v79 = vld [vmem:[%s0 + $0x1d0] sm:$0xf]
  %v80 = vld [vmem:[%s0 + $0x1d4] sm:$0xff]
  %v81 = vld [vmem:[%s0 + $0x1dc] sm:$0xff]
  %v82 = vld [vmem:[%s0 + $0x1e4] sm:$0xff]
  %v83 = vld [vmem:[%s0 + $0x1ec] sm:$0xff]
  %v84 = vld [vmem:[%s0 + $0x1f4] sm:$0xf]
  %v85 = vld [vmem:[%s0 + $0x1f8] sm:$0xff]
  %v86 = vld [vmem:[%s0 + $0x200] sm:$0xff]
  %v87 = vld [vmem:[%s0 + $0x208] sm:$0xff]
  %v88 = vld [vmem:[%s0 + $0x210] sm:$0xff]
  %v89 = vld [vmem:[%s0 + $0x218] sm:$0xf]
  %v90 = vld [vmem:[%s0 + $0x21c] sm:$0xff]
  %v91 = vld [vmem:[%s0 + $0x224] sm:$0xff]
  %v92 = vld [vmem:[%s0 + $0x22c] sm:$0xff]
  %v93 = vld [vmem:[%s0 + $0x234] sm:$0xff]
  %v94 = vld [vmem:[%s0 + $0x23c] sm:$0xf]
  %v95 = vld [vmem:[%s1] sm:$0xf]
  %v96 = vld [vmem:[%s1 + $0x4] sm:$0xf]
  %v97 = vld [vmem:[%s1 + $0x8] sm:$0xf]
  %v98 = vld [vmem:[%s1 + $0xc] sm:$0xf]
  %v99 = vld [vmem:[%s1 + $0x10] sm:$0xf]
  %v100 = vld [vmem:[%s1 + $0x14] sm:$0xf]
  %v101 = vld [vmem:[%s1 + $0x18] sm:$0xf]
  %v102 = vld [vmem:[%s1 + $0x1c] sm:$0xf]
  %v103 = vld [vmem:[%s1 + $0x20] sm:$0xf]
  %v104 = vld [vmem:[%s1 + $0x24] sm:$0xf]
  %v105 = vld [vmem:[%s1 + $0x28] sm:$0xf]
  %v106 = vld [vmem:[%s1 + $0x2c] sm:$0xf]
  %v107 = vld [vmem:[%s1 + $0x30] sm:$0xf]
  %v108 = vld [vmem:[%s1 + $0x34] sm:$0xf]
  %v109 = vld [vmem:[%s1 + $0x38] sm:$0xf]
  %v110 = vld [vmem:[%s1 + $0x3c] sm:$0xf]
  %v111 = vld [vmem:[%s1 + $0x40] sm:$0xf]
  %v112 = vld [vmem:[%s1 + $0x44] sm:$0xf]
  %v113 = vld [vmem:[%s1 + $0x48] sm:$0xf]
  %v114 = vld [vmem:[%s1 + $0x4c] sm:$0xf]
  %v115 = vld [vmem:[%s1 + $0x50] sm:$0xf]
  %v116 = vld [vmem:[%s1 + $0x54] sm:$0xf]
  %v117 = vld [vmem:[%s1 + $0x58] sm:$0xf]
  %v118 = vld [vmem:[%s1 + $0x5c] sm:$0xf]
  %v119 = vld [vmem:[%s1 + $0x60] sm:$0xf]
  %v120 = vld [vmem:[%s1 + $0x64] sm:$0xf]
  %v121 = vld [vmem:[%s1 + $0x68] sm:$0xf]
  %v122 = vld [vmem:[%s1 + $0x6c] sm:$0xf]
  %v123 = vld [vmem:[%s1 + $0x70] sm:$0xf]
  %v124 = vld [vmem:[%s1 + $0x74] sm:$0xf]
  %v125 = vld [vmem:[%s1 + $0x78] sm:$0xf]
  %v126 = vld [vmem:[%s1 + $0x7c] sm:$0xf]
  %v127 = vld [vmem:[%s1 + $0x80] sm:$0xf]
  %v128 = vld [vmem:[%s1 + $0x84] sm:$0xf]
  %v129 = vld [vmem:[%s1 + $0x88] sm:$0xf]
  %v130 = vld [vmem:[%s1 + $0x8c] sm:$0xf]
  %v131 = vld [vmem:[%s1 + $0x90] sm:$0xf]
  %v132 = vld [vmem:[%s1 + $0x94] sm:$0xf]
  %v133 = vld [vmem:[%s1 + $0x98] sm:$0xf]
  %v134 = vld [vmem:[%s1 + $0x9c] sm:$0xf]
  %v135 = vld [vmem:[%s1 + $0xa0] sm:$0xf]
  %v136 = vld [vmem:[%s1 + $0xa4] sm:$0xf]
  %v137 = vld [vmem:[%s1 + $0xa8] sm:$0xf]
  %v138 = vld [vmem:[%s1 + $0xac] sm:$0xf]
  %v139 = vld [vmem:[%s1 + $0xb0] sm:$0xf]
  %v140 = vld [vmem:[%s1 + $0xb4] sm:$0xf]
  %v141 = vld [vmem:[%s1 + $0xb8] sm:$0xf]
  %v142 = vld [vmem:[%s1 + $0xbc] sm:$0xf]
  %v143 = vld [vmem:[%s1 + $0xc0] sm:$0xf]
  %v144 = vld [vmem:[%s1 + $0xc4] sm:$0xf]
  %v145 = vld [vmem:[%s1 + $0xc8] sm:$0xf]
  %v146 = vld [vmem:[%s1 + $0xcc] sm:$0xf]
  %v147 = vld [vmem:[%s1 + $0xd0] sm:$0xf]
  %v148 = vld [vmem:[%s1 + $0xd4] sm:$0xf]
  %v149 = vld [vmem:[%s1 + $0xd8] sm:$0xf]
  %v150 = vld [vmem:[%s1 + $0xdc] sm:$0xf]
  %v151 = vld [vmem:[%s1 + $0xe0] sm:$0xf]
  %v152 = vld [vmem:[%s1 + $0xe4] sm:$0xf]
  %v153 = vld [vmem:[%s1 + $0xe8] sm:$0xf]
  %v154 = vld [vmem:[%s1 + $0xec] sm:$0xf]
  %v155 = vld [vmem:[%s1 + $0xf0] sm:$0xf]
  %v156 = vld [vmem:[%s1 + $0xf4] sm:$0xf]
  %v157 = vld [vmem:[%s1 + $0xf8] sm:$0xf]
  %v158 = vld [vmem:[%s1 + $0xfc] sm:$0xf]
  %v159 = vld [vmem:[%s1 + $0x100] sm:$0xf]
  %v160 = vld [vmem:[%s1 + $0x104] sm:$0xf]
  %v161 = vld [vmem:[%s1 + $0x108] sm:$0xf]
  %v162 = vld [vmem:[%s1 + $0x10c] sm:$0xf]
  %v163 = vld [vmem:[%s1 + $0x110] sm:$0xf]
  %v164 = vld [vmem:[%s1 + $0x114] sm:$0xf]
  %v165 = vld [vmem:[%s1 + $0x118] sm:$0xf]
  %v166 = vld [vmem:[%s1 + $0x11c] sm:$0xf]
  %v167 = vld [vmem:[%s1 + $0x120] sm:$0xf]
  %v168 = vld [vmem:[%s1 + $0x124] sm:$0xf]
  %v169 = vld [vmem:[%s1 + $0x128] sm:$0xf]
  %v170 = vld [vmem:[%s1 + $0x12c] sm:$0xf]
  %v171 = vld [vmem:[%s1 + $0x130] sm:$0xf]
  %v172 = vld [vmem:[%s1 + $0x134] sm:$0xf]
  %v173 = vld [vmem:[%s1 + $0x138] sm:$0xf]
  %v174 = vld [vmem:[%s1 + $0x13c] sm:$0xf]
  %v175 = vld [vmem:[%s1 + $0x140] sm:$0xf]
  %v176 = vld [vmem:[%s1 + $0x144] sm:$0xf]
  %v177 = vld [vmem:[%s1 + $0x148] sm:$0xf]
  %v178 = vld [vmem:[%s1 + $0x14c] sm:$0xf]
  %v179 = vld [vmem:[%s1 + $0x150] sm:$0xf]
  %v180 = vld [vmem:[%s1 + $0x154] sm:$0xf]
  %v181 = vld [vmem:[%s1 + $0x158] sm:$0xf]
  %v182 = vld [vmem:[%s1 + $0x15c] sm:$0xf]
  %v183 = vld [vmem:[%s1 + $0x160] sm:$0xf]
  %v184 = vld [vmem:[%s1 + $0x164] sm:$0xf]
  %v185 = vld [vmem:[%s1 + $0x168] sm:$0xf]
  %v186 = vld [vmem:[%s1 + $0x16c] sm:$0xf]
  %v187 = vld [vmem:[%s1 + $0x170] sm:$0xf]
  %v188 = vld [vmem:[%s1 + $0x174] sm:$0xf]
  %v189 = vld [vmem:[%s1 + $0x178] sm:$0xf]
  %v190 = vld [vmem:[%s1 + $0x17c] sm:$0xf]
  %v191 = vld [vmem:[%s1 + $0x180] sm:$0xf]
  %v192 = vld [vmem:[%s1 + $0x184] sm:$0xf]
  %v193 = vld [vmem:[%s1 + $0x188] sm:$0xf]
  %v194 = vld [vmem:[%s1 + $0x18c] sm:$0xf]
  %v195 = vld [vmem:[%s1 + $0x190] sm:$0xf]
  %v196 = vld [vmem:[%s1 + $0x194] sm:$0xf]
  %v197 = vld [vmem:[%s1 + $0x198] sm:$0xf]
  %v198 = vld [vmem:[%s1 + $0x19c] sm:$0xf]
  %v199 = vld [vmem:[%s1 + $0x1a0] sm:$0xf]
  %v200 = vld [vmem:[%s1 + $0x1a4] sm:$0xf]
  %v201 = vld [vmem:[%s1 + $0x1a8] sm:$0xf]
  %v202 = vld [vmem:[%s1 + $0x1ac] sm:$0xf]
  %v203 = vld [vmem:[%s1 + $0x1b0] sm:$0xf]
  %v204 = vld [vmem:[%s1 + $0x1b4] sm:$0xf]
  %v205 = vld [vmem:[%s1 + $0x1b8] sm:$0xf]
  %v206 = vld [vmem:[%s1 + $0x1bc] sm:$0xf]
  %v207 = vld [vmem:[%s1 + $0x1c0] sm:$0xf]
  %v208 = vld [vmem:[%s1 + $0x1c4] sm:$0xf]
  %v209 = vld [vmem:[%s1 + $0x1c8] sm:$0xf]
  %v210 = vld [vmem:[%s1 + $0x1cc] sm:$0xf]
  %v211 = vld [vmem:[%s1 + $0x1d0] sm:$0xf]
  %v212 = vld [vmem:[%s1 + $0x1d4] sm:$0xf]
  %v213 = vld [vmem:[%s1 + $0x1d8] sm:$0xf]
  %v214 = vld [vmem:[%s1 + $0x1dc] sm:$0xf]
  %v215 = vld [vmem:[%s1 + $0x1e0] sm:$0xf]
  %v216 = vld [vmem:[%s1 + $0x1e4] sm:$0xf]
  %v217 = vld [vmem:[%s1 + $0x1e8] sm:$0xf]
  %v218 = vld [vmem:[%s1 + $0x1ec] sm:$0xf]
  %v219 = vld [vmem:[%s1 + $0x1f0] sm:$0xf]
  %v220 = vld [vmem:[%s1 + $0x1f4] sm:$0xf]
  %v221 = vld [vmem:[%s1 + $0x1f8] sm:$0xf]
  %v222 = vld [vmem:[%s1 + $0x1fc] sm:$0xf]
  %v223 = vld [vmem:[%s1 + $0x200] sm:$0xf]
  %v224 = vld [vmem:[%s1 + $0x204] sm:$0xf]
  %v225 = vld [vmem:[%s1 + $0x208] sm:$0xf]
  %v226 = vld [vmem:[%s1 + $0x20c] sm:$0xf]
  %v227 = vld [vmem:[%s1 + $0x210] sm:$0xf]
  %v228 = vld [vmem:[%s1 + $0x214] sm:$0xf]
  %v229 = vld [vmem:[%s1 + $0x218] sm:$0xf]
  %v230 = vld [vmem:[%s1 + $0x21c] sm:$0xf]
  %v231 = vld [vmem:[%s1 + $0x220] sm:$0xf]
  %v232 = vld [vmem:[%s1 + $0x224] sm:$0xf]
  %v233 = vld [vmem:[%s1 + $0x228] sm:$0xf]
  %v234 = vld [vmem:[%s1 + $0x22c] sm:$0xf]
  %v235 = vld [vmem:[%s1 + $0x230] sm:$0xf]
  %v236 = vld [vmem:[%s1 + $0x234] sm:$0xf]
  %v237 = vld [vmem:[%s1 + $0x238] sm:$0xf]
  %v238 = vld [vmem:[%s1 + $0x23c] sm:$0xf]
  %v239 = vld [vmem:[%s2] sm:$0x1]
  %v241 = vlaneseq
  %v242 = vshrl.u32 %v241, 7
  %v243 = vsub.s32 0, %v242
  %v244 = vrot.slane %v239, %v243
  %v326 = vunpack.c.l.b16 %v15
  %v327 = vunpack.c.h.b16 %v15
  %v328 = vunpack.c.l.b16 %v16
  %v329 = vunpack.c.h.b16 %v16
  %v330 = vunpack.c.l.b16 %v17
  %v331 = vunpack.c.h.b16 %v17
  %v332 = vunpack.c.l.b16 %v18
  %v333 = vunpack.c.h.b16 %v18
  %v334 = vunpack.c.l.b16 %v19
  %v335 = vunpack.c.l.b16 %v20
  %v336 = vunpack.c.h.b16 %v20
  %v337 = vunpack.c.l.b16 %v21
  %v338 = vunpack.c.h.b16 %v21
  %v339 = vunpack.c.l.b16 %v22
  %v340 = vunpack.c.h.b16 %v22
  %v341 = vunpack.c.l.b16 %v23
  %v342 = vunpack.c.h.b16 %v23
  %v343 = vunpack.c.l.b16 %v24
  %v344 = vunpack.c.l.b16 %v25
  %v345 = vunpack.c.h.b16 %v25
  %v346 = vunpack.c.l.b16 %v26
  %v347 = vunpack.c.h.b16 %v26
  %v348 = vunpack.c.l.b16 %v27
  %v349 = vunpack.c.h.b16 %v27
  %v350 = vunpack.c.l.b16 %v28
  %v351 = vunpack.c.h.b16 %v28
  %v352 = vunpack.c.l.b16 %v29
  %v353 = vunpack.c.l.b16 %v30
  %v354 = vunpack.c.h.b16 %v30
  %v355 = vunpack.c.l.b16 %v31
  %v356 = vunpack.c.h.b16 %v31
  %v357 = vunpack.c.l.b16 %v32
  %v358 = vunpack.c.h.b16 %v32
  %v359 = vunpack.c.l.b16 %v33
  %v360 = vunpack.c.h.b16 %v33
  %v361 = vunpack.c.l.b16 %v34
  %v362 = vunpack.c.l.b16 %v35
  %v363 = vunpack.c.h.b16 %v35
  %v364 = vunpack.c.l.b16 %v36
  %v365 = vunpack.c.h.b16 %v36
  %v366 = vunpack.c.l.b16 %v37
  %v367 = vunpack.c.h.b16 %v37
  %v368 = vunpack.c.l.b16 %v38
  %v369 = vunpack.c.h.b16 %v38
  %v370 = vunpack.c.l.b16 %v39
  %v371 = vunpack.c.l.b16 %v40
  %v372 = vunpack.c.h.b16 %v40
  %v373 = vunpack.c.l.b16 %v41
  %v374 = vunpack.c.h.b16 %v41
  %v375 = vunpack.c.l.b16 %v42
  %v376 = vunpack.c.h.b16 %v42
  %v377 = vunpack.c.l.b16 %v43
  %v378 = vunpack.c.h.b16 %v43
  %v379 = vunpack.c.l.b16 %v44
  %v380 = vunpack.c.l.b16 %v45
  %v381 = vunpack.c.h.b16 %v45
  %v382 = vunpack.c.l.b16 %v46
  %v383 = vunpack.c.h.b16 %v46
  %v384 = vunpack.c.l.b16 %v47
  %v385 = vunpack.c.h.b16 %v47
  %v386 = vunpack.c.l.b16 %v48
  %v387 = vunpack.c.h.b16 %v48
  %v388 = vunpack.c.l.b16 %v49
  %v389 = vunpack.c.l.b16 %v50
  %v390 = vunpack.c.h.b16 %v50
  %v391 = vunpack.c.l.b16 %v51
  %v392 = vunpack.c.h.b16 %v51
  %v393 = vunpack.c.l.b16 %v52
  %v394 = vunpack.c.h.b16 %v52
  %v395 = vunpack.c.l.b16 %v53
  %v396 = vunpack.c.h.b16 %v53
  %v397 = vunpack.c.l.b16 %v54
  %v398 = vunpack.c.l.b16 %v55
  %v399 = vunpack.c.h.b16 %v55
  %v400 = vunpack.c.l.b16 %v56
  %v401 = vunpack.c.h.b16 %v56
  %v402 = vunpack.c.l.b16 %v57
  %v403 = vunpack.c.h.b16 %v57
  %v404 = vunpack.c.l.b16 %v58
  %v405 = vunpack.c.h.b16 %v58
  %v406 = vunpack.c.l.b16 %v59
  %v407 = vunpack.c.l.b16 %v60
  %v408 = vunpack.c.h.b16 %v60
  %v409 = vunpack.c.l.b16 %v61
  %v410 = vunpack.c.h.b16 %v61
  %v411 = vunpack.c.l.b16 %v62
  %v412 = vunpack.c.h.b16 %v62
  %v413 = vunpack.c.l.b16 %v63
  %v414 = vunpack.c.h.b16 %v63
  %v415 = vunpack.c.l.b16 %v64
  %v416 = vunpack.c.l.b16 %v65
  %v417 = vunpack.c.h.b16 %v65
  %v418 = vunpack.c.l.b16 %v66
  %v419 = vunpack.c.h.b16 %v66
  %v420 = vunpack.c.l.b16 %v67
  %v421 = vunpack.c.h.b16 %v67
  %v422 = vunpack.c.l.b16 %v68
  %v423 = vunpack.c.h.b16 %v68
  %v424 = vunpack.c.l.b16 %v69
  %v425 = vunpack.c.l.b16 %v70
  %v426 = vunpack.c.h.b16 %v70
  %v427 = vunpack.c.l.b16 %v71
  %v428 = vunpack.c.h.b16 %v71
  %v429 = vunpack.c.l.b16 %v72
  %v430 = vunpack.c.h.b16 %v72
  %v431 = vunpack.c.l.b16 %v73
  %v432 = vunpack.c.h.b16 %v73
  %v433 = vunpack.c.l.b16 %v74
  %v434 = vunpack.c.l.b16 %v75
  %v435 = vunpack.c.h.b16 %v75
  %v436 = vunpack.c.l.b16 %v76
  %v437 = vunpack.c.h.b16 %v76
  %v438 = vunpack.c.l.b16 %v77
  %v439 = vunpack.c.h.b16 %v77
  %v440 = vunpack.c.l.b16 %v78
  %v441 = vunpack.c.h.b16 %v78
  %v442 = vunpack.c.l.b16 %v79
  %v443 = vunpack.c.l.b16 %v80
  %v444 = vunpack.c.h.b16 %v80
  %v445 = vunpack.c.l.b16 %v81
  %v446 = vunpack.c.h.b16 %v81
  %v447 = vunpack.c.l.b16 %v82
  %v448 = vunpack.c.h.b16 %v82
  %v449 = vunpack.c.l.b16 %v83
  %v450 = vunpack.c.h.b16 %v83
  %v451 = vunpack.c.l.b16 %v84
  %v452 = vunpack.c.l.b16 %v85
  %v453 = vunpack.c.h.b16 %v85
  %v454 = vunpack.c.l.b16 %v86
  %v455 = vunpack.c.h.b16 %v86
  %v456 = vunpack.c.l.b16 %v87
  %v457 = vunpack.c.h.b16 %v87
  %v458 = vunpack.c.l.b16 %v88
  %v459 = vunpack.c.h.b16 %v88
  %v460 = vunpack.c.l.b16 %v89
  %v461 = vunpack.c.l.b16 %v90
  %v462 = vunpack.c.h.b16 %v90
  %v463 = vunpack.c.l.b16 %v91
  %v464 = vunpack.c.h.b16 %v91
  %v465 = vunpack.c.l.b16 %v92
  %v466 = vunpack.c.h.b16 %v92
  %v467 = vunpack.c.l.b16 %v93
  %v468 = vunpack.c.h.b16 %v93
  %v469 = vunpack.c.l.b16 %v94
  %v470 = vpack.c.b16 %v335, %v326
  %v471 = vpack.c.b16 %v336, %v327
  %v472 = vpack.c.b16 %v337, %v328
  %v473 = vpack.c.b16 %v338, %v329
  %v474 = vpack.c.b16 %v339, %v330
  %v475 = vpack.c.b16 %v340, %v331
  %v476 = vpack.c.b16 %v341, %v332
  %v477 = vpack.c.b16 %v342, %v333
  %v478 = vpack.c.b16 %v343, %v334
  %v479 = vpack.c.b16 %v353, %v344
  %v480 = vpack.c.b16 %v354, %v345
  %v481 = vpack.c.b16 %v355, %v346
  %v482 = vpack.c.b16 %v356, %v347
  %v483 = vpack.c.b16 %v357, %v348
  %v484 = vpack.c.b16 %v358, %v349
  %v485 = vpack.c.b16 %v359, %v350
  %v486 = vpack.c.b16 %v360, %v351
  %v487 = vpack.c.b16 %v361, %v352
  %v488 = vpack.c.b16 %v371, %v362
  %v489 = vpack.c.b16 %v372, %v363
  %v490 = vpack.c.b16 %v373, %v364
  %v491 = vpack.c.b16 %v374, %v365
  %v492 = vpack.c.b16 %v375, %v366
  %v493 = vpack.c.b16 %v376, %v367
  %v494 = vpack.c.b16 %v377, %v368
  %v495 = vpack.c.b16 %v378, %v369
  %v496 = vpack.c.b16 %v379, %v370
  %v497 = vpack.c.b16 %v389, %v380
  %v498 = vpack.c.b16 %v390, %v381
  %v499 = vpack.c.b16 %v391, %v382
  %v500 = vpack.c.b16 %v392, %v383
  %v501 = vpack.c.b16 %v393, %v384
  %v502 = vpack.c.b16 %v394, %v385
  %v503 = vpack.c.b16 %v395, %v386
  %v504 = vpack.c.b16 %v396, %v387
  %v505 = vpack.c.b16 %v397, %v388
  %v506 = vpack.c.b16 %v407, %v398
  %v507 = vpack.c.b16 %v408, %v399
  %v508 = vpack.c.b16 %v409, %v400
  %v509 = vpack.c.b16 %v410, %v401
  %v510 = vpack.c.b16 %v411, %v402
  %v511 = vpack.c.b16 %v412, %v403
  %v512 = vpack.c.b16 %v413, %v404
  %v513 = vpack.c.b16 %v414, %v405
  %v514 = vpack.c.b16 %v415, %v406
  %v515 = vpack.c.b16 %v425, %v416
  %v516 = vpack.c.b16 %v426, %v417
  %v517 = vpack.c.b16 %v427, %v418
  %v518 = vpack.c.b16 %v428, %v419
  %v519 = vpack.c.b16 %v429, %v420
  %v520 = vpack.c.b16 %v430, %v421
  %v521 = vpack.c.b16 %v431, %v422
  %v522 = vpack.c.b16 %v432, %v423
  %v523 = vpack.c.b16 %v433, %v424
  %v524 = vpack.c.b16 %v443, %v434
  %v525 = vpack.c.b16 %v444, %v435
  %v526 = vpack.c.b16 %v445, %v436
  %v527 = vpack.c.b16 %v446, %v437
  %v528 = vpack.c.b16 %v447, %v438
  %v529 = vpack.c.b16 %v448, %v439
  %v530 = vpack.c.b16 %v449, %v440
  %v531 = vpack.c.b16 %v450, %v441
  %v532 = vpack.c.b16 %v451, %v442
  %v533 = vpack.c.b16 %v461, %v452
  %v534 = vpack.c.b16 %v462, %v453
  %v535 = vpack.c.b16 %v463, %v454
  %v536 = vpack.c.b16 %v464, %v455
  %v537 = vpack.c.b16 %v465, %v456
  %v538 = vpack.c.b16 %v466, %v457
  %v539 = vpack.c.b16 %v467, %v458
  %v540 = vpack.c.b16 %v468, %v459
  %v541 = vpack.c.b16 %v469, %v460
  %v758 = vunpack.c.l.b16 %v95
  %v759 = vunpack.c.l.b16 %v96
  %v760 = vunpack.c.l.b16 %v97
  %v761 = vunpack.c.l.b16 %v98
  %v762 = vunpack.c.l.b16 %v99
  %v763 = vunpack.c.l.b16 %v100
  %v764 = vunpack.c.l.b16 %v101
  %v765 = vunpack.c.l.b16 %v102
  %v766 = vunpack.c.l.b16 %v103
  %v767 = vunpack.c.l.b16 %v104
  %v768 = vunpack.c.l.b16 %v105
  %v769 = vunpack.c.l.b16 %v106
  %v770 = vunpack.c.l.b16 %v107
  %v771 = vunpack.c.l.b16 %v108
  %v772 = vunpack.c.l.b16 %v109
  %v773 = vunpack.c.l.b16 %v110
  %v774 = vunpack.c.l.b16 %v111
  %v775 = vunpack.c.l.b16 %v112
  %v776 = vunpack.c.l.b16 %v113
  %v777 = vunpack.c.l.b16 %v114
  %v778 = vunpack.c.l.b16 %v115
  %v779 = vunpack.c.l.b16 %v116
  %v780 = vunpack.c.l.b16 %v117
  %v781 = vunpack.c.l.b16 %v118
  %v782 = vunpack.c.l.b16 %v119
  %v783 = vunpack.c.l.b16 %v120
  %v784 = vunpack.c.l.b16 %v121
  %v785 = vunpack.c.l.b16 %v122
  %v786 = vunpack.c.l.b16 %v123
  %v787 = vunpack.c.l.b16 %v124
  %v788 = vunpack.c.l.b16 %v125
  %v789 = vunpack.c.l.b16 %v126
  %v790 = vunpack.c.l.b16 %v127
  %v791 = vunpack.c.l.b16 %v128
  %v792 = vunpack.c.l.b16 %v129
  %v793 = vunpack.c.l.b16 %v130
  %v794 = vunpack.c.l.b16 %v131
  %v795 = vunpack.c.l.b16 %v132
  %v796 = vunpack.c.l.b16 %v133
  %v797 = vunpack.c.l.b16 %v134
  %v798 = vunpack.c.l.b16 %v135
  %v799 = vunpack.c.l.b16 %v136
  %v800 = vunpack.c.l.b16 %v137
  %v801 = vunpack.c.l.b16 %v138
  %v802 = vunpack.c.l.b16 %v139
  %v803 = vunpack.c.l.b16 %v140
  %v804 = vunpack.c.l.b16 %v141
  %v805 = vunpack.c.l.b16 %v142
  %v806 = vunpack.c.l.b16 %v143
  %v807 = vunpack.c.l.b16 %v144
  %v808 = vunpack.c.l.b16 %v145
  %v809 = vunpack.c.l.b16 %v146
  %v810 = vunpack.c.l.b16 %v147
  %v811 = vunpack.c.l.b16 %v148
  %v812 = vunpack.c.l.b16 %v149
  %v813 = vunpack.c.l.b16 %v150
  %v814 = vunpack.c.l.b16 %v151
  %v815 = vunpack.c.l.b16 %v152
  %v816 = vunpack.c.l.b16 %v153
  %v817 = vunpack.c.l.b16 %v154
  %v818 = vunpack.c.l.b16 %v155
  %v819 = vunpack.c.l.b16 %v156
  %v820 = vunpack.c.l.b16 %v157
  %v821 = vunpack.c.l.b16 %v158
  %v822 = vunpack.c.l.b16 %v159
  %v823 = vunpack.c.l.b16 %v160
  %v824 = vunpack.c.l.b16 %v161
  %v825 = vunpack.c.l.b16 %v162
  %v826 = vunpack.c.l.b16 %v163
  %v827 = vunpack.c.l.b16 %v164
  %v828 = vunpack.c.l.b16 %v165
  %v829 = vunpack.c.l.b16 %v166
  %v830 = vunpack.c.l.b16 %v167
  %v831 = vunpack.c.l.b16 %v168
  %v832 = vunpack.c.l.b16 %v169
  %v833 = vunpack.c.l.b16 %v170
  %v834 = vunpack.c.l.b16 %v171
  %v835 = vunpack.c.l.b16 %v172
  %v836 = vunpack.c.l.b16 %v173
  %v837 = vunpack.c.l.b16 %v174
  %v838 = vunpack.c.l.b16 %v175
  %v839 = vunpack.c.l.b16 %v176
  %v840 = vunpack.c.l.b16 %v177
  %v841 = vunpack.c.l.b16 %v178
  %v842 = vunpack.c.l.b16 %v179
  %v843 = vunpack.c.l.b16 %v180
  %v844 = vunpack.c.l.b16 %v181
  %v845 = vunpack.c.l.b16 %v182
  %v846 = vunpack.c.l.b16 %v183
  %v847 = vunpack.c.l.b16 %v184
  %v848 = vunpack.c.l.b16 %v185
  %v849 = vunpack.c.l.b16 %v186
  %v850 = vunpack.c.l.b16 %v187
  %v851 = vunpack.c.l.b16 %v188
  %v852 = vunpack.c.l.b16 %v189
  %v853 = vunpack.c.l.b16 %v190
  %v854 = vunpack.c.l.b16 %v191
  %v855 = vunpack.c.l.b16 %v192
  %v856 = vunpack.c.l.b16 %v193
  %v857 = vunpack.c.l.b16 %v194
  %v858 = vunpack.c.l.b16 %v195
  %v859 = vunpack.c.l.b16 %v196
  %v860 = vunpack.c.l.b16 %v197
  %v861 = vunpack.c.l.b16 %v198
  %v862 = vunpack.c.l.b16 %v199
  %v863 = vunpack.c.l.b16 %v200
  %v864 = vunpack.c.l.b16 %v201
  %v865 = vunpack.c.l.b16 %v202
  %v866 = vunpack.c.l.b16 %v203
  %v867 = vunpack.c.l.b16 %v204
  %v868 = vunpack.c.l.b16 %v205
  %v869 = vunpack.c.l.b16 %v206
  %v870 = vunpack.c.l.b16 %v207
  %v871 = vunpack.c.l.b16 %v208
  %v872 = vunpack.c.l.b16 %v209
  %v873 = vunpack.c.l.b16 %v210
  %v874 = vunpack.c.l.b16 %v211
  %v875 = vunpack.c.l.b16 %v212
  %v876 = vunpack.c.l.b16 %v213
  %v877 = vunpack.c.l.b16 %v214
  %v878 = vunpack.c.l.b16 %v215
  %v879 = vunpack.c.l.b16 %v216
  %v880 = vunpack.c.l.b16 %v217
  %v881 = vunpack.c.l.b16 %v218
  %v882 = vunpack.c.l.b16 %v219
  %v883 = vunpack.c.l.b16 %v220
  %v884 = vunpack.c.l.b16 %v221
  %v885 = vunpack.c.l.b16 %v222
  %v886 = vunpack.c.l.b16 %v223
  %v887 = vunpack.c.l.b16 %v224
  %v888 = vunpack.c.l.b16 %v225
  %v889 = vunpack.c.l.b16 %v226
  %v890 = vunpack.c.l.b16 %v227
  %v891 = vunpack.c.l.b16 %v228
  %v892 = vunpack.c.l.b16 %v229
  %v893 = vunpack.c.l.b16 %v230
  %v894 = vunpack.c.l.b16 %v231
  %v895 = vunpack.c.l.b16 %v232
  %v896 = vunpack.c.l.b16 %v233
  %v897 = vunpack.c.l.b16 %v234
  %v898 = vunpack.c.l.b16 %v235
  %v899 = vunpack.c.l.b16 %v236
  %v900 = vunpack.c.l.b16 %v237
  %v901 = vunpack.c.l.b16 %v238
  %v902 = vpack.c.b16 %v759, %v758
  %v903 = vpack.c.b16 %v761, %v760
  %v904 = vpack.c.b16 %v763, %v762
  %v905 = vpack.c.b16 %v765, %v764
  %v906 = vpack.c.b16 %v767, %v766
  %v907 = vpack.c.b16 %v769, %v768
  %v908 = vpack.c.b16 %v771, %v770
  %v909 = vpack.c.b16 %v773, %v772
  %v910 = vpack.c.b16 %v775, %v774
  %v911 = vpack.c.b16 %v777, %v776
  %v912 = vpack.c.b16 %v779, %v778
  %v913 = vpack.c.b16 %v781, %v780
  %v914 = vpack.c.b16 %v783, %v782
  %v915 = vpack.c.b16 %v785, %v784
  %v916 = vpack.c.b16 %v787, %v786
  %v917 = vpack.c.b16 %v789, %v788
  %v918 = vpack.c.b16 %v791, %v790
  %v919 = vpack.c.b16 %v793, %v792
  %v920 = vpack.c.b16 %v795, %v794
  %v921 = vpack.c.b16 %v797, %v796
  %v922 = vpack.c.b16 %v799, %v798
  %v923 = vpack.c.b16 %v801, %v800
  %v924 = vpack.c.b16 %v803, %v802
  %v925 = vpack.c.b16 %v805, %v804
  %v926 = vpack.c.b16 %v807, %v806
  %v927 = vpack.c.b16 %v809, %v808
  %v928 = vpack.c.b16 %v811, %v810
  %v929 = vpack.c.b16 %v813, %v812
  %v930 = vpack.c.b16 %v815, %v814
  %v931 = vpack.c.b16 %v817, %v816
  %v932 = vpack.c.b16 %v819, %v818
  %v933 = vpack.c.b16 %v821, %v820
  %v934 = vpack.c.b16 %v823, %v822
  %v935 = vpack.c.b16 %v825, %v824
  %v936 = vpack.c.b16 %v827, %v826
  %v937 = vpack.c.b16 %v829, %v828
  %v938 = vpack.c.b16 %v831, %v830
  %v939 = vpack.c.b16 %v833, %v832
  %v940 = vpack.c.b16 %v835, %v834
  %v941 = vpack.c.b16 %v837, %v836
  %v942 = vpack.c.b16 %v839, %v838
  %v943 = vpack.c.b16 %v841, %v840
  %v944 = vpack.c.b16 %v843, %v842
  %v945 = vpack.c.b16 %v845, %v844
  %v946 = vpack.c.b16 %v847, %v846
  %v947 = vpack.c.b16 %v849, %v848
  %v948 = vpack.c.b16 %v851, %v850
  %v949 = vpack.c.b16 %v853, %v852
  %v950 = vpack.c.b16 %v855, %v854
  %v951 = vpack.c.b16 %v857, %v856
  %v952 = vpack.c.b16 %v859, %v858
  %v953 = vpack.c.b16 %v861, %v860
  %v954 = vpack.c.b16 %v863, %v862
  %v955 = vpack.c.b16 %v865, %v864
  %v956 = vpack.c.b16 %v867, %v866
  %v957 = vpack.c.b16 %v869, %v868
  %v958 = vpack.c.b16 %v871, %v870
  %v959 = vpack.c.b16 %v873, %v872
  %v960 = vpack.c.b16 %v875, %v874
  %v961 = vpack.c.b16 %v877, %v876
  %v962 = vpack.c.b16 %v879, %v878
  %v963 = vpack.c.b16 %v881, %v880
  %v964 = vpack.c.b16 %v883, %v882
  %v965 = vpack.c.b16 %v885, %v884
  %v966 = vpack.c.b16 %v887, %v886
  %v967 = vpack.c.b16 %v889, %v888
  %v968 = vpack.c.b16 %v891, %v890
  %v969 = vpack.c.b16 %v893, %v892
  %v970 = vpack.c.b16 %v895, %v894
  %v971 = vpack.c.b16 %v897, %v896
  %v972 = vpack.c.b16 %v899, %v898
  %v973 = vpack.c.b16 %v901, %v900
  %1046 = vmatprep.subr.bf16.mxu0 0
  %1047 = vmatpush1.bf16.msra.mxu0 %v909
  %1048 = vmatprep.subr.bf16.mxu0 0
  %1049 = vmatpush1.bf16.msra.mxu0 %v908
  %1050 = vmatprep.subr.bf16.mxu0 0
  %1051 = vmatpush1.bf16.msra.mxu0 %v907
  %1052 = vmatprep.subr.bf16.mxu0 0
  %1053 = vmatpush1.bf16.msra.mxu0 %v906
  %1054 = vmatprep.subr.bf16.mxu0 0
  %1055 = vmatpush1.bf16.msra.mxu0 %v905
  %1056 = vmatprep.subr.bf16.mxu0 0
  %1057 = vmatpush1.bf16.msra.mxu0 %v904
  %1058 = vmatprep.subr.bf16.mxu0 0
  %1059 = vmatpush1.bf16.msra.mxu0 %v903
  %1060 = vmatprep.subr.bf16.mxu0 0
  %1061 = vmatpush1.bf16.msra.mxu0 %v902
  %1062 = vmatprep.subr.bf16.mxu0 0
  %1063 = vmatpush2.bf16.msra.mxu0 %v917
  %1064 = vmatprep.subr.bf16.mxu0 0
  %1065 = vmatpush2.bf16.msra.mxu0 %v916
  %1066 = vmatprep.subr.bf16.mxu0 0
  %1067 = vmatpush2.bf16.msra.mxu0 %v915
  %1068 = vmatprep.subr.bf16.mxu0 0
  %1069 = vmatpush2.bf16.msra.mxu0 %v914
  %1070 = vmatprep.subr.bf16.mxu0 0
  %1071 = vmatpush2.bf16.msra.mxu0 %v913
  %1072 = vmatprep.subr.bf16.mxu0 0
  %1073 = vmatpush2.bf16.msra.mxu0 %v912
  %1074 = vmatprep.subr.bf16.mxu0 0
  %1075 = vmatpush2.bf16.msra.mxu0 %v911
  %1076 = vmatprep.subr.bf16.mxu0 0
  %1077 = vmatpush2.bf16.msra.mxu0 %v910
  %1078 = vmatprep.mubr.bf16.mxu0 %v471
  %1079 = vmatmul.mubr.bf16.gmra.mxu0 %v470
  %v1080 = vpop.f32.mrf.mxu0
  %v1081 = vadd.f32 %v244, %v1080
  %v1082 = vpop.f32.mrf.mxu0
  %v1083 = vpop.f32.mrf.mxu0
  %v1084 = vadd.f32 %v244, %v1083
  %v1085 = vpop.f32.mrf.mxu0
  %1086 = vmatprep.mubr.bf16.mxu0 %v480
  %1087 = vmatmul.mubr.bf16.gmra.mxu0 %v479
  %v1088 = vpop.f32.mrf.mxu0
  %v1089 = vadd.f32 %v244, %v1088
  %v1090 = vpop.f32.mrf.mxu0
  %v1091 = vpop.f32.mrf.mxu0
  %v1092 = vadd.f32 %v244, %v1091
  %v1093 = vpop.f32.mrf.mxu0
  %1094 = vmatprep.mubr.bf16.mxu0 %v489
  %1095 = vmatmul.mubr.bf16.gmra.mxu0 %v488
  %v1096 = vpop.f32.mrf.mxu0
  %v1097 = vadd.f32 %v244, %v1096
  %v1098 = vpop.f32.mrf.mxu0
  %v1099 = vpop.f32.mrf.mxu0
  %v1100 = vadd.f32 %v244, %v1099
  %v1101 = vpop.f32.mrf.mxu0
  %1102 = vmatprep.mubr.bf16.mxu0 %v498
  %1103 = vmatmul.mubr.bf16.gmra.mxu0 %v497
  %v1104 = vpop.f32.mrf.mxu0
  %v1105 = vadd.f32 %v244, %v1104
  %v1106 = vpop.f32.mrf.mxu0
  %v1107 = vpop.f32.mrf.mxu0
  %v1108 = vadd.f32 %v244, %v1107
  %v1109 = vpop.f32.mrf.mxu0
  %1110 = vmatprep.mubr.bf16.mxu0 %v507
  %1111 = vmatmul.mubr.bf16.gmra.mxu0 %v506
  %v1112 = vpop.f32.mrf.mxu0
  %v1113 = vadd.f32 %v244, %v1112
  %v1114 = vpop.f32.mrf.mxu0
  %v1115 = vpop.f32.mrf.mxu0
  %v1116 = vadd.f32 %v244, %v1115
  %v1117 = vpop.f32.mrf.mxu0
  %1118 = vmatprep.mubr.bf16.mxu0 %v516
  %1119 = vmatmul.mubr.bf16.gmra.mxu0 %v515
  %v1120 = vpop.f32.mrf.mxu0
  %v1121 = vadd.f32 %v244, %v1120
  %v1122 = vpop.f32.mrf.mxu0
  %v1123 = vpop.f32.mrf.mxu0
  %v1124 = vadd.f32 %v244, %v1123
  %v1125 = vpop.f32.mrf.mxu0
  %1126 = vmatprep.mubr.bf16.mxu0 %v525
  %1127 = vmatmul.mubr.bf16.gmra.mxu0 %v524
  %v1128 = vpop.f32.mrf.mxu0
  %v1129 = vadd.f32 %v244, %v1128
  %v1130 = vpop.f32.mrf.mxu0
  %v1131 = vpop.f32.mrf.mxu0
  %v1132 = vadd.f32 %v244, %v1131
  %v1133 = vpop.f32.mrf.mxu0
  %1134 = vmatprep.mubr.bf16.mxu0 %v534
  %1135 = vmatmul.mubr.bf16.gmra.mxu0 %v533
  %v1136 = vpop.f32.mrf.mxu0
  %v1137 = vadd.f32 %v244, %v1136
  %v1138 = vpop.f32.mrf.mxu0
  %v1139 = vpop.f32.mrf.mxu0
  %v1140 = vadd.f32 %v244, %v1139
  %v1141 = vpop.f32.mrf.mxu0
  %1142 = vdwg.mxu0
  %1143 = vmatprep.subr.bf16.mxu0 0
  %1144 = vmatpush1.bf16.msra.mxu0 %v925
  %1145 = vmatprep.subr.bf16.mxu0 0
  %1146 = vmatpush1.bf16.msra.mxu0 %v924
  %1147 = vmatprep.subr.bf16.mxu0 0
  %1148 = vmatpush1.bf16.msra.mxu0 %v923
  %1149 = vmatprep.subr.bf16.mxu0 0
  %1150 = vmatpush1.bf16.msra.mxu0 %v922
  %1151 = vmatprep.subr.bf16.mxu0 0
  %1152 = vmatpush1.bf16.msra.mxu0 %v921
  %1153 = vmatprep.subr.bf16.mxu0 0
  %1154 = vmatpush1.bf16.msra.mxu0 %v920
  %1155 = vmatprep.subr.bf16.mxu0 0
  %1156 = vmatpush1.bf16.msra.mxu0 %v919
  %1157 = vmatprep.subr.bf16.mxu0 0
  %1158 = vmatpush1.bf16.msra.mxu0 %v918
  %1159 = vmatprep.subr.bf16.mxu0 0
  %1160 = vmatpush2.bf16.msra.mxu0 %v933
  %1161 = vmatprep.subr.bf16.mxu0 0
  %1162 = vmatpush2.bf16.msra.mxu0 %v932
  %1163 = vmatprep.subr.bf16.mxu0 0
  %1164 = vmatpush2.bf16.msra.mxu0 %v931
  %1165 = vmatprep.subr.bf16.mxu0 0
  %1166 = vmatpush2.bf16.msra.mxu0 %v930
  %1167 = vmatprep.subr.bf16.mxu0 0
  %1168 = vmatpush2.bf16.msra.mxu0 %v929
  %1169 = vmatprep.subr.bf16.mxu0 0
  %1170 = vmatpush2.bf16.msra.mxu0 %v928
  %1171 = vmatprep.subr.bf16.mxu0 0
  %1172 = vmatpush2.bf16.msra.mxu0 %v927
  %1173 = vmatprep.subr.bf16.mxu0 0
  %1174 = vmatpush2.bf16.msra.mxu0 %v926
  %1175 = vmatprep.mubr.bf16.mxu0 %v473
  %1176 = vmatmul.mubr.bf16.gmra.mxu0 %v472
  %v1177 = vpop.f32.mrf.mxu0
  %v1178 = vadd.f32 %v1081, %v1177
  %v1179 = vpop.f32.mrf.mxu0
  %v1180 = vpop.f32.mrf.mxu0
  %v1181 = vadd.f32 %v1084, %v1180
  %v1182 = vpop.f32.mrf.mxu0
  %1183 = vmatprep.mubr.bf16.mxu0 %v482
  %1184 = vmatmul.mubr.bf16.gmra.mxu0 %v481
  %v1185 = vpop.f32.mrf.mxu0
  %v1186 = vadd.f32 %v1089, %v1185
  %v1187 = vpop.f32.mrf.mxu0
  %v1188 = vpop.f32.mrf.mxu0
  %v1189 = vadd.f32 %v1092, %v1188
  %v1190 = vpop.f32.mrf.mxu0
  %1191 = vmatprep.mubr.bf16.mxu0 %v491
  %1192 = vmatmul.mubr.bf16.gmra.mxu0 %v490
  %v1193 = vpop.f32.mrf.mxu0
  %v1194 = vadd.f32 %v1097, %v1193
  %v1195 = vpop.f32.mrf.mxu0
  %v1196 = vpop.f32.mrf.mxu0
  %v1197 = vadd.f32 %v1100, %v1196
  %v1198 = vpop.f32.mrf.mxu0
  %1199 = vmatprep.mubr.bf16.mxu0 %v500
  %1200 = vmatmul.mubr.bf16.gmra.mxu0 %v499
  %v1201 = vpop.f32.mrf.mxu0
  %v1202 = vadd.f32 %v1105, %v1201
  %v1203 = vpop.f32.mrf.mxu0
  %v1204 = vpop.f32.mrf.mxu0
  %v1205 = vadd.f32 %v1108, %v1204
  %v1206 = vpop.f32.mrf.mxu0
  %1207 = vmatprep.mubr.bf16.mxu0 %v509
  %1208 = vmatmul.mubr.bf16.gmra.mxu0 %v508
  %v1209 = vpop.f32.mrf.mxu0
  %v1210 = vadd.f32 %v1113, %v1209
  %v1211 = vpop.f32.mrf.mxu0
  %v1212 = vpop.f32.mrf.mxu0
  %v1213 = vadd.f32 %v1116, %v1212
  %v1214 = vpop.f32.mrf.mxu0
  %1215 = vmatprep.mubr.bf16.mxu0 %v518
  %1216 = vmatmul.mubr.bf16.gmra.mxu0 %v517
  %v1217 = vpop.f32.mrf.mxu0
  %v1218 = vadd.f32 %v1121, %v1217
  %v1219 = vpop.f32.mrf.mxu0
  %v1220 = vpop.f32.mrf.mxu0
  %v1221 = vadd.f32 %v1124, %v1220
  %v1222 = vpop.f32.mrf.mxu0
  %1223 = vmatprep.mubr.bf16.mxu0 %v527
  %1224 = vmatmul.mubr.bf16.gmra.mxu0 %v526
  %v1225 = vpop.f32.mrf.mxu0
  %v1226 = vadd.f32 %v1129, %v1225
  %v1227 = vpop.f32.mrf.mxu0
  %v1228 = vpop.f32.mrf.mxu0
  %v1229 = vadd.f32 %v1132, %v1228
  %v1230 = vpop.f32.mrf.mxu0
  %1231 = vmatprep.mubr.bf16.mxu0 %v536
  %1232 = vmatmul.mubr.bf16.gmra.mxu0 %v535
  %v1233 = vpop.f32.mrf.mxu0
  %v1234 = vadd.f32 %v1137, %v1233
  %v1235 = vpop.f32.mrf.mxu0
  %v1236 = vpop.f32.mrf.mxu0
  %v1237 = vadd.f32 %v1140, %v1236
  %v1238 = vpop.f32.mrf.mxu0
  %1239 = vdwg.mxu0
  %1240 = vmatprep.subr.bf16.mxu0 0
  %1241 = vmatpush1.bf16.msra.mxu0 %v941
  %1242 = vmatprep.subr.bf16.mxu0 0
  %1243 = vmatpush1.bf16.msra.mxu0 %v940
  %1244 = vmatprep.subr.bf16.mxu0 0
  %1245 = vmatpush1.bf16.msra.mxu0 %v939
  %1246 = vmatprep.subr.bf16.mxu0 0
  %1247 = vmatpush1.bf16.msra.mxu0 %v938
  %1248 = vmatprep.subr.bf16.mxu0 0
  %1249 = vmatpush1.bf16.msra.mxu0 %v937
  %1250 = vmatprep.subr.bf16.mxu0 0
  %1251 = vmatpush1.bf16.msra.mxu0 %v936
  %1252 = vmatprep.subr.bf16.mxu0 0
  %1253 = vmatpush1.bf16.msra.mxu0 %v935
  %1254 = vmatprep.subr.bf16.mxu0 0
  %1255 = vmatpush1.bf16.msra.mxu0 %v934
  %1256 = vmatprep.subr.bf16.mxu0 0
  %1257 = vmatpush2.bf16.msra.mxu0 %v949
  %1258 = vmatprep.subr.bf16.mxu0 0
  %1259 = vmatpush2.bf16.msra.mxu0 %v948
  %1260 = vmatprep.subr.bf16.mxu0 0
  %1261 = vmatpush2.bf16.msra.mxu0 %v947
  %1262 = vmatprep.subr.bf16.mxu0 0
  %1263 = vmatpush2.bf16.msra.mxu0 %v946
  %1264 = vmatprep.subr.bf16.mxu0 0
  %1265 = vmatpush2.bf16.msra.mxu0 %v945
  %1266 = vmatprep.subr.bf16.mxu0 0
  %1267 = vmatpush2.bf16.msra.mxu0 %v944
  %1268 = vmatprep.subr.bf16.mxu0 0
  %1269 = vmatpush2.bf16.msra.mxu0 %v943
  %1270 = vmatprep.subr.bf16.mxu0 0
  %1271 = vmatpush2.bf16.msra.mxu0 %v942
  %1272 = vmatprep.mubr.bf16.mxu0 %v475
  %1273 = vmatmul.mubr.bf16.gmra.mxu0 %v474
  %v1274 = vpop.f32.mrf.mxu0
  %v1275 = vadd.f32 %v1178, %v1274
  %v1276 = vpop.f32.mrf.mxu0
  %v1277 = vpop.f32.mrf.mxu0
  %v1278 = vadd.f32 %v1181, %v1277
  %v1279 = vpop.f32.mrf.mxu0
  %1280 = vmatprep.mubr.bf16.mxu0 %v484
  %1281 = vmatmul.mubr.bf16.gmra.mxu0 %v483
  %v1282 = vpop.f32.mrf.mxu0
  %v1283 = vadd.f32 %v1186, %v1282
  %v1284 = vpop.f32.mrf.mxu0
  %v1285 = vpop.f32.mrf.mxu0
  %v1286 = vadd.f32 %v1189, %v1285
  %v1287 = vpop.f32.mrf.mxu0
  %1288 = vmatprep.mubr.bf16.mxu0 %v493
  %1289 = vmatmul.mubr.bf16.gmra.mxu0 %v492
  %v1290 = vpop.f32.mrf.mxu0
  %v1291 = vadd.f32 %v1194, %v1290
  %v1292 = vpop.f32.mrf.mxu0
  %v1293 = vpop.f32.mrf.mxu0
  %v1294 = vadd.f32 %v1197, %v1293
  %v1295 = vpop.f32.mrf.mxu0
  %1296 = vmatprep.mubr.bf16.mxu0 %v502
  %1297 = vmatmul.mubr.bf16.gmra.mxu0 %v501
  %v1298 = vpop.f32.mrf.mxu0
  %v1299 = vadd.f32 %v1202, %v1298
  %v1300 = vpop.f32.mrf.mxu0
  %v1301 = vpop.f32.mrf.mxu0
  %v1302 = vadd.f32 %v1205, %v1301
  %v1303 = vpop.f32.mrf.mxu0
  %1304 = vmatprep.mubr.bf16.mxu0 %v511
  %1305 = vmatmul.mubr.bf16.gmra.mxu0 %v510
  %v1306 = vpop.f32.mrf.mxu0
  %v1307 = vadd.f32 %v1210, %v1306
  %v1308 = vpop.f32.mrf.mxu0
  %v1309 = vpop.f32.mrf.mxu0
  %v1310 = vadd.f32 %v1213, %v1309
  %v1311 = vpop.f32.mrf.mxu0
  %1312 = vmatprep.mubr.bf16.mxu0 %v520
  %1313 = vmatmul.mubr.bf16.gmra.mxu0 %v519
  %v1314 = vpop.f32.mrf.mxu0
  %v1315 = vadd.f32 %v1218, %v1314
  %v1316 = vpop.f32.mrf.mxu0
  %v1317 = vpop.f32.mrf.mxu0
  %v1318 = vadd.f32 %v1221, %v1317
  %v1319 = vpop.f32.mrf.mxu0
  %1320 = vmatprep.mubr.bf16.mxu0 %v529
  %1321 = vmatmul.mubr.bf16.gmra.mxu0 %v528
  %v1322 = vpop.f32.mrf.mxu0
  %v1323 = vadd.f32 %v1226, %v1322
  %v1324 = vpop.f32.mrf.mxu0
  %v1325 = vpop.f32.mrf.mxu0
  %v1326 = vadd.f32 %v1229, %v1325
  %v1327 = vpop.f32.mrf.mxu0
  %1328 = vmatprep.mubr.bf16.mxu0 %v538
  %1329 = vmatmul.mubr.bf16.gmra.mxu0 %v537
  %v1330 = vpop.f32.mrf.mxu0
  %v1331 = vadd.f32 %v1234, %v1330
  %v1332 = vpop.f32.mrf.mxu0
  %v1333 = vpop.f32.mrf.mxu0
  %v1334 = vadd.f32 %v1237, %v1333
  %v1335 = vpop.f32.mrf.mxu0
  %1336 = vdwg.mxu0
  %1337 = vmatprep.subr.bf16.mxu0 0
  %1338 = vmatpush1.bf16.msra.mxu0 %v957
  %1339 = vmatprep.subr.bf16.mxu0 0
  %1340 = vmatpush1.bf16.msra.mxu0 %v956
  %1341 = vmatprep.subr.bf16.mxu0 0
  %1342 = vmatpush1.bf16.msra.mxu0 %v955
  %1343 = vmatprep.subr.bf16.mxu0 0
  %1344 = vmatpush1.bf16.msra.mxu0 %v954
  %1345 = vmatprep.subr.bf16.mxu0 0
  %1346 = vmatpush1.bf16.msra.mxu0 %v953
  %1347 = vmatprep.subr.bf16.mxu0 0
  %1348 = vmatpush1.bf16.msra.mxu0 %v952
  %1349 = vmatprep.subr.bf16.mxu0 0
  %1350 = vmatpush1.bf16.msra.mxu0 %v951
  %1351 = vmatprep.subr.bf16.mxu0 0
  %1352 = vmatpush1.bf16.msra.mxu0 %v950
  %1353 = vmatprep.subr.bf16.mxu0 0
  %1354 = vmatpush2.bf16.msra.mxu0 %v965
  %1355 = vmatprep.subr.bf16.mxu0 0
  %1356 = vmatpush2.bf16.msra.mxu0 %v964
  %1357 = vmatprep.subr.bf16.mxu0 0
  %1358 = vmatpush2.bf16.msra.mxu0 %v963
  %1359 = vmatprep.subr.bf16.mxu0 0
  %1360 = vmatpush2.bf16.msra.mxu0 %v962
  %1361 = vmatprep.subr.bf16.mxu0 0
  %1362 = vmatpush2.bf16.msra.mxu0 %v961
  %1363 = vmatprep.subr.bf16.mxu0 0
  %1364 = vmatpush2.bf16.msra.mxu0 %v960
  %1365 = vmatprep.subr.bf16.mxu0 0
  %1366 = vmatpush2.bf16.msra.mxu0 %v959
  %1367 = vmatprep.subr.bf16.mxu0 0
  %1368 = vmatpush2.bf16.msra.mxu0 %v958
  %1369 = vmatprep.mubr.bf16.mxu0 %v477
  %1370 = vmatmul.mubr.bf16.gmra.mxu0 %v476
  %v1371 = vpop.f32.mrf.mxu0
  %v1372 = vadd.f32 %v1275, %v1371
  %v1373 = vpop.f32.mrf.mxu0
  %v1374 = vpop.f32.mrf.mxu0
  %v1375 = vadd.f32 %v1278, %v1374
  %v1376 = vpop.f32.mrf.mxu0
  %1377 = vmatprep.mubr.bf16.mxu0 %v486
  %1378 = vmatmul.mubr.bf16.gmra.mxu0 %v485
  %v1379 = vpop.f32.mrf.mxu0
  %v1380 = vadd.f32 %v1283, %v1379
  %v1381 = vpop.f32.mrf.mxu0
  %v1382 = vpop.f32.mrf.mxu0
  %v1383 = vadd.f32 %v1286, %v1382
  %v1384 = vpop.f32.mrf.mxu0
  %1385 = vmatprep.mubr.bf16.mxu0 %v495
  %1386 = vmatmul.mubr.bf16.gmra.mxu0 %v494
  %v1387 = vpop.f32.mrf.mxu0
  %v1388 = vadd.f32 %v1291, %v1387
  %v1389 = vpop.f32.mrf.mxu0
  %v1390 = vpop.f32.mrf.mxu0
  %v1391 = vadd.f32 %v1294, %v1390
  %v1392 = vpop.f32.mrf.mxu0
  %1393 = vmatprep.mubr.bf16.mxu0 %v504
  %1394 = vmatmul.mubr.bf16.gmra.mxu0 %v503
  %v1395 = vpop.f32.mrf.mxu0
  %v1396 = vadd.f32 %v1299, %v1395
  %v1397 = vpop.f32.mrf.mxu0
  %v1398 = vpop.f32.mrf.mxu0
  %v1399 = vadd.f32 %v1302, %v1398
  %v1400 = vpop.f32.mrf.mxu0
  %1401 = vmatprep.mubr.bf16.mxu0 %v513
  %1402 = vmatmul.mubr.bf16.gmra.mxu0 %v512
  %v1403 = vpop.f32.mrf.mxu0
  %v1404 = vadd.f32 %v1307, %v1403
  %v1405 = vpop.f32.mrf.mxu0
  %v1406 = vpop.f32.mrf.mxu0
  %v1407 = vadd.f32 %v1310, %v1406
  %v1408 = vpop.f32.mrf.mxu0
  %1409 = vmatprep.mubr.bf16.mxu0 %v522
  %1410 = vmatmul.mubr.bf16.gmra.mxu0 %v521
  %v1411 = vpop.f32.mrf.mxu0
  %v1412 = vadd.f32 %v1315, %v1411
  %v1413 = vpop.f32.mrf.mxu0
  %v1414 = vpop.f32.mrf.mxu0
  %v1415 = vadd.f32 %v1318, %v1414
  %v1416 = vpop.f32.mrf.mxu0
  %1417 = vmatprep.mubr.bf16.mxu0 %v531
  %1418 = vmatmul.mubr.bf16.gmra.mxu0 %v530
  %v1419 = vpop.f32.mrf.mxu0
  %v1420 = vadd.f32 %v1323, %v1419
  %v1421 = vpop.f32.mrf.mxu0
  %v1422 = vpop.f32.mrf.mxu0
  %v1423 = vadd.f32 %v1326, %v1422
  %v1424 = vpop.f32.mrf.mxu0
  %1425 = vmatprep.mubr.bf16.mxu0 %v540
  %1426 = vmatmul.mubr.bf16.gmra.mxu0 %v539
  %v1427 = vpop.f32.mrf.mxu0
  %v1428 = vadd.f32 %v1331, %v1427
  %v1429 = vpop.f32.mrf.mxu0
  %v1430 = vpop.f32.mrf.mxu0
  %v1431 = vadd.f32 %v1334, %v1430
  %v1432 = vpop.f32.mrf.mxu0
  %1433 = vdwg.mxu0
  %1434 = vmatprep.subr.bf16.mxu0 0
  %1435 = vmatpush1.bf16.msra.mxu0 %v973
  %1436 = vmatprep.subr.bf16.mxu0 0
  %1437 = vmatpush1.bf16.msra.mxu0 %v972
  %1438 = vmatprep.subr.bf16.mxu0 0
  %1439 = vmatpush1.bf16.msra.mxu0 %v971
  %1440 = vmatprep.subr.bf16.mxu0 0
  %1441 = vmatpush1.bf16.msra.mxu0 %v970
  %1442 = vmatprep.subr.bf16.mxu0 0
  %1443 = vmatpush1.bf16.msra.mxu0 %v969
  %1444 = vmatprep.subr.bf16.mxu0 0
  %1445 = vmatpush1.bf16.msra.mxu0 %v968
  %1446 = vmatprep.subr.bf16.mxu0 0
  %1447 = vmatpush1.bf16.msra.mxu0 %v967
  %1448 = vmatprep.subr.bf16.mxu0 0
  %1449 = vmatpush1.bf16.msra.mxu0 %v966
  %1450 = vmatprep.subr.bf16.mxu0 0
  %1451 = vmatpush2.bf16.msra.mxu0 0
  %1452 = vmatprep.subr.bf16.mxu0 0
  %1453 = vmatpush2.bf16.msra.mxu0 0
  %1454 = vmatprep.subr.bf16.mxu0 0
  %1455 = vmatpush2.bf16.msra.mxu0 0
  %1456 = vmatprep.subr.bf16.mxu0 0
  %1457 = vmatpush2.bf16.msra.mxu0 0
  %1458 = vmatprep.subr.bf16.mxu0 0
  %1459 = vmatpush2.bf16.msra.mxu0 0
  %1460 = vmatprep.subr.bf16.mxu0 0
  %1461 = vmatpush2.bf16.msra.mxu0 0
  %1462 = vmatprep.subr.bf16.mxu0 0
  %1463 = vmatpush2.bf16.msra.mxu0 0
  %1464 = vmatprep.subr.bf16.mxu0 0
  %1465 = vmatpush2.bf16.msra.mxu0 0
  %1466 = vmatprep.mubr.bf16.mxu0 0
  %1467 = vmatmul.mubr.bf16.gmra.mxu0 %v478
  %v1468 = vpop.f32.mrf.mxu0
  %v1469 = vadd.f32 %v1372, %v1468
  %v1470 = vpop.f32.mrf.mxu0
  %v1471 = vpop.f32.mrf.mxu0
  %v1472 = vadd.f32 %v1375, %v1471
  %v1473 = vpop.f32.mrf.mxu0
  %1474 = vmatprep.mubr.bf16.mxu0 0
  %1475 = vmatmul.mubr.bf16.gmra.mxu0 %v487
  %v1476 = vpop.f32.mrf.mxu0
  %v1477 = vadd.f32 %v1380, %v1476
  %v1478 = vpop.f32.mrf.mxu0
  %v1479 = vpop.f32.mrf.mxu0
  %v1480 = vadd.f32 %v1383, %v1479
  %v1481 = vpop.f32.mrf.mxu0
  %1482 = vmatprep.mubr.bf16.mxu0 0
  %1483 = vmatmul.mubr.bf16.gmra.mxu0 %v496
  %v1484 = vpop.f32.mrf.mxu0
  %v1485 = vadd.f32 %v1388, %v1484
  %v1486 = vpop.f32.mrf.mxu0
  %v1487 = vpop.f32.mrf.mxu0
  %v1488 = vadd.f32 %v1391, %v1487
  %v1489 = vpop.f32.mrf.mxu0
  %1490 = vmatprep.mubr.bf16.mxu0 0
  %1491 = vmatmul.mubr.bf16.gmra.mxu0 %v505
  %v1492 = vpop.f32.mrf.mxu0
  %v1493 = vadd.f32 %v1396, %v1492
  %v1494 = vpop.f32.mrf.mxu0
  %v1495 = vpop.f32.mrf.mxu0
  %v1496 = vadd.f32 %v1399, %v1495
  %v1497 = vpop.f32.mrf.mxu0
  %1498 = vmatprep.mubr.bf16.mxu0 0
  %1499 = vmatmul.mubr.bf16.gmra.mxu0 %v514
  %v1500 = vpop.f32.mrf.mxu0
  %v1501 = vadd.f32 %v1404, %v1500
  %v1502 = vpop.f32.mrf.mxu0
  %v1503 = vpop.f32.mrf.mxu0
  %v1504 = vadd.f32 %v1407, %v1503
  %v1505 = vpop.f32.mrf.mxu0
  %1506 = vmatprep.mubr.bf16.mxu0 0
  %1507 = vmatmul.mubr.bf16.gmra.mxu0 %v523
  %v1508 = vpop.f32.mrf.mxu0
  %v1509 = vadd.f32 %v1412, %v1508
  %v1510 = vpop.f32.mrf.mxu0
  %v1511 = vpop.f32.mrf.mxu0
  %v1512 = vadd.f32 %v1415, %v1511
  %v1513 = vpop.f32.mrf.mxu0
  %1514 = vmatprep.mubr.bf16.mxu0 0
  %1515 = vmatmul.mubr.bf16.gmra.mxu0 %v532
  %v1516 = vpop.f32.mrf.mxu0
  %v1517 = vadd.f32 %v1420, %v1516
  %v1518 = vpop.f32.mrf.mxu0
  %v1519 = vpop.f32.mrf.mxu0
  %v1520 = vadd.f32 %v1423, %v1519
  %v1521 = vpop.f32.mrf.mxu0
  %1522 = vmatprep.mubr.bf16.mxu0 0
  %1523 = vmatmul.mubr.bf16.gmra.mxu0 %v541
  %v1524 = vpop.f32.mrf.mxu0
  %v1525 = vadd.f32 %v1428, %v1524
  %v1526 = vpop.f32.mrf.mxu0
  %v1527 = vpop.f32.mrf.mxu0
  %v1528 = vadd.f32 %v1431, %v1527
  %v1529 = vpop.f32.mrf.mxu0
  %1530 = vdwg.mxu0
  %vm1531 = vcmask 523264
  %1532 = vst.msk [vmem:[%s3] sm:$0xff] %vm1531, %v1469
  %1533 = vst.msk [vmem:[%s3 + $0x8] sm:$0xff] %vm1531, %v1472
  %1534 = vst.msk [vmem:[%s3 + $0x10] sm:$0xff] %vm1531, %v1477
  %1535 = vst.msk [vmem:[%s3 + $0x18] sm:$0xff] %vm1531, %v1480
  %1536 = vst.msk [vmem:[%s3 + $0x20] sm:$0xff] %vm1531, %v1485
  %1537 = vst.msk [vmem:[%s3 + $0x28] sm:$0xff] %vm1531, %v1488
  %1538 = vst.msk [vmem:[%s3 + $0x30] sm:$0xff] %vm1531, %v1493
  %1539 = vst.msk [vmem:[%s3 + $0x38] sm:$0xff] %vm1531, %v1496
  %1540 = vst.msk [vmem:[%s3 + $0x40] sm:$0xff] %vm1531, %v1501
  %1541 = vst.msk [vmem:[%s3 + $0x48] sm:$0xff] %vm1531, %v1504
  %1542 = vst.msk [vmem:[%s3 + $0x50] sm:$0xff] %vm1531, %v1509
  %1543 = vst.msk [vmem:[%s3 + $0x58] sm:$0xff] %vm1531, %v1512
  %1544 = vst.msk [vmem:[%s3 + $0x60] sm:$0xff] %vm1531, %v1517
  %1545 = vst.msk [vmem:[%s3 + $0x68] sm:$0xff] %vm1531, %v1520
  %1546 = vst.msk [vmem:[%s3 + $0x70] sm:$0xff] %vm1531, %v1525
  %1547 = vst.msk [vmem:[%s3 + $0x78] sm:$0xff] %vm1531, %v1528
  // Predicated region
  $region14: #{forward.57} parent=0 // pred_check
    _
  $region15: #{forward.57} parent=0 // pred_check_branch
    %1549 = sbr.rel (0) target = $region17
  $region16: #{forward.57} parent=0 // pred_region
    _
  $region17: #{forward.57} parent=0 // pred_fallthru
    _
  // Predicated region
  $region18: #{forward.57} parent=0 // pred_check
    _
  $region19: #{forward.57} parent=0 // pred_check_branch
    %1551 = sbr.rel (0) target = $region21
  $region20: #{forward.57} parent=0 // pred_region
    _
  $region21: #{forward.57} parent=0 // pred_fallthru
    _

// kernel: forward.59
$region0: #{forward.59}
  #allocation0 [shape = 'u32[]', space=smem, size = 0x4, offset = 0x4, fixed_abs, tag = 'smem constant byte address 0x4 - core index']
  #allocation1 [shape = 'u32[144,128]{1,0:T(1,128)}', space=vmem, size = 0x12000, scoped, tag = 'internal scratch']
  %s0 = inlined_call_operand.vmem [shape: bf16[512,576], index: 0, kind: input, shape index: {}]
  %s1 = inlined_call_operand.vmem [shape: bf16[576,32], index: 1, kind: input, shape index: {}]
  %s2 = inlined_call_operand.vmem [shape: f32[1,32], index: 2, kind: input, shape index: {}]
  %s3 = inlined_call_operand.vmem [shape: f32[512,32], index: 3, kind: output, shape index: {}]
  %s4 = sld [smem:[#allocation0]]
  $region45: #{forward.59} parent=0
    _
  %s6 = ssub.s32 1, %s4
  %s7 = scalar_select 0, %s6, %s4
  loop: start=0, step=1, limit=4
  $region2: #{forward.59} parent=0 // loop_pre_header
    _
  $region3: #{forward.59} parent=0 // loop_header
    %s9 = sphi 0, %s13
    %p10 = scmp.ge.s32.totalorder %s9, 4
    %s19 = sphi 0, %s21
    %s22 = sphi 0, %s19
    %s23 = sphi 0, %s22
    %s39 = sphi 0, %s23
    %s43 = sphi 0, %s43
    %s45 = sphi 0, %s43
    %s46 = sphi 0, %s45
    %s60 = sphi 0, %s46
    %s64 = sphi 0, %s64
    %s66 = sphi 0, %s64
    %s67 = sphi 0, %s66
    %s81 = sphi 0, %s67
    %s87 = sphi 0, %s89
    %s90 = sphi 0, %s87
    %s91 = sphi 0, %s90
    %s107 = sphi 0, %s91
  $region4: #{forward.59} parent=0 // loop_header_branch
    %12 = sbr.rel (%p10) target = $region8
  $region5: #{forward.59} parent=0 // loop_body
    %s14 = ssub.s32 %s9, 1
    %s15 = ssub.s32 %s9, 2
    %s16 = sadd.s32 %s9, 1
    %s17 = ssub.s32 %s9, %s16
    %p18 = scmp.eq.s32.totalorder %s17, 0
    %s20 = sadd.s32 %s19, 1
    %s21 = scalar_select %p18, %s19, %s20
    %p24 = pneg %p18
    %p25 = scmp.eq.s32.totalorder %s9, 1
    %p26 = por %p24, %p25
    %p27 = scmp.ne.s32.totalorder %s19, %s22
    %p28 = scmp.eq.s32.totalorder %s9, 0
    %p29 = por %p27, %p28
    %p30 = scmp.ne.s32.totalorder %s19, %s22
    %p31 = scmp.eq.s32.totalorder %s14, 1
    %p32 = por %p30, %p31
    %p33 = scmp.ne.s32.totalorder %s22, %s23
    %p34 = scmp.eq.s32.totalorder %s14, 0
    %p35 = por %p33, %p34
    %p36 = scmp.ne.s32.totalorder %s22, %s23
    %p37 = scmp.eq.s32.totalorder %s15, 1
    %p38 = por %p36, %p37
    %p40 = scmp.ne.s32.totalorder %s23, %s39
    %p41 = scmp.eq.s32.totalorder %s15, 0
    %p42 = por %p40, %p41
    %s44 = sadd.s32 %s43, 1
    %p47 = scmp.eq.s32.totalorder %s9, 1
    %p48 = scmp.ne.s32.totalorder %s43, %s45
    %p49 = scmp.eq.s32.totalorder %s9, 0
    %p50 = por %p48, %p49
    %p51 = scmp.ne.s32.totalorder %s43, %s45
    %p52 = scmp.eq.s32.totalorder %s14, 1
    %p53 = por %p51, %p52
    %p54 = scmp.ne.s32.totalorder %s45, %s46
    %p55 = scmp.eq.s32.totalorder %s14, 0
    %p56 = por %p54, %p55
    %p57 = scmp.ne.s32.totalorder %s45, %s46
    %p58 = scmp.eq.s32.totalorder %s15, 1
    %p59 = por %p57, %p58
    %p61 = scmp.ne.s32.totalorder %s46, %s60
    %p62 = scmp.eq.s32.totalorder %s15, 0
    %p63 = por %p61, %p62
    %s65 = sadd.s32 %s64, 1
    %p68 = scmp.eq.s32.totalorder %s9, 1
    %p69 = scmp.ne.s32.totalorder %s64, %s66
    %p70 = scmp.eq.s32.totalorder %s9, 0
    %p71 = por %p69, %p70
    %p72 = scmp.ne.s32.totalorder %s64, %s66
    %p73 = scmp.eq.s32.totalorder %s14, 1
    %p74 = por %p72, %p73
    %p75 = scmp.ne.s32.totalorder %s66, %s67
    %p76 = scmp.eq.s32.totalorder %s14, 0
    %p77 = por %p75, %p76
    %p78 = scmp.ne.s32.totalorder %s66, %s67
    %p79 = scmp.eq.s32.totalorder %s15, 1
    %p80 = por %p78, %p79
    %p82 = scmp.ne.s32.totalorder %s67, %s81
    %p83 = scmp.eq.s32.totalorder %s15, 0
    %p84 = por %p82, %p83
    %s85 = ssub.s32 %s9, %s16
    %p86 = scmp.eq.s32.totalorder %s85, 0
    %s88 = sadd.s32 %s87, 1
    %s89 = scalar_select %p86, %s87, %s88
    %p92 = pneg %p86
    %p93 = scmp.eq.s32.totalorder %s9, 1
    %p94 = por %p92, %p93
    %p95 = scmp.ne.s32.totalorder %s87, %s90
    %p96 = scmp.eq.s32.totalorder %s9, 0
    %p97 = por %p95, %p96
    %p98 = scmp.ne.s32.totalorder %s87, %s90
    %p99 = scmp.eq.s32.totalorder %s14, 1
    %p100 = por %p98, %p99
    %p101 = scmp.ne.s32.totalorder %s90, %s91
    %p102 = scmp.eq.s32.totalorder %s14, 0
    %p103 = por %p101, %p102
    %p104 = scmp.ne.s32.totalorder %s90, %s91
    %p105 = scmp.eq.s32.totalorder %s15, 1
    %p106 = por %p104, %p105
    %p108 = scmp.ne.s32.totalorder %s91, %s107
    %p109 = scmp.eq.s32.totalorder %s15, 0
    %p110 = por %p108, %p109
    %p111 = scmp.le.s32.totalorder 1, %s9
    %p112 = scmp.lt.s32.totalorder %s9, 3
    %p113 = pnand %p111, %p112
    %p114 = pneg %p113
    // Predicated region
    $region9: #{forward.59} parent=5 // pred_check
      _
    $region10: #{forward.59} parent=5 // pred_check_branch
      %116 = sbr.rel (%p113) target = $region12
    $region11: #{forward.59} parent=5 // pred_region
      %s117 = ssub.s32 %s9, 1
      // Predicated region
      $region13: #{forward.59} parent=11 // pred_check
        %p118 = pneg %p56
      $region14: #{forward.59} parent=11 // pred_check_branch
        %120 = sbr.rel (%p118) target = $region16
      $region15: #{forward.59} parent=11 // pred_region
        _
      $region16: #{forward.59} parent=11 // pred_fallthru
        _
      // Predicated region
      $region17: #{forward.59} parent=11 // pred_check
        %p121 = pneg %p77
      $region18: #{forward.59} parent=11 // pred_check_branch
        %123 = sbr.rel (%p121) target = $region20
      $region19: #{forward.59} parent=11 // pred_region
        _
      $region20: #{forward.59} parent=11 // pred_fallthru
        _
    $region12: #{forward.59} parent=5 // pred_fallthru
      _
    %p124 = scmp.lt.s32.totalorder %s9, 2
    // Predicated region
    $region21: #{forward.59} parent=5 // pred_check
      %p125 = pneg %p124
    $region22: #{forward.59} parent=5 // pred_check_branch
      %127 = sbr.rel (%p125) target = $region24
    $region23: #{forward.59} parent=5 // pred_region
      // Predicated region
      $region25: #{forward.59} parent=23 // pred_check
        %p128 = pneg %p29
      $region26: #{forward.59} parent=23 // pred_check_branch
        %130 = sbr.rel (%p128) target = $region28
      $region27: #{forward.59} parent=23 // pred_region
        %s131 = smul.u32 32, %s9
        %p132 = scmp.lt.s32.totalorder %s131, 63
        %s133 = scalar_select %p132, %s131, 63
        %s134 = smul.addr %s133, 5
        %s135 = smul.addr %s134, 4
        %s136 = scalar_lea.vmem %s0, %s135
        %s137 = smul.u32 32, %s9
      $region28: #{forward.59} parent=23 // pred_fallthru
        _
    $region24: #{forward.59} parent=5 // pred_fallthru
      _
    %p138 = scmp.le.s32.totalorder 1, %s9
    %p139 = scmp.lt.s32.totalorder %s9, 3
    %p140 = pnand %p138, %p139
    %p141 = pneg %p140
    // Predicated region
    $region29: #{forward.59} parent=5 // pred_check
      _
    $region30: #{forward.59} parent=5 // pred_check_branch
      %143 = sbr.rel (%p140) target = $region32
    $region31: #{forward.59} parent=5 // pred_region
      %s144 = ssub.s32 %s9, 1
      %s145 = smul.u32 32, %s14
      %p146 = scmp.lt.s32.totalorder %s145, 63
      %s147 = scalar_select %p146, %s145, 63
      %s148 = smul.addr %s147, 5
      %s149 = smul.addr %s148, 4
      %s150 = scalar_lea.vmem %s0, %s149
      %p151 = pneg %p35
      %p152 = pneg %p32
      %p153 = pneg %p56
      %p154 = pneg %p53
      %p155 = pneg %p77
      %p156 = pneg %p74
      %p157 = pneg %p103
      %p158 = pneg %p100
      %s159 = smul.u32 32, %s14
      %p160 = scmp.lt.s32.totalorder %s159, 63
      %s161 = scalar_select %p160, %s159, 63
      %s162 = smul.addr %s161, 8
      %s163 = scalar_lea.vmem %s3, %s162
      %s164 = smul.u32 32, %s14
      %p165 = scmp.lt.s32.totalorder %s164, 63
      %s166 = scalar_select %p165, %s164, 63
      %s167 = smul.addr %s166, 5
      %s168 = smul.addr %s167, 4
      %s169 = scalar_lea.vmem %s0, %s168
      %s170 = smul.u32 32, %s14
      %s171 = smul.u32 32, %s14
      %p172 = scmp.lt.s32.totalorder %s171, 63
      %s173 = scalar_select %p172, %s171, 63
      %s174 = smul.addr %s173, 8
      %s175 = scalar_lea.vmem %s3, %s174
      %s176 = smul.u32 32, %s14
      %v178 = vld [vmem:[%s169] sm:$0xff]
      %v179 = vld [vmem:[%s169 + $0x8] sm:$0xff]
      %v180 = vld [vmem:[%s169 + $0x10] sm:$0xf]
      %v181 = vld [vmem:[%s169 + $0x14] sm:$0xff]
      %v182 = vld [vmem:[%s169 + $0x1c] sm:$0xff]
      %v183 = vld [vmem:[%s169 + $0x24] sm:$0xf]
      %v184 = vld [vmem:[%s169 + $0x28] sm:$0xff]
      %v185 = vld [vmem:[%s169 + $0x30] sm:$0xff]
      %v186 = vld [vmem:[%s169 + $0x38] sm:$0xf]
      %v187 = vld [vmem:[%s169 + $0x3c] sm:$0xff]
      %v188 = vld [vmem:[%s169 + $0x44] sm:$0xff]
      %v189 = vld [vmem:[%s169 + $0x4c] sm:$0xf]
      %v190 = vld [vmem:[%s169 + $0x50] sm:$0xff]
      %v191 = vld [vmem:[%s169 + $0x58] sm:$0xff]
      %v192 = vld [vmem:[%s169 + $0x60] sm:$0xf]
      %v193 = vld [vmem:[%s169 + $0x64] sm:$0xff]
      %v194 = vld [vmem:[%s169 + $0x6c] sm:$0xff]
      %v195 = vld [vmem:[%s169 + $0x74] sm:$0xf]
      %v196 = vld [vmem:[%s169 + $0x78] sm:$0xff]
      %v197 = vld [vmem:[%s169 + $0x80] sm:$0xff]
      %v198 = vld [vmem:[%s169 + $0x88] sm:$0xf]
      %v199 = vld [vmem:[%s169 + $0x8c] sm:$0xff]
      %v200 = vld [vmem:[%s169 + $0x94] sm:$0xff]
      %v201 = vld [vmem:[%s169 + $0x9c] sm:$0xf]
      %v202 = vld [vmem:[%s169 + $0xa0] sm:$0xff]
      %v203 = vld [vmem:[%s169 + $0xa8] sm:$0xff]
      %v204 = vld [vmem:[%s169 + $0xb0] sm:$0xf]
      %v205 = vld [vmem:[%s169 + $0xb4] sm:$0xff]
      %v206 = vld [vmem:[%s169 + $0xbc] sm:$0xff]
      %v207 = vld [vmem:[%s169 + $0xc4] sm:$0xf]
      %v208 = vld [vmem:[%s169 + $0xc8] sm:$0xff]
      %v209 = vld [vmem:[%s169 + $0xd0] sm:$0xff]
      %v210 = vld [vmem:[%s169 + $0xd8] sm:$0xf]
      %v211 = vld [vmem:[%s169 + $0xdc] sm:$0xff]
      %v212 = vld [vmem:[%s169 + $0xe4] sm:$0xff]
      %v213 = vld [vmem:[%s169 + $0xec] sm:$0xf]
      %v214 = vld [vmem:[%s169 + $0xf0] sm:$0xff]
      %v215 = vld [vmem:[%s169 + $0xf8] sm:$0xff]
      %v216 = vld [vmem:[%s169 + $0x100] sm:$0xf]
      %v217 = vld [vmem:[%s169 + $0x104] sm:$0xff]
      %v218 = vld [vmem:[%s169 + $0x10c] sm:$0xff]
      %v219 = vld [vmem:[%s169 + $0x114] sm:$0xf]
      %v220 = vld [vmem:[%s169 + $0x118] sm:$0xff]
      %v221 = vld [vmem:[%s169 + $0x120] sm:$0xff]
      %v222 = vld [vmem:[%s169 + $0x128] sm:$0xf]
      %v223 = vld [vmem:[%s169 + $0x12c] sm:$0xff]
      %v224 = vld [vmem:[%s169 + $0x134] sm:$0xff]
      %v225 = vld [vmem:[%s169 + $0x13c] sm:$0xf]
      %v226 = vld [vmem:[%s169 + $0x140] sm:$0xff]
      %v227 = vld [vmem:[%s169 + $0x148] sm:$0xff]
      %v228 = vld [vmem:[%s169 + $0x150] sm:$0xf]
      %v229 = vld [vmem:[%s169 + $0x154] sm:$0xff]
      %v230 = vld [vmem:[%s169 + $0x15c] sm:$0xff]
      %v231 = vld [vmem:[%s169 + $0x164] sm:$0xf]
      %v232 = vld [vmem:[%s169 + $0x168] sm:$0xff]
      %v233 = vld [vmem:[%s169 + $0x170] sm:$0xff]
      %v234 = vld [vmem:[%s169 + $0x178] sm:$0xf]
      %v235 = vld [vmem:[%s169 + $0x17c] sm:$0xff]
      %v236 = vld [vmem:[%s169 + $0x184] sm:$0xff]
      %v237 = vld [vmem:[%s169 + $0x18c] sm:$0xf]
      %v238 = vld [vmem:[%s169 + $0x190] sm:$0xff]
      %v239 = vld [vmem:[%s169 + $0x198] sm:$0xff]
      %v240 = vld [vmem:[%s169 + $0x1a0] sm:$0xf]
      %v241 = vld [vmem:[%s169 + $0x1a4] sm:$0xff]
      %v242 = vld [vmem:[%s169 + $0x1ac] sm:$0xff]
      %v243 = vld [vmem:[%s169 + $0x1b4] sm:$0xf]
      %v244 = vld [vmem:[%s169 + $0x1b8] sm:$0xff]
      %v245 = vld [vmem:[%s169 + $0x1c0] sm:$0xff]
      %v246 = vld [vmem:[%s169 + $0x1c8] sm:$0xf]
      %v247 = vld [vmem:[%s169 + $0x1cc] sm:$0xff]
      %v248 = vld [vmem:[%s169 + $0x1d4] sm:$0xff]
      %v249 = vld [vmem:[%s169 + $0x1dc] sm:$0xf]
      %v250 = vld [vmem:[%s169 + $0x1e0] sm:$0xff]
      %v251 = vld [vmem:[%s169 + $0x1e8] sm:$0xff]
      %v252 = vld [vmem:[%s169 + $0x1f0] sm:$0xf]
      %v253 = vld [vmem:[%s169 + $0x1f4] sm:$0xff]
      %v254 = vld [vmem:[%s169 + $0x1fc] sm:$0xff]
      %v255 = vld [vmem:[%s169 + $0x204] sm:$0xf]
      %v256 = vld [vmem:[%s169 + $0x208] sm:$0xff]
      %v257 = vld [vmem:[%s169 + $0x210] sm:$0xff]
      %v258 = vld [vmem:[%s169 + $0x218] sm:$0xf]
      %v259 = vld [vmem:[%s169 + $0x21c] sm:$0xff]
      %v260 = vld [vmem:[%s169 + $0x224] sm:$0xff]
      %v261 = vld [vmem:[%s169 + $0x22c] sm:$0xf]
      %v262 = vld [vmem:[%s169 + $0x230] sm:$0xff]
      %v263 = vld [vmem:[%s169 + $0x238] sm:$0xff]
      %v264 = vld [vmem:[%s169 + $0x240] sm:$0xf]
      %v265 = vld [vmem:[%s169 + $0x244] sm:$0xff]
      %v266 = vld [vmem:[%s169 + $0x24c] sm:$0xff]
      %v267 = vld [vmem:[%s169 + $0x254] sm:$0xf]
      %v268 = vld [vmem:[%s169 + $0x258] sm:$0xff]
      %v269 = vld [vmem:[%s169 + $0x260] sm:$0xff]
      %v270 = vld [vmem:[%s169 + $0x268] sm:$0xf]
      %v271 = vld [vmem:[%s169 + $0x26c] sm:$0xff]
      %v272 = vld [vmem:[%s169 + $0x274] sm:$0xff]
      %v273 = vld [vmem:[%s169 + $0x27c] sm:$0xf]
      %v274 = vld [vmem:[%s1] sm:$0xf]
      %v275 = vld [vmem:[%s1 + $0x4] sm:$0xf]
      %v276 = vld [vmem:[%s1 + $0x8] sm:$0xf]
      %v277 = vld [vmem:[%s1 + $0xc] sm:$0xf]
      %v278 = vld [vmem:[%s1 + $0x10] sm:$0xf]
      %v279 = vld [vmem:[%s1 + $0x14] sm:$0xf]
      %v280 = vld [vmem:[%s1 + $0x18] sm:$0xf]
      %v281 = vld [vmem:[%s1 + $0x1c] sm:$0xf]
      %v282 = vld [vmem:[%s1 + $0x20] sm:$0xf]
      %v283 = vld [vmem:[%s1 + $0x24] sm:$0xf]
      %v284 = vld [vmem:[%s1 + $0x28] sm:$0xf]
      %v285 = vld [vmem:[%s1 + $0x2c] sm:$0xf]
      %v286 = vld [vmem:[%s1 + $0x30] sm:$0xf]
      %v287 = vld [vmem:[%s1 + $0x34] sm:$0xf]
      %v288 = vld [vmem:[%s1 + $0x38] sm:$0xf]
      %v289 = vld [vmem:[%s1 + $0x3c] sm:$0xf]
      %v290 = vld [vmem:[%s1 + $0x40] sm:$0xf]
      %v291 = vld [vmem:[%s1 + $0x44] sm:$0xf]
      %v292 = vld [vmem:[%s1 + $0x48] sm:$0xf]
      %v293 = vld [vmem:[%s1 + $0x4c] sm:$0xf]
      %v294 = vld [vmem:[%s1 + $0x50] sm:$0xf]
      %v295 = vld [vmem:[%s1 + $0x54] sm:$0xf]
      %v296 = vld [vmem:[%s1 + $0x58] sm:$0xf]
      %v297 = vld [vmem:[%s1 + $0x5c] sm:$0xf]
      %v298 = vld [vmem:[%s1 + $0x60] sm:$0xf]
      %v299 = vld [vmem:[%s1 + $0x64] sm:$0xf]
      %v300 = vld [vmem:[%s1 + $0x68] sm:$0xf]
      %v301 = vld [vmem:[%s1 + $0x6c] sm:$0xf]
      %v302 = vld [vmem:[%s1 + $0x70] sm:$0xf]
      %v303 = vld [vmem:[%s1 + $0x74] sm:$0xf]
      %v304 = vld [vmem:[%s1 + $0x78] sm:$0xf]
      %v305 = vld [vmem:[%s1 + $0x7c] sm:$0xf]
      %v306 = vld [vmem:[%s1 + $0x80] sm:$0xf]
      %v307 = vld [vmem:[%s1 + $0x84] sm:$0xf]
      %v308 = vld [vmem:[%s1 + $0x88] sm:$0xf]
      %v309 = vld [vmem:[%s1 + $0x8c] sm:$0xf]
      %v310 = vld [vmem:[%s1 + $0x90] sm:$0xf]
      %v311 = vld [vmem:[%s1 + $0x94] sm:$0xf]
      %v312 = vld [vmem:[%s1 + $0x98] sm:$0xf]
      %v313 = vld [vmem:[%s1 + $0x9c] sm:$0xf]
      %v314 = vld [vmem:[%s1 + $0xa0] sm:$0xf]
      %v315 = vld [vmem:[%s1 + $0xa4] sm:$0xf]
      %v316 = vld [vmem:[%s1 + $0xa8] sm:$0xf]
      %v317 = vld [vmem:[%s1 + $0xac] sm:$0xf]
      %v318 = vld [vmem:[%s1 + $0xb0] sm:$0xf]
      %v319 = vld [vmem:[%s1 + $0xb4] sm:$0xf]
      %v320 = vld [vmem:[%s1 + $0xb8] sm:$0xf]
      %v321 = vld [vmem:[%s1 + $0xbc] sm:$0xf]
      %v322 = vld [vmem:[%s1 + $0xc0] sm:$0xf]
      %v323 = vld [vmem:[%s1 + $0xc4] sm:$0xf]
      %v324 = vld [vmem:[%s1 + $0xc8] sm:$0xf]
      %v325 = vld [vmem:[%s1 + $0xcc] sm:$0xf]
      %v326 = vld [vmem:[%s1 + $0xd0] sm:$0xf]
      %v327 = vld [vmem:[%s1 + $0xd4] sm:$0xf]
      %v328 = vld [vmem:[%s1 + $0xd8] sm:$0xf]
      %v329 = vld [vmem:[%s1 + $0xdc] sm:$0xf]
      %v330 = vld [vmem:[%s1 + $0xe0] sm:$0xf]
      %v331 = vld [vmem:[%s1 + $0xe4] sm:$0xf]
      %v332 = vld [vmem:[%s1 + $0xe8] sm:$0xf]
      %v333 = vld [vmem:[%s1 + $0xec] sm:$0xf]
      %v334 = vld [vmem:[%s1 + $0xf0] sm:$0xf]
      %v335 = vld [vmem:[%s1 + $0xf4] sm:$0xf]
      %v336 = vld [vmem:[%s1 + $0xf8] sm:$0xf]
      %v337 = vld [vmem:[%s1 + $0xfc] sm:$0xf]
      %v338 = vld [vmem:[%s1 + $0x100] sm:$0xf]
      %v339 = vld [vmem:[%s1 + $0x104] sm:$0xf]
      %v340 = vld [vmem:[%s1 + $0x108] sm:$0xf]
      %v341 = vld [vmem:[%s1 + $0x10c] sm:$0xf]
      %v342 = vld [vmem:[%s1 + $0x110] sm:$0xf]
      %v343 = vld [vmem:[%s1 + $0x114] sm:$0xf]
      %v344 = vld [vmem:[%s1 + $0x118] sm:$0xf]
      %v345 = vld [vmem:[%s1 + $0x11c] sm:$0xf]
      %v346 = vld [vmem:[%s2] sm:$0x1]
      %v348 = vlaneseq
      %v349 = vshrl.u32 %v348, 7
      %v350 = vsub.s32 0, %v349
      %v351 = vrot.slane %v346, %v350
      %v449 = vunpack.c.l.b16 %v178
      %v450 = vunpack.c.h.b16 %v178
      %v451 = vunpack.c.l.b16 %v179
      %v452 = vunpack.c.h.b16 %v179
      %v453 = vunpack.c.l.b16 %v180
      %v454 = vunpack.c.l.b16 %v181
      %v455 = vunpack.c.h.b16 %v181
      %v456 = vunpack.c.l.b16 %v182
      %v457 = vunpack.c.h.b16 %v182
      %v458 = vunpack.c.l.b16 %v183
      %v459 = vunpack.c.l.b16 %v184
      %v460 = vunpack.c.h.b16 %v184
      %v461 = vunpack.c.l.b16 %v185
      %v462 = vunpack.c.h.b16 %v185
      %v463 = vunpack.c.l.b16 %v186
      %v464 = vunpack.c.l.b16 %v187
      %v465 = vunpack.c.h.b16 %v187
      %v466 = vunpack.c.l.b16 %v188
      %v467 = vunpack.c.h.b16 %v188
      %v468 = vunpack.c.l.b16 %v189
      %v469 = vunpack.c.l.b16 %v190
      %v470 = vunpack.c.h.b16 %v190
      %v471 = vunpack.c.l.b16 %v191
      %v472 = vunpack.c.h.b16 %v191
      %v473 = vunpack.c.l.b16 %v192
      %v474 = vunpack.c.l.b16 %v193
      %v475 = vunpack.c.h.b16 %v193
      %v476 = vunpack.c.l.b16 %v194
      %v477 = vunpack.c.h.b16 %v194
      %v478 = vunpack.c.l.b16 %v195
      %v479 = vunpack.c.l.b16 %v196
      %v480 = vunpack.c.h.b16 %v196
      %v481 = vunpack.c.l.b16 %v197
      %v482 = vunpack.c.h.b16 %v197
      %v483 = vunpack.c.l.b16 %v198
      %v484 = vunpack.c.l.b16 %v199
      %v485 = vunpack.c.h.b16 %v199
      %v486 = vunpack.c.l.b16 %v200
      %v487 = vunpack.c.h.b16 %v200
      %v488 = vunpack.c.l.b16 %v201
      %v489 = vunpack.c.l.b16 %v202
      %v490 = vunpack.c.h.b16 %v202
      %v491 = vunpack.c.l.b16 %v203
      %v492 = vunpack.c.h.b16 %v203
      %v493 = vunpack.c.l.b16 %v204
      %v494 = vunpack.c.l.b16 %v205
      %v495 = vunpack.c.h.b16 %v205
      %v496 = vunpack.c.l.b16 %v206
      %v497 = vunpack.c.h.b16 %v206
      %v498 = vunpack.c.l.b16 %v207
      %v499 = vunpack.c.l.b16 %v208
      %v500 = vunpack.c.h.b16 %v208
      %v501 = vunpack.c.l.b16 %v209
      %v502 = vunpack.c.h.b16 %v209
      %v503 = vunpack.c.l.b16 %v210
      %v504 = vunpack.c.l.b16 %v211
      %v505 = vunpack.c.h.b16 %v211
      %v506 = vunpack.c.l.b16 %v212
      %v507 = vunpack.c.h.b16 %v212
      %v508 = vunpack.c.l.b16 %v213
      %v509 = vunpack.c.l.b16 %v214
      %v510 = vunpack.c.h.b16 %v214
      %v511 = vunpack.c.l.b16 %v215
      %v512 = vunpack.c.h.b16 %v215
      %v513 = vunpack.c.l.b16 %v216
      %v514 = vunpack.c.l.b16 %v217
      %v515 = vunpack.c.h.b16 %v217
      %v516 = vunpack.c.l.b16 %v218
      %v517 = vunpack.c.h.b16 %v218
      %v518 = vunpack.c.l.b16 %v219
      %v519 = vunpack.c.l.b16 %v220
      %v520 = vunpack.c.h.b16 %v220
      %v521 = vunpack.c.l.b16 %v221
      %v522 = vunpack.c.h.b16 %v221
      %v523 = vunpack.c.l.b16 %v222
      %v524 = vunpack.c.l.b16 %v223
      %v525 = vunpack.c.h.b16 %v223
      %v526 = vunpack.c.l.b16 %v224
      %v527 = vunpack.c.h.b16 %v224
      %v528 = vunpack.c.l.b16 %v225
      %v529 = vunpack.c.l.b16 %v226
      %v530 = vunpack.c.h.b16 %v226
      %v531 = vunpack.c.l.b16 %v227
      %v532 = vunpack.c.h.b16 %v227
      %v533 = vunpack.c.l.b16 %v228
      %v534 = vunpack.c.l.b16 %v229
      %v535 = vunpack.c.h.b16 %v229
      %v536 = vunpack.c.l.b16 %v230
      %v537 = vunpack.c.h.b16 %v230
      %v538 = vunpack.c.l.b16 %v231
      %v539 = vunpack.c.l.b16 %v232
      %v540 = vunpack.c.h.b16 %v232
      %v541 = vunpack.c.l.b16 %v233
      %v542 = vunpack.c.h.b16 %v233
      %v543 = vunpack.c.l.b16 %v234
      %v544 = vunpack.c.l.b16 %v235
      %v545 = vunpack.c.h.b16 %v235
      %v546 = vunpack.c.l.b16 %v236
      %v547 = vunpack.c.h.b16 %v236
      %v548 = vunpack.c.l.b16 %v237
      %v549 = vunpack.c.l.b16 %v238
      %v550 = vunpack.c.h.b16 %v238
      %v551 = vunpack.c.l.b16 %v239
      %v552 = vunpack.c.h.b16 %v239
      %v553 = vunpack.c.l.b16 %v240
      %v554 = vunpack.c.l.b16 %v241
      %v555 = vunpack.c.h.b16 %v241
      %v556 = vunpack.c.l.b16 %v242
      %v557 = vunpack.c.h.b16 %v242
      %v558 = vunpack.c.l.b16 %v243
      %v559 = vunpack.c.l.b16 %v244
      %v560 = vunpack.c.h.b16 %v244
      %v561 = vunpack.c.l.b16 %v245
      %v562 = vunpack.c.h.b16 %v245
      %v563 = vunpack.c.l.b16 %v246
      %v564 = vunpack.c.l.b16 %v247
      %v565 = vunpack.c.h.b16 %v247
      %v566 = vunpack.c.l.b16 %v248
      %v567 = vunpack.c.h.b16 %v248
      %v568 = vunpack.c.l.b16 %v249
      %v569 = vunpack.c.l.b16 %v250
      %v570 = vunpack.c.h.b16 %v250
      %v571 = vunpack.c.l.b16 %v251
      %v572 = vunpack.c.h.b16 %v251
      %v573 = vunpack.c.l.b16 %v252
      %v574 = vunpack.c.l.b16 %v253
      %v575 = vunpack.c.h.b16 %v253
      %v576 = vunpack.c.l.b16 %v254
      %v577 = vunpack.c.h.b16 %v254
      %v578 = vunpack.c.l.b16 %v255
      %v579 = vunpack.c.l.b16 %v256
      %v580 = vunpack.c.h.b16 %v256
      %v581 = vunpack.c.l.b16 %v257
      %v582 = vunpack.c.h.b16 %v257
      %v583 = vunpack.c.l.b16 %v258
      %v584 = vunpack.c.l.b16 %v259
      %v585 = vunpack.c.h.b16 %v259
      %v586 = vunpack.c.l.b16 %v260
      %v587 = vunpack.c.h.b16 %v260
      %v588 = vunpack.c.l.b16 %v261
      %v589 = vunpack.c.l.b16 %v262
      %v590 = vunpack.c.h.b16 %v262
      %v591 = vunpack.c.l.b16 %v263
      %v592 = vunpack.c.h.b16 %v263
      %v593 = vunpack.c.l.b16 %v264
      %v594 = vunpack.c.l.b16 %v265
      %v595 = vunpack.c.h.b16 %v265
      %v596 = vunpack.c.l.b16 %v266
      %v597 = vunpack.c.h.b16 %v266
      %v598 = vunpack.c.l.b16 %v267
      %v599 = vunpack.c.l.b16 %v268
      %v600 = vunpack.c.h.b16 %v268
      %v601 = vunpack.c.l.b16 %v269
      %v602 = vunpack.c.h.b16 %v269
      %v603 = vunpack.c.l.b16 %v270
      %v604 = vunpack.c.l.b16 %v271
      %v605 = vunpack.c.h.b16 %v271
      %v606 = vunpack.c.l.b16 %v272
      %v607 = vunpack.c.h.b16 %v272
      %v608 = vunpack.c.l.b16 %v273
      %v609 = vpack.c.b16 %v454, %v449
      %v610 = vpack.c.b16 %v455, %v450
      %v611 = vpack.c.b16 %v456, %v451
      %v612 = vpack.c.b16 %v457, %v452
      %v613 = vpack.c.b16 %v458, %v453
      %v614 = vpack.c.b16 %v464, %v459
      %v615 = vpack.c.b16 %v465, %v460
      %v616 = vpack.c.b16 %v466, %v461
      %v617 = vpack.c.b16 %v467, %v462
      %v618 = vpack.c.b16 %v468, %v463
      %v619 = vpack.c.b16 %v474, %v469
      %v620 = vpack.c.b16 %v475, %v470
      %v621 = vpack.c.b16 %v476, %v471
      %v622 = vpack.c.b16 %v477, %v472
      %v623 = vpack.c.b16 %v478, %v473
      %v624 = vpack.c.b16 %v484, %v479
      %v625 = vpack.c.b16 %v485, %v480
      %v626 = vpack.c.b16 %v486, %v481
      %v627 = vpack.c.b16 %v487, %v482
      %v628 = vpack.c.b16 %v488, %v483
      %v629 = vpack.c.b16 %v494, %v489
      %v630 = vpack.c.b16 %v495, %v490
      %v631 = vpack.c.b16 %v496, %v491
      %v632 = vpack.c.b16 %v497, %v492
      %v633 = vpack.c.b16 %v498, %v493
      %v634 = vpack.c.b16 %v504, %v499
      %v635 = vpack.c.b16 %v505, %v500
      %v636 = vpack.c.b16 %v506, %v501
      %v637 = vpack.c.b16 %v507, %v502
      %v638 = vpack.c.b16 %v508, %v503
      %v639 = vpack.c.b16 %v514, %v509
      %v640 = vpack.c.b16 %v515, %v510
      %v641 = vpack.c.b16 %v516, %v511
      %v642 = vpack.c.b16 %v517, %v512
      %v643 = vpack.c.b16 %v518, %v513
      %v644 = vpack.c.b16 %v524, %v519
      %v645 = vpack.c.b16 %v525, %v520
      %v646 = vpack.c.b16 %v526, %v521
      %v647 = vpack.c.b16 %v527, %v522
      %v648 = vpack.c.b16 %v528, %v523
      %v649 = vpack.c.b16 %v534, %v529
      %v650 = vpack.c.b16 %v535, %v530
      %v651 = vpack.c.b16 %v536, %v531
      %v652 = vpack.c.b16 %v537, %v532
      %v653 = vpack.c.b16 %v538, %v533
      %v654 = vpack.c.b16 %v544, %v539
      %v655 = vpack.c.b16 %v545, %v540
      %v656 = vpack.c.b16 %v546, %v541
      %v657 = vpack.c.b16 %v547, %v542
      %v658 = vpack.c.b16 %v548, %v543
      %v659 = vpack.c.b16 %v554, %v549
      %v660 = vpack.c.b16 %v555, %v550
      %v661 = vpack.c.b16 %v556, %v551
      %v662 = vpack.c.b16 %v557, %v552
      %v663 = vpack.c.b16 %v558, %v553
      %v664 = vpack.c.b16 %v564, %v559
      %v665 = vpack.c.b16 %v565, %v560
      %v666 = vpack.c.b16 %v566, %v561
      %v667 = vpack.c.b16 %v567, %v562
      %v668 = vpack.c.b16 %v568, %v563
      %v669 = vpack.c.b16 %v574, %v569
      %v670 = vpack.c.b16 %v575, %v570
      %v671 = vpack.c.b16 %v576, %v571
      %v672 = vpack.c.b16 %v577, %v572
      %v673 = vpack.c.b16 %v578, %v573
      %v674 = vpack.c.b16 %v584, %v579
      %v675 = vpack.c.b16 %v585, %v580
      %v676 = vpack.c.b16 %v586, %v581
      %v677 = vpack.c.b16 %v587, %v582
      %v678 = vpack.c.b16 %v588, %v583
      %v679 = vpack.c.b16 %v594, %v589
      %v680 = vpack.c.b16 %v595, %v590
      %v681 = vpack.c.b16 %v596, %v591
      %v682 = vpack.c.b16 %v597, %v592
      %v683 = vpack.c.b16 %v598, %v593
      %v684 = vpack.c.b16 %v604, %v599
      %v685 = vpack.c.b16 %v605, %v600
      %v686 = vpack.c.b16 %v606, %v601
      %v687 = vpack.c.b16 %v607, %v602
      %v688 = vpack.c.b16 %v608, %v603
      %v825 = vunpack.c.l.b16 %v274
      %v826 = vunpack.c.l.b16 %v275
      %v827 = vunpack.c.l.b16 %v276
      %v828 = vunpack.c.l.b16 %v277
      %v829 = vunpack.c.l.b16 %v278
      %v830 = vunpack.c.l.b16 %v279
      %v831 = vunpack.c.l.b16 %v280
      %v832 = vunpack.c.l.b16 %v281
      %v833 = vunpack.c.l.b16 %v282
      %v834 = vunpack.c.l.b16 %v283
      %v835 = vunpack.c.l.b16 %v284
      %v836 = vunpack.c.l.b16 %v285
      %v837 = vunpack.c.l.b16 %v286
      %v838 = vunpack.c.l.b16 %v287
      %v839 = vunpack.c.l.b16 %v288
      %v840 = vunpack.c.l.b16 %v289
      %v841 = vunpack.c.l.b16 %v290
      %v842 = vunpack.c.l.b16 %v291
      %v843 = vunpack.c.l.b16 %v292
      %v844 = vunpack.c.l.b16 %v293
      %v845 = vunpack.c.l.b16 %v294
      %v846 = vunpack.c.l.b16 %v295
      %v847 = vunpack.c.l.b16 %v296
      %v848 = vunpack.c.l.b16 %v297
      %v849 = vunpack.c.l.b16 %v298
      %v850 = vunpack.c.l.b16 %v299
      %v851 = vunpack.c.l.b16 %v300
      %v852 = vunpack.c.l.b16 %v301
      %v853 = vunpack.c.l.b16 %v302
      %v854 = vunpack.c.l.b16 %v303
      %v855 = vunpack.c.l.b16 %v304
      %v856 = vunpack.c.l.b16 %v305
      %v857 = vunpack.c.l.b16 %v306
      %v858 = vunpack.c.l.b16 %v307
      %v859 = vunpack.c.l.b16 %v308
      %v860 = vunpack.c.l.b16 %v309
      %v861 = vunpack.c.l.b16 %v310
      %v862 = vunpack.c.l.b16 %v311
      %v863 = vunpack.c.l.b16 %v312
      %v864 = vunpack.c.l.b16 %v313
      %v865 = vunpack.c.l.b16 %v314
      %v866 = vunpack.c.l.b16 %v315
      %v867 = vunpack.c.l.b16 %v316
      %v868 = vunpack.c.l.b16 %v317
      %v869 = vunpack.c.l.b16 %v318
      %v870 = vunpack.c.l.b16 %v319
      %v871 = vunpack.c.l.b16 %v320
      %v872 = vunpack.c.l.b16 %v321
      %v873 = vunpack.c.l.b16 %v322
      %v874 = vunpack.c.l.b16 %v323
      %v875 = vunpack.c.l.b16 %v324
      %v876 = vunpack.c.l.b16 %v325
      %v877 = vunpack.c.l.b16 %v326
      %v878 = vunpack.c.l.b16 %v327
      %v879 = vunpack.c.l.b16 %v328
      %v880 = vunpack.c.l.b16 %v329
      %v881 = vunpack.c.l.b16 %v330
      %v882 = vunpack.c.l.b16 %v331
      %v883 = vunpack.c.l.b16 %v332
      %v884 = vunpack.c.l.b16 %v333
      %v885 = vunpack.c.l.b16 %v334
      %v886 = vunpack.c.l.b16 %v335
      %v887 = vunpack.c.l.b16 %v336
      %v888 = vunpack.c.l.b16 %v337
      %v889 = vunpack.c.l.b16 %v338
      %v890 = vunpack.c.l.b16 %v339
      %v891 = vunpack.c.l.b16 %v340
      %v892 = vunpack.c.l.b16 %v341
      %v893 = vunpack.c.l.b16 %v342
      %v894 = vunpack.c.l.b16 %v343
      %v895 = vunpack.c.l.b16 %v344
      %v896 = vunpack.c.l.b16 %v345
      %v897 = vpack.c.b16 %v826, %v825
      %v898 = vpack.c.b16 %v828, %v827
      %v899 = vpack.c.b16 %v830, %v829
      %v900 = vpack.c.b16 %v832, %v831
      %v901 = vpack.c.b16 %v834, %v833
      %v902 = vpack.c.b16 %v836, %v835
      %v903 = vpack.c.b16 %v838, %v837
      %v904 = vpack.c.b16 %v840, %v839
      %v905 = vpack.c.b16 %v842, %v841
      %v906 = vpack.c.b16 %v844, %v843
      %v907 = vpack.c.b16 %v846, %v845
      %v908 = vpack.c.b16 %v848, %v847
      %v909 = vpack.c.b16 %v850, %v849
      %v910 = vpack.c.b16 %v852, %v851
      %v911 = vpack.c.b16 %v854, %v853
      %v912 = vpack.c.b16 %v856, %v855
      %v913 = vpack.c.b16 %v858, %v857
      %v914 = vpack.c.b16 %v860, %v859
      %v915 = vpack.c.b16 %v862, %v861
      %v916 = vpack.c.b16 %v864, %v863
      %v917 = vpack.c.b16 %v866, %v865
      %v918 = vpack.c.b16 %v868, %v867
      %v919 = vpack.c.b16 %v870, %v869
      %v920 = vpack.c.b16 %v872, %v871
      %v921 = vpack.c.b16 %v874, %v873
      %v922 = vpack.c.b16 %v876, %v875
      %v923 = vpack.c.b16 %v878, %v877
      %v924 = vpack.c.b16 %v880, %v879
      %v925 = vpack.c.b16 %v882, %v881
      %v926 = vpack.c.b16 %v884, %v883
      %v927 = vpack.c.b16 %v886, %v885
      %v928 = vpack.c.b16 %v888, %v887
      %v929 = vpack.c.b16 %v890, %v889
      %v930 = vpack.c.b16 %v892, %v891
      %v931 = vpack.c.b16 %v894, %v893
      %v932 = vpack.c.b16 %v896, %v895
      %vm969 = vcmask 523264
      %v971 = vsel %vm969, %v613, 0
      %v974 = vsel %vm969, %v618, 0
      %v977 = vsel %vm969, %v623, 0
      %v980 = vsel %vm969, %v628, 0
      %v983 = vsel %vm969, %v633, 0
      %v986 = vsel %vm969, %v638, 0
      %v989 = vsel %vm969, %v643, 0
      %v992 = vsel %vm969, %v648, 0
      %v995 = vsel %vm969, %v653, 0
      %v998 = vsel %vm969, %v658, 0
      %v1001 = vsel %vm969, %v663, 0
      %v1004 = vsel %vm969, %v668, 0
      %v1007 = vsel %vm969, %v673, 0
      %v1010 = vsel %vm969, %v678, 0
      %v1013 = vsel %vm969, %v683, 0
      %v1016 = vsel %vm969, %v688, 0
      %1018 = vmatprep.subr.bf16.mxu0 0
      %1019 = vmatpush1.bf16.msra.mxu0 %v904
      %1020 = vmatprep.subr.bf16.mxu0 0
      %1021 = vmatpush1.bf16.msra.mxu0 %v903
      %1022 = vmatprep.subr.bf16.mxu0 0
      %1023 = vmatpush1.bf16.msra.mxu0 %v902
      %1024 = vmatprep.subr.bf16.mxu0 0
      %1025 = vmatpush1.bf16.msra.mxu0 %v901
      %1026 = vmatprep.subr.bf16.mxu0 0
      %1027 = vmatpush1.bf16.msra.mxu0 %v900
      %1028 = vmatprep.subr.bf16.mxu0 0
      %1029 = vmatpush1.bf16.msra.mxu0 %v899
      %1030 = vmatprep.subr.bf16.mxu0 0
      %1031 = vmatpush1.bf16.msra.mxu0 %v898
      %1032 = vmatprep.subr.bf16.mxu0 0
      %1033 = vmatpush1.bf16.msra.mxu0 %v897
      %1034 = vmatprep.subr.bf16.mxu0 0
      %1035 = vmatpush2.bf16.msra.mxu0 %v912
      %1036 = vmatprep.subr.bf16.mxu0 0
      %1037 = vmatpush2.bf16.msra.mxu0 %v911
      %1038 = vmatprep.subr.bf16.mxu0 0
      %1039 = vmatpush2.bf16.msra.mxu0 %v910
      %1040 = vmatprep.subr.bf16.mxu0 0
      %1041 = vmatpush2.bf16.msra.mxu0 %v909
      %1042 = vmatprep.subr.bf16.mxu0 0
      %1043 = vmatpush2.bf16.msra.mxu0 %v908
      %1044 = vmatprep.subr.bf16.mxu0 0
      %1045 = vmatpush2.bf16.msra.mxu0 %v907
      %1046 = vmatprep.subr.bf16.mxu0 0
      %1047 = vmatpush2.bf16.msra.mxu0 %v906
      %1048 = vmatprep.subr.bf16.mxu0 0
      %1049 = vmatpush2.bf16.msra.mxu0 %v905
      %1050 = vmatprep.mubr.bf16.mxu0 %v610
      %1051 = vmatmul.mubr.bf16.gmra.mxu0 %v609
      %v1052 = vpop.f32.mrf.mxu0
      %v1053 = vadd.f32 %v351, %v1052
      %v1054 = vpop.f32.mrf.mxu0
      %v1055 = vpop.f32.mrf.mxu0
      %v1056 = vadd.f32 %v351, %v1055
      %v1057 = vpop.f32.mrf.mxu0
      %1058 = vmatprep.mubr.bf16.mxu0 %v615
      %1059 = vmatmul.mubr.bf16.gmra.mxu0 %v614
      %v1060 = vpop.f32.mrf.mxu0
      %v1061 = vadd.f32 %v351, %v1060
      %v1062 = vpop.f32.mrf.mxu0
      %v1063 = vpop.f32.mrf.mxu0
      %v1064 = vadd.f32 %v351, %v1063
      %v1065 = vpop.f32.mrf.mxu0
      %1066 = vmatprep.mubr.bf16.mxu0 %v620
      %1067 = vmatmul.mubr.bf16.gmra.mxu0 %v619
      %v1068 = vpop.f32.mrf.mxu0
      %v1069 = vadd.f32 %v351, %v1068
      %v1070 = vpop.f32.mrf.mxu0
      %v1071 = vpop.f32.mrf.mxu0
      %v1072 = vadd.f32 %v351, %v1071
      %v1073 = vpop.f32.mrf.mxu0
      %1074 = vmatprep.mubr.bf16.mxu0 %v625
      %1075 = vmatmul.mubr.bf16.gmra.mxu0 %v624
      %v1076 = vpop.f32.mrf.mxu0
      %v1077 = vadd.f32 %v351, %v1076
      %v1078 = vpop.f32.mrf.mxu0
      %v1079 = vpop.f32.mrf.mxu0
      %v1080 = vadd.f32 %v351, %v1079
      %v1081 = vpop.f32.mrf.mxu0
      %1082 = vmatprep.mubr.bf16.mxu0 %v630
      %1083 = vmatmul.mubr.bf16.gmra.mxu0 %v629
      %v1084 = vpop.f32.mrf.mxu0
      %v1085 = vadd.f32 %v351, %v1084
      %v1086 = vpop.f32.mrf.mxu0
      %v1087 = vpop.f32.mrf.mxu0
      %v1088 = vadd.f32 %v351, %v1087
      %v1089 = vpop.f32.mrf.mxu0
      %1090 = vmatprep.mubr.bf16.mxu0 %v635
      %1091 = vmatmul.mubr.bf16.gmra.mxu0 %v634
      %v1092 = vpop.f32.mrf.mxu0
      %v1093 = vadd.f32 %v351, %v1092
      %v1094 = vpop.f32.mrf.mxu0
      %v1095 = vpop.f32.mrf.mxu0
      %v1096 = vadd.f32 %v351, %v1095
      %v1097 = vpop.f32.mrf.mxu0
      %1098 = vmatprep.mubr.bf16.mxu0 %v640
      %1099 = vmatmul.mubr.bf16.gmra.mxu0 %v639
      %v1100 = vpop.f32.mrf.mxu0
      %v1101 = vadd.f32 %v351, %v1100
      %v1102 = vpop.f32.mrf.mxu0
      %v1103 = vpop.f32.mrf.mxu0
      %v1104 = vadd.f32 %v351, %v1103
      %v1105 = vpop.f32.mrf.mxu0
      %1106 = vmatprep.mubr.bf16.mxu0 %v645
      %1107 = vmatmul.mubr.bf16.gmra.mxu0 %v644
      %v1108 = vpop.f32.mrf.mxu0
      %v1109 = vadd.f32 %v351, %v1108
      %v1110 = vpop.f32.mrf.mxu0
      %v1111 = vpop.f32.mrf.mxu0
      %v1112 = vadd.f32 %v351, %v1111
      %v1113 = vpop.f32.mrf.mxu0
      %1114 = vmatprep.mubr.bf16.mxu0 %v650
      %1115 = vmatmul.mubr.bf16.gmra.mxu0 %v649
      %v1116 = vpop.f32.mrf.mxu0
      %v1117 = vadd.f32 %v351, %v1116
      %v1118 = vpop.f32.mrf.mxu0
      %v1119 = vpop.f32.mrf.mxu0
      %v1120 = vadd.f32 %v351, %v1119
      %v1121 = vpop.f32.mrf.mxu0
      %1122 = vmatprep.mubr.bf16.mxu0 %v655
      %1123 = vmatmul.mubr.bf16.gmra.mxu0 %v654
      %v1124 = vpop.f32.mrf.mxu0
      %v1125 = vadd.f32 %v351, %v1124
      %v1126 = vpop.f32.mrf.mxu0
      %v1127 = vpop.f32.mrf.mxu0
      %v1128 = vadd.f32 %v351, %v1127
      %v1129 = vpop.f32.mrf.mxu0
      %1130 = vmatprep.mubr.bf16.mxu0 %v660
      %1131 = vmatmul.mubr.bf16.gmra.mxu0 %v659
      %v1132 = vpop.f32.mrf.mxu0
      %v1133 = vadd.f32 %v351, %v1132
      %v1134 = vpop.f32.mrf.mxu0
      %v1135 = vpop.f32.mrf.mxu0
      %v1136 = vadd.f32 %v351, %v1135
      %v1137 = vpop.f32.mrf.mxu0
      %1138 = vmatprep.mubr.bf16.mxu0 %v665
      %1139 = vmatmul.mubr.bf16.gmra.mxu0 %v664
      %v1140 = vpop.f32.mrf.mxu0
      %v1141 = vadd.f32 %v351, %v1140
      %v1142 = vpop.f32.mrf.mxu0
      %v1143 = vpop.f32.mrf.mxu0
      %v1144 = vadd.f32 %v351, %v1143
      %v1145 = vpop.f32.mrf.mxu0
      %1146 = vmatprep.mubr.bf16.mxu0 %v670
      %1147 = vmatmul.mubr.bf16.gmra.mxu0 %v669
      %v1148 = vpop.f32.mrf.mxu0
      %v1149 = vadd.f32 %v351, %v1148
      %v1150 = vpop.f32.mrf.mxu0
      %v1151 = vpop.f32.mrf.mxu0
      %v1152 = vadd.f32 %v351, %v1151
      %v1153 = vpop.f32.mrf.mxu0
      %1154 = vmatprep.mubr.bf16.mxu0 %v675
      %1155 = vmatmul.mubr.bf16.gmra.mxu0 %v674
      %v1156 = vpop.f32.mrf.mxu0
      %v1157 = vadd.f32 %v351, %v1156
      %v1158 = vpop.f32.mrf.mxu0
      %v1159 = vpop.f32.mrf.mxu0
      %v1160 = vadd.f32 %v351, %v1159
      %v1161 = vpop.f32.mrf.mxu0
      %1162 = vmatprep.mubr.bf16.mxu0 %v680
      %1163 = vmatmul.mubr.bf16.gmra.mxu0 %v679
      %v1164 = vpop.f32.mrf.mxu0
      %v1165 = vadd.f32 %v351, %v1164
      %v1166 = vpop.f32.mrf.mxu0
      %v1167 = vpop.f32.mrf.mxu0
      %v1168 = vadd.f32 %v351, %v1167
      %v1169 = vpop.f32.mrf.mxu0
      %1170 = vmatprep.mubr.bf16.mxu0 %v685
      %1171 = vmatmul.mubr.bf16.gmra.mxu0 %v684
      %v1172 = vpop.f32.mrf.mxu0
      %v1173 = vadd.f32 %v351, %v1172
      %v1174 = vpop.f32.mrf.mxu0
      %v1175 = vpop.f32.mrf.mxu0
      %v1176 = vadd.f32 %v351, %v1175
      %v1177 = vpop.f32.mrf.mxu0
      %1178 = vdwg.mxu0
      %1179 = vmatprep.subr.bf16.mxu0 0
      %1180 = vmatpush1.bf16.msra.mxu0 %v920
      %1181 = vmatprep.subr.bf16.mxu0 0
      %1182 = vmatpush1.bf16.msra.mxu0 %v919
      %1183 = vmatprep.subr.bf16.mxu0 0
      %1184 = vmatpush1.bf16.msra.mxu0 %v918
      %1185 = vmatprep.subr.bf16.mxu0 0
      %1186 = vmatpush1.bf16.msra.mxu0 %v917
      %1187 = vmatprep.subr.bf16.mxu0 0
      %1188 = vmatpush1.bf16.msra.mxu0 %v916
      %1189 = vmatprep.subr.bf16.mxu0 0
      %1190 = vmatpush1.bf16.msra.mxu0 %v915
      %1191 = vmatprep.subr.bf16.mxu0 0
      %1192 = vmatpush1.bf16.msra.mxu0 %v914
      %1193 = vmatprep.subr.bf16.mxu0 0
      %1194 = vmatpush1.bf16.msra.mxu0 %v913
      %1195 = vmatprep.subr.bf16.mxu0 0
      %1196 = vmatpush2.bf16.msra.mxu0 %v928
      %1197 = vmatprep.subr.bf16.mxu0 0
      %1198 = vmatpush2.bf16.msra.mxu0 %v927
      %1199 = vmatprep.subr.bf16.mxu0 0
      %1200 = vmatpush2.bf16.msra.mxu0 %v926
      %1201 = vmatprep.subr.bf16.mxu0 0
      %1202 = vmatpush2.bf16.msra.mxu0 %v925
      %1203 = vmatprep.subr.bf16.mxu0 0
      %1204 = vmatpush2.bf16.msra.mxu0 %v924
      %1205 = vmatprep.subr.bf16.mxu0 0
      %1206 = vmatpush2.bf16.msra.mxu0 %v923
      %1207 = vmatprep.subr.bf16.mxu0 0
      %1208 = vmatpush2.bf16.msra.mxu0 %v922
      %1209 = vmatprep.subr.bf16.mxu0 0
      %1210 = vmatpush2.bf16.msra.mxu0 %v921
      %1211 = vmatprep.mubr.bf16.mxu0 %v612
      %1212 = vmatmul.mubr.bf16.gmra.mxu0 %v611
      %v1213 = vpop.f32.mrf.mxu0
      %v1214 = vadd.f32 %v1053, %v1213
      %v1215 = vpop.f32.mrf.mxu0
      %v1216 = vpop.f32.mrf.mxu0
      %v1217 = vadd.f32 %v1056, %v1216
      %v1218 = vpop.f32.mrf.mxu0
      %1219 = vmatprep.mubr.bf16.mxu0 %v617
      %1220 = vmatmul.mubr.bf16.gmra.mxu0 %v616
      %v1221 = vpop.f32.mrf.mxu0
      %v1222 = vadd.f32 %v1061, %v1221
      %v1223 = vpop.f32.mrf.mxu0
      %v1224 = vpop.f32.mrf.mxu0
      %v1225 = vadd.f32 %v1064, %v1224
      %v1226 = vpop.f32.mrf.mxu0
      %1227 = vmatprep.mubr.bf16.mxu0 %v622
      %1228 = vmatmul.mubr.bf16.gmra.mxu0 %v621
      %v1229 = vpop.f32.mrf.mxu0
      %v1230 = vadd.f32 %v1069, %v1229
      %v1231 = vpop.f32.mrf.mxu0
      %v1232 = vpop.f32.mrf.mxu0
      %v1233 = vadd.f32 %v1072, %v1232
      %v1234 = vpop.f32.mrf.mxu0
      %1235 = vmatprep.mubr.bf16.mxu0 %v627
      %1236 = vmatmul.mubr.bf16.gmra.mxu0 %v626
      %v1237 = vpop.f32.mrf.mxu0
      %v1238 = vadd.f32 %v1077, %v1237
      %v1239 = vpop.f32.mrf.mxu0
      %v1240 = vpop.f32.mrf.mxu0
      %v1241 = vadd.f32 %v1080, %v1240
      %v1242 = vpop.f32.mrf.mxu0
      %1243 = vmatprep.mubr.bf16.mxu0 %v632
      %1244 = vmatmul.mubr.bf16.gmra.mxu0 %v631
      %v1245 = vpop.f32.mrf.mxu0
      %v1246 = vadd.f32 %v1085, %v1245
      %v1247 = vpop.f32.mrf.mxu0
      %v1248 = vpop.f32.mrf.mxu0
      %v1249 = vadd.f32 %v1088, %v1248
      %v1250 = vpop.f32.mrf.mxu0
      %1251 = vmatprep.mubr.bf16.mxu0 %v637
      %1252 = vmatmul.mubr.bf16.gmra.mxu0 %v636
      %v1253 = vpop.f32.mrf.mxu0
      %v1254 = vadd.f32 %v1093, %v1253
      %v1255 = vpop.f32.mrf.mxu0
      %v1256 = vpop.f32.mrf.mxu0
      %v1257 = vadd.f32 %v1096, %v1256
      %v1258 = vpop.f32.mrf.mxu0
      %1259 = vmatprep.mubr.bf16.mxu0 %v642
      %1260 = vmatmul.mubr.bf16.gmra.mxu0 %v641
      %v1261 = vpop.f32.mrf.mxu0
      %v1262 = vadd.f32 %v1101, %v1261
      %v1263 = vpop.f32.mrf.mxu0
      %v1264 = vpop.f32.mrf.mxu0
      %v1265 = vadd.f32 %v1104, %v1264
      %v1266 = vpop.f32.mrf.mxu0
      %1267 = vmatprep.mubr.bf16.mxu0 %v647
      %1268 = vmatmul.mubr.bf16.gmra.mxu0 %v646
      %v1269 = vpop.f32.mrf.mxu0
      %v1270 = vadd.f32 %v1109, %v1269
      %v1271 = vpop.f32.mrf.mxu0
      %v1272 = vpop.f32.mrf.mxu0
      %v1273 = vadd.f32 %v1112, %v1272
      %v1274 = vpop.f32.mrf.mxu0
      %1275 = vmatprep.mubr.bf16.mxu0 %v652
      %1276 = vmatmul.mubr.bf16.gmra.mxu0 %v651
      %v1277 = vpop.f32.mrf.mxu0
      %v1278 = vadd.f32 %v1117, %v1277
      %v1279 = vpop.f32.mrf.mxu0
      %v1280 = vpop.f32.mrf.mxu0
      %v1281 = vadd.f32 %v1120, %v1280
      %v1282 = vpop.f32.mrf.mxu0
      %1283 = vmatprep.mubr.bf16.mxu0 %v657
      %1284 = vmatmul.mubr.bf16.gmra.mxu0 %v656
      %v1285 = vpop.f32.mrf.mxu0
      %v1286 = vadd.f32 %v1125, %v1285
      %v1287 = vpop.f32.mrf.mxu0
      %v1288 = vpop.f32.mrf.mxu0
      %v1289 = vadd.f32 %v1128, %v1288
      %v1290 = vpop.f32.mrf.mxu0
      %1291 = vmatprep.mubr.bf16.mxu0 %v662
      %1292 = vmatmul.mubr.bf16.gmra.mxu0 %v661
      %v1293 = vpop.f32.mrf.mxu0
      %v1294 = vadd.f32 %v1133, %v1293
      %v1295 = vpop.f32.mrf.mxu0
      %v1296 = vpop.f32.mrf.mxu0
      %v1297 = vadd.f32 %v1136, %v1296
      %v1298 = vpop.f32.mrf.mxu0
      %1299 = vmatprep.mubr.bf16.mxu0 %v667
      %1300 = vmatmul.mubr.bf16.gmra.mxu0 %v666
      %v1301 = vpop.f32.mrf.mxu0
      %v1302 = vadd.f32 %v1141, %v1301
      %v1303 = vpop.f32.mrf.mxu0
      %v1304 = vpop.f32.mrf.mxu0
      %v1305 = vadd.f32 %v1144, %v1304
      %v1306 = vpop.f32.mrf.mxu0
      %1307 = vmatprep.mubr.bf16.mxu0 %v672
      %1308 = vmatmul.mubr.bf16.gmra.mxu0 %v671
      %v1309 = vpop.f32.mrf.mxu0
      %v1310 = vadd.f32 %v1149, %v1309
      %v1311 = vpop.f32.mrf.mxu0
      %v1312 = vpop.f32.mrf.mxu0
      %v1313 = vadd.f32 %v1152, %v1312
      %v1314 = vpop.f32.mrf.mxu0
      %1315 = vmatprep.mubr.bf16.mxu0 %v677
      %1316 = vmatmul.mubr.bf16.gmra.mxu0 %v676
      %v1317 = vpop.f32.mrf.mxu0
      %v1318 = vadd.f32 %v1157, %v1317
      %v1319 = vpop.f32.mrf.mxu0
      %v1320 = vpop.f32.mrf.mxu0
      %v1321 = vadd.f32 %v1160, %v1320
      %v1322 = vpop.f32.mrf.mxu0
      %1323 = vmatprep.mubr.bf16.mxu0 %v682
      %1324 = vmatmul.mubr.bf16.gmra.mxu0 %v681
      %v1325 = vpop.f32.mrf.mxu0
      %v1326 = vadd.f32 %v1165, %v1325
      %v1327 = vpop.f32.mrf.mxu0
      %v1328 = vpop.f32.mrf.mxu0
      %v1329 = vadd.f32 %v1168, %v1328
      %v1330 = vpop.f32.mrf.mxu0
      %1331 = vmatprep.mubr.bf16.mxu0 %v687
      %1332 = vmatmul.mubr.bf16.gmra.mxu0 %v686
      %v1333 = vpop.f32.mrf.mxu0
      %v1334 = vadd.f32 %v1173, %v1333
      %v1335 = vpop.f32.mrf.mxu0
      %v1336 = vpop.f32.mrf.mxu0
      %v1337 = vadd.f32 %v1176, %v1336
      %v1338 = vpop.f32.mrf.mxu0
      %1339 = vdwg.mxu0
      %1340 = vmatprep.subr.bf16.mxu0 0
      %1341 = vmatpush1.bf16.msra.mxu0 0
      %1342 = vmatprep.subr.bf16.mxu0 0
      %1343 = vmatpush1.bf16.msra.mxu0 0
      %1344 = vmatprep.subr.bf16.mxu0 0
      %1345 = vmatpush1.bf16.msra.mxu0 0
      %1346 = vmatprep.subr.bf16.mxu0 0
      %1347 = vmatpush1.bf16.msra.mxu0 0
      %1348 = vmatprep.subr.bf16.mxu0 0
      %1349 = vmatpush1.bf16.msra.mxu0 %v932
      %1350 = vmatprep.subr.bf16.mxu0 0
      %1351 = vmatpush1.bf16.msra.mxu0 %v931
      %1352 = vmatprep.subr.bf16.mxu0 0
      %1353 = vmatpush1.bf16.msra.mxu0 %v930
      %1354 = vmatprep.subr.bf16.mxu0 0
      %1355 = vmatpush1.bf16.msra.mxu0 %v929
      %1356 = vmatprep.subr.bf16.mxu0 0
      %1357 = vmatpush2.bf16.msra.mxu0 0
      %1358 = vmatprep.subr.bf16.mxu0 0
      %1359 = vmatpush2.bf16.msra.mxu0 0
      %1360 = vmatprep.subr.bf16.mxu0 0
      %1361 = vmatpush2.bf16.msra.mxu0 0
      %1362 = vmatprep.subr.bf16.mxu0 0
      %1363 = vmatpush2.bf16.msra.mxu0 0
      %1364 = vmatprep.subr.bf16.mxu0 0
      %1365 = vmatpush2.bf16.msra.mxu0 0
      %1366 = vmatprep.subr.bf16.mxu0 0
      %1367 = vmatpush2.bf16.msra.mxu0 0
      %1368 = vmatprep.subr.bf16.mxu0 0
      %1369 = vmatpush2.bf16.msra.mxu0 0
      %1370 = vmatprep.subr.bf16.mxu0 0
      %1371 = vmatpush2.bf16.msra.mxu0 0
      %1372 = vmatprep.mubr.bf16.mxu0 0
      %1373 = vmatmul.mubr.bf16.gmra.mxu0 %v971
      %v1374 = vpop.f32.mrf.mxu0
      %v1375 = vadd.f32 %v1214, %v1374
      %v1376 = vpop.f32.mrf.mxu0
      %v1377 = vpop.f32.mrf.mxu0
      %v1378 = vadd.f32 %v1217, %v1377
      %v1379 = vpop.f32.mrf.mxu0
      %1380 = vmatprep.mubr.bf16.mxu0 0
      %1381 = vmatmul.mubr.bf16.gmra.mxu0 %v974
      %v1382 = vpop.f32.mrf.mxu0
      %v1383 = vadd.f32 %v1222, %v1382
      %v1384 = vpop.f32.mrf.mxu0
      %v1385 = vpop.f32.mrf.mxu0
      %v1386 = vadd.f32 %v1225, %v1385
      %v1387 = vpop.f32.mrf.mxu0
      %1388 = vmatprep.mubr.bf16.mxu0 0
      %1389 = vmatmul.mubr.bf16.gmra.mxu0 %v977
      %v1390 = vpop.f32.mrf.mxu0
      %v1391 = vadd.f32 %v1230, %v1390
      %v1392 = vpop.f32.mrf.mxu0
      %v1393 = vpop.f32.mrf.mxu0
      %v1394 = vadd.f32 %v1233, %v1393
      %v1395 = vpop.f32.mrf.mxu0
      %1396 = vmatprep.mubr.bf16.mxu0 0
      %1397 = vmatmul.mubr.bf16.gmra.mxu0 %v980
      %v1398 = vpop.f32.mrf.mxu0
      %v1399 = vadd.f32 %v1238, %v1398
      %v1400 = vpop.f32.mrf.mxu0
      %v1401 = vpop.f32.mrf.mxu0
      %v1402 = vadd.f32 %v1241, %v1401
      %v1403 = vpop.f32.mrf.mxu0
      %1404 = vmatprep.mubr.bf16.mxu0 0
      %1405 = vmatmul.mubr.bf16.gmra.mxu0 %v983
      %v1406 = vpop.f32.mrf.mxu0
      %v1407 = vadd.f32 %v1246, %v1406
      %v1408 = vpop.f32.mrf.mxu0
      %v1409 = vpop.f32.mrf.mxu0
      %v1410 = vadd.f32 %v1249, %v1409
      %v1411 = vpop.f32.mrf.mxu0
      %1412 = vmatprep.mubr.bf16.mxu0 0
      %1413 = vmatmul.mubr.bf16.gmra.mxu0 %v986
      %v1414 = vpop.f32.mrf.mxu0
      %v1415 = vadd.f32 %v1254, %v1414
      %v1416 = vpop.f32.mrf.mxu0
      %v1417 = vpop.f32.mrf.mxu0
      %v1418 = vadd.f32 %v1257, %v1417
      %v1419 = vpop.f32.mrf.mxu0
      %1420 = vmatprep.mubr.bf16.mxu0 0
      %1421 = vmatmul.mubr.bf16.gmra.mxu0 %v989
      %v1422 = vpop.f32.mrf.mxu0
      %v1423 = vadd.f32 %v1262, %v1422
      %v1424 = vpop.f32.mrf.mxu0
      %v1425 = vpop.f32.mrf.mxu0
      %v1426 = vadd.f32 %v1265, %v1425
      %v1427 = vpop.f32.mrf.mxu0
      %1428 = vmatprep.mubr.bf16.mxu0 0
      %1429 = vmatmul.mubr.bf16.gmra.mxu0 %v992
      %v1430 = vpop.f32.mrf.mxu0
      %v1431 = vadd.f32 %v1270, %v1430
      %v1432 = vpop.f32.mrf.mxu0
      %v1433 = vpop.f32.mrf.mxu0
      %v1434 = vadd.f32 %v1273, %v1433
      %v1435 = vpop.f32.mrf.mxu0
      %1436 = vmatprep.mubr.bf16.mxu0 0
      %1437 = vmatmul.mubr.bf16.gmra.mxu0 %v995
      %v1438 = vpop.f32.mrf.mxu0
      %v1439 = vadd.f32 %v1278, %v1438
      %v1440 = vpop.f32.mrf.mxu0
      %v1441 = vpop.f32.mrf.mxu0
      %v1442 = vadd.f32 %v1281, %v1441
      %v1443 = vpop.f32.mrf.mxu0
      %1444 = vmatprep.mubr.bf16.mxu0 0
      %1445 = vmatmul.mubr.bf16.gmra.mxu0 %v998
      %v1446 = vpop.f32.mrf.mxu0
      %v1447 = vadd.f32 %v1286, %v1446
      %v1448 = vpop.f32.mrf.mxu0
      %v1449 = vpop.f32.mrf.mxu0
      %v1450 = vadd.f32 %v1289, %v1449
      %v1451 = vpop.f32.mrf.mxu0
      %1452 = vmatprep.mubr.bf16.mxu0 0
      %1453 = vmatmul.mubr.bf16.gmra.mxu0 %v1001
      %v1454 = vpop.f32.mrf.mxu0
      %v1455 = vadd.f32 %v1294, %v1454
      %v1456 = vpop.f32.mrf.mxu0
      %v1457 = vpop.f32.mrf.mxu0
      %v1458 = vadd.f32 %v1297, %v1457
      %v1459 = vpop.f32.mrf.mxu0
      %1460 = vmatprep.mubr.bf16.mxu0 0
      %1461 = vmatmul.mubr.bf16.gmra.mxu0 %v1004
      %v1462 = vpop.f32.mrf.mxu0
      %v1463 = vadd.f32 %v1302, %v1462
      %v1464 = vpop.f32.mrf.mxu0
      %v1465 = vpop.f32.mrf.mxu0
      %v1466 = vadd.f32 %v1305, %v1465
      %v1467 = vpop.f32.mrf.mxu0
      %1468 = vmatprep.mubr.bf16.mxu0 0
      %1469 = vmatmul.mubr.bf16.gmra.mxu0 %v1007
      %v1470 = vpop.f32.mrf.mxu0
      %v1471 = vadd.f32 %v1310, %v1470
      %v1472 = vpop.f32.mrf.mxu0
      %v1473 = vpop.f32.mrf.mxu0
      %v1474 = vadd.f32 %v1313, %v1473
      %v1475 = vpop.f32.mrf.mxu0
      %1476 = vmatprep.mubr.bf16.mxu0 0
      %1477 = vmatmul.mubr.bf16.gmra.mxu0 %v1010
      %v1478 = vpop.f32.mrf.mxu0
      %v1479 = vadd.f32 %v1318, %v1478
      %v1480 = vpop.f32.mrf.mxu0
      %v1481 = vpop.f32.mrf.mxu0
      %v1482 = vadd.f32 %v1321, %v1481
      %v1483 = vpop.f32.mrf.mxu0
      %1484 = vmatprep.mubr.bf16.mxu0 0
      %1485 = vmatmul.mubr.bf16.gmra.mxu0 %v1013
      %v1486 = vpop.f32.mrf.mxu0
      %v1487 = vadd.f32 %v1326, %v1486
      %v1488 = vpop.f32.mrf.mxu0
      %v1489 = vpop.f32.mrf.mxu0
      %v1490 = vadd.f32 %v1329, %v1489
      %v1491 = vpop.f32.mrf.mxu0
      %1492 = vmatprep.mubr.bf16.mxu0 0
      %1493 = vmatmul.mubr.bf16.gmra.mxu0 %v1016
      %v1494 = vpop.f32.mrf.mxu0
      %v1495 = vadd.f32 %v1334, %v1494
      %v1496 = vpop.f32.mrf.mxu0
      %v1497 = vpop.f32.mrf.mxu0
      %v1498 = vadd.f32 %v1337, %v1497
      %v1499 = vpop.f32.mrf.mxu0
      %1500 = vdwg.mxu0
      %vm1501 = vcmask 261120
      %1502 = vst.msk [vmem:[%s175] sm:$0xff] %vm1501, %v1375
      %1503 = vst.msk [vmem:[%s175 + $0x8] sm:$0xff] %vm1501, %v1378
      %1504 = vst.msk [vmem:[%s175 + $0x10] sm:$0xff] %vm1501, %v1383
      %1505 = vst.msk [vmem:[%s175 + $0x18] sm:$0xff] %vm1501, %v1386
      %1506 = vst.msk [vmem:[%s175 + $0x20] sm:$0xff] %vm1501, %v1391
      %1507 = vst.msk [vmem:[%s175 + $0x28] sm:$0xff] %vm1501, %v1394
      %1508 = vst.msk [vmem:[%s175 + $0x30] sm:$0xff] %vm1501, %v1399
      %1509 = vst.msk [vmem:[%s175 + $0x38] sm:$0xff] %vm1501, %v1402
      %1510 = vst.msk [vmem:[%s175 + $0x40] sm:$0xff] %vm1501, %v1407
      %1511 = vst.msk [vmem:[%s175 + $0x48] sm:$0xff] %vm1501, %v1410
      %1512 = vst.msk [vmem:[%s175 + $0x50] sm:$0xff] %vm1501, %v1415
      %1513 = vst.msk [vmem:[%s175 + $0x58] sm:$0xff] %vm1501, %v1418
      %1514 = vst.msk [vmem:[%s175 + $0x60] sm:$0xff] %vm1501, %v1423
      %1515 = vst.msk [vmem:[%s175 + $0x68] sm:$0xff] %vm1501, %v1426
      %1516 = vst.msk [vmem:[%s175 + $0x70] sm:$0xff] %vm1501, %v1431
      %1517 = vst.msk [vmem:[%s175 + $0x78] sm:$0xff] %vm1501, %v1434
      %1518 = vst.msk [vmem:[%s175 + $0x80] sm:$0xff] %vm1501, %v1439
      %1519 = vst.msk [vmem:[%s175 + $0x88] sm:$0xff] %vm1501, %v1442
      %1520 = vst.msk [vmem:[%s175 + $0x90] sm:$0xff] %vm1501, %v1447
      %1521 = vst.msk [vmem:[%s175 + $0x98] sm:$0xff] %vm1501, %v1450
      %1522 = vst.msk [vmem:[%s175 + $0xa0] sm:$0xff] %vm1501, %v1455
      %1523 = vst.msk [vmem:[%s175 + $0xa8] sm:$0xff] %vm1501, %v1458
      %1524 = vst.msk [vmem:[%s175 + $0xb0] sm:$0xff] %vm1501, %v1463
      %1525 = vst.msk [vmem:[%s175 + $0xb8] sm:$0xff] %vm1501, %v1466
      %1526 = vst.msk [vmem:[%s175 + $0xc0] sm:$0xff] %vm1501, %v1471
      %1527 = vst.msk [vmem:[%s175 + $0xc8] sm:$0xff] %vm1501, %v1474
      %1528 = vst.msk [vmem:[%s175 + $0xd0] sm:$0xff] %vm1501, %v1479
      %1529 = vst.msk [vmem:[%s175 + $0xd8] sm:$0xff] %vm1501, %v1482
      %1530 = vst.msk [vmem:[%s175 + $0xe0] sm:$0xff] %vm1501, %v1487
      %1531 = vst.msk [vmem:[%s175 + $0xe8] sm:$0xff] %vm1501, %v1490
      %1532 = vst.msk [vmem:[%s175 + $0xf0] sm:$0xff] %vm1501, %v1495
      %1533 = vst.msk [vmem:[%s175 + $0xf8] sm:$0xff] %vm1501, %v1498
      %s1534 = smul.u32 32, %s14
      %p1535 = scmp.lt.s32.totalorder %s1534, 63
      %s1536 = scalar_select %p1535, %s1534, 63
      %s1537 = smul.addr %s1536, 8
      %s1538 = scalar_lea.vmem %s3, %s1537
      // Predicated region
      $region33: #{forward.59} parent=31 // pred_check
        %p1539 = pneg %p100
      $region34: #{forward.59} parent=31 // pred_check_branch
        %1541 = sbr.rel (%p1539) target = $region36
      $region35: #{forward.59} parent=31 // pred_region
        %s1542 = smul.u32 32, %s14
      $region36: #{forward.59} parent=31 // pred_fallthru
        _
    $region32: #{forward.59} parent=5 // pred_fallthru
      _
    %p1543 = scmp.le.s32.totalorder 2, %s9
    // Predicated region
    $region37: #{forward.59} parent=5 // pred_check
      %p1544 = pneg %p1543
    $region38: #{forward.59} parent=5 // pred_check_branch
      %1546 = sbr.rel (%p1544) target = $region40
    $region39: #{forward.59} parent=5 // pred_region
      %s1547 = ssub.s32 %s9, 2
      // Predicated region
      $region41: #{forward.59} parent=39 // pred_check
        %p1548 = pneg %p106
      $region42: #{forward.59} parent=39 // pred_check_branch
        %1550 = sbr.rel (%p1548) target = $region44
      $region43: #{forward.59} parent=39 // pred_region
        %s1551 = smul.u32 32, %s15
        %p1552 = scmp.lt.s32.totalorder %s1551, 63
        %s1553 = scalar_select %p1552, %s1551, 63
        %s1554 = smul.addr %s1553, 8
        %s1555 = scalar_lea.vmem %s3, %s1554
      $region44: #{forward.59} parent=39 // pred_fallthru
        _
    $region40: #{forward.59} parent=5 // pred_fallthru
      _
  $region6: #{forward.59} parent=0 // loop_footer
    %s13 = sadd.s32 1, %s9
  $region7: #{forward.59} parent=0 // loop_footer_branch
    %8 = sbr.rel target = $region3
  $region8: #{forward.59} parent=0 // loop_exit
    _

// kernel: forward.61
$region0: #{forward.61}
  #allocation0 [shape = 'u32[]', space=smem, size = 0x4, offset = 0x4, fixed_abs, tag = 'smem constant byte address 0x4 - core index']
  #allocation1 [shape = 'u32[144,128]{1,0:T(1,128)}', space=vmem, size = 0x12000, scoped, tag = 'internal scratch']
  %s0 = inlined_call_operand.vmem [shape: bf16[512,2592], index: 0, kind: input, shape index: {}]
  %s1 = inlined_call_operand.vmem [shape: bf16[2592,3], index: 1, kind: input, shape index: {}]
  %s2 = inlined_call_operand.vmem [shape: f32[1,3], index: 2, kind: input, shape index: {}]
  %s3 = inlined_call_operand.vmem [shape: f32[512,3], index: 3, kind: output, shape index: {}]
  %s4 = sld [smem:[#allocation0]]
  $region45: #{forward.61} parent=0
    _
  %s6 = ssub.s32 1, %s4
  %s7 = scalar_select 0, %s6, %s4
  loop: start=0, step=1, limit=4
  $region2: #{forward.61} parent=0 // loop_pre_header
    _
  $region3: #{forward.61} parent=0 // loop_header
    %s9 = sphi 0, %s13
    %p10 = scmp.ge.s32.totalorder %s9, 4
    %s19 = sphi 0, %s21
    %s22 = sphi 0, %s19
    %s23 = sphi 0, %s22
    %s39 = sphi 0, %s23
    %s43 = sphi 0, %s43
    %s45 = sphi 0, %s43
    %s46 = sphi 0, %s45
    %s60 = sphi 0, %s46
    %s64 = sphi 0, %s64
    %s66 = sphi 0, %s64
    %s67 = sphi 0, %s66
    %s81 = sphi 0, %s67
    %s87 = sphi 0, %s89
    %s90 = sphi 0, %s87
    %s91 = sphi 0, %s90
    %s107 = sphi 0, %s91
  $region4: #{forward.61} parent=0 // loop_header_branch
    %12 = sbr.rel (%p10) target = $region8
  $region5: #{forward.61} parent=0 // loop_body
    %s14 = ssub.s32 %s9, 1
    %s15 = ssub.s32 %s9, 2
    %s16 = sadd.s32 %s9, 1
    %s17 = ssub.s32 %s9, %s16
    %p18 = scmp.eq.s32.totalorder %s17, 0
    %s20 = sadd.s32 %s19, 1
    %s21 = scalar_select %p18, %s19, %s20
    %p24 = pneg %p18
    %p25 = scmp.eq.s32.totalorder %s9, 1
    %p26 = por %p24, %p25
    %p27 = scmp.ne.s32.totalorder %s19, %s22
    %p28 = scmp.eq.s32.totalorder %s9, 0
    %p29 = por %p27, %p28
    %p30 = scmp.ne.s32.totalorder %s19, %s22
    %p31 = scmp.eq.s32.totalorder %s14, 1
    %p32 = por %p30, %p31
    %p33 = scmp.ne.s32.totalorder %s22, %s23
    %p34 = scmp.eq.s32.totalorder %s14, 0
    %p35 = por %p33, %p34
    %p36 = scmp.ne.s32.totalorder %s22, %s23
    %p37 = scmp.eq.s32.totalorder %s15, 1
    %p38 = por %p36, %p37
    %p40 = scmp.ne.s32.totalorder %s23, %s39
    %p41 = scmp.eq.s32.totalorder %s15, 0
    %p42 = por %p40, %p41
    %s44 = sadd.s32 %s43, 1
    %p47 = scmp.eq.s32.totalorder %s9, 1
    %p48 = scmp.ne.s32.totalorder %s43, %s45
    %p49 = scmp.eq.s32.totalorder %s9, 0
    %p50 = por %p48, %p49
    %p51 = scmp.ne.s32.totalorder %s43, %s45
    %p52 = scmp.eq.s32.totalorder %s14, 1
    %p53 = por %p51, %p52
    %p54 = scmp.ne.s32.totalorder %s45, %s46
    %p55 = scmp.eq.s32.totalorder %s14, 0
    %p56 = por %p54, %p55
    %p57 = scmp.ne.s32.totalorder %s45, %s46
    %p58 = scmp.eq.s32.totalorder %s15, 1
    %p59 = por %p57, %p58
    %p61 = scmp.ne.s32.totalorder %s46, %s60
    %p62 = scmp.eq.s32.totalorder %s15, 0
    %p63 = por %p61, %p62
    %s65 = sadd.s32 %s64, 1
    %p68 = scmp.eq.s32.totalorder %s9, 1
    %p69 = scmp.ne.s32.totalorder %s64, %s66
    %p70 = scmp.eq.s32.totalorder %s9, 0
    %p71 = por %p69, %p70
    %p72 = scmp.ne.s32.totalorder %s64, %s66
    %p73 = scmp.eq.s32.totalorder %s14, 1
    %p74 = por %p72, %p73
    %p75 = scmp.ne.s32.totalorder %s66, %s67
    %p76 = scmp.eq.s32.totalorder %s14, 0
    %p77 = por %p75, %p76
    %p78 = scmp.ne.s32.totalorder %s66, %s67
    %p79 = scmp.eq.s32.totalorder %s15, 1
    %p80 = por %p78, %p79
    %p82 = scmp.ne.s32.totalorder %s67, %s81
    %p83 = scmp.eq.s32.totalorder %s15, 0
    %p84 = por %p82, %p83
    %s85 = ssub.s32 %s9, %s16
    %p86 = scmp.eq.s32.totalorder %s85, 0
    %s88 = sadd.s32 %s87, 1
    %s89 = scalar_select %p86, %s87, %s88
    %p92 = pneg %p86
    %p93 = scmp.eq.s32.totalorder %s9, 1
    %p94 = por %p92, %p93
    %p95 = scmp.ne.s32.totalorder %s87, %s90
    %p96 = scmp.eq.s32.totalorder %s9, 0
    %p97 = por %p95, %p96
    %p98 = scmp.ne.s32.totalorder %s87, %s90
    %p99 = scmp.eq.s32.totalorder %s14, 1
    %p100 = por %p98, %p99
    %p101 = scmp.ne.s32.totalorder %s90, %s91
    %p102 = scmp.eq.s32.totalorder %s14, 0
    %p103 = por %p101, %p102
    %p104 = scmp.ne.s32.totalorder %s90, %s91
    %p105 = scmp.eq.s32.totalorder %s15, 1
    %p106 = por %p104, %p105
    %p108 = scmp.ne.s32.totalorder %s91, %s107
    %p109 = scmp.eq.s32.totalorder %s15, 0
    %p110 = por %p108, %p109
    %p111 = scmp.le.s32.totalorder 1, %s9
    %p112 = scmp.lt.s32.totalorder %s9, 3
    %p113 = pnand %p111, %p112
    %p114 = pneg %p113
    // Predicated region
    $region9: #{forward.61} parent=5 // pred_check
      _
    $region10: #{forward.61} parent=5 // pred_check_branch
      %116 = sbr.rel (%p113) target = $region12
    $region11: #{forward.61} parent=5 // pred_region
      %s117 = ssub.s32 %s9, 1
      // Predicated region
      $region13: #{forward.61} parent=11 // pred_check
        %p118 = pneg %p56
      $region14: #{forward.61} parent=11 // pred_check_branch
        %120 = sbr.rel (%p118) target = $region16
      $region15: #{forward.61} parent=11 // pred_region
        _
      $region16: #{forward.61} parent=11 // pred_fallthru
        _
      // Predicated region
      $region17: #{forward.61} parent=11 // pred_check
        %p121 = pneg %p77
      $region18: #{forward.61} parent=11 // pred_check_branch
        %123 = sbr.rel (%p121) target = $region20
      $region19: #{forward.61} parent=11 // pred_region
        _
      $region20: #{forward.61} parent=11 // pred_fallthru
        _
    $region12: #{forward.61} parent=5 // pred_fallthru
      _
    %p124 = scmp.lt.s32.totalorder %s9, 2
    // Predicated region
    $region21: #{forward.61} parent=5 // pred_check
      %p125 = pneg %p124
    $region22: #{forward.61} parent=5 // pred_check_branch
      %127 = sbr.rel (%p125) target = $region24
    $region23: #{forward.61} parent=5 // pred_region
      // Predicated region
      $region25: #{forward.61} parent=23 // pred_check
        %p128 = pneg %p29
      $region26: #{forward.61} parent=23 // pred_check_branch
        %130 = sbr.rel (%p128) target = $region28
      $region27: #{forward.61} parent=23 // pred_region
        %s131 = smul.u32 32, %s9
        %p132 = scmp.lt.s32.totalorder %s131, 63
        %s133 = scalar_select %p132, %s131, 63
        %s134 = smul.addr %s133, 21
        %s135 = smul.addr %s134, 4
        %s136 = scalar_lea.vmem %s0, %s135
        %s137 = smul.u32 32, %s9
      $region28: #{forward.61} parent=23 // pred_fallthru
        _
    $region24: #{forward.61} parent=5 // pred_fallthru
      _
    %p138 = scmp.le.s32.totalorder 1, %s9
    %p139 = scmp.lt.s32.totalorder %s9, 3
    %p140 = pnand %p138, %p139
    %p141 = pneg %p140
    // Predicated region
    $region29: #{forward.61} parent=5 // pred_check
      _
    $region30: #{forward.61} parent=5 // pred_check_branch
      %143 = sbr.rel (%p140) target = $region32
    $region31: #{forward.61} parent=5 // pred_region
      %s144 = ssub.s32 %s9, 1
      %s145 = smul.u32 32, %s14
      %p146 = scmp.lt.s32.totalorder %s145, 63
      %s147 = scalar_select %p146, %s145, 63
      %s148 = smul.addr %s147, 21
      %s149 = smul.addr %s148, 4
      %s150 = scalar_lea.vmem %s0, %s149
      %p151 = pneg %p35
      %p152 = pneg %p32
      %p153 = pneg %p56
      %p154 = pneg %p53
      %p155 = pneg %p77
      %p156 = pneg %p74
      %p157 = pneg %p103
      %p158 = pneg %p100
      %s159 = smul.u32 32, %s14
      %p160 = scmp.lt.s32.totalorder %s159, 63
      %s161 = scalar_select %p160, %s159, 63
      %s162 = smul.addr %s161, 8
      %s163 = scalar_lea.vmem %s3, %s162
      %s164 = smul.u32 32, %s14
      %p165 = scmp.lt.s32.totalorder %s164, 63
      %s166 = scalar_select %p165, %s164, 63
      %s167 = smul.addr %s166, 21
      %s168 = smul.addr %s167, 4
      %s169 = scalar_lea.vmem %s0, %s168
      %s170 = smul.u32 32, %s14
      %s171 = smul.u32 32, %s14
      %p172 = scmp.lt.s32.totalorder %s171, 63
      %s173 = scalar_select %p172, %s171, 63
      %s174 = smul.addr %s173, 8
      %s175 = scalar_lea.vmem %s3, %s174
      %s176 = smul.u32 32, %s14
      %v178 = vld [vmem:[%s169] sm:$0xff]
      %v179 = vld [vmem:[%s169 + $0x8] sm:$0xff]
      %v180 = vld [vmem:[%s169 + $0x10] sm:$0xff]
      %v181 = vld [vmem:[%s169 + $0x18] sm:$0xff]
      %v182 = vld [vmem:[%s169 + $0x20] sm:$0xff]
      %v183 = vld [vmem:[%s169 + $0x28] sm:$0xff]
      %v184 = vld [vmem:[%s169 + $0x30] sm:$0xff]
      %v185 = vld [vmem:[%s169 + $0x38] sm:$0xff]
      %v186 = vld [vmem:[%s169 + $0x40] sm:$0xff]
      %v187 = vld [vmem:[%s169 + $0x48] sm:$0xff]
      %v188 = vld [vmem:[%s169 + $0x50] sm:$0xf]
      %v189 = vld [vmem:[%s169 + $0x54] sm:$0xff]
      %v190 = vld [vmem:[%s169 + $0x5c] sm:$0xff]
      %v191 = vld [vmem:[%s169 + $0x64] sm:$0xff]
      %v192 = vld [vmem:[%s169 + $0x6c] sm:$0xff]
      %v193 = vld [vmem:[%s169 + $0x74] sm:$0xff]
      %v194 = vld [vmem:[%s169 + $0x7c] sm:$0xff]
      %v195 = vld [vmem:[%s169 + $0x84] sm:$0xff]
      %v196 = vld [vmem:[%s169 + $0x8c] sm:$0xff]
      %v197 = vld [vmem:[%s169 + $0x94] sm:$0xff]
      %v198 = vld [vmem:[%s169 + $0x9c] sm:$0xff]
      %v199 = vld [vmem:[%s169 + $0xa4] sm:$0xf]
      %v200 = vld [vmem:[%s169 + $0xa8] sm:$0xff]
      %v201 = vld [vmem:[%s169 + $0xb0] sm:$0xff]
      %v202 = vld [vmem:[%s169 + $0xb8] sm:$0xff]
      %v203 = vld [vmem:[%s169 + $0xc0] sm:$0xff]
      %v204 = vld [vmem:[%s169 + $0xc8] sm:$0xff]
      %v205 = vld [vmem:[%s169 + $0xd0] sm:$0xff]
      %v206 = vld [vmem:[%s169 + $0xd8] sm:$0xff]
      %v207 = vld [vmem:[%s169 + $0xe0] sm:$0xff]
      %v208 = vld [vmem:[%s169 + $0xe8] sm:$0xff]
      %v209 = vld [vmem:[%s169 + $0xf0] sm:$0xff]
      %v210 = vld [vmem:[%s169 + $0xf8] sm:$0xf]
      %v211 = vld [vmem:[%s169 + $0xfc] sm:$0xff]
      %v212 = vld [vmem:[%s169 + $0x104] sm:$0xff]
      %v213 = vld [vmem:[%s169 + $0x10c] sm:$0xff]
      %v214 = vld [vmem:[%s169 + $0x114] sm:$0xff]
      %v215 = vld [vmem:[%s169 + $0x11c] sm:$0xff]
      %v216 = vld [vmem:[%s169 + $0x124] sm:$0xff]
      %v217 = vld [vmem:[%s169 + $0x12c] sm:$0xff]
      %v218 = vld [vmem:[%s169 + $0x134] sm:$0xff]
      %v219 = vld [vmem:[%s169 + $0x13c] sm:$0xff]
      %v220 = vld [vmem:[%s169 + $0x144] sm:$0xff]
      %v221 = vld [vmem:[%s169 + $0x14c] sm:$0xf]
      %v222 = vld [vmem:[%s169 + $0x150] sm:$0xff]
      %v223 = vld [vmem:[%s169 + $0x158] sm:$0xff]
      %v224 = vld [vmem:[%s169 + $0x160] sm:$0xff]
      %v225 = vld [vmem:[%s169 + $0x168] sm:$0xff]
      %v226 = vld [vmem:[%s169 + $0x170] sm:$0xff]
      %v227 = vld [vmem:[%s169 + $0x178] sm:$0xff]
      %v228 = vld [vmem:[%s169 + $0x180] sm:$0xff]
      %v229 = vld [vmem:[%s169 + $0x188] sm:$0xff]
      %v230 = vld [vmem:[%s169 + $0x190] sm:$0xff]
      %v231 = vld [vmem:[%s169 + $0x198] sm:$0xff]
      %v232 = vld [vmem:[%s169 + $0x1a0] sm:$0xf]
      %v233 = vld [vmem:[%s169 + $0x1a4] sm:$0xff]
      %v234 = vld [vmem:[%s169 + $0x1ac] sm:$0xff]
      %v235 = vld [vmem:[%s169 + $0x1b4] sm:$0xff]
      %v236 = vld [vmem:[%s169 + $0x1bc] sm:$0xff]
      %v237 = vld [vmem:[%s169 + $0x1c4] sm:$0xff]
      %v238 = vld [vmem:[%s169 + $0x1cc] sm:$0xff]
      %v239 = vld [vmem:[%s169 + $0x1d4] sm:$0xff]
      %v240 = vld [vmem:[%s169 + $0x1dc] sm:$0xff]
      %v241 = vld [vmem:[%s169 + $0x1e4] sm:$0xff]
      %v242 = vld [vmem:[%s169 + $0x1ec] sm:$0xff]
      %v243 = vld [vmem:[%s169 + $0x1f4] sm:$0xf]
      %v244 = vld [vmem:[%s169 + $0x1f8] sm:$0xff]
      %v245 = vld [vmem:[%s169 + $0x200] sm:$0xff]
      %v246 = vld [vmem:[%s169 + $0x208] sm:$0xff]
      %v247 = vld [vmem:[%s169 + $0x210] sm:$0xff]
      %v248 = vld [vmem:[%s169 + $0x218] sm:$0xff]
      %v249 = vld [vmem:[%s169 + $0x220] sm:$0xff]
      %v250 = vld [vmem:[%s169 + $0x228] sm:$0xff]
      %v251 = vld [vmem:[%s169 + $0x230] sm:$0xff]
      %v252 = vld [vmem:[%s169 + $0x238] sm:$0xff]
      %v253 = vld [vmem:[%s169 + $0x240] sm:$0xff]
      %v254 = vld [vmem:[%s169 + $0x248] sm:$0xf]
      %v255 = vld [vmem:[%s169 + $0x24c] sm:$0xff]
      %v256 = vld [vmem:[%s169 + $0x254] sm:$0xff]
      %v257 = vld [vmem:[%s169 + $0x25c] sm:$0xff]
      %v258 = vld [vmem:[%s169 + $0x264] sm:$0xff]
      %v259 = vld [vmem:[%s169 + $0x26c] sm:$0xff]
      %v260 = vld [vmem:[%s169 + $0x274] sm:$0xff]
      %v261 = vld [vmem:[%s169 + $0x27c] sm:$0xff]
      %v262 = vld [vmem:[%s169 + $0x284] sm:$0xff]
      %v263 = vld [vmem:[%s169 + $0x28c] sm:$0xff]
      %v264 = vld [vmem:[%s169 + $0x294] sm:$0xff]
      %v265 = vld [vmem:[%s169 + $0x29c] sm:$0xf]
      %v266 = vld [vmem:[%s169 + $0x2a0] sm:$0xff]
      %v267 = vld [vmem:[%s169 + $0x2a8] sm:$0xff]
      %v268 = vld [vmem:[%s169 + $0x2b0] sm:$0xff]
      %v269 = vld [vmem:[%s169 + $0x2b8] sm:$0xff]
      %v270 = vld [vmem:[%s169 + $0x2c0] sm:$0xff]
      %v271 = vld [vmem:[%s169 + $0x2c8] sm:$0xff]
      %v272 = vld [vmem:[%s169 + $0x2d0] sm:$0xff]
      %v273 = vld [vmem:[%s169 + $0x2d8] sm:$0xff]
      %v274 = vld [vmem:[%s169 + $0x2e0] sm:$0xff]
      %v275 = vld [vmem:[%s169 + $0x2e8] sm:$0xff]
      %v276 = vld [vmem:[%s169 + $0x2f0] sm:$0xf]
      %v277 = vld [vmem:[%s169 + $0x2f4] sm:$0xff]
      %v278 = vld [vmem:[%s169 + $0x2fc] sm:$0xff]
      %v279 = vld [vmem:[%s169 + $0x304] sm:$0xff]
      %v280 = vld [vmem:[%s169 + $0x30c] sm:$0xff]
      %v281 = vld [vmem:[%s169 + $0x314] sm:$0xff]
      %v282 = vld [vmem:[%s169 + $0x31c] sm:$0xff]
      %v283 = vld [vmem:[%s169 + $0x324] sm:$0xff]
      %v284 = vld [vmem:[%s169 + $0x32c] sm:$0xff]
      %v285 = vld [vmem:[%s169 + $0x334] sm:$0xff]
      %v286 = vld [vmem:[%s169 + $0x33c] sm:$0xff]
      %v287 = vld [vmem:[%s169 + $0x344] sm:$0xf]
      %v288 = vld [vmem:[%s169 + $0x348] sm:$0xff]
      %v289 = vld [vmem:[%s169 + $0x350] sm:$0xff]
      %v290 = vld [vmem:[%s169 + $0x358] sm:$0xff]
      %v291 = vld [vmem:[%s169 + $0x360] sm:$0xff]
      %v292 = vld [vmem:[%s169 + $0x368] sm:$0xff]
      %v293 = vld [vmem:[%s169 + $0x370] sm:$0xff]
      %v294 = vld [vmem:[%s169 + $0x378] sm:$0xff]
      %v295 = vld [vmem:[%s169 + $0x380] sm:$0xff]
      %v296 = vld [vmem:[%s169 + $0x388] sm:$0xff]
      %v297 = vld [vmem:[%s169 + $0x390] sm:$0xff]
      %v298 = vld [vmem:[%s169 + $0x398] sm:$0xf]
      %v299 = vld [vmem:[%s169 + $0x39c] sm:$0xff]
      %v300 = vld [vmem:[%s169 + $0x3a4] sm:$0xff]
      %v301 = vld [vmem:[%s169 + $0x3ac] sm:$0xff]
      %v302 = vld [vmem:[%s169 + $0x3b4] sm:$0xff]
      %v303 = vld [vmem:[%s169 + $0x3bc] sm:$0xff]
      %v304 = vld [vmem:[%s169 + $0x3c4] sm:$0xff]
      %v305 = vld [vmem:[%s169 + $0x3cc] sm:$0xff]
      %v306 = vld [vmem:[%s169 + $0x3d4] sm:$0xff]
      %v307 = vld [vmem:[%s169 + $0x3dc] sm:$0xff]
      %v308 = vld [vmem:[%s169 + $0x3e4] sm:$0xff]
      %v309 = vld [vmem:[%s169 + $0x3ec] sm:$0xf]
      %v310 = vld [vmem:[%s169 + $0x3f0] sm:$0xff]
      %v311 = vld [vmem:[%s169 + $0x3f8] sm:$0xff]
      %v312 = vld [vmem:[%s169 + $0x400] sm:$0xff]
      %v313 = vld [vmem:[%s169 + $0x408] sm:$0xff]
      %v314 = vld [vmem:[%s169 + $0x410] sm:$0xff]
      %v315 = vld [vmem:[%s169 + $0x418] sm:$0xff]
      %v316 = vld [vmem:[%s169 + $0x420] sm:$0xff]
      %v317 = vld [vmem:[%s169 + $0x428] sm:$0xff]
      %v318 = vld [vmem:[%s169 + $0x430] sm:$0xff]
      %v319 = vld [vmem:[%s169 + $0x438] sm:$0xff]
      %v320 = vld [vmem:[%s169 + $0x440] sm:$0xf]
      %v321 = vld [vmem:[%s169 + $0x444] sm:$0xff]
      %v322 = vld [vmem:[%s169 + $0x44c] sm:$0xff]
      %v323 = vld [vmem:[%s169 + $0x454] sm:$0xff]
      %v324 = vld [vmem:[%s169 + $0x45c] sm:$0xff]
      %v325 = vld [vmem:[%s169 + $0x464] sm:$0xff]
      %v326 = vld [vmem:[%s169 + $0x46c] sm:$0xff]
      %v327 = vld [vmem:[%s169 + $0x474] sm:$0xff]
      %v328 = vld [vmem:[%s169 + $0x47c] sm:$0xff]
      %v329 = vld [vmem:[%s169 + $0x484] sm:$0xff]
      %v330 = vld [vmem:[%s169 + $0x48c] sm:$0xff]
      %v331 = vld [vmem:[%s169 + $0x494] sm:$0xf]
      %v332 = vld [vmem:[%s169 + $0x498] sm:$0xff]
      %v333 = vld [vmem:[%s169 + $0x4a0] sm:$0xff]
      %v334 = vld [vmem:[%s169 + $0x4a8] sm:$0xff]
      %v335 = vld [vmem:[%s169 + $0x4b0] sm:$0xff]
      %v336 = vld [vmem:[%s169 + $0x4b8] sm:$0xff]
      %v337 = vld [vmem:[%s169 + $0x4c0] sm:$0xff]
      %v338 = vld [vmem:[%s169 + $0x4c8] sm:$0xff]
      %v339 = vld [vmem:[%s169 + $0x4d0] sm:$0xff]
      %v340 = vld [vmem:[%s169 + $0x4d8] sm:$0xff]
      %v341 = vld [vmem:[%s169 + $0x4e0] sm:$0xff]
      %v342 = vld [vmem:[%s169 + $0x4e8] sm:$0xf]
      %v343 = vld [vmem:[%s169 + $0x4ec] sm:$0xff]
      %v344 = vld [vmem:[%s169 + $0x4f4] sm:$0xff]
      %v345 = vld [vmem:[%s169 + $0x4fc] sm:$0xff]
      %v346 = vld [vmem:[%s169 + $0x504] sm:$0xff]
      %v347 = vld [vmem:[%s169 + $0x50c] sm:$0xff]
      %v348 = vld [vmem:[%s169 + $0x514] sm:$0xff]
      %v349 = vld [vmem:[%s169 + $0x51c] sm:$0xff]
      %v350 = vld [vmem:[%s169 + $0x524] sm:$0xff]
      %v351 = vld [vmem:[%s169 + $0x52c] sm:$0xff]
      %v352 = vld [vmem:[%s169 + $0x534] sm:$0xff]
      %v353 = vld [vmem:[%s169 + $0x53c] sm:$0xf]
      %v354 = vld [vmem:[%s169 + $0x540] sm:$0xff]
      %v355 = vld [vmem:[%s169 + $0x548] sm:$0xff]
      %v356 = vld [vmem:[%s169 + $0x550] sm:$0xff]
      %v357 = vld [vmem:[%s169 + $0x558] sm:$0xff]
      %v358 = vld [vmem:[%s169 + $0x560] sm:$0xff]
      %v359 = vld [vmem:[%s169 + $0x568] sm:$0xff]
      %v360 = vld [vmem:[%s169 + $0x570] sm:$0xff]
      %v361 = vld [vmem:[%s169 + $0x578] sm:$0xff]
      %v362 = vld [vmem:[%s169 + $0x580] sm:$0xff]
      %v363 = vld [vmem:[%s169 + $0x588] sm:$0xff]
      %v364 = vld [vmem:[%s169 + $0x590] sm:$0xf]
      %v365 = vld [vmem:[%s169 + $0x594] sm:$0xff]
      %v366 = vld [vmem:[%s169 + $0x59c] sm:$0xff]
      %v367 = vld [vmem:[%s169 + $0x5a4] sm:$0xff]
      %v368 = vld [vmem:[%s169 + $0x5ac] sm:$0xff]
      %v369 = vld [vmem:[%s169 + $0x5b4] sm:$0xff]
      %v370 = vld [vmem:[%s169 + $0x5bc] sm:$0xff]
      %v371 = vld [vmem:[%s169 + $0x5c4] sm:$0xff]
      %v372 = vld [vmem:[%s169 + $0x5cc] sm:$0xff]
      %v373 = vld [vmem:[%s169 + $0x5d4] sm:$0xff]
      %v374 = vld [vmem:[%s169 + $0x5dc] sm:$0xff]
      %v375 = vld [vmem:[%s169 + $0x5e4] sm:$0xf]
      %v376 = vld [vmem:[%s169 + $0x5e8] sm:$0xff]
      %v377 = vld [vmem:[%s169 + $0x5f0] sm:$0xff]
      %v378 = vld [vmem:[%s169 + $0x5f8] sm:$0xff]
      %v379 = vld [vmem:[%s169 + $0x600] sm:$0xff]
      %v380 = vld [vmem:[%s169 + $0x608] sm:$0xff]
      %v381 = vld [vmem:[%s169 + $0x610] sm:$0xff]
      %v382 = vld [vmem:[%s169 + $0x618] sm:$0xff]
      %v383 = vld [vmem:[%s169 + $0x620] sm:$0xff]
      %v384 = vld [vmem:[%s169 + $0x628] sm:$0xff]
      %v385 = vld [vmem:[%s169 + $0x630] sm:$0xff]
      %v386 = vld [vmem:[%s169 + $0x638] sm:$0xf]
      %v387 = vld [vmem:[%s169 + $0x63c] sm:$0xff]
      %v388 = vld [vmem:[%s169 + $0x644] sm:$0xff]
      %v389 = vld [vmem:[%s169 + $0x64c] sm:$0xff]
      %v390 = vld [vmem:[%s169 + $0x654] sm:$0xff]
      %v391 = vld [vmem:[%s169 + $0x65c] sm:$0xff]
      %v392 = vld [vmem:[%s169 + $0x664] sm:$0xff]
      %v393 = vld [vmem:[%s169 + $0x66c] sm:$0xff]
      %v394 = vld [vmem:[%s169 + $0x674] sm:$0xff]
      %v395 = vld [vmem:[%s169 + $0x67c] sm:$0xff]
      %v396 = vld [vmem:[%s169 + $0x684] sm:$0xff]
      %v397 = vld [vmem:[%s169 + $0x68c] sm:$0xf]
      %v398 = vld [vmem:[%s169 + $0x690] sm:$0xff]
      %v399 = vld [vmem:[%s169 + $0x698] sm:$0xff]
      %v400 = vld [vmem:[%s169 + $0x6a0] sm:$0xff]
      %v401 = vld [vmem:[%s169 + $0x6a8] sm:$0xff]
      %v402 = vld [vmem:[%s169 + $0x6b0] sm:$0xff]
      %v403 = vld [vmem:[%s169 + $0x6b8] sm:$0xff]
      %v404 = vld [vmem:[%s169 + $0x6c0] sm:$0xff]
      %v405 = vld [vmem:[%s169 + $0x6c8] sm:$0xff]
      %v406 = vld [vmem:[%s169 + $0x6d0] sm:$0xff]
      %v407 = vld [vmem:[%s169 + $0x6d8] sm:$0xff]
      %v408 = vld [vmem:[%s169 + $0x6e0] sm:$0xf]
      %v409 = vld [vmem:[%s169 + $0x6e4] sm:$0xff]
      %v410 = vld [vmem:[%s169 + $0x6ec] sm:$0xff]
      %v411 = vld [vmem:[%s169 + $0x6f4] sm:$0xff]
      %v412 = vld [vmem:[%s169 + $0x6fc] sm:$0xff]
      %v413 = vld [vmem:[%s169 + $0x704] sm:$0xff]
      %v414 = vld [vmem:[%s169 + $0x70c] sm:$0xff]
      %v415 = vld [vmem:[%s169 + $0x714] sm:$0xff]
      %v416 = vld [vmem:[%s169 + $0x71c] sm:$0xff]
      %v417 = vld [vmem:[%s169 + $0x724] sm:$0xff]
      %v418 = vld [vmem:[%s169 + $0x72c] sm:$0xff]
      %v419 = vld [vmem:[%s169 + $0x734] sm:$0xf]
      %v420 = vld [vmem:[%s169 + $0x738] sm:$0xff]
      %v421 = vld [vmem:[%s169 + $0x740] sm:$0xff]
      %v422 = vld [vmem:[%s169 + $0x748] sm:$0xff]
      %v423 = vld [vmem:[%s169 + $0x750] sm:$0xff]
      %v424 = vld [vmem:[%s169 + $0x758] sm:$0xff]
      %v425 = vld [vmem:[%s169 + $0x760] sm:$0xff]
      %v426 = vld [vmem:[%s169 + $0x768] sm:$0xff]
      %v427 = vld [vmem:[%s169 + $0x770] sm:$0xff]
      %v428 = vld [vmem:[%s169 + $0x778] sm:$0xff]
      %v429 = vld [vmem:[%s169 + $0x780] sm:$0xff]
      %v430 = vld [vmem:[%s169 + $0x788] sm:$0xf]
      %v431 = vld [vmem:[%s169 + $0x78c] sm:$0xff]
      %v432 = vld [vmem:[%s169 + $0x794] sm:$0xff]
      %v433 = vld [vmem:[%s169 + $0x79c] sm:$0xff]
      %v434 = vld [vmem:[%s169 + $0x7a4] sm:$0xff]
      %v435 = vld [vmem:[%s169 + $0x7ac] sm:$0xff]
      %v436 = vld [vmem:[%s169 + $0x7b4] sm:$0xff]
      %v437 = vld [vmem:[%s169 + $0x7bc] sm:$0xff]
      %v438 = vld [vmem:[%s169 + $0x7c4] sm:$0xff]
      %v439 = vld [vmem:[%s169 + $0x7cc] sm:$0xff]
      %v440 = vld [vmem:[%s169 + $0x7d4] sm:$0xff]
      %v441 = vld [vmem:[%s169 + $0x7dc] sm:$0xf]
      %v442 = vld [vmem:[%s169 + $0x7e0] sm:$0xff]
      %v443 = vld [vmem:[%s169 + $0x7e8] sm:$0xff]
      %v444 = vld [vmem:[%s169 + $0x7f0] sm:$0xff]
      %v445 = vld [vmem:[%s169 + $0x7f8] sm:$0xff]
      %v446 = vld [vmem:[%s169 + $0x800] sm:$0xff]
      %v447 = vld [vmem:[%s169 + $0x808] sm:$0xff]
      %v448 = vld [vmem:[%s169 + $0x810] sm:$0xff]
      %v449 = vld [vmem:[%s169 + $0x818] sm:$0xff]
      %v450 = vld [vmem:[%s169 + $0x820] sm:$0xff]
      %v451 = vld [vmem:[%s169 + $0x828] sm:$0xff]
      %v452 = vld [vmem:[%s169 + $0x830] sm:$0xf]
      %v453 = vld [vmem:[%s169 + $0x834] sm:$0xff]
      %v454 = vld [vmem:[%s169 + $0x83c] sm:$0xff]
      %v455 = vld [vmem:[%s169 + $0x844] sm:$0xff]
      %v456 = vld [vmem:[%s169 + $0x84c] sm:$0xff]
      %v457 = vld [vmem:[%s169 + $0x854] sm:$0xff]
      %v458 = vld [vmem:[%s169 + $0x85c] sm:$0xff]
      %v459 = vld [vmem:[%s169 + $0x864] sm:$0xff]
      %v460 = vld [vmem:[%s169 + $0x86c] sm:$0xff]
      %v461 = vld [vmem:[%s169 + $0x874] sm:$0xff]
      %v462 = vld [vmem:[%s169 + $0x87c] sm:$0xff]
      %v463 = vld [vmem:[%s169 + $0x884] sm:$0xf]
      %v464 = vld [vmem:[%s169 + $0x888] sm:$0xff]
      %v465 = vld [vmem:[%s169 + $0x890] sm:$0xff]
      %v466 = vld [vmem:[%s169 + $0x898] sm:$0xff]
      %v467 = vld [vmem:[%s169 + $0x8a0] sm:$0xff]
      %v468 = vld [vmem:[%s169 + $0x8a8] sm:$0xff]
      %v469 = vld [vmem:[%s169 + $0x8b0] sm:$0xff]
      %v470 = vld [vmem:[%s169 + $0x8b8] sm:$0xff]
      %v471 = vld [vmem:[%s169 + $0x8c0] sm:$0xff]
      %v472 = vld [vmem:[%s169 + $0x8c8] sm:$0xff]
      %v473 = vld [vmem:[%s169 + $0x8d0] sm:$0xff]
      %v474 = vld [vmem:[%s169 + $0x8d8] sm:$0xf]
      %v475 = vld [vmem:[%s169 + $0x8dc] sm:$0xff]
      %v476 = vld [vmem:[%s169 + $0x8e4] sm:$0xff]
      %v477 = vld [vmem:[%s169 + $0x8ec] sm:$0xff]
      %v478 = vld [vmem:[%s169 + $0x8f4] sm:$0xff]
      %v479 = vld [vmem:[%s169 + $0x8fc] sm:$0xff]
      %v480 = vld [vmem:[%s169 + $0x904] sm:$0xff]
      %v481 = vld [vmem:[%s169 + $0x90c] sm:$0xff]
      %v482 = vld [vmem:[%s169 + $0x914] sm:$0xff]
      %v483 = vld [vmem:[%s169 + $0x91c] sm:$0xff]
      %v484 = vld [vmem:[%s169 + $0x924] sm:$0xff]
      %v485 = vld [vmem:[%s169 + $0x92c] sm:$0xf]
      %v486 = vld [vmem:[%s169 + $0x930] sm:$0xff]
      %v487 = vld [vmem:[%s169 + $0x938] sm:$0xff]
      %v488 = vld [vmem:[%s169 + $0x940] sm:$0xff]
      %v489 = vld [vmem:[%s169 + $0x948] sm:$0xff]
      %v490 = vld [vmem:[%s169 + $0x950] sm:$0xff]
      %v491 = vld [vmem:[%s169 + $0x958] sm:$0xff]
      %v492 = vld [vmem:[%s169 + $0x960] sm:$0xff]
      %v493 = vld [vmem:[%s169 + $0x968] sm:$0xff]
      %v494 = vld [vmem:[%s169 + $0x970] sm:$0xff]
      %v495 = vld [vmem:[%s169 + $0x978] sm:$0xff]
      %v496 = vld [vmem:[%s169 + $0x980] sm:$0xf]
      %v497 = vld [vmem:[%s169 + $0x984] sm:$0xff]
      %v498 = vld [vmem:[%s169 + $0x98c] sm:$0xff]
      %v499 = vld [vmem:[%s169 + $0x994] sm:$0xff]
      %v500 = vld [vmem:[%s169 + $0x99c] sm:$0xff]
      %v501 = vld [vmem:[%s169 + $0x9a4] sm:$0xff]
      %v502 = vld [vmem:[%s169 + $0x9ac] sm:$0xff]
      %v503 = vld [vmem:[%s169 + $0x9b4] sm:$0xff]
      %v504 = vld [vmem:[%s169 + $0x9bc] sm:$0xff]
      %v505 = vld [vmem:[%s169 + $0x9c4] sm:$0xff]
      %v506 = vld [vmem:[%s169 + $0x9cc] sm:$0xff]
      %v507 = vld [vmem:[%s169 + $0x9d4] sm:$0xf]
      %v508 = vld [vmem:[%s169 + $0x9d8] sm:$0xff]
      %v509 = vld [vmem:[%s169 + $0x9e0] sm:$0xff]
      %v510 = vld [vmem:[%s169 + $0x9e8] sm:$0xff]
      %v511 = vld [vmem:[%s169 + $0x9f0] sm:$0xff]
      %v512 = vld [vmem:[%s169 + $0x9f8] sm:$0xff]
      %v513 = vld [vmem:[%s169 + $0xa00] sm:$0xff]
      %v514 = vld [vmem:[%s169 + $0xa08] sm:$0xff]
      %v515 = vld [vmem:[%s169 + $0xa10] sm:$0xff]
      %v516 = vld [vmem:[%s169 + $0xa18] sm:$0xff]
      %v517 = vld [vmem:[%s169 + $0xa20] sm:$0xff]
      %v518 = vld [vmem:[%s169 + $0xa28] sm:$0xf]
      %v519 = vld [vmem:[%s169 + $0xa2c] sm:$0xff]
      %v520 = vld [vmem:[%s169 + $0xa34] sm:$0xff]
      %v521 = vld [vmem:[%s169 + $0xa3c] sm:$0xff]
      %v522 = vld [vmem:[%s169 + $0xa44] sm:$0xff]
      %v523 = vld [vmem:[%s169 + $0xa4c] sm:$0xff]
      %v524 = vld [vmem:[%s169 + $0xa54] sm:$0xff]
      %v525 = vld [vmem:[%s169 + $0xa5c] sm:$0xff]
      %v526 = vld [vmem:[%s169 + $0xa64] sm:$0xff]
      %v527 = vld [vmem:[%s169 + $0xa6c] sm:$0xff]
      %v528 = vld [vmem:[%s169 + $0xa74] sm:$0xff]
      %v529 = vld [vmem:[%s169 + $0xa7c] sm:$0xf]
      %v530 = vld [vmem:[%s1] sm:$0xf]
      %v531 = vld [vmem:[%s1 + $0x4] sm:$0xf]
      %v532 = vld [vmem:[%s1 + $0x8] sm:$0xf]
      %v533 = vld [vmem:[%s1 + $0xc] sm:$0xf]
      %v534 = vld [vmem:[%s1 + $0x10] sm:$0xf]
      %v535 = vld [vmem:[%s1 + $0x14] sm:$0xf]
      %v536 = vld [vmem:[%s1 + $0x18] sm:$0xf]
      %v537 = vld [vmem:[%s1 + $0x1c] sm:$0xf]
      %v538 = vld [vmem:[%s1 + $0x20] sm:$0xf]
      %v539 = vld [vmem:[%s1 + $0x24] sm:$0xf]
      %v540 = vld [vmem:[%s1 + $0x28] sm:$0xf]
      %v541 = vld [vmem:[%s1 + $0x2c] sm:$0xf]
      %v542 = vld [vmem:[%s1 + $0x30] sm:$0xf]
      %v543 = vld [vmem:[%s1 + $0x34] sm:$0xf]
      %v544 = vld [vmem:[%s1 + $0x38] sm:$0xf]
      %v545 = vld [vmem:[%s1 + $0x3c] sm:$0xf]
      %v546 = vld [vmem:[%s1 + $0x40] sm:$0xf]
      %v547 = vld [vmem:[%s1 + $0x44] sm:$0xf]
      %v548 = vld [vmem:[%s1 + $0x48] sm:$0xf]
      %v549 = vld [vmem:[%s1 + $0x4c] sm:$0xf]
      %v550 = vld [vmem:[%s1 + $0x50] sm:$0xf]
      %v551 = vld [vmem:[%s1 + $0x54] sm:$0xf]
      %v552 = vld [vmem:[%s1 + $0x58] sm:$0xf]
      %v553 = vld [vmem:[%s1 + $0x5c] sm:$0xf]
      %v554 = vld [vmem:[%s1 + $0x60] sm:$0xf]
      %v555 = vld [vmem:[%s1 + $0x64] sm:$0xf]
      %v556 = vld [vmem:[%s1 + $0x68] sm:$0xf]
      %v557 = vld [vmem:[%s1 + $0x6c] sm:$0xf]
      %v558 = vld [vmem:[%s1 + $0x70] sm:$0xf]
      %v559 = vld [vmem:[%s1 + $0x74] sm:$0xf]
      %v560 = vld [vmem:[%s1 + $0x78] sm:$0xf]
      %v561 = vld [vmem:[%s1 + $0x7c] sm:$0xf]
      %v562 = vld [vmem:[%s1 + $0x80] sm:$0xf]
      %v563 = vld [vmem:[%s1 + $0x84] sm:$0xf]
      %v564 = vld [vmem:[%s1 + $0x88] sm:$0xf]
      %v565 = vld [vmem:[%s1 + $0x8c] sm:$0xf]
      %v566 = vld [vmem:[%s1 + $0x90] sm:$0xf]
      %v567 = vld [vmem:[%s1 + $0x94] sm:$0xf]
      %v568 = vld [vmem:[%s1 + $0x98] sm:$0xf]
      %v569 = vld [vmem:[%s1 + $0x9c] sm:$0xf]
      %v570 = vld [vmem:[%s1 + $0xa0] sm:$0xf]
      %v571 = vld [vmem:[%s1 + $0xa4] sm:$0xf]
      %v572 = vld [vmem:[%s1 + $0xa8] sm:$0xf]
      %v573 = vld [vmem:[%s1 + $0xac] sm:$0xf]
      %v574 = vld [vmem:[%s1 + $0xb0] sm:$0xf]
      %v575 = vld [vmem:[%s1 + $0xb4] sm:$0xf]
      %v576 = vld [vmem:[%s1 + $0xb8] sm:$0xf]
      %v577 = vld [vmem:[%s1 + $0xbc] sm:$0xf]
      %v578 = vld [vmem:[%s1 + $0xc0] sm:$0xf]
      %v579 = vld [vmem:[%s1 + $0xc4] sm:$0xf]
      %v580 = vld [vmem:[%s1 + $0xc8] sm:$0xf]
      %v581 = vld [vmem:[%s1 + $0xcc] sm:$0xf]
      %v582 = vld [vmem:[%s1 + $0xd0] sm:$0xf]
      %v583 = vld [vmem:[%s1 + $0xd4] sm:$0xf]
      %v584 = vld [vmem:[%s1 + $0xd8] sm:$0xf]
      %v585 = vld [vmem:[%s1 + $0xdc] sm:$0xf]
      %v586 = vld [vmem:[%s1 + $0xe0] sm:$0xf]
      %v587 = vld [vmem:[%s1 + $0xe4] sm:$0xf]
      %v588 = vld [vmem:[%s1 + $0xe8] sm:$0xf]
      %v589 = vld [vmem:[%s1 + $0xec] sm:$0xf]
      %v590 = vld [vmem:[%s1 + $0xf0] sm:$0xf]
      %v591 = vld [vmem:[%s1 + $0xf4] sm:$0xf]
      %v592 = vld [vmem:[%s1 + $0xf8] sm:$0xf]
      %v593 = vld [vmem:[%s1 + $0xfc] sm:$0xf]
      %v594 = vld [vmem:[%s1 + $0x100] sm:$0xf]
      %v595 = vld [vmem:[%s1 + $0x104] sm:$0xf]
      %v596 = vld [vmem:[%s1 + $0x108] sm:$0xf]
      %v597 = vld [vmem:[%s1 + $0x10c] sm:$0xf]
      %v598 = vld [vmem:[%s1 + $0x110] sm:$0xf]
      %v599 = vld [vmem:[%s1 + $0x114] sm:$0xf]
      %v600 = vld [vmem:[%s1 + $0x118] sm:$0xf]
      %v601 = vld [vmem:[%s1 + $0x11c] sm:$0xf]
      %v602 = vld [vmem:[%s1 + $0x120] sm:$0xf]
      %v603 = vld [vmem:[%s1 + $0x124] sm:$0xf]
      %v604 = vld [vmem:[%s1 + $0x128] sm:$0xf]
      %v605 = vld [vmem:[%s1 + $0x12c] sm:$0xf]
      %v606 = vld [vmem:[%s1 + $0x130] sm:$0xf]
      %v607 = vld [vmem:[%s1 + $0x134] sm:$0xf]
      %v608 = vld [vmem:[%s1 + $0x138] sm:$0xf]
      %v609 = vld [vmem:[%s1 + $0x13c] sm:$0xf]
      %v610 = vld [vmem:[%s1 + $0x140] sm:$0xf]
      %v611 = vld [vmem:[%s1 + $0x144] sm:$0xf]
      %v612 = vld [vmem:[%s1 + $0x148] sm:$0xf]
      %v613 = vld [vmem:[%s1 + $0x14c] sm:$0xf]
      %v614 = vld [vmem:[%s1 + $0x150] sm:$0xf]
      %v615 = vld [vmem:[%s1 + $0x154] sm:$0xf]
      %v616 = vld [vmem:[%s1 + $0x158] sm:$0xf]
      %v617 = vld [vmem:[%s1 + $0x15c] sm:$0xf]
      %v618 = vld [vmem:[%s1 + $0x160] sm:$0xf]
      %v619 = vld [vmem:[%s1 + $0x164] sm:$0xf]
      %v620 = vld [vmem:[%s1 + $0x168] sm:$0xf]
      %v621 = vld [vmem:[%s1 + $0x16c] sm:$0xf]
      %v622 = vld [vmem:[%s1 + $0x170] sm:$0xf]
      %v623 = vld [vmem:[%s1 + $0x174] sm:$0xf]
      %v624 = vld [vmem:[%s1 + $0x178] sm:$0xf]
      %v625 = vld [vmem:[%s1 + $0x17c] sm:$0xf]
      %v626 = vld [vmem:[%s1 + $0x180] sm:$0xf]
      %v627 = vld [vmem:[%s1 + $0x184] sm:$0xf]
      %v628 = vld [vmem:[%s1 + $0x188] sm:$0xf]
      %v629 = vld [vmem:[%s1 + $0x18c] sm:$0xf]
      %v630 = vld [vmem:[%s1 + $0x190] sm:$0xf]
      %v631 = vld [vmem:[%s1 + $0x194] sm:$0xf]
      %v632 = vld [vmem:[%s1 + $0x198] sm:$0xf]
      %v633 = vld [vmem:[%s1 + $0x19c] sm:$0xf]
      %v634 = vld [vmem:[%s1 + $0x1a0] sm:$0xf]
      %v635 = vld [vmem:[%s1 + $0x1a4] sm:$0xf]
      %v636 = vld [vmem:[%s1 + $0x1a8] sm:$0xf]
      %v637 = vld [vmem:[%s1 + $0x1ac] sm:$0xf]
      %v638 = vld [vmem:[%s1 + $0x1b0] sm:$0xf]
      %v639 = vld [vmem:[%s1 + $0x1b4] sm:$0xf]
      %v640 = vld [vmem:[%s1 + $0x1b8] sm:$0xf]
      %v641 = vld [vmem:[%s1 + $0x1bc] sm:$0xf]
      %v642 = vld [vmem:[%s1 + $0x1c0] sm:$0xf]
      %v643 = vld [vmem:[%s1 + $0x1c4] sm:$0xf]
      %v644 = vld [vmem:[%s1 + $0x1c8] sm:$0xf]
      %v645 = vld [vmem:[%s1 + $0x1cc] sm:$0xf]
      %v646 = vld [vmem:[%s1 + $0x1d0] sm:$0xf]
      %v647 = vld [vmem:[%s1 + $0x1d4] sm:$0xf]
      %v648 = vld [vmem:[%s1 + $0x1d8] sm:$0xf]
      %v649 = vld [vmem:[%s1 + $0x1dc] sm:$0xf]
      %v650 = vld [vmem:[%s1 + $0x1e0] sm:$0xf]
      %v651 = vld [vmem:[%s1 + $0x1e4] sm:$0xf]
      %v652 = vld [vmem:[%s1 + $0x1e8] sm:$0xf]
      %v653 = vld [vmem:[%s1 + $0x1ec] sm:$0xf]
      %v654 = vld [vmem:[%s1 + $0x1f0] sm:$0xf]
      %v655 = vld [vmem:[%s1 + $0x1f4] sm:$0xf]
      %v656 = vld [vmem:[%s1 + $0x1f8] sm:$0xf]
      %v657 = vld [vmem:[%s1 + $0x1fc] sm:$0xf]
      %v658 = vld [vmem:[%s1 + $0x200] sm:$0xf]
      %v659 = vld [vmem:[%s1 + $0x204] sm:$0xf]
      %v660 = vld [vmem:[%s1 + $0x208] sm:$0xf]
      %v661 = vld [vmem:[%s1 + $0x20c] sm:$0xf]
      %v662 = vld [vmem:[%s1 + $0x210] sm:$0xf]
      %v663 = vld [vmem:[%s1 + $0x214] sm:$0xf]
      %v664 = vld [vmem:[%s1 + $0x218] sm:$0xf]
      %v665 = vld [vmem:[%s1 + $0x21c] sm:$0xf]
      %v666 = vld [vmem:[%s1 + $0x220] sm:$0xf]
      %v667 = vld [vmem:[%s1 + $0x224] sm:$0xf]
      %v668 = vld [vmem:[%s1 + $0x228] sm:$0xf]
      %v669 = vld [vmem:[%s1 + $0x22c] sm:$0xf]
      %v670 = vld [vmem:[%s1 + $0x230] sm:$0xf]
      %v671 = vld [vmem:[%s1 + $0x234] sm:$0xf]
      %v672 = vld [vmem:[%s1 + $0x238] sm:$0xf]
      %v673 = vld [vmem:[%s1 + $0x23c] sm:$0xf]
      %v674 = vld [vmem:[%s1 + $0x240] sm:$0xf]
      %v675 = vld [vmem:[%s1 + $0x244] sm:$0xf]
      %v676 = vld [vmem:[%s1 + $0x248] sm:$0xf]
      %v677 = vld [vmem:[%s1 + $0x24c] sm:$0xf]
      %v678 = vld [vmem:[%s1 + $0x250] sm:$0xf]
      %v679 = vld [vmem:[%s1 + $0x254] sm:$0xf]
      %v680 = vld [vmem:[%s1 + $0x258] sm:$0xf]
      %v681 = vld [vmem:[%s1 + $0x25c] sm:$0xf]
      %v682 = vld [vmem:[%s1 + $0x260] sm:$0xf]
      %v683 = vld [vmem:[%s1 + $0x264] sm:$0xf]
      %v684 = vld [vmem:[%s1 + $0x268] sm:$0xf]
      %v685 = vld [vmem:[%s1 + $0x26c] sm:$0xf]
      %v686 = vld [vmem:[%s1 + $0x270] sm:$0xf]
      %v687 = vld [vmem:[%s1 + $0x274] sm:$0xf]
      %v688 = vld [vmem:[%s1 + $0x278] sm:$0xf]
      %v689 = vld [vmem:[%s1 + $0x27c] sm:$0xf]
      %v690 = vld [vmem:[%s1 + $0x280] sm:$0xf]
      %v691 = vld [vmem:[%s1 + $0x284] sm:$0xf]
      %v692 = vld [vmem:[%s1 + $0x288] sm:$0xf]
      %v693 = vld [vmem:[%s1 + $0x28c] sm:$0xf]
      %v694 = vld [vmem:[%s1 + $0x290] sm:$0xf]
      %v695 = vld [vmem:[%s1 + $0x294] sm:$0xf]
      %v696 = vld [vmem:[%s1 + $0x298] sm:$0xf]
      %v697 = vld [vmem:[%s1 + $0x29c] sm:$0xf]
      %v698 = vld [vmem:[%s1 + $0x2a0] sm:$0xf]
      %v699 = vld [vmem:[%s1 + $0x2a4] sm:$0xf]
      %v700 = vld [vmem:[%s1 + $0x2a8] sm:$0xf]
      %v701 = vld [vmem:[%s1 + $0x2ac] sm:$0xf]
      %v702 = vld [vmem:[%s1 + $0x2b0] sm:$0xf]
      %v703 = vld [vmem:[%s1 + $0x2b4] sm:$0xf]
      %v704 = vld [vmem:[%s1 + $0x2b8] sm:$0xf]
      %v705 = vld [vmem:[%s1 + $0x2bc] sm:$0xf]
      %v706 = vld [vmem:[%s1 + $0x2c0] sm:$0xf]
      %v707 = vld [vmem:[%s1 + $0x2c4] sm:$0xf]
      %v708 = vld [vmem:[%s1 + $0x2c8] sm:$0xf]
      %v709 = vld [vmem:[%s1 + $0x2cc] sm:$0xf]
      %v710 = vld [vmem:[%s1 + $0x2d0] sm:$0xf]
      %v711 = vld [vmem:[%s1 + $0x2d4] sm:$0xf]
      %v712 = vld [vmem:[%s1 + $0x2d8] sm:$0xf]
      %v713 = vld [vmem:[%s1 + $0x2dc] sm:$0xf]
      %v714 = vld [vmem:[%s1 + $0x2e0] sm:$0xf]
      %v715 = vld [vmem:[%s1 + $0x2e4] sm:$0xf]
      %v716 = vld [vmem:[%s1 + $0x2e8] sm:$0xf]
      %v717 = vld [vmem:[%s1 + $0x2ec] sm:$0xf]
      %v718 = vld [vmem:[%s1 + $0x2f0] sm:$0xf]
      %v719 = vld [vmem:[%s1 + $0x2f4] sm:$0xf]
      %v720 = vld [vmem:[%s1 + $0x2f8] sm:$0xf]
      %v721 = vld [vmem:[%s1 + $0x2fc] sm:$0xf]
      %v722 = vld [vmem:[%s1 + $0x300] sm:$0xf]
      %v723 = vld [vmem:[%s1 + $0x304] sm:$0xf]
      %v724 = vld [vmem:[%s1 + $0x308] sm:$0xf]
      %v725 = vld [vmem:[%s1 + $0x30c] sm:$0xf]
      %v726 = vld [vmem:[%s1 + $0x310] sm:$0xf]
      %v727 = vld [vmem:[%s1 + $0x314] sm:$0xf]
      %v728 = vld [vmem:[%s1 + $0x318] sm:$0xf]
      %v729 = vld [vmem:[%s1 + $0x31c] sm:$0xf]
      %v730 = vld [vmem:[%s1 + $0x320] sm:$0xf]
      %v731 = vld [vmem:[%s1 + $0x324] sm:$0xf]
      %v732 = vld [vmem:[%s1 + $0x328] sm:$0xf]
      %v733 = vld [vmem:[%s1 + $0x32c] sm:$0xf]
      %v734 = vld [vmem:[%s1 + $0x330] sm:$0xf]
      %v735 = vld [vmem:[%s1 + $0x334] sm:$0xf]
      %v736 = vld [vmem:[%s1 + $0x338] sm:$0xf]
      %v737 = vld [vmem:[%s1 + $0x33c] sm:$0xf]
      %v738 = vld [vmem:[%s1 + $0x340] sm:$0xf]
      %v739 = vld [vmem:[%s1 + $0x344] sm:$0xf]
      %v740 = vld [vmem:[%s1 + $0x348] sm:$0xf]
      %v741 = vld [vmem:[%s1 + $0x34c] sm:$0xf]
      %v742 = vld [vmem:[%s1 + $0x350] sm:$0xf]
      %v743 = vld [vmem:[%s1 + $0x354] sm:$0xf]
      %v744 = vld [vmem:[%s1 + $0x358] sm:$0xf]
      %v745 = vld [vmem:[%s1 + $0x35c] sm:$0xf]
      %v746 = vld [vmem:[%s1 + $0x360] sm:$0xf]
      %v747 = vld [vmem:[%s1 + $0x364] sm:$0xf]
      %v748 = vld [vmem:[%s1 + $0x368] sm:$0xf]
      %v749 = vld [vmem:[%s1 + $0x36c] sm:$0xf]
      %v750 = vld [vmem:[%s1 + $0x370] sm:$0xf]
      %v751 = vld [vmem:[%s1 + $0x374] sm:$0xf]
      %v752 = vld [vmem:[%s1 + $0x378] sm:$0xf]
      %v753 = vld [vmem:[%s1 + $0x37c] sm:$0xf]
      %v754 = vld [vmem:[%s1 + $0x380] sm:$0xf]
      %v755 = vld [vmem:[%s1 + $0x384] sm:$0xf]
      %v756 = vld [vmem:[%s1 + $0x388] sm:$0xf]
      %v757 = vld [vmem:[%s1 + $0x38c] sm:$0xf]
      %v758 = vld [vmem:[%s1 + $0x390] sm:$0xf]
      %v759 = vld [vmem:[%s1 + $0x394] sm:$0xf]
      %v760 = vld [vmem:[%s1 + $0x398] sm:$0xf]
      %v761 = vld [vmem:[%s1 + $0x39c] sm:$0xf]
      %v762 = vld [vmem:[%s1 + $0x3a0] sm:$0xf]
      %v763 = vld [vmem:[%s1 + $0x3a4] sm:$0xf]
      %v764 = vld [vmem:[%s1 + $0x3a8] sm:$0xf]
      %v765 = vld [vmem:[%s1 + $0x3ac] sm:$0xf]
      %v766 = vld [vmem:[%s1 + $0x3b0] sm:$0xf]
      %v767 = vld [vmem:[%s1 + $0x3b4] sm:$0xf]
      %v768 = vld [vmem:[%s1 + $0x3b8] sm:$0xf]
      %v769 = vld [vmem:[%s1 + $0x3bc] sm:$0xf]
      %v770 = vld [vmem:[%s1 + $0x3c0] sm:$0xf]
      %v771 = vld [vmem:[%s1 + $0x3c4] sm:$0xf]
      %v772 = vld [vmem:[%s1 + $0x3c8] sm:$0xf]
      %v773 = vld [vmem:[%s1 + $0x3cc] sm:$0xf]
      %v774 = vld [vmem:[%s1 + $0x3d0] sm:$0xf]
      %v775 = vld [vmem:[%s1 + $0x3d4] sm:$0xf]
      %v776 = vld [vmem:[%s1 + $0x3d8] sm:$0xf]
      %v777 = vld [vmem:[%s1 + $0x3dc] sm:$0xf]
      %v778 = vld [vmem:[%s1 + $0x3e0] sm:$0xf]
      %v779 = vld [vmem:[%s1 + $0x3e4] sm:$0xf]
      %v780 = vld [vmem:[%s1 + $0x3e8] sm:$0xf]
      %v781 = vld [vmem:[%s1 + $0x3ec] sm:$0xf]
      %v782 = vld [vmem:[%s1 + $0x3f0] sm:$0xf]
      %v783 = vld [vmem:[%s1 + $0x3f4] sm:$0xf]
      %v784 = vld [vmem:[%s1 + $0x3f8] sm:$0xf]
      %v785 = vld [vmem:[%s1 + $0x3fc] sm:$0xf]
      %v786 = vld [vmem:[%s1 + $0x400] sm:$0xf]
      %v787 = vld [vmem:[%s1 + $0x404] sm:$0xf]
      %v788 = vld [vmem:[%s1 + $0x408] sm:$0xf]
      %v789 = vld [vmem:[%s1 + $0x40c] sm:$0xf]
      %v790 = vld [vmem:[%s1 + $0x410] sm:$0xf]
      %v791 = vld [vmem:[%s1 + $0x414] sm:$0xf]
      %v792 = vld [vmem:[%s1 + $0x418] sm:$0xf]
      %v793 = vld [vmem:[%s1 + $0x41c] sm:$0xf]
      %v794 = vld [vmem:[%s1 + $0x420] sm:$0xf]
      %v795 = vld [vmem:[%s1 + $0x424] sm:$0xf]
      %v796 = vld [vmem:[%s1 + $0x428] sm:$0xf]
      %v797 = vld [vmem:[%s1 + $0x42c] sm:$0xf]
      %v798 = vld [vmem:[%s1 + $0x430] sm:$0xf]
      %v799 = vld [vmem:[%s1 + $0x434] sm:$0xf]
      %v800 = vld [vmem:[%s1 + $0x438] sm:$0xf]
      %v801 = vld [vmem:[%s1 + $0x43c] sm:$0xf]
      %v802 = vld [vmem:[%s1 + $0x440] sm:$0xf]
      %v803 = vld [vmem:[%s1 + $0x444] sm:$0xf]
      %v804 = vld [vmem:[%s1 + $0x448] sm:$0xf]
      %v805 = vld [vmem:[%s1 + $0x44c] sm:$0xf]
      %v806 = vld [vmem:[%s1 + $0x450] sm:$0xf]
      %v807 = vld [vmem:[%s1 + $0x454] sm:$0xf]
      %v808 = vld [vmem:[%s1 + $0x458] sm:$0xf]
      %v809 = vld [vmem:[%s1 + $0x45c] sm:$0xf]
      %v810 = vld [vmem:[%s1 + $0x460] sm:$0xf]
      %v811 = vld [vmem:[%s1 + $0x464] sm:$0xf]
      %v812 = vld [vmem:[%s1 + $0x468] sm:$0xf]
      %v813 = vld [vmem:[%s1 + $0x46c] sm:$0xf]
      %v814 = vld [vmem:[%s1 + $0x470] sm:$0xf]
      %v815 = vld [vmem:[%s1 + $0x474] sm:$0xf]
      %v816 = vld [vmem:[%s1 + $0x478] sm:$0xf]
      %v817 = vld [vmem:[%s1 + $0x47c] sm:$0xf]
      %v818 = vld [vmem:[%s1 + $0x480] sm:$0xf]
      %v819 = vld [vmem:[%s1 + $0x484] sm:$0xf]
      %v820 = vld [vmem:[%s1 + $0x488] sm:$0xf]
      %v821 = vld [vmem:[%s1 + $0x48c] sm:$0xf]
      %v822 = vld [vmem:[%s1 + $0x490] sm:$0xf]
      %v823 = vld [vmem:[%s1 + $0x494] sm:$0xf]
      %v824 = vld [vmem:[%s1 + $0x498] sm:$0xf]
      %v825 = vld [vmem:[%s1 + $0x49c] sm:$0xf]
      %v826 = vld [vmem:[%s1 + $0x4a0] sm:$0xf]
      %v827 = vld [vmem:[%s1 + $0x4a4] sm:$0xf]
      %v828 = vld [vmem:[%s1 + $0x4a8] sm:$0xf]
      %v829 = vld [vmem:[%s1 + $0x4ac] sm:$0xf]
      %v830 = vld [vmem:[%s1 + $0x4b0] sm:$0xf]
      %v831 = vld [vmem:[%s1 + $0x4b4] sm:$0xf]
      %v832 = vld [vmem:[%s1 + $0x4b8] sm:$0xf]
      %v833 = vld [vmem:[%s1 + $0x4bc] sm:$0xf]
      %v834 = vld [vmem:[%s1 + $0x4c0] sm:$0xf]
      %v835 = vld [vmem:[%s1 + $0x4c4] sm:$0xf]
      %v836 = vld [vmem:[%s1 + $0x4c8] sm:$0xf]
      %v837 = vld [vmem:[%s1 + $0x4cc] sm:$0xf]
      %v838 = vld [vmem:[%s1 + $0x4d0] sm:$0xf]
      %v839 = vld [vmem:[%s1 + $0x4d4] sm:$0xf]
      %v840 = vld [vmem:[%s1 + $0x4d8] sm:$0xf]
      %v841 = vld [vmem:[%s1 + $0x4dc] sm:$0xf]
      %v842 = vld [vmem:[%s1 + $0x4e0] sm:$0xf]
      %v843 = vld [vmem:[%s1 + $0x4e4] sm:$0xf]
      %v844 = vld [vmem:[%s1 + $0x4e8] sm:$0xf]
      %v845 = vld [vmem:[%s1 + $0x4ec] sm:$0xf]
      %v846 = vld [vmem:[%s1 + $0x4f0] sm:$0xf]
      %v847 = vld [vmem:[%s1 + $0x4f4] sm:$0xf]
      %v848 = vld [vmem:[%s1 + $0x4f8] sm:$0xf]
      %v849 = vld [vmem:[%s1 + $0x4fc] sm:$0xf]
      %v850 = vld [vmem:[%s1 + $0x500] sm:$0xf]
      %v851 = vld [vmem:[%s1 + $0x504] sm:$0xf]
      %v852 = vld [vmem:[%s1 + $0x508] sm:$0xf]
      %v853 = vld [vmem:[%s1 + $0x50c] sm:$0xf]
      %v854 = vld [vmem:[%s2] sm:$0x1]
      %v856 = vlaneseq
      %v857 = vshrl.u32 %v856, 7
      %v858 = vsub.s32 0, %v857
      %v859 = vrot.slane %v854, %v858
      %v1213 = vunpack.c.l.b16 %v178
      %v1214 = vunpack.c.h.b16 %v178
      %v1215 = vunpack.c.l.b16 %v179
      %v1216 = vunpack.c.h.b16 %v179
      %v1217 = vunpack.c.l.b16 %v180
      %v1218 = vunpack.c.h.b16 %v180
      %v1219 = vunpack.c.l.b16 %v181
      %v1220 = vunpack.c.h.b16 %v181
      %v1221 = vunpack.c.l.b16 %v182
      %v1222 = vunpack.c.h.b16 %v182
      %v1223 = vunpack.c.l.b16 %v183
      %v1224 = vunpack.c.h.b16 %v183
      %v1225 = vunpack.c.l.b16 %v184
      %v1226 = vunpack.c.h.b16 %v184
      %v1227 = vunpack.c.l.b16 %v185
      %v1228 = vunpack.c.h.b16 %v185
      %v1229 = vunpack.c.l.b16 %v186
      %v1230 = vunpack.c.h.b16 %v186
      %v1231 = vunpack.c.l.b16 %v187
      %v1232 = vunpack.c.h.b16 %v187
      %v1233 = vunpack.c.l.b16 %v188
      %v1234 = vunpack.c.l.b16 %v189
      %v1235 = vunpack.c.h.b16 %v189
      %v1236 = vunpack.c.l.b16 %v190
      %v1237 = vunpack.c.h.b16 %v190
      %v1238 = vunpack.c.l.b16 %v191
      %v1239 = vunpack.c.h.b16 %v191
      %v1240 = vunpack.c.l.b16 %v192
      %v1241 = vunpack.c.h.b16 %v192
      %v1242 = vunpack.c.l.b16 %v193
      %v1243 = vunpack.c.h.b16 %v193
      %v1244 = vunpack.c.l.b16 %v194
      %v1245 = vunpack.c.h.b16 %v194
      %v1246 = vunpack.c.l.b16 %v195
      %v1247 = vunpack.c.h.b16 %v195
      %v1248 = vunpack.c.l.b16 %v196
      %v1249 = vunpack.c.h.b16 %v196
      %v1250 = vunpack.c.l.b16 %v197
      %v1251 = vunpack.c.h.b16 %v197
      %v1252 = vunpack.c.l.b16 %v198
      %v1253 = vunpack.c.h.b16 %v198
      %v1254 = vunpack.c.l.b16 %v199
      %v1255 = vunpack.c.l.b16 %v200
      %v1256 = vunpack.c.h.b16 %v200
      %v1257 = vunpack.c.l.b16 %v201
      %v1258 = vunpack.c.h.b16 %v201
      %v1259 = vunpack.c.l.b16 %v202
      %v1260 = vunpack.c.h.b16 %v202
      %v1261 = vunpack.c.l.b16 %v203
      %v1262 = vunpack.c.h.b16 %v203
      %v1263 = vunpack.c.l.b16 %v204
      %v1264 = vunpack.c.h.b16 %v204
      %v1265 = vunpack.c.l.b16 %v205
      %v1266 = vunpack.c.h.b16 %v205
      %v1267 = vunpack.c.l.b16 %v206
      %v1268 = vunpack.c.h.b16 %v206
      %v1269 = vunpack.c.l.b16 %v207
      %v1270 = vunpack.c.h.b16 %v207
      %v1271 = vunpack.c.l.b16 %v208
      %v1272 = vunpack.c.h.b16 %v208
      %v1273 = vunpack.c.l.b16 %v209
      %v1274 = vunpack.c.h.b16 %v209
      %v1275 = vunpack.c.l.b16 %v210
      %v1276 = vunpack.c.l.b16 %v211
      %v1277 = vunpack.c.h.b16 %v211
      %v1278 = vunpack.c.l.b16 %v212
      %v1279 = vunpack.c.h.b16 %v212
      %v1280 = vunpack.c.l.b16 %v213
      %v1281 = vunpack.c.h.b16 %v213
      %v1282 = vunpack.c.l.b16 %v214
      %v1283 = vunpack.c.h.b16 %v214
      %v1284 = vunpack.c.l.b16 %v215
      %v1285 = vunpack.c.h.b16 %v215
      %v1286 = vunpack.c.l.b16 %v216
      %v1287 = vunpack.c.h.b16 %v216
      %v1288 = vunpack.c.l.b16 %v217
      %v1289 = vunpack.c.h.b16 %v217
      %v1290 = vunpack.c.l.b16 %v218
      %v1291 = vunpack.c.h.b16 %v218
      %v1292 = vunpack.c.l.b16 %v219
      %v1293 = vunpack.c.h.b16 %v219
      %v1294 = vunpack.c.l.b16 %v220
      %v1295 = vunpack.c.h.b16 %v220
      %v1296 = vunpack.c.l.b16 %v221
      %v1297 = vunpack.c.l.b16 %v222
      %v1298 = vunpack.c.h.b16 %v222
      %v1299 = vunpack.c.l.b16 %v223
      %v1300 = vunpack.c.h.b16 %v223
      %v1301 = vunpack.c.l.b16 %v224
      %v1302 = vunpack.c.h.b16 %v224
      %v1303 = vunpack.c.l.b16 %v225
      %v1304 = vunpack.c.h.b16 %v225
      %v1305 = vunpack.c.l.b16 %v226
      %v1306 = vunpack.c.h.b16 %v226
      %v1307 = vunpack.c.l.b16 %v227
      %v1308 = vunpack.c.h.b16 %v227
      %v1309 = vunpack.c.l.b16 %v228
      %v1310 = vunpack.c.h.b16 %v228
      %v1311 = vunpack.c.l.b16 %v229
      %v1312 = vunpack.c.h.b16 %v229
      %v1313 = vunpack.c.l.b16 %v230
      %v1314 = vunpack.c.h.b16 %v230
      %v1315 = vunpack.c.l.b16 %v231
      %v1316 = vunpack.c.h.b16 %v231
      %v1317 = vunpack.c.l.b16 %v232
      %v1318 = vunpack.c.l.b16 %v233
      %v1319 = vunpack.c.h.b16 %v233
      %v1320 = vunpack.c.l.b16 %v234
      %v1321 = vunpack.c.h.b16 %v234
      %v1322 = vunpack.c.l.b16 %v235
      %v1323 = vunpack.c.h.b16 %v235
      %v1324 = vunpack.c.l.b16 %v236
      %v1325 = vunpack.c.h.b16 %v236
      %v1326 = vunpack.c.l.b16 %v237
      %v1327 = vunpack.c.h.b16 %v237
      %v1328 = vunpack.c.l.b16 %v238
      %v1329 = vunpack.c.h.b16 %v238
      %v1330 = vunpack.c.l.b16 %v239
      %v1331 = vunpack.c.h.b16 %v239
      %v1332 = vunpack.c.l.b16 %v240
      %v1333 = vunpack.c.h.b16 %v240
      %v1334 = vunpack.c.l.b16 %v241
      %v1335 = vunpack.c.h.b16 %v241
      %v1336 = vunpack.c.l.b16 %v242
      %v1337 = vunpack.c.h.b16 %v242
      %v1338 = vunpack.c.l.b16 %v243
      %v1339 = vunpack.c.l.b16 %v244
      %v1340 = vunpack.c.h.b16 %v244
      %v1341 = vunpack.c.l.b16 %v245
      %v1342 = vunpack.c.h.b16 %v245
      %v1343 = vunpack.c.l.b16 %v246
      %v1344 = vunpack.c.h.b16 %v246
      %v1345 = vunpack.c.l.b16 %v247
      %v1346 = vunpack.c.h.b16 %v247
      %v1347 = vunpack.c.l.b16 %v248
      %v1348 = vunpack.c.h.b16 %v248
      %v1349 = vunpack.c.l.b16 %v249
      %v1350 = vunpack.c.h.b16 %v249
      %v1351 = vunpack.c.l.b16 %v250
      %v1352 = vunpack.c.h.b16 %v250
      %v1353 = vunpack.c.l.b16 %v251
      %v1354 = vunpack.c.h.b16 %v251
      %v1355 = vunpack.c.l.b16 %v252
      %v1356 = vunpack.c.h.b16 %v252
      %v1357 = vunpack.c.l.b16 %v253
      %v1358 = vunpack.c.h.b16 %v253
      %v1359 = vunpack.c.l.b16 %v254
      %v1360 = vunpack.c.l.b16 %v255
      %v1361 = vunpack.c.h.b16 %v255
      %v1362 = vunpack.c.l.b16 %v256
      %v1363 = vunpack.c.h.b16 %v256
      %v1364 = vunpack.c.l.b16 %v257
      %v1365 = vunpack.c.h.b16 %v257
      %v1366 = vunpack.c.l.b16 %v258
      %v1367 = vunpack.c.h.b16 %v258
      %v1368 = vunpack.c.l.b16 %v259
      %v1369 = vunpack.c.h.b16 %v259
      %v1370 = vunpack.c.l.b16 %v260
      %v1371 = vunpack.c.h.b16 %v260
      %v1372 = vunpack.c.l.b16 %v261
      %v1373 = vunpack.c.h.b16 %v261
      %v1374 = vunpack.c.l.b16 %v262
      %v1375 = vunpack.c.h.b16 %v262
      %v1376 = vunpack.c.l.b16 %v263
      %v1377 = vunpack.c.h.b16 %v263
      %v1378 = vunpack.c.l.b16 %v264
      %v1379 = vunpack.c.h.b16 %v264
      %v1380 = vunpack.c.l.b16 %v265
      %v1381 = vunpack.c.l.b16 %v266
      %v1382 = vunpack.c.h.b16 %v266
      %v1383 = vunpack.c.l.b16 %v267
      %v1384 = vunpack.c.h.b16 %v267
      %v1385 = vunpack.c.l.b16 %v268
      %v1386 = vunpack.c.h.b16 %v268
      %v1387 = vunpack.c.l.b16 %v269
      %v1388 = vunpack.c.h.b16 %v269
      %v1389 = vunpack.c.l.b16 %v270
      %v1390 = vunpack.c.h.b16 %v270
      %v1391 = vunpack.c.l.b16 %v271
      %v1392 = vunpack.c.h.b16 %v271
      %v1393 = vunpack.c.l.b16 %v272
      %v1394 = vunpack.c.h.b16 %v272
      %v1395 = vunpack.c.l.b16 %v273
      %v1396 = vunpack.c.h.b16 %v273
      %v1397 = vunpack.c.l.b16 %v274
      %v1398 = vunpack.c.h.b16 %v274
      %v1399 = vunpack.c.l.b16 %v275
      %v1400 = vunpack.c.h.b16 %v275
      %v1401 = vunpack.c.l.b16 %v276
      %v1402 = vunpack.c.l.b16 %v277
      %v1403 = vunpack.c.h.b16 %v277
      %v1404 = vunpack.c.l.b16 %v278
      %v1405 = vunpack.c.h.b16 %v278
      %v1406 = vunpack.c.l.b16 %v279
      %v1407 = vunpack.c.h.b16 %v279
      %v1408 = vunpack.c.l.b16 %v280
      %v1409 = vunpack.c.h.b16 %v280
      %v1410 = vunpack.c.l.b16 %v281
      %v1411 = vunpack.c.h.b16 %v281
      %v1412 = vunpack.c.l.b16 %v282
      %v1413 = vunpack.c.h.b16 %v282
      %v1414 = vunpack.c.l.b16 %v283
      %v1415 = vunpack.c.h.b16 %v283
      %v1416 = vunpack.c.l.b16 %v284
      %v1417 = vunpack.c.h.b16 %v284
      %v1418 = vunpack.c.l.b16 %v285
      %v1419 = vunpack.c.h.b16 %v285
      %v1420 = vunpack.c.l.b16 %v286
      %v1421 = vunpack.c.h.b16 %v286
      %v1422 = vunpack.c.l.b16 %v287
      %v1423 = vunpack.c.l.b16 %v288
      %v1424 = vunpack.c.h.b16 %v288
      %v1425 = vunpack.c.l.b16 %v289
      %v1426 = vunpack.c.h.b16 %v289
      %v1427 = vunpack.c.l.b16 %v290
      %v1428 = vunpack.c.h.b16 %v290
      %v1429 = vunpack.c.l.b16 %v291
      %v1430 = vunpack.c.h.b16 %v291
      %v1431 = vunpack.c.l.b16 %v292
      %v1432 = vunpack.c.h.b16 %v292
      %v1433 = vunpack.c.l.b16 %v293
      %v1434 = vunpack.c.h.b16 %v293
      %v1435 = vunpack.c.l.b16 %v294
      %v1436 = vunpack.c.h.b16 %v294
      %v1437 = vunpack.c.l.b16 %v295
      %v1438 = vunpack.c.h.b16 %v295
      %v1439 = vunpack.c.l.b16 %v296
      %v1440 = vunpack.c.h.b16 %v296
      %v1441 = vunpack.c.l.b16 %v297
      %v1442 = vunpack.c.h.b16 %v297
      %v1443 = vunpack.c.l.b16 %v298
      %v1444 = vunpack.c.l.b16 %v299
      %v1445 = vunpack.c.h.b16 %v299
      %v1446 = vunpack.c.l.b16 %v300
      %v1447 = vunpack.c.h.b16 %v300
      %v1448 = vunpack.c.l.b16 %v301
      %v1449 = vunpack.c.h.b16 %v301
      %v1450 = vunpack.c.l.b16 %v302
      %v1451 = vunpack.c.h.b16 %v302
      %v1452 = vunpack.c.l.b16 %v303
      %v1453 = vunpack.c.h.b16 %v303
      %v1454 = vunpack.c.l.b16 %v304
      %v1455 = vunpack.c.h.b16 %v304
      %v1456 = vunpack.c.l.b16 %v305
      %v1457 = vunpack.c.h.b16 %v305
      %v1458 = vunpack.c.l.b16 %v306
      %v1459 = vunpack.c.h.b16 %v306
      %v1460 = vunpack.c.l.b16 %v307
      %v1461 = vunpack.c.h.b16 %v307
      %v1462 = vunpack.c.l.b16 %v308
      %v1463 = vunpack.c.h.b16 %v308
      %v1464 = vunpack.c.l.b16 %v309
      %v1465 = vunpack.c.l.b16 %v310
      %v1466 = vunpack.c.h.b16 %v310
      %v1467 = vunpack.c.l.b16 %v311
      %v1468 = vunpack.c.h.b16 %v311
      %v1469 = vunpack.c.l.b16 %v312
      %v1470 = vunpack.c.h.b16 %v312
      %v1471 = vunpack.c.l.b16 %v313
      %v1472 = vunpack.c.h.b16 %v313
      %v1473 = vunpack.c.l.b16 %v314
      %v1474 = vunpack.c.h.b16 %v314
      %v1475 = vunpack.c.l.b16 %v315
      %v1476 = vunpack.c.h.b16 %v315
      %v1477 = vunpack.c.l.b16 %v316
      %v1478 = vunpack.c.h.b16 %v316
      %v1479 = vunpack.c.l.b16 %v317
      %v1480 = vunpack.c.h.b16 %v317
      %v1481 = vunpack.c.l.b16 %v318
      %v1482 = vunpack.c.h.b16 %v318
      %v1483 = vunpack.c.l.b16 %v319
      %v1484 = vunpack.c.h.b16 %v319
      %v1485 = vunpack.c.l.b16 %v320
      %v1486 = vunpack.c.l.b16 %v321
      %v1487 = vunpack.c.h.b16 %v321
      %v1488 = vunpack.c.l.b16 %v322
      %v1489 = vunpack.c.h.b16 %v322
      %v1490 = vunpack.c.l.b16 %v323
      %v1491 = vunpack.c.h.b16 %v323
      %v1492 = vunpack.c.l.b16 %v324
      %v1493 = vunpack.c.h.b16 %v324
      %v1494 = vunpack.c.l.b16 %v325
      %v1495 = vunpack.c.h.b16 %v325
      %v1496 = vunpack.c.l.b16 %v326
      %v1497 = vunpack.c.h.b16 %v326
      %v1498 = vunpack.c.l.b16 %v327
      %v1499 = vunpack.c.h.b16 %v327
      %v1500 = vunpack.c.l.b16 %v328
      %v1501 = vunpack.c.h.b16 %v328
      %v1502 = vunpack.c.l.b16 %v329
      %v1503 = vunpack.c.h.b16 %v329
      %v1504 = vunpack.c.l.b16 %v330
      %v1505 = vunpack.c.h.b16 %v330
      %v1506 = vunpack.c.l.b16 %v331
      %v1507 = vunpack.c.l.b16 %v332
      %v1508 = vunpack.c.h.b16 %v332
      %v1509 = vunpack.c.l.b16 %v333
      %v1510 = vunpack.c.h.b16 %v333
      %v1511 = vunpack.c.l.b16 %v334
      %v1512 = vunpack.c.h.b16 %v334
      %v1513 = vunpack.c.l.b16 %v335
      %v1514 = vunpack.c.h.b16 %v335
      %v1515 = vunpack.c.l.b16 %v336
      %v1516 = vunpack.c.h.b16 %v336
      %v1517 = vunpack.c.l.b16 %v337
      %v1518 = vunpack.c.h.b16 %v337
      %v1519 = vunpack.c.l.b16 %v338
      %v1520 = vunpack.c.h.b16 %v338
      %v1521 = vunpack.c.l.b16 %v339
      %v1522 = vunpack.c.h.b16 %v339
      %v1523 = vunpack.c.l.b16 %v340
      %v1524 = vunpack.c.h.b16 %v340
      %v1525 = vunpack.c.l.b16 %v341
      %v1526 = vunpack.c.h.b16 %v341
      %v1527 = vunpack.c.l.b16 %v342
      %v1528 = vunpack.c.l.b16 %v343
      %v1529 = vunpack.c.h.b16 %v343
      %v1530 = vunpack.c.l.b16 %v344
      %v1531 = vunpack.c.h.b16 %v344
      %v1532 = vunpack.c.l.b16 %v345
      %v1533 = vunpack.c.h.b16 %v345
      %v1534 = vunpack.c.l.b16 %v346
      %v1535 = vunpack.c.h.b16 %v346
      %v1536 = vunpack.c.l.b16 %v347
      %v1537 = vunpack.c.h.b16 %v347
      %v1538 = vunpack.c.l.b16 %v348
      %v1539 = vunpack.c.h.b16 %v348
      %v1540 = vunpack.c.l.b16 %v349
      %v1541 = vunpack.c.h.b16 %v349
      %v1542 = vunpack.c.l.b16 %v350
      %v1543 = vunpack.c.h.b16 %v350
      %v1544 = vunpack.c.l.b16 %v351
      %v1545 = vunpack.c.h.b16 %v351
      %v1546 = vunpack.c.l.b16 %v352
      %v1547 = vunpack.c.h.b16 %v352
      %v1548 = vunpack.c.l.b16 %v353
      %v1549 = vunpack.c.l.b16 %v354
      %v1550 = vunpack.c.h.b16 %v354
      %v1551 = vunpack.c.l.b16 %v355
      %v1552 = vunpack.c.h.b16 %v355
      %v1553 = vunpack.c.l.b16 %v356
      %v1554 = vunpack.c.h.b16 %v356
      %v1555 = vunpack.c.l.b16 %v357
      %v1556 = vunpack.c.h.b16 %v357
      %v1557 = vunpack.c.l.b16 %v358
      %v1558 = vunpack.c.h.b16 %v358
      %v1559 = vunpack.c.l.b16 %v359
      %v1560 = vunpack.c.h.b16 %v359
      %v1561 = vunpack.c.l.b16 %v360
      %v1562 = vunpack.c.h.b16 %v360
      %v1563 = vunpack.c.l.b16 %v361
      %v1564 = vunpack.c.h.b16 %v361
      %v1565 = vunpack.c.l.b16 %v362
      %v1566 = vunpack.c.h.b16 %v362
      %v1567 = vunpack.c.l.b16 %v363
      %v1568 = vunpack.c.h.b16 %v363
      %v1569 = vunpack.c.l.b16 %v364
      %v1570 = vunpack.c.l.b16 %v365
      %v1571 = vunpack.c.h.b16 %v365
      %v1572 = vunpack.c.l.b16 %v366
      %v1573 = vunpack.c.h.b16 %v366
      %v1574 = vunpack.c.l.b16 %v367
      %v1575 = vunpack.c.h.b16 %v367
      %v1576 = vunpack.c.l.b16 %v368
      %v1577 = vunpack.c.h.b16 %v368
      %v1578 = vunpack.c.l.b16 %v369
      %v1579 = vunpack.c.h.b16 %v369
      %v1580 = vunpack.c.l.b16 %v370
      %v1581 = vunpack.c.h.b16 %v370
      %v1582 = vunpack.c.l.b16 %v371
      %v1583 = vunpack.c.h.b16 %v371
      %v1584 = vunpack.c.l.b16 %v372
      %v1585 = vunpack.c.h.b16 %v372
      %v1586 = vunpack.c.l.b16 %v373
      %v1587 = vunpack.c.h.b16 %v373
      %v1588 = vunpack.c.l.b16 %v374
      %v1589 = vunpack.c.h.b16 %v374
      %v1590 = vunpack.c.l.b16 %v375
      %v1591 = vunpack.c.l.b16 %v376
      %v1592 = vunpack.c.h.b16 %v376
      %v1593 = vunpack.c.l.b16 %v377
      %v1594 = vunpack.c.h.b16 %v377
      %v1595 = vunpack.c.l.b16 %v378
      %v1596 = vunpack.c.h.b16 %v378
      %v1597 = vunpack.c.l.b16 %v379
      %v1598 = vunpack.c.h.b16 %v379
      %v1599 = vunpack.c.l.b16 %v380
      %v1600 = vunpack.c.h.b16 %v380
      %v1601 = vunpack.c.l.b16 %v381
      %v1602 = vunpack.c.h.b16 %v381
      %v1603 = vunpack.c.l.b16 %v382
      %v1604 = vunpack.c.h.b16 %v382
      %v1605 = vunpack.c.l.b16 %v383
      %v1606 = vunpack.c.h.b16 %v383
      %v1607 = vunpack.c.l.b16 %v384
      %v1608 = vunpack.c.h.b16 %v384
      %v1609 = vunpack.c.l.b16 %v385
      %v1610 = vunpack.c.h.b16 %v385
      %v1611 = vunpack.c.l.b16 %v386
      %v1612 = vunpack.c.l.b16 %v387
      %v1613 = vunpack.c.h.b16 %v387
      %v1614 = vunpack.c.l.b16 %v388
      %v1615 = vunpack.c.h.b16 %v388
      %v1616 = vunpack.c.l.b16 %v389
      %v1617 = vunpack.c.h.b16 %v389
      %v1618 = vunpack.c.l.b16 %v390
      %v1619 = vunpack.c.h.b16 %v390
      %v1620 = vunpack.c.l.b16 %v391
      %v1621 = vunpack.c.h.b16 %v391
      %v1622 = vunpack.c.l.b16 %v392
      %v1623 = vunpack.c.h.b16 %v392
      %v1624 = vunpack.c.l.b16 %v393
      %v1625 = vunpack.c.h.b16 %v393
      %v1626 = vunpack.c.l.b16 %v394
      %v1627 = vunpack.c.h.b16 %v394
      %v1628 = vunpack.c.l.b16 %v395
      %v1629 = vunpack.c.h.b16 %v395
      %v1630 = vunpack.c.l.b16 %v396
      %v1631 = vunpack.c.h.b16 %v396
      %v1632 = vunpack.c.l.b16 %v397
      %v1633 = vunpack.c.l.b16 %v398
      %v1634 = vunpack.c.h.b16 %v398
      %v1635 = vunpack.c.l.b16 %v399
      %v1636 = vunpack.c.h.b16 %v399
      %v1637 = vunpack.c.l.b16 %v400
      %v1638 = vunpack.c.h.b16 %v400
      %v1639 = vunpack.c.l.b16 %v401
      %v1640 = vunpack.c.h.b16 %v401
      %v1641 = vunpack.c.l.b16 %v402
      %v1642 = vunpack.c.h.b16 %v402
      %v1643 = vunpack.c.l.b16 %v403
      %v1644 = vunpack.c.h.b16 %v403
      %v1645 = vunpack.c.l.b16 %v404
      %v1646 = vunpack.c.h.b16 %v404
      %v1647 = vunpack.c.l.b16 %v405
      %v1648 = vunpack.c.h.b16 %v405
      %v1649 = vunpack.c.l.b16 %v406
      %v1650 = vunpack.c.h.b16 %v406
      %v1651 = vunpack.c.l.b16 %v407
      %v1652 = vunpack.c.h.b16 %v407
      %v1653 = vunpack.c.l.b16 %v408
      %v1654 = vunpack.c.l.b16 %v409
      %v1655 = vunpack.c.h.b16 %v409
      %v1656 = vunpack.c.l.b16 %v410
      %v1657 = vunpack.c.h.b16 %v410
      %v1658 = vunpack.c.l.b16 %v411
      %v1659 = vunpack.c.h.b16 %v411
      %v1660 = vunpack.c.l.b16 %v412
      %v1661 = vunpack.c.h.b16 %v412
      %v1662 = vunpack.c.l.b16 %v413
      %v1663 = vunpack.c.h.b16 %v413
      %v1664 = vunpack.c.l.b16 %v414
      %v1665 = vunpack.c.h.b16 %v414
      %v1666 = vunpack.c.l.b16 %v415
      %v1667 = vunpack.c.h.b16 %v415
      %v1668 = vunpack.c.l.b16 %v416
      %v1669 = vunpack.c.h.b16 %v416
      %v1670 = vunpack.c.l.b16 %v417
      %v1671 = vunpack.c.h.b16 %v417
      %v1672 = vunpack.c.l.b16 %v418
      %v1673 = vunpack.c.h.b16 %v418
      %v1674 = vunpack.c.l.b16 %v419
      %v1675 = vunpack.c.l.b16 %v420
      %v1676 = vunpack.c.h.b16 %v420
      %v1677 = vunpack.c.l.b16 %v421
      %v1678 = vunpack.c.h.b16 %v421
      %v1679 = vunpack.c.l.b16 %v422
      %v1680 = vunpack.c.h.b16 %v422
      %v1681 = vunpack.c.l.b16 %v423
      %v1682 = vunpack.c.h.b16 %v423
      %v1683 = vunpack.c.l.b16 %v424
      %v1684 = vunpack.c.h.b16 %v424
      %v1685 = vunpack.c.l.b16 %v425
      %v1686 = vunpack.c.h.b16 %v425
      %v1687 = vunpack.c.l.b16 %v426
      %v1688 = vunpack.c.h.b16 %v426
      %v1689 = vunpack.c.l.b16 %v427
      %v1690 = vunpack.c.h.b16 %v427
      %v1691 = vunpack.c.l.b16 %v428
      %v1692 = vunpack.c.h.b16 %v428
      %v1693 = vunpack.c.l.b16 %v429
      %v1694 = vunpack.c.h.b16 %v429
      %v1695 = vunpack.c.l.b16 %v430
      %v1696 = vunpack.c.l.b16 %v431
      %v1697 = vunpack.c.h.b16 %v431
      %v1698 = vunpack.c.l.b16 %v432
      %v1699 = vunpack.c.h.b16 %v432
      %v1700 = vunpack.c.l.b16 %v433
      %v1701 = vunpack.c.h.b16 %v433
      %v1702 = vunpack.c.l.b16 %v434
      %v1703 = vunpack.c.h.b16 %v434
      %v1704 = vunpack.c.l.b16 %v435
      %v1705 = vunpack.c.h.b16 %v435
      %v1706 = vunpack.c.l.b16 %v436
      %v1707 = vunpack.c.h.b16 %v436
      %v1708 = vunpack.c.l.b16 %v437
      %v1709 = vunpack.c.h.b16 %v437
      %v1710 = vunpack.c.l.b16 %v438
      %v1711 = vunpack.c.h.b16 %v438
      %v1712 = vunpack.c.l.b16 %v439
      %v1713 = vunpack.c.h.b16 %v439
      %v1714 = vunpack.c.l.b16 %v440
      %v1715 = vunpack.c.h.b16 %v440
      %v1716 = vunpack.c.l.b16 %v441
      %v1717 = vunpack.c.l.b16 %v442
      %v1718 = vunpack.c.h.b16 %v442
      %v1719 = vunpack.c.l.b16 %v443
      %v1720 = vunpack.c.h.b16 %v443
      %v1721 = vunpack.c.l.b16 %v444
      %v1722 = vunpack.c.h.b16 %v444
      %v1723 = vunpack.c.l.b16 %v445
      %v1724 = vunpack.c.h.b16 %v445
      %v1725 = vunpack.c.l.b16 %v446
      %v1726 = vunpack.c.h.b16 %v446
      %v1727 = vunpack.c.l.b16 %v447
      %v1728 = vunpack.c.h.b16 %v447
      %v1729 = vunpack.c.l.b16 %v448
      %v1730 = vunpack.c.h.b16 %v448
      %v1731 = vunpack.c.l.b16 %v449
      %v1732 = vunpack.c.h.b16 %v449
      %v1733 = vunpack.c.l.b16 %v450
      %v1734 = vunpack.c.h.b16 %v450
      %v1735 = vunpack.c.l.b16 %v451
      %v1736 = vunpack.c.h.b16 %v451
      %v1737 = vunpack.c.l.b16 %v452
      %v1738 = vunpack.c.l.b16 %v453
      %v1739 = vunpack.c.h.b16 %v453
      %v1740 = vunpack.c.l.b16 %v454
      %v1741 = vunpack.c.h.b16 %v454
      %v1742 = vunpack.c.l.b16 %v455
      %v1743 = vunpack.c.h.b16 %v455
      %v1744 = vunpack.c.l.b16 %v456
      %v1745 = vunpack.c.h.b16 %v456
      %v1746 = vunpack.c.l.b16 %v457
      %v1747 = vunpack.c.h.b16 %v457
      %v1748 = vunpack.c.l.b16 %v458
      %v1749 = vunpack.c.h.b16 %v458
      %v1750 = vunpack.c.l.b16 %v459
      %v1751 = vunpack.c.h.b16 %v459
      %v1752 = vunpack.c.l.b16 %v460
      %v1753 = vunpack.c.h.b16 %v460
      %v1754 = vunpack.c.l.b16 %v461
      %v1755 = vunpack.c.h.b16 %v461
      %v1756 = vunpack.c.l.b16 %v462
      %v1757 = vunpack.c.h.b16 %v462
      %v1758 = vunpack.c.l.b16 %v463
      %v1759 = vunpack.c.l.b16 %v464
      %v1760 = vunpack.c.h.b16 %v464
      %v1761 = vunpack.c.l.b16 %v465
      %v1762 = vunpack.c.h.b16 %v465
      %v1763 = vunpack.c.l.b16 %v466
      %v1764 = vunpack.c.h.b16 %v466
      %v1765 = vunpack.c.l.b16 %v467
      %v1766 = vunpack.c.h.b16 %v467
      %v1767 = vunpack.c.l.b16 %v468
      %v1768 = vunpack.c.h.b16 %v468
      %v1769 = vunpack.c.l.b16 %v469
      %v1770 = vunpack.c.h.b16 %v469
      %v1771 = vunpack.c.l.b16 %v470
      %v1772 = vunpack.c.h.b16 %v470
      %v1773 = vunpack.c.l.b16 %v471
      %v1774 = vunpack.c.h.b16 %v471
      %v1775 = vunpack.c.l.b16 %v472
      %v1776 = vunpack.c.h.b16 %v472
      %v1777 = vunpack.c.l.b16 %v473
      %v1778 = vunpack.c.h.b16 %v473
      %v1779 = vunpack.c.l.b16 %v474
      %v1780 = vunpack.c.l.b16 %v475
      %v1781 = vunpack.c.h.b16 %v475
      %v1782 = vunpack.c.l.b16 %v476
      %v1783 = vunpack.c.h.b16 %v476
      %v1784 = vunpack.c.l.b16 %v477
      %v1785 = vunpack.c.h.b16 %v477
      %v1786 = vunpack.c.l.b16 %v478
      %v1787 = vunpack.c.h.b16 %v478
      %v1788 = vunpack.c.l.b16 %v479
      %v1789 = vunpack.c.h.b16 %v479
      %v1790 = vunpack.c.l.b16 %v480
      %v1791 = vunpack.c.h.b16 %v480
      %v1792 = vunpack.c.l.b16 %v481
      %v1793 = vunpack.c.h.b16 %v481
      %v1794 = vunpack.c.l.b16 %v482
      %v1795 = vunpack.c.h.b16 %v482
      %v1796 = vunpack.c.l.b16 %v483
      %v1797 = vunpack.c.h.b16 %v483
      %v1798 = vunpack.c.l.b16 %v484
      %v1799 = vunpack.c.h.b16 %v484
      %v1800 = vunpack.c.l.b16 %v485
      %v1801 = vunpack.c.l.b16 %v486
      %v1802 = vunpack.c.h.b16 %v486
      %v1803 = vunpack.c.l.b16 %v487
      %v1804 = vunpack.c.h.b16 %v487
      %v1805 = vunpack.c.l.b16 %v488
      %v1806 = vunpack.c.h.b16 %v488
      %v1807 = vunpack.c.l.b16 %v489
      %v1808 = vunpack.c.h.b16 %v489
      %v1809 = vunpack.c.l.b16 %v490
      %v1810 = vunpack.c.h.b16 %v490
      %v1811 = vunpack.c.l.b16 %v491
      %v1812 = vunpack.c.h.b16 %v491
      %v1813 = vunpack.c.l.b16 %v492
      %v1814 = vunpack.c.h.b16 %v492
      %v1815 = vunpack.c.l.b16 %v493
      %v1816 = vunpack.c.h.b16 %v493
      %v1817 = vunpack.c.l.b16 %v494
      %v1818 = vunpack.c.h.b16 %v494
      %v1819 = vunpack.c.l.b16 %v495
      %v1820 = vunpack.c.h.b16 %v495
      %v1821 = vunpack.c.l.b16 %v496
      %v1822 = vunpack.c.l.b16 %v497
      %v1823 = vunpack.c.h.b16 %v497
      %v1824 = vunpack.c.l.b16 %v498
      %v1825 = vunpack.c.h.b16 %v498
      %v1826 = vunpack.c.l.b16 %v499
      %v1827 = vunpack.c.h.b16 %v499
      %v1828 = vunpack.c.l.b16 %v500
      %v1829 = vunpack.c.h.b16 %v500
      %v1830 = vunpack.c.l.b16 %v501
      %v1831 = vunpack.c.h.b16 %v501
      %v1832 = vunpack.c.l.b16 %v502
      %v1833 = vunpack.c.h.b16 %v502
      %v1834 = vunpack.c.l.b16 %v503
      %v1835 = vunpack.c.h.b16 %v503
      %v1836 = vunpack.c.l.b16 %v504
      %v1837 = vunpack.c.h.b16 %v504
      %v1838 = vunpack.c.l.b16 %v505
      %v1839 = vunpack.c.h.b16 %v505
      %v1840 = vunpack.c.l.b16 %v506
      %v1841 = vunpack.c.h.b16 %v506
      %v1842 = vunpack.c.l.b16 %v507
      %v1843 = vunpack.c.l.b16 %v508
      %v1844 = vunpack.c.h.b16 %v508
      %v1845 = vunpack.c.l.b16 %v509
      %v1846 = vunpack.c.h.b16 %v509
      %v1847 = vunpack.c.l.b16 %v510
      %v1848 = vunpack.c.h.b16 %v510
      %v1849 = vunpack.c.l.b16 %v511
      %v1850 = vunpack.c.h.b16 %v511
      %v1851 = vunpack.c.l.b16 %v512
      %v1852 = vunpack.c.h.b16 %v512
      %v1853 = vunpack.c.l.b16 %v513
      %v1854 = vunpack.c.h.b16 %v513
      %v1855 = vunpack.c.l.b16 %v514
      %v1856 = vunpack.c.h.b16 %v514
      %v1857 = vunpack.c.l.b16 %v515
      %v1858 = vunpack.c.h.b16 %v515
      %v1859 = vunpack.c.l.b16 %v516
      %v1860 = vunpack.c.h.b16 %v516
      %v1861 = vunpack.c.l.b16 %v517
      %v1862 = vunpack.c.h.b16 %v517
      %v1863 = vunpack.c.l.b16 %v518
      %v1864 = vunpack.c.l.b16 %v519
      %v1865 = vunpack.c.h.b16 %v519
      %v1866 = vunpack.c.l.b16 %v520
      %v1867 = vunpack.c.h.b16 %v520
      %v1868 = vunpack.c.l.b16 %v521
      %v1869 = vunpack.c.h.b16 %v521
      %v1870 = vunpack.c.l.b16 %v522
      %v1871 = vunpack.c.h.b16 %v522
      %v1872 = vunpack.c.l.b16 %v523
      %v1873 = vunpack.c.h.b16 %v523
      %v1874 = vunpack.c.l.b16 %v524
      %v1875 = vunpack.c.h.b16 %v524
      %v1876 = vunpack.c.l.b16 %v525
      %v1877 = vunpack.c.h.b16 %v525
      %v1878 = vunpack.c.l.b16 %v526
      %v1879 = vunpack.c.h.b16 %v526
      %v1880 = vunpack.c.l.b16 %v527
      %v1881 = vunpack.c.h.b16 %v527
      %v1882 = vunpack.c.l.b16 %v528
      %v1883 = vunpack.c.h.b16 %v528
      %v1884 = vunpack.c.l.b16 %v529
      %v1885 = vpack.c.b16 %v1234, %v1213
      %v1886 = vpack.c.b16 %v1235, %v1214
      %v1887 = vpack.c.b16 %v1236, %v1215
      %v1888 = vpack.c.b16 %v1237, %v1216
      %v1889 = vpack.c.b16 %v1238, %v1217
      %v1890 = vpack.c.b16 %v1239, %v1218
      %v1891 = vpack.c.b16 %v1240, %v1219
      %v1892 = vpack.c.b16 %v1241, %v1220
      %v1893 = vpack.c.b16 %v1242, %v1221
      %v1894 = vpack.c.b16 %v1243, %v1222
      %v1895 = vpack.c.b16 %v1244, %v1223
      %v1896 = vpack.c.b16 %v1245, %v1224
      %v1897 = vpack.c.b16 %v1246, %v1225
      %v1898 = vpack.c.b16 %v1247, %v1226
      %v1899 = vpack.c.b16 %v1248, %v1227
      %v1900 = vpack.c.b16 %v1249, %v1228
      %v1901 = vpack.c.b16 %v1250, %v1229
      %v1902 = vpack.c.b16 %v1251, %v1230
      %v1903 = vpack.c.b16 %v1252, %v1231
      %v1904 = vpack.c.b16 %v1253, %v1232
      %v1905 = vpack.c.b16 %v1254, %v1233
      %v1906 = vpack.c.b16 %v1276, %v1255
      %v1907 = vpack.c.b16 %v1277, %v1256
      %v1908 = vpack.c.b16 %v1278, %v1257
      %v1909 = vpack.c.b16 %v1279, %v1258
      %v1910 = vpack.c.b16 %v1280, %v1259
      %v1911 = vpack.c.b16 %v1281, %v1260
      %v1912 = vpack.c.b16 %v1282, %v1261
      %v1913 = vpack.c.b16 %v1283, %v1262
      %v1914 = vpack.c.b16 %v1284, %v1263
      %v1915 = vpack.c.b16 %v1285, %v1264
      %v1916 = vpack.c.b16 %v1286, %v1265
      %v1917 = vpack.c.b16 %v1287, %v1266
      %v1918 = vpack.c.b16 %v1288, %v1267
      %v1919 = vpack.c.b16 %v1289, %v1268
      %v1920 = vpack.c.b16 %v1290, %v1269
      %v1921 = vpack.c.b16 %v1291, %v1270
      %v1922 = vpack.c.b16 %v1292, %v1271
      %v1923 = vpack.c.b16 %v1293, %v1272
      %v1924 = vpack.c.b16 %v1294, %v1273
      %v1925 = vpack.c.b16 %v1295, %v1274
      %v1926 = vpack.c.b16 %v1296, %v1275
      %v1927 = vpack.c.b16 %v1318, %v1297
      %v1928 = vpack.c.b16 %v1319, %v1298
      %v1929 = vpack.c.b16 %v1320, %v1299
      %v1930 = vpack.c.b16 %v1321, %v1300
      %v1931 = vpack.c.b16 %v1322, %v1301
      %v1932 = vpack.c.b16 %v1323, %v1302
      %v1933 = vpack.c.b16 %v1324, %v1303
      %v1934 = vpack.c.b16 %v1325, %v1304
      %v1935 = vpack.c.b16 %v1326, %v1305
      %v1936 = vpack.c.b16 %v1327, %v1306
      %v1937 = vpack.c.b16 %v1328, %v1307
      %v1938 = vpack.c.b16 %v1329, %v1308
      %v1939 = vpack.c.b16 %v1330, %v1309
      %v1940 = vpack.c.b16 %v1331, %v1310
      %v1941 = vpack.c.b16 %v1332, %v1311
      %v1942 = vpack.c.b16 %v1333, %v1312
      %v1943 = vpack.c.b16 %v1334, %v1313
      %v1944 = vpack.c.b16 %v1335, %v1314
      %v1945 = vpack.c.b16 %v1336, %v1315
      %v1946 = vpack.c.b16 %v1337, %v1316
      %v1947 = vpack.c.b16 %v1338, %v1317
      %v1948 = vpack.c.b16 %v1360, %v1339
      %v1949 = vpack.c.b16 %v1361, %v1340
      %v1950 = vpack.c.b16 %v1362, %v1341
      %v1951 = vpack.c.b16 %v1363, %v1342
      %v1952 = vpack.c.b16 %v1364, %v1343
      %v1953 = vpack.c.b16 %v1365, %v1344
      %v1954 = vpack.c.b16 %v1366, %v1345
      %v1955 = vpack.c.b16 %v1367, %v1346
      %v1956 = vpack.c.b16 %v1368, %v1347
      %v1957 = vpack.c.b16 %v1369, %v1348
      %v1958 = vpack.c.b16 %v1370, %v1349
      %v1959 = vpack.c.b16 %v1371, %v1350
      %v1960 = vpack.c.b16 %v1372, %v1351
      %v1961 = vpack.c.b16 %v1373, %v1352
      %v1962 = vpack.c.b16 %v1374, %v1353
      %v1963 = vpack.c.b16 %v1375, %v1354
      %v1964 = vpack.c.b16 %v1376, %v1355
      %v1965 = vpack.c.b16 %v1377, %v1356
      %v1966 = vpack.c.b16 %v1378, %v1357
      %v1967 = vpack.c.b16 %v1379, %v1358
      %v1968 = vpack.c.b16 %v1380, %v1359
      %v1969 = vpack.c.b16 %v1402, %v1381
      %v1970 = vpack.c.b16 %v1403, %v1382
      %v1971 = vpack.c.b16 %v1404, %v1383
      %v1972 = vpack.c.b16 %v1405, %v1384
      %v1973 = vpack.c.b16 %v1406, %v1385
      %v1974 = vpack.c.b16 %v1407, %v1386
      %v1975 = vpack.c.b16 %v1408, %v1387
      %v1976 = vpack.c.b16 %v1409, %v1388
      %v1977 = vpack.c.b16 %v1410, %v1389
      %v1978 = vpack.c.b16 %v1411, %v1390
      %v1979 = vpack.c.b16 %v1412, %v1391
      %v1980 = vpack.c.b16 %v1413, %v1392
      %v1981 = vpack.c.b16 %v1414, %v1393
      %v1982 = vpack.c.b16 %v1415, %v1394
      %v1983 = vpack.c.b16 %v1416, %v1395
      %v1984 = vpack.c.b16 %v1417, %v1396
      %v1985 = vpack.c.b16 %v1418, %v1397
      %v1986 = vpack.c.b16 %v1419, %v1398
      %v1987 = vpack.c.b16 %v1420, %v1399
      %v1988 = vpack.c.b16 %v1421, %v1400
      %v1989 = vpack.c.b16 %v1422, %v1401
      %v1990 = vpack.c.b16 %v1444, %v1423
      %v1991 = vpack.c.b16 %v1445, %v1424
      %v1992 = vpack.c.b16 %v1446, %v1425
      %v1993 = vpack.c.b16 %v1447, %v1426
      %v1994 = vpack.c.b16 %v1448, %v1427
      %v1995 = vpack.c.b16 %v1449, %v1428
      %v1996 = vpack.c.b16 %v1450, %v1429
      %v1997 = vpack.c.b16 %v1451, %v1430
      %v1998 = vpack.c.b16 %v1452, %v1431
      %v1999 = vpack.c.b16 %v1453, %v1432
      %v2000 = vpack.c.b16 %v1454, %v1433
      %v2001 = vpack.c.b16 %v1455, %v1434
      %v2002 = vpack.c.b16 %v1456, %v1435
      %v2003 = vpack.c.b16 %v1457, %v1436
      %v2004 = vpack.c.b16 %v1458, %v1437
      %v2005 = vpack.c.b16 %v1459, %v1438
      %v2006 = vpack.c.b16 %v1460, %v1439
      %v2007 = vpack.c.b16 %v1461, %v1440
      %v2008 = vpack.c.b16 %v1462, %v1441
      %v2009 = vpack.c.b16 %v1463, %v1442
      %v2010 = vpack.c.b16 %v1464, %v1443
      %v2011 = vpack.c.b16 %v1486, %v1465
      %v2012 = vpack.c.b16 %v1487, %v1466
      %v2013 = vpack.c.b16 %v1488, %v1467
      %v2014 = vpack.c.b16 %v1489, %v1468
      %v2015 = vpack.c.b16 %v1490, %v1469
      %v2016 = vpack.c.b16 %v1491, %v1470
      %v2017 = vpack.c.b16 %v1492, %v1471
      %v2018 = vpack.c.b16 %v1493, %v1472
      %v2019 = vpack.c.b16 %v1494, %v1473
      %v2020 = vpack.c.b16 %v1495, %v1474
      %v2021 = vpack.c.b16 %v1496, %v1475
      %v2022 = vpack.c.b16 %v1497, %v1476
      %v2023 = vpack.c.b16 %v1498, %v1477
      %v2024 = vpack.c.b16 %v1499, %v1478
      %v2025 = vpack.c.b16 %v1500, %v1479
      %v2026 = vpack.c.b16 %v1501, %v1480
      %v2027 = vpack.c.b16 %v1502, %v1481
      %v2028 = vpack.c.b16 %v1503, %v1482
      %v2029 = vpack.c.b16 %v1504, %v1483
      %v2030 = vpack.c.b16 %v1505, %v1484
      %v2031 = vpack.c.b16 %v1506, %v1485
      %v2032 = vpack.c.b16 %v1528, %v1507
      %v2033 = vpack.c.b16 %v1529, %v1508
      %v2034 = vpack.c.b16 %v1530, %v1509
      %v2035 = vpack.c.b16 %v1531, %v1510
      %v2036 = vpack.c.b16 %v1532, %v1511
      %v2037 = vpack.c.b16 %v1533, %v1512
      %v2038 = vpack.c.b16 %v1534, %v1513
      %v2039 = vpack.c.b16 %v1535, %v1514
      %v2040 = vpack.c.b16 %v1536, %v1515
      %v2041 = vpack.c.b16 %v1537, %v1516
      %v2042 = vpack.c.b16 %v1538, %v1517
      %v2043 = vpack.c.b16 %v1539, %v1518
      %v2044 = vpack.c.b16 %v1540, %v1519
      %v2045 = vpack.c.b16 %v1541, %v1520
      %v2046 = vpack.c.b16 %v1542, %v1521
      %v2047 = vpack.c.b16 %v1543, %v1522
      %v2048 = vpack.c.b16 %v1544, %v1523
      %v2049 = vpack.c.b16 %v1545, %v1524
      %v2050 = vpack.c.b16 %v1546, %v1525
      %v2051 = vpack.c.b16 %v1547, %v1526
      %v2052 = vpack.c.b16 %v1548, %v1527
      %v2053 = vpack.c.b16 %v1570, %v1549
      %v2054 = vpack.c.b16 %v1571, %v1550
      %v2055 = vpack.c.b16 %v1572, %v1551
      %v2056 = vpack.c.b16 %v1573, %v1552
      %v2057 = vpack.c.b16 %v1574, %v1553
      %v2058 = vpack.c.b16 %v1575, %v1554
      %v2059 = vpack.c.b16 %v1576, %v1555
      %v2060 = vpack.c.b16 %v1577, %v1556
      %v2061 = vpack.c.b16 %v1578, %v1557
      %v2062 = vpack.c.b16 %v1579, %v1558
      %v2063 = vpack.c.b16 %v1580, %v1559
      %v2064 = vpack.c.b16 %v1581, %v1560
      %v2065 = vpack.c.b16 %v1582, %v1561
      %v2066 = vpack.c.b16 %v1583, %v1562
      %v2067 = vpack.c.b16 %v1584, %v1563
      %v2068 = vpack.c.b16 %v1585, %v1564
      %v2069 = vpack.c.b16 %v1586, %v1565
      %v2070 = vpack.c.b16 %v1587, %v1566
      %v2071 = vpack.c.b16 %v1588, %v1567
      %v2072 = vpack.c.b16 %v1589, %v1568
      %v2073 = vpack.c.b16 %v1590, %v1569
      %v2074 = vpack.c.b16 %v1612, %v1591
      %v2075 = vpack.c.b16 %v1613, %v1592
      %v2076 = vpack.c.b16 %v1614, %v1593
      %v2077 = vpack.c.b16 %v1615, %v1594
      %v2078 = vpack.c.b16 %v1616, %v1595
      %v2079 = vpack.c.b16 %v1617, %v1596
      %v2080 = vpack.c.b16 %v1618, %v1597
      %v2081 = vpack.c.b16 %v1619, %v1598
      %v2082 = vpack.c.b16 %v1620, %v1599
      %v2083 = vpack.c.b16 %v1621, %v1600
      %v2084 = vpack.c.b16 %v1622, %v1601
      %v2085 = vpack.c.b16 %v1623, %v1602
      %v2086 = vpack.c.b16 %v1624, %v1603
      %v2087 = vpack.c.b16 %v1625, %v1604
      %v2088 = vpack.c.b16 %v1626, %v1605
      %v2089 = vpack.c.b16 %v1627, %v1606
      %v2090 = vpack.c.b16 %v1628, %v1607
      %v2091 = vpack.c.b16 %v1629, %v1608
      %v2092 = vpack.c.b16 %v1630, %v1609
      %v2093 = vpack.c.b16 %v1631, %v1610
      %v2094 = vpack.c.b16 %v1632, %v1611
      %v2095 = vpack.c.b16 %v1654, %v1633
      %v2096 = vpack.c.b16 %v1655, %v1634
      %v2097 = vpack.c.b16 %v1656, %v1635
      %v2098 = vpack.c.b16 %v1657, %v1636
      %v2099 = vpack.c.b16 %v1658, %v1637
      %v2100 = vpack.c.b16 %v1659, %v1638
      %v2101 = vpack.c.b16 %v1660, %v1639
      %v2102 = vpack.c.b16 %v1661, %v1640
      %v2103 = vpack.c.b16 %v1662, %v1641
      %v2104 = vpack.c.b16 %v1663, %v1642
      %v2105 = vpack.c.b16 %v1664, %v1643
      %v2106 = vpack.c.b16 %v1665, %v1644
      %v2107 = vpack.c.b16 %v1666, %v1645
      %v2108 = vpack.c.b16 %v1667, %v1646
      %v2109 = vpack.c.b16 %v1668, %v1647
      %v2110 = vpack.c.b16 %v1669, %v1648
      %v2111 = vpack.c.b16 %v1670, %v1649
      %v2112 = vpack.c.b16 %v1671, %v1650
      %v2113 = vpack.c.b16 %v1672, %v1651
      %v2114 = vpack.c.b16 %v1673, %v1652
      %v2115 = vpack.c.b16 %v1674, %v1653
      %v2116 = vpack.c.b16 %v1696, %v1675
      %v2117 = vpack.c.b16 %v1697, %v1676
      %v2118 = vpack.c.b16 %v1698, %v1677
      %v2119 = vpack.c.b16 %v1699, %v1678
      %v2120 = vpack.c.b16 %v1700, %v1679
      %v2121 = vpack.c.b16 %v1701, %v1680
      %v2122 = vpack.c.b16 %v1702, %v1681
      %v2123 = vpack.c.b16 %v1703, %v1682
      %v2124 = vpack.c.b16 %v1704, %v1683
      %v2125 = vpack.c.b16 %v1705, %v1684
      %v2126 = vpack.c.b16 %v1706, %v1685
      %v2127 = vpack.c.b16 %v1707, %v1686
      %v2128 = vpack.c.b16 %v1708, %v1687
      %v2129 = vpack.c.b16 %v1709, %v1688
      %v2130 = vpack.c.b16 %v1710, %v1689
      %v2131 = vpack.c.b16 %v1711, %v1690
      %v2132 = vpack.c.b16 %v1712, %v1691
      %v2133 = vpack.c.b16 %v1713, %v1692
      %v2134 = vpack.c.b16 %v1714, %v1693
      %v2135 = vpack.c.b16 %v1715, %v1694
      %v2136 = vpack.c.b16 %v1716, %v1695
      %v2137 = vpack.c.b16 %v1738, %v1717
      %v2138 = vpack.c.b16 %v1739, %v1718
      %v2139 = vpack.c.b16 %v1740, %v1719
      %v2140 = vpack.c.b16 %v1741, %v1720
      %v2141 = vpack.c.b16 %v1742, %v1721
      %v2142 = vpack.c.b16 %v1743, %v1722
      %v2143 = vpack.c.b16 %v1744, %v1723
      %v2144 = vpack.c.b16 %v1745, %v1724
      %v2145 = vpack.c.b16 %v1746, %v1725
      %v2146 = vpack.c.b16 %v1747, %v1726
      %v2147 = vpack.c.b16 %v1748, %v1727
      %v2148 = vpack.c.b16 %v1749, %v1728
      %v2149 = vpack.c.b16 %v1750, %v1729
      %v2150 = vpack.c.b16 %v1751, %v1730
      %v2151 = vpack.c.b16 %v1752, %v1731
      %v2152 = vpack.c.b16 %v1753, %v1732
      %v2153 = vpack.c.b16 %v1754, %v1733
      %v2154 = vpack.c.b16 %v1755, %v1734
      %v2155 = vpack.c.b16 %v1756, %v1735
      %v2156 = vpack.c.b16 %v1757, %v1736
      %v2157 = vpack.c.b16 %v1758, %v1737
      %v2158 = vpack.c.b16 %v1780, %v1759
      %v2159 = vpack.c.b16 %v1781, %v1760
      %v2160 = vpack.c.b16 %v1782, %v1761
      %v2161 = vpack.c.b16 %v1783, %v1762
      %v2162 = vpack.c.b16 %v1784, %v1763
      %v2163 = vpack.c.b16 %v1785, %v1764
      %v2164 = vpack.c.b16 %v1786, %v1765
      %v2165 = vpack.c.b16 %v1787, %v1766
      %v2166 = vpack.c.b16 %v1788, %v1767
      %v2167 = vpack.c.b16 %v1789, %v1768
      %v2168 = vpack.c.b16 %v1790, %v1769
      %v2169 = vpack.c.b16 %v1791, %v1770
      %v2170 = vpack.c.b16 %v1792, %v1771
      %v2171 = vpack.c.b16 %v1793, %v1772
      %v2172 = vpack.c.b16 %v1794, %v1773
      %v2173 = vpack.c.b16 %v1795, %v1774
      %v2174 = vpack.c.b16 %v1796, %v1775
      %v2175 = vpack.c.b16 %v1797, %v1776
      %v2176 = vpack.c.b16 %v1798, %v1777
      %v2177 = vpack.c.b16 %v1799, %v1778
      %v2178 = vpack.c.b16 %v1800, %v1779
      %v2179 = vpack.c.b16 %v1822, %v1801
      %v2180 = vpack.c.b16 %v1823, %v1802
      %v2181 = vpack.c.b16 %v1824, %v1803
      %v2182 = vpack.c.b16 %v1825, %v1804
      %v2183 = vpack.c.b16 %v1826, %v1805
      %v2184 = vpack.c.b16 %v1827, %v1806
      %v2185 = vpack.c.b16 %v1828, %v1807
      %v2186 = vpack.c.b16 %v1829, %v1808
      %v2187 = vpack.c.b16 %v1830, %v1809
      %v2188 = vpack.c.b16 %v1831, %v1810
      %v2189 = vpack.c.b16 %v1832, %v1811
      %v2190 = vpack.c.b16 %v1833, %v1812
      %v2191 = vpack.c.b16 %v1834, %v1813
      %v2192 = vpack.c.b16 %v1835, %v1814
      %v2193 = vpack.c.b16 %v1836, %v1815
      %v2194 = vpack.c.b16 %v1837, %v1816
      %v2195 = vpack.c.b16 %v1838, %v1817
      %v2196 = vpack.c.b16 %v1839, %v1818
      %v2197 = vpack.c.b16 %v1840, %v1819
      %v2198 = vpack.c.b16 %v1841, %v1820
      %v2199 = vpack.c.b16 %v1842, %v1821
      %v2200 = vpack.c.b16 %v1864, %v1843
      %v2201 = vpack.c.b16 %v1865, %v1844
      %v2202 = vpack.c.b16 %v1866, %v1845
      %v2203 = vpack.c.b16 %v1867, %v1846
      %v2204 = vpack.c.b16 %v1868, %v1847
      %v2205 = vpack.c.b16 %v1869, %v1848
      %v2206 = vpack.c.b16 %v1870, %v1849
      %v2207 = vpack.c.b16 %v1871, %v1850
      %v2208 = vpack.c.b16 %v1872, %v1851
      %v2209 = vpack.c.b16 %v1873, %v1852
      %v2210 = vpack.c.b16 %v1874, %v1853
      %v2211 = vpack.c.b16 %v1875, %v1854
      %v2212 = vpack.c.b16 %v1876, %v1855
      %v2213 = vpack.c.b16 %v1877, %v1856
      %v2214 = vpack.c.b16 %v1878, %v1857
      %v2215 = vpack.c.b16 %v1879, %v1858
      %v2216 = vpack.c.b16 %v1880, %v1859
      %v2217 = vpack.c.b16 %v1881, %v1860
      %v2218 = vpack.c.b16 %v1882, %v1861
      %v2219 = vpack.c.b16 %v1883, %v1862
      %v2220 = vpack.c.b16 %v1884, %v1863
      %v2865 = vunpack.c.l.b16 %v530
      %v2866 = vunpack.c.l.b16 %v531
      %v2867 = vunpack.c.l.b16 %v532
      %v2868 = vunpack.c.l.b16 %v533
      %v2869 = vunpack.c.l.b16 %v534
      %v2870 = vunpack.c.l.b16 %v535
      %v2871 = vunpack.c.l.b16 %v536
      %v2872 = vunpack.c.l.b16 %v537
      %v2873 = vunpack.c.l.b16 %v538
      %v2874 = vunpack.c.l.b16 %v539
      %v2875 = vunpack.c.l.b16 %v540
      %v2876 = vunpack.c.l.b16 %v541
      %v2877 = vunpack.c.l.b16 %v542
      %v2878 = vunpack.c.l.b16 %v543
      %v2879 = vunpack.c.l.b16 %v544
      %v2880 = vunpack.c.l.b16 %v545
      %v2881 = vunpack.c.l.b16 %v546
      %v2882 = vunpack.c.l.b16 %v547
      %v2883 = vunpack.c.l.b16 %v548
      %v2884 = vunpack.c.l.b16 %v549
      %v2885 = vunpack.c.l.b16 %v550
      %v2886 = vunpack.c.l.b16 %v551
      %v2887 = vunpack.c.l.b16 %v552
      %v2888 = vunpack.c.l.b16 %v553
      %v2889 = vunpack.c.l.b16 %v554
      %v2890 = vunpack.c.l.b16 %v555
      %v2891 = vunpack.c.l.b16 %v556
      %v2892 = vunpack.c.l.b16 %v557
      %v2893 = vunpack.c.l.b16 %v558
      %v2894 = vunpack.c.l.b16 %v559
      %v2895 = vunpack.c.l.b16 %v560
      %v2896 = vunpack.c.l.b16 %v561
      %v2897 = vunpack.c.l.b16 %v562
      %v2898 = vunpack.c.l.b16 %v563
      %v2899 = vunpack.c.l.b16 %v564
      %v2900 = vunpack.c.l.b16 %v565
      %v2901 = vunpack.c.l.b16 %v566
      %v2902 = vunpack.c.l.b16 %v567
      %v2903 = vunpack.c.l.b16 %v568
      %v2904 = vunpack.c.l.b16 %v569
      %v2905 = vunpack.c.l.b16 %v570
      %v2906 = vunpack.c.l.b16 %v571
      %v2907 = vunpack.c.l.b16 %v572
      %v2908 = vunpack.c.l.b16 %v573
      %v2909 = vunpack.c.l.b16 %v574
      %v2910 = vunpack.c.l.b16 %v575
      %v2911 = vunpack.c.l.b16 %v576
      %v2912 = vunpack.c.l.b16 %v577
      %v2913 = vunpack.c.l.b16 %v578
      %v2914 = vunpack.c.l.b16 %v579
      %v2915 = vunpack.c.l.b16 %v580
      %v2916 = vunpack.c.l.b16 %v581
      %v2917 = vunpack.c.l.b16 %v582
      %v2918 = vunpack.c.l.b16 %v583
      %v2919 = vunpack.c.l.b16 %v584
      %v2920 = vunpack.c.l.b16 %v585
      %v2921 = vunpack.c.l.b16 %v586
      %v2922 = vunpack.c.l.b16 %v587
      %v2923 = vunpack.c.l.b16 %v588
      %v2924 = vunpack.c.l.b16 %v589
      %v2925 = vunpack.c.l.b16 %v590
      %v2926 = vunpack.c.l.b16 %v591
      %v2927 = vunpack.c.l.b16 %v592
      %v2928 = vunpack.c.l.b16 %v593
      %v2929 = vunpack.c.l.b16 %v594
      %v2930 = vunpack.c.l.b16 %v595
      %v2931 = vunpack.c.l.b16 %v596
      %v2932 = vunpack.c.l.b16 %v597
      %v2933 = vunpack.c.l.b16 %v598
      %v2934 = vunpack.c.l.b16 %v599
      %v2935 = vunpack.c.l.b16 %v600
      %v2936 = vunpack.c.l.b16 %v601
      %v2937 = vunpack.c.l.b16 %v602
      %v2938 = vunpack.c.l.b16 %v603
      %v2939 = vunpack.c.l.b16 %v604
      %v2940 = vunpack.c.l.b16 %v605
      %v2941 = vunpack.c.l.b16 %v606
      %v2942 = vunpack.c.l.b16 %v607
      %v2943 = vunpack.c.l.b16 %v608
      %v2944 = vunpack.c.l.b16 %v609
      %v2945 = vunpack.c.l.b16 %v610
      %v2946 = vunpack.c.l.b16 %v611
      %v2947 = vunpack.c.l.b16 %v612
      %v2948 = vunpack.c.l.b16 %v613
      %v2949 = vunpack.c.l.b16 %v614
      %v2950 = vunpack.c.l.b16 %v615
      %v2951 = vunpack.c.l.b16 %v616
      %v2952 = vunpack.c.l.b16 %v617
      %v2953 = vunpack.c.l.b16 %v618
      %v2954 = vunpack.c.l.b16 %v619
      %v2955 = vunpack.c.l.b16 %v620
      %v2956 = vunpack.c.l.b16 %v621
      %v2957 = vunpack.c.l.b16 %v622
      %v2958 = vunpack.c.l.b16 %v623
      %v2959 = vunpack.c.l.b16 %v624
      %v2960 = vunpack.c.l.b16 %v625
      %v2961 = vunpack.c.l.b16 %v626
      %v2962 = vunpack.c.l.b16 %v627
      %v2963 = vunpack.c.l.b16 %v628
      %v2964 = vunpack.c.l.b16 %v629
      %v2965 = vunpack.c.l.b16 %v630
      %v2966 = vunpack.c.l.b16 %v631
      %v2967 = vunpack.c.l.b16 %v632
      %v2968 = vunpack.c.l.b16 %v633
      %v2969 = vunpack.c.l.b16 %v634
      %v2970 = vunpack.c.l.b16 %v635
      %v2971 = vunpack.c.l.b16 %v636
      %v2972 = vunpack.c.l.b16 %v637
      %v2973 = vunpack.c.l.b16 %v638
      %v2974 = vunpack.c.l.b16 %v639
      %v2975 = vunpack.c.l.b16 %v640
      %v2976 = vunpack.c.l.b16 %v641
      %v2977 = vunpack.c.l.b16 %v642
      %v2978 = vunpack.c.l.b16 %v643
      %v2979 = vunpack.c.l.b16 %v644
      %v2980 = vunpack.c.l.b16 %v645
      %v2981 = vunpack.c.l.b16 %v646
      %v2982 = vunpack.c.l.b16 %v647
      %v2983 = vunpack.c.l.b16 %v648
      %v2984 = vunpack.c.l.b16 %v649
      %v2985 = vunpack.c.l.b16 %v650
      %v2986 = vunpack.c.l.b16 %v651
      %v2987 = vunpack.c.l.b16 %v652
      %v2988 = vunpack.c.l.b16 %v653
      %v2989 = vunpack.c.l.b16 %v654
      %v2990 = vunpack.c.l.b16 %v655
      %v2991 = vunpack.c.l.b16 %v656
      %v2992 = vunpack.c.l.b16 %v657
      %v2993 = vunpack.c.l.b16 %v658
      %v2994 = vunpack.c.l.b16 %v659
      %v2995 = vunpack.c.l.b16 %v660
      %v2996 = vunpack.c.l.b16 %v661
      %v2997 = vunpack.c.l.b16 %v662
      %v2998 = vunpack.c.l.b16 %v663
      %v2999 = vunpack.c.l.b16 %v664
      %v3000 = vunpack.c.l.b16 %v665
      %v3001 = vunpack.c.l.b16 %v666
      %v3002 = vunpack.c.l.b16 %v667
      %v3003 = vunpack.c.l.b16 %v668
      %v3004 = vunpack.c.l.b16 %v669
      %v3005 = vunpack.c.l.b16 %v670
      %v3006 = vunpack.c.l.b16 %v671
      %v3007 = vunpack.c.l.b16 %v672
      %v3008 = vunpack.c.l.b16 %v673
      %v3009 = vunpack.c.l.b16 %v674
      %v3010 = vunpack.c.l.b16 %v675
      %v3011 = vunpack.c.l.b16 %v676
      %v3012 = vunpack.c.l.b16 %v677
      %v3013 = vunpack.c.l.b16 %v678
      %v3014 = vunpack.c.l.b16 %v679
      %v3015 = vunpack.c.l.b16 %v680
      %v3016 = vunpack.c.l.b16 %v681
      %v3017 = vunpack.c.l.b16 %v682
      %v3018 = vunpack.c.l.b16 %v683
      %v3019 = vunpack.c.l.b16 %v684
      %v3020 = vunpack.c.l.b16 %v685
      %v3021 = vunpack.c.l.b16 %v686
      %v3022 = vunpack.c.l.b16 %v687
      %v3023 = vunpack.c.l.b16 %v688
      %v3024 = vunpack.c.l.b16 %v689
      %v3025 = vunpack.c.l.b16 %v690
      %v3026 = vunpack.c.l.b16 %v691
      %v3027 = vunpack.c.l.b16 %v692
      %v3028 = vunpack.c.l.b16 %v693
      %v3029 = vunpack.c.l.b16 %v694
      %v3030 = vunpack.c.l.b16 %v695
      %v3031 = vunpack.c.l.b16 %v696
      %v3032 = vunpack.c.l.b16 %v697
      %v3033 = vunpack.c.l.b16 %v698
      %v3034 = vunpack.c.l.b16 %v699
      %v3035 = vunpack.c.l.b16 %v700
      %v3036 = vunpack.c.l.b16 %v701
      %v3037 = vunpack.c.l.b16 %v702
      %v3038 = vunpack.c.l.b16 %v703
      %v3039 = vunpack.c.l.b16 %v704
      %v3040 = vunpack.c.l.b16 %v705
      %v3041 = vunpack.c.l.b16 %v706
      %v3042 = vunpack.c.l.b16 %v707
      %v3043 = vunpack.c.l.b16 %v708
      %v3044 = vunpack.c.l.b16 %v709
      %v3045 = vunpack.c.l.b16 %v710
      %v3046 = vunpack.c.l.b16 %v711
      %v3047 = vunpack.c.l.b16 %v712
      %v3048 = vunpack.c.l.b16 %v713
      %v3049 = vunpack.c.l.b16 %v714
      %v3050 = vunpack.c.l.b16 %v715
      %v3051 = vunpack.c.l.b16 %v716
      %v3052 = vunpack.c.l.b16 %v717
      %v3053 = vunpack.c.l.b16 %v718
      %v3054 = vunpack.c.l.b16 %v719
      %v3055 = vunpack.c.l.b16 %v720
      %v3056 = vunpack.c.l.b16 %v721
      %v3057 = vunpack.c.l.b16 %v722
      %v3058 = vunpack.c.l.b16 %v723
      %v3059 = vunpack.c.l.b16 %v724
      %v3060 = vunpack.c.l.b16 %v725
      %v3061 = vunpack.c.l.b16 %v726
      %v3062 = vunpack.c.l.b16 %v727
      %v3063 = vunpack.c.l.b16 %v728
      %v3064 = vunpack.c.l.b16 %v729
      %v3065 = vunpack.c.l.b16 %v730
      %v3066 = vunpack.c.l.b16 %v731
      %v3067 = vunpack.c.l.b16 %v732
      %v3068 = vunpack.c.l.b16 %v733
      %v3069 = vunpack.c.l.b16 %v734
      %v3070 = vunpack.c.l.b16 %v735
      %v3071 = vunpack.c.l.b16 %v736
      %v3072 = vunpack.c.l.b16 %v737
      %v3073 = vunpack.c.l.b16 %v738
      %v3074 = vunpack.c.l.b16 %v739
      %v3075 = vunpack.c.l.b16 %v740
      %v3076 = vunpack.c.l.b16 %v741
      %v3077 = vunpack.c.l.b16 %v742
      %v3078 = vunpack.c.l.b16 %v743
      %v3079 = vunpack.c.l.b16 %v744
      %v3080 = vunpack.c.l.b16 %v745
      %v3081 = vunpack.c.l.b16 %v746
      %v3082 = vunpack.c.l.b16 %v747
      %v3083 = vunpack.c.l.b16 %v748
      %v3084 = vunpack.c.l.b16 %v749
      %v3085 = vunpack.c.l.b16 %v750
      %v3086 = vunpack.c.l.b16 %v751
      %v3087 = vunpack.c.l.b16 %v752
      %v3088 = vunpack.c.l.b16 %v753
      %v3089 = vunpack.c.l.b16 %v754
      %v3090 = vunpack.c.l.b16 %v755
      %v3091 = vunpack.c.l.b16 %v756
      %v3092 = vunpack.c.l.b16 %v757
      %v3093 = vunpack.c.l.b16 %v758
      %v3094 = vunpack.c.l.b16 %v759
      %v3095 = vunpack.c.l.b16 %v760
      %v3096 = vunpack.c.l.b16 %v761
      %v3097 = vunpack.c.l.b16 %v762
      %v3098 = vunpack.c.l.b16 %v763
      %v3099 = vunpack.c.l.b16 %v764
      %v3100 = vunpack.c.l.b16 %v765
      %v3101 = vunpack.c.l.b16 %v766
      %v3102 = vunpack.c.l.b16 %v767
      %v3103 = vunpack.c.l.b16 %v768
      %v3104 = vunpack.c.l.b16 %v769
      %v3105 = vunpack.c.l.b16 %v770
      %v3106 = vunpack.c.l.b16 %v771
      %v3107 = vunpack.c.l.b16 %v772
      %v3108 = vunpack.c.l.b16 %v773
      %v3109 = vunpack.c.l.b16 %v774
      %v3110 = vunpack.c.l.b16 %v775
      %v3111 = vunpack.c.l.b16 %v776
      %v3112 = vunpack.c.l.b16 %v777
      %v3113 = vunpack.c.l.b16 %v778
      %v3114 = vunpack.c.l.b16 %v779
      %v3115 = vunpack.c.l.b16 %v780
      %v3116 = vunpack.c.l.b16 %v781
      %v3117 = vunpack.c.l.b16 %v782
      %v3118 = vunpack.c.l.b16 %v783
      %v3119 = vunpack.c.l.b16 %v784
      %v3120 = vunpack.c.l.b16 %v785
      %v3121 = vunpack.c.l.b16 %v786
      %v3122 = vunpack.c.l.b16 %v787
      %v3123 = vunpack.c.l.b16 %v788
      %v3124 = vunpack.c.l.b16 %v789
      %v3125 = vunpack.c.l.b16 %v790
      %v3126 = vunpack.c.l.b16 %v791
      %v3127 = vunpack.c.l.b16 %v792
      %v3128 = vunpack.c.l.b16 %v793
      %v3129 = vunpack.c.l.b16 %v794
      %v3130 = vunpack.c.l.b16 %v795
      %v3131 = vunpack.c.l.b16 %v796
      %v3132 = vunpack.c.l.b16 %v797
      %v3133 = vunpack.c.l.b16 %v798
      %v3134 = vunpack.c.l.b16 %v799
      %v3135 = vunpack.c.l.b16 %v800
      %v3136 = vunpack.c.l.b16 %v801
      %v3137 = vunpack.c.l.b16 %v802
      %v3138 = vunpack.c.l.b16 %v803
      %v3139 = vunpack.c.l.b16 %v804
      %v3140 = vunpack.c.l.b16 %v805
      %v3141 = vunpack.c.l.b16 %v806
      %v3142 = vunpack.c.l.b16 %v807
      %v3143 = vunpack.c.l.b16 %v808
      %v3144 = vunpack.c.l.b16 %v809
      %v3145 = vunpack.c.l.b16 %v810
      %v3146 = vunpack.c.l.b16 %v811
      %v3147 = vunpack.c.l.b16 %v812
      %v3148 = vunpack.c.l.b16 %v813
      %v3149 = vunpack.c.l.b16 %v814
      %v3150 = vunpack.c.l.b16 %v815
      %v3151 = vunpack.c.l.b16 %v816
      %v3152 = vunpack.c.l.b16 %v817
      %v3153 = vunpack.c.l.b16 %v818
      %v3154 = vunpack.c.l.b16 %v819
      %v3155 = vunpack.c.l.b16 %v820
      %v3156 = vunpack.c.l.b16 %v821
      %v3157 = vunpack.c.l.b16 %v822
      %v3158 = vunpack.c.l.b16 %v823
      %v3159 = vunpack.c.l.b16 %v824
      %v3160 = vunpack.c.l.b16 %v825
      %v3161 = vunpack.c.l.b16 %v826
      %v3162 = vunpack.c.l.b16 %v827
      %v3163 = vunpack.c.l.b16 %v828
      %v3164 = vunpack.c.l.b16 %v829
      %v3165 = vunpack.c.l.b16 %v830
      %v3166 = vunpack.c.l.b16 %v831
      %v3167 = vunpack.c.l.b16 %v832
      %v3168 = vunpack.c.l.b16 %v833
      %v3169 = vunpack.c.l.b16 %v834
      %v3170 = vunpack.c.l.b16 %v835
      %v3171 = vunpack.c.l.b16 %v836
      %v3172 = vunpack.c.l.b16 %v837
      %v3173 = vunpack.c.l.b16 %v838
      %v3174 = vunpack.c.l.b16 %v839
      %v3175 = vunpack.c.l.b16 %v840
      %v3176 = vunpack.c.l.b16 %v841
      %v3177 = vunpack.c.l.b16 %v842
      %v3178 = vunpack.c.l.b16 %v843
      %v3179 = vunpack.c.l.b16 %v844
      %v3180 = vunpack.c.l.b16 %v845
      %v3181 = vunpack.c.l.b16 %v846
      %v3182 = vunpack.c.l.b16 %v847
      %v3183 = vunpack.c.l.b16 %v848
      %v3184 = vunpack.c.l.b16 %v849
      %v3185 = vunpack.c.l.b16 %v850
      %v3186 = vunpack.c.l.b16 %v851
      %v3187 = vunpack.c.l.b16 %v852
      %v3188 = vunpack.c.l.b16 %v853
      %v3189 = vpack.c.b16 %v2866, %v2865
      %v3190 = vpack.c.b16 %v2868, %v2867
      %v3191 = vpack.c.b16 %v2870, %v2869
      %v3192 = vpack.c.b16 %v2872, %v2871
      %v3193 = vpack.c.b16 %v2874, %v2873
      %v3194 = vpack.c.b16 %v2876, %v2875
      %v3195 = vpack.c.b16 %v2878, %v2877
      %v3196 = vpack.c.b16 %v2880, %v2879
      %v3197 = vpack.c.b16 %v2882, %v2881
      %v3198 = vpack.c.b16 %v2884, %v2883
      %v3199 = vpack.c.b16 %v2886, %v2885
      %v3200 = vpack.c.b16 %v2888, %v2887
      %v3201 = vpack.c.b16 %v2890, %v2889
      %v3202 = vpack.c.b16 %v2892, %v2891
      %v3203 = vpack.c.b16 %v2894, %v2893
      %v3204 = vpack.c.b16 %v2896, %v2895
      %v3205 = vpack.c.b16 %v2898, %v2897
      %v3206 = vpack.c.b16 %v2900, %v2899
      %v3207 = vpack.c.b16 %v2902, %v2901
      %v3208 = vpack.c.b16 %v2904, %v2903
      %v3209 = vpack.c.b16 %v2906, %v2905
      %v3210 = vpack.c.b16 %v2908, %v2907
      %v3211 = vpack.c.b16 %v2910, %v2909
      %v3212 = vpack.c.b16 %v2912, %v2911
      %v3213 = vpack.c.b16 %v2914, %v2913
      %v3214 = vpack.c.b16 %v2916, %v2915
      %v3215 = vpack.c.b16 %v2918, %v2917
      %v3216 = vpack.c.b16 %v2920, %v2919
      %v3217 = vpack.c.b16 %v2922, %v2921
      %v3218 = vpack.c.b16 %v2924, %v2923
      %v3219 = vpack.c.b16 %v2926, %v2925
      %v3220 = vpack.c.b16 %v2928, %v2927
      %v3221 = vpack.c.b16 %v2930, %v2929
      %v3222 = vpack.c.b16 %v2932, %v2931
      %v3223 = vpack.c.b16 %v2934, %v2933
      %v3224 = vpack.c.b16 %v2936, %v2935
      %v3225 = vpack.c.b16 %v2938, %v2937
      %v3226 = vpack.c.b16 %v2940, %v2939
      %v3227 = vpack.c.b16 %v2942, %v2941
      %v3228 = vpack.c.b16 %v2944, %v2943
      %v3229 = vpack.c.b16 %v2946, %v2945
      %v3230 = vpack.c.b16 %v2948, %v2947
      %v3231 = vpack.c.b16 %v2950, %v2949
      %v3232 = vpack.c.b16 %v2952, %v2951
      %v3233 = vpack.c.b16 %v2954, %v2953
      %v3234 = vpack.c.b16 %v2956, %v2955
      %v3235 = vpack.c.b16 %v2958, %v2957
      %v3236 = vpack.c.b16 %v2960, %v2959
      %v3237 = vpack.c.b16 %v2962, %v2961
      %v3238 = vpack.c.b16 %v2964, %v2963
      %v3239 = vpack.c.b16 %v2966, %v2965
      %v3240 = vpack.c.b16 %v2968, %v2967
      %v3241 = vpack.c.b16 %v2970, %v2969
      %v3242 = vpack.c.b16 %v2972, %v2971
      %v3243 = vpack.c.b16 %v2974, %v2973
      %v3244 = vpack.c.b16 %v2976, %v2975
      %v3245 = vpack.c.b16 %v2978, %v2977
      %v3246 = vpack.c.b16 %v2980, %v2979
      %v3247 = vpack.c.b16 %v2982, %v2981
      %v3248 = vpack.c.b16 %v2984, %v2983
      %v3249 = vpack.c.b16 %v2986, %v2985
      %v3250 = vpack.c.b16 %v2988, %v2987
      %v3251 = vpack.c.b16 %v2990, %v2989
      %v3252 = vpack.c.b16 %v2992, %v2991
      %v3253 = vpack.c.b16 %v2994, %v2993
      %v3254 = vpack.c.b16 %v2996, %v2995
      %v3255 = vpack.c.b16 %v2998, %v2997
      %v3256 = vpack.c.b16 %v3000, %v2999
      %v3257 = vpack.c.b16 %v3002, %v3001
      %v3258 = vpack.c.b16 %v3004, %v3003
      %v3259 = vpack.c.b16 %v3006, %v3005
      %v3260 = vpack.c.b16 %v3008, %v3007
      %v3261 = vpack.c.b16 %v3010, %v3009
      %v3262 = vpack.c.b16 %v3012, %v3011
      %v3263 = vpack.c.b16 %v3014, %v3013
      %v3264 = vpack.c.b16 %v3016, %v3015
      %v3265 = vpack.c.b16 %v3018, %v3017
      %v3266 = vpack.c.b16 %v3020, %v3019
      %v3267 = vpack.c.b16 %v3022, %v3021
      %v3268 = vpack.c.b16 %v3024, %v3023
      %v3269 = vpack.c.b16 %v3026, %v3025
      %v3270 = vpack.c.b16 %v3028, %v3027
      %v3271 = vpack.c.b16 %v3030, %v3029
      %v3272 = vpack.c.b16 %v3032, %v3031
      %v3273 = vpack.c.b16 %v3034, %v3033
      %v3274 = vpack.c.b16 %v3036, %v3035
      %v3275 = vpack.c.b16 %v3038, %v3037
      %v3276 = vpack.c.b16 %v3040, %v3039
      %v3277 = vpack.c.b16 %v3042, %v3041
      %v3278 = vpack.c.b16 %v3044, %v3043
      %v3279 = vpack.c.b16 %v3046, %v3045
      %v3280 = vpack.c.b16 %v3048, %v3047
      %v3281 = vpack.c.b16 %v3050, %v3049
      %v3282 = vpack.c.b16 %v3052, %v3051
      %v3283 = vpack.c.b16 %v3054, %v3053
      %v3284 = vpack.c.b16 %v3056, %v3055
      %v3285 = vpack.c.b16 %v3058, %v3057
      %v3286 = vpack.c.b16 %v3060, %v3059
      %v3287 = vpack.c.b16 %v3062, %v3061
      %v3288 = vpack.c.b16 %v3064, %v3063
      %v3289 = vpack.c.b16 %v3066, %v3065
      %v3290 = vpack.c.b16 %v3068, %v3067
      %v3291 = vpack.c.b16 %v3070, %v3069
      %v3292 = vpack.c.b16 %v3072, %v3071
      %v3293 = vpack.c.b16 %v3074, %v3073
      %v3294 = vpack.c.b16 %v3076, %v3075
      %v3295 = vpack.c.b16 %v3078, %v3077
      %v3296 = vpack.c.b16 %v3080, %v3079
      %v3297 = vpack.c.b16 %v3082, %v3081
      %v3298 = vpack.c.b16 %v3084, %v3083
      %v3299 = vpack.c.b16 %v3086, %v3085
      %v3300 = vpack.c.b16 %v3088, %v3087
      %v3301 = vpack.c.b16 %v3090, %v3089
      %v3302 = vpack.c.b16 %v3092, %v3091
      %v3303 = vpack.c.b16 %v3094, %v3093
      %v3304 = vpack.c.b16 %v3096, %v3095
      %v3305 = vpack.c.b16 %v3098, %v3097
      %v3306 = vpack.c.b16 %v3100, %v3099
      %v3307 = vpack.c.b16 %v3102, %v3101
      %v3308 = vpack.c.b16 %v3104, %v3103
      %v3309 = vpack.c.b16 %v3106, %v3105
      %v3310 = vpack.c.b16 %v3108, %v3107
      %v3311 = vpack.c.b16 %v3110, %v3109
      %v3312 = vpack.c.b16 %v3112, %v3111
      %v3313 = vpack.c.b16 %v3114, %v3113
      %v3314 = vpack.c.b16 %v3116, %v3115
      %v3315 = vpack.c.b16 %v3118, %v3117
      %v3316 = vpack.c.b16 %v3120, %v3119
      %v3317 = vpack.c.b16 %v3122, %v3121
      %v3318 = vpack.c.b16 %v3124, %v3123
      %v3319 = vpack.c.b16 %v3126, %v3125
      %v3320 = vpack.c.b16 %v3128, %v3127
      %v3321 = vpack.c.b16 %v3130, %v3129
      %v3322 = vpack.c.b16 %v3132, %v3131
      %v3323 = vpack.c.b16 %v3134, %v3133
      %v3324 = vpack.c.b16 %v3136, %v3135
      %v3325 = vpack.c.b16 %v3138, %v3137
      %v3326 = vpack.c.b16 %v3140, %v3139
      %v3327 = vpack.c.b16 %v3142, %v3141
      %v3328 = vpack.c.b16 %v3144, %v3143
      %v3329 = vpack.c.b16 %v3146, %v3145
      %v3330 = vpack.c.b16 %v3148, %v3147
      %v3331 = vpack.c.b16 %v3150, %v3149
      %v3332 = vpack.c.b16 %v3152, %v3151
      %v3333 = vpack.c.b16 %v3154, %v3153
      %v3334 = vpack.c.b16 %v3156, %v3155
      %v3335 = vpack.c.b16 %v3158, %v3157
      %v3336 = vpack.c.b16 %v3160, %v3159
      %v3337 = vpack.c.b16 %v3162, %v3161
      %v3338 = vpack.c.b16 %v3164, %v3163
      %v3339 = vpack.c.b16 %v3166, %v3165
      %v3340 = vpack.c.b16 %v3168, %v3167
      %v3341 = vpack.c.b16 %v3170, %v3169
      %v3342 = vpack.c.b16 %v3172, %v3171
      %v3343 = vpack.c.b16 %v3174, %v3173
      %v3344 = vpack.c.b16 %v3176, %v3175
      %v3345 = vpack.c.b16 %v3178, %v3177
      %v3346 = vpack.c.b16 %v3180, %v3179
      %v3347 = vpack.c.b16 %v3182, %v3181
      %v3348 = vpack.c.b16 %v3184, %v3183
      %v3349 = vpack.c.b16 %v3186, %v3185
      %v3350 = vpack.c.b16 %v3188, %v3187
      %vm3513 = vcmask 261120
      %v3515 = vsel %vm3513, %v1905, 0
      %v3518 = vsel %vm3513, %v1926, 0
      %v3521 = vsel %vm3513, %v1947, 0
      %v3524 = vsel %vm3513, %v1968, 0
      %v3527 = vsel %vm3513, %v1989, 0
      %v3530 = vsel %vm3513, %v2010, 0
      %v3533 = vsel %vm3513, %v2031, 0
      %v3536 = vsel %vm3513, %v2052, 0
      %v3539 = vsel %vm3513, %v2073, 0
      %v3542 = vsel %vm3513, %v2094, 0
      %v3545 = vsel %vm3513, %v2115, 0
      %v3548 = vsel %vm3513, %v2136, 0
      %v3551 = vsel %vm3513, %v2157, 0
      %v3554 = vsel %vm3513, %v2178, 0
      %v3557 = vsel %vm3513, %v2199, 0
      %v3560 = vsel %vm3513, %v2220, 0
      %3562 = vmatprep.subr.bf16.mxu0 0
      %3563 = vmatpush1.bf16.msra.mxu0 %v3196
      %3564 = vmatprep.subr.bf16.mxu0 0
      %3565 = vmatpush1.bf16.msra.mxu0 %v3195
      %3566 = vmatprep.subr.bf16.mxu0 0
      %3567 = vmatpush1.bf16.msra.mxu0 %v3194
      %3568 = vmatprep.subr.bf16.mxu0 0
      %3569 = vmatpush1.bf16.msra.mxu0 %v3193
      %3570 = vmatprep.subr.bf16.mxu0 0
      %3571 = vmatpush1.bf16.msra.mxu0 %v3192
      %3572 = vmatprep.subr.bf16.mxu0 0
      %3573 = vmatpush1.bf16.msra.mxu0 %v3191
      %3574 = vmatprep.subr.bf16.mxu0 0
      %3575 = vmatpush1.bf16.msra.mxu0 %v3190
      %3576 = vmatprep.subr.bf16.mxu0 0
      %3577 = vmatpush1.bf16.msra.mxu0 %v3189
      %3578 = vmatprep.subr.bf16.mxu0 0
      %3579 = vmatpush2.bf16.msra.mxu0 %v3204
      %3580 = vmatprep.subr.bf16.mxu0 0
      %3581 = vmatpush2.bf16.msra.mxu0 %v3203
      %3582 = vmatprep.subr.bf16.mxu0 0
      %3583 = vmatpush2.bf16.msra.mxu0 %v3202
      %3584 = vmatprep.subr.bf16.mxu0 0
      %3585 = vmatpush2.bf16.msra.mxu0 %v3201
      %3586 = vmatprep.subr.bf16.mxu0 0
      %3587 = vmatpush2.bf16.msra.mxu0 %v3200
      %3588 = vmatprep.subr.bf16.mxu0 0
      %3589 = vmatpush2.bf16.msra.mxu0 %v3199
      %3590 = vmatprep.subr.bf16.mxu0 0
      %3591 = vmatpush2.bf16.msra.mxu0 %v3198
      %3592 = vmatprep.subr.bf16.mxu0 0
      %3593 = vmatpush2.bf16.msra.mxu0 %v3197
      %3594 = vmatprep.mubr.bf16.mxu0 %v1886
      %3595 = vmatmul.mubr.bf16.gmra.mxu0 %v1885
      %v3596 = vpop.f32.mrf.mxu0
      %v3597 = vadd.f32 %v859, %v3596
      %v3598 = vpop.f32.mrf.mxu0
      %v3599 = vpop.f32.mrf.mxu0
      %v3600 = vadd.f32 %v859, %v3599
      %v3601 = vpop.f32.mrf.mxu0
      %3602 = vmatprep.mubr.bf16.mxu0 %v1907
      %3603 = vmatmul.mubr.bf16.gmra.mxu0 %v1906
      %v3604 = vpop.f32.mrf.mxu0
      %v3605 = vadd.f32 %v859, %v3604
      %v3606 = vpop.f32.mrf.mxu0
      %v3607 = vpop.f32.mrf.mxu0
      %v3608 = vadd.f32 %v859, %v3607
      %v3609 = vpop.f32.mrf.mxu0
      %3610 = vmatprep.mubr.bf16.mxu0 %v1928
      %3611 = vmatmul.mubr.bf16.gmra.mxu0 %v1927
      %v3612 = vpop.f32.mrf.mxu0
      %v3613 = vadd.f32 %v859, %v3612
      %v3614 = vpop.f32.mrf.mxu0
      %v3615 = vpop.f32.mrf.mxu0
      %v3616 = vadd.f32 %v859, %v3615
      %v3617 = vpop.f32.mrf.mxu0
      %3618 = vmatprep.mubr.bf16.mxu0 %v1949
      %3619 = vmatmul.mubr.bf16.gmra.mxu0 %v1948
      %v3620 = vpop.f32.mrf.mxu0
      %v3621 = vadd.f32 %v859, %v3620
      %v3622 = vpop.f32.mrf.mxu0
      %v3623 = vpop.f32.mrf.mxu0
      %v3624 = vadd.f32 %v859, %v3623
      %v3625 = vpop.f32.mrf.mxu0
      %3626 = vmatprep.mubr.bf16.mxu0 %v1970
      %3627 = vmatmul.mubr.bf16.gmra.mxu0 %v1969
      %v3628 = vpop.f32.mrf.mxu0
      %v3629 = vadd.f32 %v859, %v3628
      %v3630 = vpop.f32.mrf.mxu0
      %v3631 = vpop.f32.mrf.mxu0
      %v3632 = vadd.f32 %v859, %v3631
      %v3633 = vpop.f32.mrf.mxu0
      %3634 = vmatprep.mubr.bf16.mxu0 %v1991
      %3635 = vmatmul.mubr.bf16.gmra.mxu0 %v1990
      %v3636 = vpop.f32.mrf.mxu0
      %v3637 = vadd.f32 %v859, %v3636
      %v3638 = vpop.f32.mrf.mxu0
      %v3639 = vpop.f32.mrf.mxu0
      %v3640 = vadd.f32 %v859, %v3639
      %v3641 = vpop.f32.mrf.mxu0
      %3642 = vmatprep.mubr.bf16.mxu0 %v2012
      %3643 = vmatmul.mubr.bf16.gmra.mxu0 %v2011
      %v3644 = vpop.f32.mrf.mxu0
      %v3645 = vadd.f32 %v859, %v3644
      %v3646 = vpop.f32.mrf.mxu0
      %v3647 = vpop.f32.mrf.mxu0
      %v3648 = vadd.f32 %v859, %v3647
      %v3649 = vpop.f32.mrf.mxu0
      %3650 = vmatprep.mubr.bf16.mxu0 %v2033
      %3651 = vmatmul.mubr.bf16.gmra.mxu0 %v2032
      %v3652 = vpop.f32.mrf.mxu0
      %v3653 = vadd.f32 %v859, %v3652
      %v3654 = vpop.f32.mrf.mxu0
      %v3655 = vpop.f32.mrf.mxu0
      %v3656 = vadd.f32 %v859, %v3655
      %v3657 = vpop.f32.mrf.mxu0
      %3658 = vmatprep.mubr.bf16.mxu0 %v2054
      %3659 = vmatmul.mubr.bf16.gmra.mxu0 %v2053
      %v3660 = vpop.f32.mrf.mxu0
      %v3661 = vadd.f32 %v859, %v3660
      %v3662 = vpop.f32.mrf.mxu0
      %v3663 = vpop.f32.mrf.mxu0
      %v3664 = vadd.f32 %v859, %v3663
      %v3665 = vpop.f32.mrf.mxu0
      %3666 = vmatprep.mubr.bf16.mxu0 %v2075
      %3667 = vmatmul.mubr.bf16.gmra.mxu0 %v2074
      %v3668 = vpop.f32.mrf.mxu0
      %v3669 = vadd.f32 %v859, %v3668
      %v3670 = vpop.f32.mrf.mxu0
      %v3671 = vpop.f32.mrf.mxu0
      %v3672 = vadd.f32 %v859, %v3671
      %v3673 = vpop.f32.mrf.mxu0
      %3674 = vmatprep.mubr.bf16.mxu0 %v2096
      %3675 = vmatmul.mubr.bf16.gmra.mxu0 %v2095
      %v3676 = vpop.f32.mrf.mxu0
      %v3677 = vadd.f32 %v859, %v3676
      %v3678 = vpop.f32.mrf.mxu0
      %v3679 = vpop.f32.mrf.mxu0
      %v3680 = vadd.f32 %v859, %v3679
      %v3681 = vpop.f32.mrf.mxu0
      %3682 = vmatprep.mubr.bf16.mxu0 %v2117
      %3683 = vmatmul.mubr.bf16.gmra.mxu0 %v2116
      %v3684 = vpop.f32.mrf.mxu0
      %v3685 = vadd.f32 %v859, %v3684
      %v3686 = vpop.f32.mrf.mxu0
      %v3687 = vpop.f32.mrf.mxu0
      %v3688 = vadd.f32 %v859, %v3687
      %v3689 = vpop.f32.mrf.mxu0
      %3690 = vmatprep.mubr.bf16.mxu0 %v2138
      %3691 = vmatmul.mubr.bf16.gmra.mxu0 %v2137
      %v3692 = vpop.f32.mrf.mxu0
      %v3693 = vadd.f32 %v859, %v3692
      %v3694 = vpop.f32.mrf.mxu0
      %v3695 = vpop.f32.mrf.mxu0
      %v3696 = vadd.f32 %v859, %v3695
      %v3697 = vpop.f32.mrf.mxu0
      %3698 = vmatprep.mubr.bf16.mxu0 %v2159
      %3699 = vmatmul.mubr.bf16.gmra.mxu0 %v2158
      %v3700 = vpop.f32.mrf.mxu0
      %v3701 = vadd.f32 %v859, %v3700
      %v3702 = vpop.f32.mrf.mxu0
      %v3703 = vpop.f32.mrf.mxu0
      %v3704 = vadd.f32 %v859, %v3703
      %v3705 = vpop.f32.mrf.mxu0
      %3706 = vmatprep.mubr.bf16.mxu0 %v2180
      %3707 = vmatmul.mubr.bf16.gmra.mxu0 %v2179
      %v3708 = vpop.f32.mrf.mxu0
      %v3709 = vadd.f32 %v859, %v3708
      %v3710 = vpop.f32.mrf.mxu0
      %v3711 = vpop.f32.mrf.mxu0
      %v3712 = vadd.f32 %v859, %v3711
      %v3713 = vpop.f32.mrf.mxu0
      %3714 = vmatprep.mubr.bf16.mxu0 %v2201
      %3715 = vmatmul.mubr.bf16.gmra.mxu0 %v2200
      %v3716 = vpop.f32.mrf.mxu0
      %v3717 = vadd.f32 %v859, %v3716
      %v3718 = vpop.f32.mrf.mxu0
      %v3719 = vpop.f32.mrf.mxu0
      %v3720 = vadd.f32 %v859, %v3719
      %v3721 = vpop.f32.mrf.mxu0
      %3722 = vdwg.mxu0
      %3723 = vmatprep.subr.bf16.mxu0 0
      %3724 = vmatpush1.bf16.msra.mxu0 %v3212
      %3725 = vmatprep.subr.bf16.mxu0 0
      %3726 = vmatpush1.bf16.msra.mxu0 %v3211
      %3727 = vmatprep.subr.bf16.mxu0 0
      %3728 = vmatpush1.bf16.msra.mxu0 %v3210
      %3729 = vmatprep.subr.bf16.mxu0 0
      %3730 = vmatpush1.bf16.msra.mxu0 %v3209
      %3731 = vmatprep.subr.bf16.mxu0 0
      %3732 = vmatpush1.bf16.msra.mxu0 %v3208
      %3733 = vmatprep.subr.bf16.mxu0 0
      %3734 = vmatpush1.bf16.msra.mxu0 %v3207
      %3735 = vmatprep.subr.bf16.mxu0 0
      %3736 = vmatpush1.bf16.msra.mxu0 %v3206
      %3737 = vmatprep.subr.bf16.mxu0 0
      %3738 = vmatpush1.bf16.msra.mxu0 %v3205
      %3739 = vmatprep.subr.bf16.mxu0 0
      %3740 = vmatpush2.bf16.msra.mxu0 %v3220
      %3741 = vmatprep.subr.bf16.mxu0 0
      %3742 = vmatpush2.bf16.msra.mxu0 %v3219
      %3743 = vmatprep.subr.bf16.mxu0 0
      %3744 = vmatpush2.bf16.msra.mxu0 %v3218
      %3745 = vmatprep.subr.bf16.mxu0 0
      %3746 = vmatpush2.bf16.msra.mxu0 %v3217
      %3747 = vmatprep.subr.bf16.mxu0 0
      %3748 = vmatpush2.bf16.msra.mxu0 %v3216
      %3749 = vmatprep.subr.bf16.mxu0 0
      %3750 = vmatpush2.bf16.msra.mxu0 %v3215
      %3751 = vmatprep.subr.bf16.mxu0 0
      %3752 = vmatpush2.bf16.msra.mxu0 %v3214
      %3753 = vmatprep.subr.bf16.mxu0 0
      %3754 = vmatpush2.bf16.msra.mxu0 %v3213
      %3755 = vmatprep.mubr.bf16.mxu0 %v1888
      %3756 = vmatmul.mubr.bf16.gmra.mxu0 %v1887
      %v3757 = vpop.f32.mrf.mxu0
      %v3758 = vadd.f32 %v3597, %v3757
      %v3759 = vpop.f32.mrf.mxu0
      %v3760 = vpop.f32.mrf.mxu0
      %v3761 = vadd.f32 %v3600, %v3760
      %v3762 = vpop.f32.mrf.mxu0
      %3763 = vmatprep.mubr.bf16.mxu0 %v1909
      %3764 = vmatmul.mubr.bf16.gmra.mxu0 %v1908
      %v3765 = vpop.f32.mrf.mxu0
      %v3766 = vadd.f32 %v3605, %v3765
      %v3767 = vpop.f32.mrf.mxu0
      %v3768 = vpop.f32.mrf.mxu0
      %v3769 = vadd.f32 %v3608, %v3768
      %v3770 = vpop.f32.mrf.mxu0
      %3771 = vmatprep.mubr.bf16.mxu0 %v1930
      %3772 = vmatmul.mubr.bf16.gmra.mxu0 %v1929
      %v3773 = vpop.f32.mrf.mxu0
      %v3774 = vadd.f32 %v3613, %v3773
      %v3775 = vpop.f32.mrf.mxu0
      %v3776 = vpop.f32.mrf.mxu0
      %v3777 = vadd.f32 %v3616, %v3776
      %v3778 = vpop.f32.mrf.mxu0
      %3779 = vmatprep.mubr.bf16.mxu0 %v1951
      %3780 = vmatmul.mubr.bf16.gmra.mxu0 %v1950
      %v3781 = vpop.f32.mrf.mxu0
      %v3782 = vadd.f32 %v3621, %v3781
      %v3783 = vpop.f32.mrf.mxu0
      %v3784 = vpop.f32.mrf.mxu0
      %v3785 = vadd.f32 %v3624, %v3784
      %v3786 = vpop.f32.mrf.mxu0
      %3787 = vmatprep.mubr.bf16.mxu0 %v1972
      %3788 = vmatmul.mubr.bf16.gmra.mxu0 %v1971
      %v3789 = vpop.f32.mrf.mxu0
      %v3790 = vadd.f32 %v3629, %v3789
      %v3791 = vpop.f32.mrf.mxu0
      %v3792 = vpop.f32.mrf.mxu0
      %v3793 = vadd.f32 %v3632, %v3792
      %v3794 = vpop.f32.mrf.mxu0
      %3795 = vmatprep.mubr.bf16.mxu0 %v1993
      %3796 = vmatmul.mubr.bf16.gmra.mxu0 %v1992
      %v3797 = vpop.f32.mrf.mxu0
      %v3798 = vadd.f32 %v3637, %v3797
      %v3799 = vpop.f32.mrf.mxu0
      %v3800 = vpop.f32.mrf.mxu0
      %v3801 = vadd.f32 %v3640, %v3800
      %v3802 = vpop.f32.mrf.mxu0
      %3803 = vmatprep.mubr.bf16.mxu0 %v2014
      %3804 = vmatmul.mubr.bf16.gmra.mxu0 %v2013
      %v3805 = vpop.f32.mrf.mxu0
      %v3806 = vadd.f32 %v3645, %v3805
      %v3807 = vpop.f32.mrf.mxu0
      %v3808 = vpop.f32.mrf.mxu0
      %v3809 = vadd.f32 %v3648, %v3808
      %v3810 = vpop.f32.mrf.mxu0
      %3811 = vmatprep.mubr.bf16.mxu0 %v2035
      %3812 = vmatmul.mubr.bf16.gmra.mxu0 %v2034
      %v3813 = vpop.f32.mrf.mxu0
      %v3814 = vadd.f32 %v3653, %v3813
      %v3815 = vpop.f32.mrf.mxu0
      %v3816 = vpop.f32.mrf.mxu0
      %v3817 = vadd.f32 %v3656, %v3816
      %v3818 = vpop.f32.mrf.mxu0
      %3819 = vmatprep.mubr.bf16.mxu0 %v2056
      %3820 = vmatmul.mubr.bf16.gmra.mxu0 %v2055
      %v3821 = vpop.f32.mrf.mxu0
      %v3822 = vadd.f32 %v3661, %v3821
      %v3823 = vpop.f32.mrf.mxu0
      %v3824 = vpop.f32.mrf.mxu0
      %v3825 = vadd.f32 %v3664, %v3824
      %v3826 = vpop.f32.mrf.mxu0
      %3827 = vmatprep.mubr.bf16.mxu0 %v2077
      %3828 = vmatmul.mubr.bf16.gmra.mxu0 %v2076
      %v3829 = vpop.f32.mrf.mxu0
      %v3830 = vadd.f32 %v3669, %v3829
      %v3831 = vpop.f32.mrf.mxu0
      %v3832 = vpop.f32.mrf.mxu0
      %v3833 = vadd.f32 %v3672, %v3832
      %v3834 = vpop.f32.mrf.mxu0
      %3835 = vmatprep.mubr.bf16.mxu0 %v2098
      %3836 = vmatmul.mubr.bf16.gmra.mxu0 %v2097
      %v3837 = vpop.f32.mrf.mxu0
      %v3838 = vadd.f32 %v3677, %v3837
      %v3839 = vpop.f32.mrf.mxu0
      %v3840 = vpop.f32.mrf.mxu0
      %v3841 = vadd.f32 %v3680, %v3840
      %v3842 = vpop.f32.mrf.mxu0
      %3843 = vmatprep.mubr.bf16.mxu0 %v2119
      %3844 = vmatmul.mubr.bf16.gmra.mxu0 %v2118
      %v3845 = vpop.f32.mrf.mxu0
      %v3846 = vadd.f32 %v3685, %v3845
      %v3847 = vpop.f32.mrf.mxu0
      %v3848 = vpop.f32.mrf.mxu0
      %v3849 = vadd.f32 %v3688, %v3848
      %v3850 = vpop.f32.mrf.mxu0
      %3851 = vmatprep.mubr.bf16.mxu0 %v2140
      %3852 = vmatmul.mubr.bf16.gmra.mxu0 %v2139
      %v3853 = vpop.f32.mrf.mxu0
      %v3854 = vadd.f32 %v3693, %v3853
      %v3855 = vpop.f32.mrf.mxu0
      %v3856 = vpop.f32.mrf.mxu0
      %v3857 = vadd.f32 %v3696, %v3856
      %v3858 = vpop.f32.mrf.mxu0
      %3859 = vmatprep.mubr.bf16.mxu0 %v2161
      %3860 = vmatmul.mubr.bf16.gmra.mxu0 %v2160
      %v3861 = vpop.f32.mrf.mxu0
      %v3862 = vadd.f32 %v3701, %v3861
      %v3863 = vpop.f32.mrf.mxu0
      %v3864 = vpop.f32.mrf.mxu0
      %v3865 = vadd.f32 %v3704, %v3864
      %v3866 = vpop.f32.mrf.mxu0
      %3867 = vmatprep.mubr.bf16.mxu0 %v2182
      %3868 = vmatmul.mubr.bf16.gmra.mxu0 %v2181
      %v3869 = vpop.f32.mrf.mxu0
      %v3870 = vadd.f32 %v3709, %v3869
      %v3871 = vpop.f32.mrf.mxu0
      %v3872 = vpop.f32.mrf.mxu0
      %v3873 = vadd.f32 %v3712, %v3872
      %v3874 = vpop.f32.mrf.mxu0
      %3875 = vmatprep.mubr.bf16.mxu0 %v2203
      %3876 = vmatmul.mubr.bf16.gmra.mxu0 %v2202
      %v3877 = vpop.f32.mrf.mxu0
      %v3878 = vadd.f32 %v3717, %v3877
      %v3879 = vpop.f32.mrf.mxu0
      %v3880 = vpop.f32.mrf.mxu0
      %v3881 = vadd.f32 %v3720, %v3880
      %v3882 = vpop.f32.mrf.mxu0
      %3883 = vdwg.mxu0
      %3884 = vmatprep.subr.bf16.mxu0 0
      %3885 = vmatpush1.bf16.msra.mxu0 %v3228
      %3886 = vmatprep.subr.bf16.mxu0 0
      %3887 = vmatpush1.bf16.msra.mxu0 %v3227
      %3888 = vmatprep.subr.bf16.mxu0 0
      %3889 = vmatpush1.bf16.msra.mxu0 %v3226
      %3890 = vmatprep.subr.bf16.mxu0 0
      %3891 = vmatpush1.bf16.msra.mxu0 %v3225
      %3892 = vmatprep.subr.bf16.mxu0 0
      %3893 = vmatpush1.bf16.msra.mxu0 %v3224
      %3894 = vmatprep.subr.bf16.mxu0 0
      %3895 = vmatpush1.bf16.msra.mxu0 %v3223
      %3896 = vmatprep.subr.bf16.mxu0 0
      %3897 = vmatpush1.bf16.msra.mxu0 %v3222
      %3898 = vmatprep.subr.bf16.mxu0 0
      %3899 = vmatpush1.bf16.msra.mxu0 %v3221
      %3900 = vmatprep.subr.bf16.mxu0 0
      %3901 = vmatpush2.bf16.msra.mxu0 %v3236
      %3902 = vmatprep.subr.bf16.mxu0 0
      %3903 = vmatpush2.bf16.msra.mxu0 %v3235
      %3904 = vmatprep.subr.bf16.mxu0 0
      %3905 = vmatpush2.bf16.msra.mxu0 %v3234
      %3906 = vmatprep.subr.bf16.mxu0 0
      %3907 = vmatpush2.bf16.msra.mxu0 %v3233
      %3908 = vmatprep.subr.bf16.mxu0 0
      %3909 = vmatpush2.bf16.msra.mxu0 %v3232
      %3910 = vmatprep.subr.bf16.mxu0 0
      %3911 = vmatpush2.bf16.msra.mxu0 %v3231
      %3912 = vmatprep.subr.bf16.mxu0 0
      %3913 = vmatpush2.bf16.msra.mxu0 %v3230
      %3914 = vmatprep.subr.bf16.mxu0 0
      %3915 = vmatpush2.bf16.msra.mxu0 %v3229
      %3916 = vmatprep.mubr.bf16.mxu0 %v1890
      %3917 = vmatmul.mubr.bf16.gmra.mxu0 %v1889
      %v3918 = vpop.f32.mrf.mxu0
      %v3919 = vadd.f32 %v3758, %v3918
      %v3920 = vpop.f32.mrf.mxu0
      %v3921 = vpop.f32.mrf.mxu0
      %v3922 = vadd.f32 %v3761, %v3921
      %v3923 = vpop.f32.mrf.mxu0
      %3924 = vmatprep.mubr.bf16.mxu0 %v1911
      %3925 = vmatmul.mubr.bf16.gmra.mxu0 %v1910
      %v3926 = vpop.f32.mrf.mxu0
      %v3927 = vadd.f32 %v3766, %v3926
      %v3928 = vpop.f32.mrf.mxu0
      %v3929 = vpop.f32.mrf.mxu0
      %v3930 = vadd.f32 %v3769, %v3929
      %v3931 = vpop.f32.mrf.mxu0
      %3932 = vmatprep.mubr.bf16.mxu0 %v1932
      %3933 = vmatmul.mubr.bf16.gmra.mxu0 %v1931
      %v3934 = vpop.f32.mrf.mxu0
      %v3935 = vadd.f32 %v3774, %v3934
      %v3936 = vpop.f32.mrf.mxu0
      %v3937 = vpop.f32.mrf.mxu0
      %v3938 = vadd.f32 %v3777, %v3937
      %v3939 = vpop.f32.mrf.mxu0
      %3940 = vmatprep.mubr.bf16.mxu0 %v1953
      %3941 = vmatmul.mubr.bf16.gmra.mxu0 %v1952
      %v3942 = vpop.f32.mrf.mxu0
      %v3943 = vadd.f32 %v3782, %v3942
      %v3944 = vpop.f32.mrf.mxu0
      %v3945 = vpop.f32.mrf.mxu0
      %v3946 = vadd.f32 %v3785, %v3945
      %v3947 = vpop.f32.mrf.mxu0
      %3948 = vmatprep.mubr.bf16.mxu0 %v1974
      %3949 = vmatmul.mubr.bf16.gmra.mxu0 %v1973
      %v3950 = vpop.f32.mrf.mxu0
      %v3951 = vadd.f32 %v3790, %v3950
      %v3952 = vpop.f32.mrf.mxu0
      %v3953 = vpop.f32.mrf.mxu0
      %v3954 = vadd.f32 %v3793, %v3953
      %v3955 = vpop.f32.mrf.mxu0
      %3956 = vmatprep.mubr.bf16.mxu0 %v1995
      %3957 = vmatmul.mubr.bf16.gmra.mxu0 %v1994
      %v3958 = vpop.f32.mrf.mxu0
      %v3959 = vadd.f32 %v3798, %v3958
      %v3960 = vpop.f32.mrf.mxu0
      %v3961 = vpop.f32.mrf.mxu0
      %v3962 = vadd.f32 %v3801, %v3961
      %v3963 = vpop.f32.mrf.mxu0
      %3964 = vmatprep.mubr.bf16.mxu0 %v2016
      %3965 = vmatmul.mubr.bf16.gmra.mxu0 %v2015
      %v3966 = vpop.f32.mrf.mxu0
      %v3967 = vadd.f32 %v3806, %v3966
      %v3968 = vpop.f32.mrf.mxu0
      %v3969 = vpop.f32.mrf.mxu0
      %v3970 = vadd.f32 %v3809, %v3969
      %v3971 = vpop.f32.mrf.mxu0
      %3972 = vmatprep.mubr.bf16.mxu0 %v2037
      %3973 = vmatmul.mubr.bf16.gmra.mxu0 %v2036
      %v3974 = vpop.f32.mrf.mxu0
      %v3975 = vadd.f32 %v3814, %v3974
      %v3976 = vpop.f32.mrf.mxu0
      %v3977 = vpop.f32.mrf.mxu0
      %v3978 = vadd.f32 %v3817, %v3977
      %v3979 = vpop.f32.mrf.mxu0
      %3980 = vmatprep.mubr.bf16.mxu0 %v2058
      %3981 = vmatmul.mubr.bf16.gmra.mxu0 %v2057
      %v3982 = vpop.f32.mrf.mxu0
      %v3983 = vadd.f32 %v3822, %v3982
      %v3984 = vpop.f32.mrf.mxu0
      %v3985 = vpop.f32.mrf.mxu0
      %v3986 = vadd.f32 %v3825, %v3985
      %v3987 = vpop.f32.mrf.mxu0
      %3988 = vmatprep.mubr.bf16.mxu0 %v2079
      %3989 = vmatmul.mubr.bf16.gmra.mxu0 %v2078
      %v3990 = vpop.f32.mrf.mxu0
      %v3991 = vadd.f32 %v3830, %v3990
      %v3992 = vpop.f32.mrf.mxu0
      %v3993 = vpop.f32.mrf.mxu0
      %v3994 = vadd.f32 %v3833, %v3993
      %v3995 = vpop.f32.mrf.mxu0
      %3996 = vmatprep.mubr.bf16.mxu0 %v2100
      %3997 = vmatmul.mubr.bf16.gmra.mxu0 %v2099
      %v3998 = vpop.f32.mrf.mxu0
      %v3999 = vadd.f32 %v3838, %v3998
      %v4000 = vpop.f32.mrf.mxu0
      %v4001 = vpop.f32.mrf.mxu0
      %v4002 = vadd.f32 %v3841, %v4001
      %v4003 = vpop.f32.mrf.mxu0
      %4004 = vmatprep.mubr.bf16.mxu0 %v2121
      %4005 = vmatmul.mubr.bf16.gmra.mxu0 %v2120
      %v4006 = vpop.f32.mrf.mxu0
      %v4007 = vadd.f32 %v3846, %v4006
      %v4008 = vpop.f32.mrf.mxu0
      %v4009 = vpop.f32.mrf.mxu0
      %v4010 = vadd.f32 %v3849, %v4009
      %v4011 = vpop.f32.mrf.mxu0
      %4012 = vmatprep.mubr.bf16.mxu0 %v2142
      %4013 = vmatmul.mubr.bf16.gmra.mxu0 %v2141
      %v4014 = vpop.f32.mrf.mxu0
      %v4015 = vadd.f32 %v3854, %v4014
      %v4016 = vpop.f32.mrf.mxu0
      %v4017 = vpop.f32.mrf.mxu0
      %v4018 = vadd.f32 %v3857, %v4017
      %v4019 = vpop.f32.mrf.mxu0
      %4020 = vmatprep.mubr.bf16.mxu0 %v2163
      %4021 = vmatmul.mubr.bf16.gmra.mxu0 %v2162
      %v4022 = vpop.f32.mrf.mxu0
      %v4023 = vadd.f32 %v3862, %v4022
      %v4024 = vpop.f32.mrf.mxu0
      %v4025 = vpop.f32.mrf.mxu0
      %v4026 = vadd.f32 %v3865, %v4025
      %v4027 = vpop.f32.mrf.mxu0
      %4028 = vmatprep.mubr.bf16.mxu0 %v2184
      %4029 = vmatmul.mubr.bf16.gmra.mxu0 %v2183
      %v4030 = vpop.f32.mrf.mxu0
      %v4031 = vadd.f32 %v3870, %v4030
      %v4032 = vpop.f32.mrf.mxu0
      %v4033 = vpop.f32.mrf.mxu0
      %v4034 = vadd.f32 %v3873, %v4033
      %v4035 = vpop.f32.mrf.mxu0
      %4036 = vmatprep.mubr.bf16.mxu0 %v2205
      %4037 = vmatmul.mubr.bf16.gmra.mxu0 %v2204
      %v4038 = vpop.f32.mrf.mxu0
      %v4039 = vadd.f32 %v3878, %v4038
      %v4040 = vpop.f32.mrf.mxu0
      %v4041 = vpop.f32.mrf.mxu0
      %v4042 = vadd.f32 %v3881, %v4041
      %v4043 = vpop.f32.mrf.mxu0
      %4044 = vdwg.mxu0
      %4045 = vmatprep.subr.bf16.mxu0 0
      %4046 = vmatpush1.bf16.msra.mxu0 %v3244
      %4047 = vmatprep.subr.bf16.mxu0 0
      %4048 = vmatpush1.bf16.msra.mxu0 %v3243
      %4049 = vmatprep.subr.bf16.mxu0 0
      %4050 = vmatpush1.bf16.msra.mxu0 %v3242
      %4051 = vmatprep.subr.bf16.mxu0 0
      %4052 = vmatpush1.bf16.msra.mxu0 %v3241
      %4053 = vmatprep.subr.bf16.mxu0 0
      %4054 = vmatpush1.bf16.msra.mxu0 %v3240
      %4055 = vmatprep.subr.bf16.mxu0 0
      %4056 = vmatpush1.bf16.msra.mxu0 %v3239
      %4057 = vmatprep.subr.bf16.mxu0 0
      %4058 = vmatpush1.bf16.msra.mxu0 %v3238
      %4059 = vmatprep.subr.bf16.mxu0 0
      %4060 = vmatpush1.bf16.msra.mxu0 %v3237
      %4061 = vmatprep.subr.bf16.mxu0 0
      %4062 = vmatpush2.bf16.msra.mxu0 %v3252
      %4063 = vmatprep.subr.bf16.mxu0 0
      %4064 = vmatpush2.bf16.msra.mxu0 %v3251
      %4065 = vmatprep.subr.bf16.mxu0 0
      %4066 = vmatpush2.bf16.msra.mxu0 %v3250
      %4067 = vmatprep.subr.bf16.mxu0 0
      %4068 = vmatpush2.bf16.msra.mxu0 %v3249
      %4069 = vmatprep.subr.bf16.mxu0 0
      %4070 = vmatpush2.bf16.msra.mxu0 %v3248
      %4071 = vmatprep.subr.bf16.mxu0 0
      %4072 = vmatpush2.bf16.msra.mxu0 %v3247
      %4073 = vmatprep.subr.bf16.mxu0 0
      %4074 = vmatpush2.bf16.msra.mxu0 %v3246
      %4075 = vmatprep.subr.bf16.mxu0 0
      %4076 = vmatpush2.bf16.msra.mxu0 %v3245
      %4077 = vmatprep.mubr.bf16.mxu0 %v1892
      %4078 = vmatmul.mubr.bf16.gmra.mxu0 %v1891
      %v4079 = vpop.f32.mrf.mxu0
      %v4080 = vadd.f32 %v3919, %v4079
      %v4081 = vpop.f32.mrf.mxu0
      %v4082 = vpop.f32.mrf.mxu0
      %v4083 = vadd.f32 %v3922, %v4082
      %v4084 = vpop.f32.mrf.mxu0
      %4085 = vmatprep.mubr.bf16.mxu0 %v1913
      %4086 = vmatmul.mubr.bf16.gmra.mxu0 %v1912
      %v4087 = vpop.f32.mrf.mxu0
      %v4088 = vadd.f32 %v3927, %v4087
      %v4089 = vpop.f32.mrf.mxu0
      %v4090 = vpop.f32.mrf.mxu0
      %v4091 = vadd.f32 %v3930, %v4090
      %v4092 = vpop.f32.mrf.mxu0
      %4093 = vmatprep.mubr.bf16.mxu0 %v1934
      %4094 = vmatmul.mubr.bf16.gmra.mxu0 %v1933
      %v4095 = vpop.f32.mrf.mxu0
      %v4096 = vadd.f32 %v3935, %v4095
      %v4097 = vpop.f32.mrf.mxu0
      %v4098 = vpop.f32.mrf.mxu0
      %v4099 = vadd.f32 %v3938, %v4098
      %v4100 = vpop.f32.mrf.mxu0
      %4101 = vmatprep.mubr.bf16.mxu0 %v1955
      %4102 = vmatmul.mubr.bf16.gmra.mxu0 %v1954
      %v4103 = vpop.f32.mrf.mxu0
      %v4104 = vadd.f32 %v3943, %v4103
      %v4105 = vpop.f32.mrf.mxu0
      %v4106 = vpop.f32.mrf.mxu0
      %v4107 = vadd.f32 %v3946, %v4106
      %v4108 = vpop.f32.mrf.mxu0
      %4109 = vmatprep.mubr.bf16.mxu0 %v1976
      %4110 = vmatmul.mubr.bf16.gmra.mxu0 %v1975
      %v4111 = vpop.f32.mrf.mxu0
      %v4112 = vadd.f32 %v3951, %v4111
      %v4113 = vpop.f32.mrf.mxu0
      %v4114 = vpop.f32.mrf.mxu0
      %v4115 = vadd.f32 %v3954, %v4114
      %v4116 = vpop.f32.mrf.mxu0
      %4117 = vmatprep.mubr.bf16.mxu0 %v1997
      %4118 = vmatmul.mubr.bf16.gmra.mxu0 %v1996
      %v4119 = vpop.f32.mrf.mxu0
      %v4120 = vadd.f32 %v3959, %v4119
      %v4121 = vpop.f32.mrf.mxu0
      %v4122 = vpop.f32.mrf.mxu0
      %v4123 = vadd.f32 %v3962, %v4122
      %v4124 = vpop.f32.mrf.mxu0
      %4125 = vmatprep.mubr.bf16.mxu0 %v2018
      %4126 = vmatmul.mubr.bf16.gmra.mxu0 %v2017
      %v4127 = vpop.f32.mrf.mxu0
      %v4128 = vadd.f32 %v3967, %v4127
      %v4129 = vpop.f32.mrf.mxu0
      %v4130 = vpop.f32.mrf.mxu0
      %v4131 = vadd.f32 %v3970, %v4130
      %v4132 = vpop.f32.mrf.mxu0
      %4133 = vmatprep.mubr.bf16.mxu0 %v2039
      %4134 = vmatmul.mubr.bf16.gmra.mxu0 %v2038
      %v4135 = vpop.f32.mrf.mxu0
      %v4136 = vadd.f32 %v3975, %v4135
      %v4137 = vpop.f32.mrf.mxu0
      %v4138 = vpop.f32.mrf.mxu0
      %v4139 = vadd.f32 %v3978, %v4138
      %v4140 = vpop.f32.mrf.mxu0
      %4141 = vmatprep.mubr.bf16.mxu0 %v2060
      %4142 = vmatmul.mubr.bf16.gmra.mxu0 %v2059
      %v4143 = vpop.f32.mrf.mxu0
      %v4144 = vadd.f32 %v3983, %v4143
      %v4145 = vpop.f32.mrf.mxu0
      %v4146 = vpop.f32.mrf.mxu0
      %v4147 = vadd.f32 %v3986, %v4146
      %v4148 = vpop.f32.mrf.mxu0
      %4149 = vmatprep.mubr.bf16.mxu0 %v2081
      %4150 = vmatmul.mubr.bf16.gmra.mxu0 %v2080
      %v4151 = vpop.f32.mrf.mxu0
      %v4152 = vadd.f32 %v3991, %v4151
      %v4153 = vpop.f32.mrf.mxu0
      %v4154 = vpop.f32.mrf.mxu0
      %v4155 = vadd.f32 %v3994, %v4154
      %v4156 = vpop.f32.mrf.mxu0
      %4157 = vmatprep.mubr.bf16.mxu0 %v2102
      %4158 = vmatmul.mubr.bf16.gmra.mxu0 %v2101
      %v4159 = vpop.f32.mrf.mxu0
      %v4160 = vadd.f32 %v3999, %v4159
      %v4161 = vpop.f32.mrf.mxu0
      %v4162 = vpop.f32.mrf.mxu0
      %v4163 = vadd.f32 %v4002, %v4162
      %v4164 = vpop.f32.mrf.mxu0
      %4165 = vmatprep.mubr.bf16.mxu0 %v2123
      %4166 = vmatmul.mubr.bf16.gmra.mxu0 %v2122
      %v4167 = vpop.f32.mrf.mxu0
      %v4168 = vadd.f32 %v4007, %v4167
      %v4169 = vpop.f32.mrf.mxu0
      %v4170 = vpop.f32.mrf.mxu0
      %v4171 = vadd.f32 %v4010, %v4170
      %v4172 = vpop.f32.mrf.mxu0
      %4173 = vmatprep.mubr.bf16.mxu0 %v2144
      %4174 = vmatmul.mubr.bf16.gmra.mxu0 %v2143
      %v4175 = vpop.f32.mrf.mxu0
      %v4176 = vadd.f32 %v4015, %v4175
      %v4177 = vpop.f32.mrf.mxu0
      %v4178 = vpop.f32.mrf.mxu0
      %v4179 = vadd.f32 %v4018, %v4178
      %v4180 = vpop.f32.mrf.mxu0
      %4181 = vmatprep.mubr.bf16.mxu0 %v2165
      %4182 = vmatmul.mubr.bf16.gmra.mxu0 %v2164
      %v4183 = vpop.f32.mrf.mxu0
      %v4184 = vadd.f32 %v4023, %v4183
      %v4185 = vpop.f32.mrf.mxu0
      %v4186 = vpop.f32.mrf.mxu0
      %v4187 = vadd.f32 %v4026, %v4186
      %v4188 = vpop.f32.mrf.mxu0
      %4189 = vmatprep.mubr.bf16.mxu0 %v2186
      %4190 = vmatmul.mubr.bf16.gmra.mxu0 %v2185
      %v4191 = vpop.f32.mrf.mxu0
      %v4192 = vadd.f32 %v4031, %v4191
      %v4193 = vpop.f32.mrf.mxu0
      %v4194 = vpop.f32.mrf.mxu0
      %v4195 = vadd.f32 %v4034, %v4194
      %v4196 = vpop.f32.mrf.mxu0
      %4197 = vmatprep.mubr.bf16.mxu0 %v2207
      %4198 = vmatmul.mubr.bf16.gmra.mxu0 %v2206
      %v4199 = vpop.f32.mrf.mxu0
      %v4200 = vadd.f32 %v4039, %v4199
      %v4201 = vpop.f32.mrf.mxu0
      %v4202 = vpop.f32.mrf.mxu0
      %v4203 = vadd.f32 %v4042, %v4202
      %v4204 = vpop.f32.mrf.mxu0
      %4205 = vdwg.mxu0
      %4206 = vmatprep.subr.bf16.mxu0 0
      %4207 = vmatpush1.bf16.msra.mxu0 %v3260
      %4208 = vmatprep.subr.bf16.mxu0 0
      %4209 = vmatpush1.bf16.msra.mxu0 %v3259
      %4210 = vmatprep.subr.bf16.mxu0 0
      %4211 = vmatpush1.bf16.msra.mxu0 %v3258
      %4212 = vmatprep.subr.bf16.mxu0 0
      %4213 = vmatpush1.bf16.msra.mxu0 %v3257
      %4214 = vmatprep.subr.bf16.mxu0 0
      %4215 = vmatpush1.bf16.msra.mxu0 %v3256
      %4216 = vmatprep.subr.bf16.mxu0 0
      %4217 = vmatpush1.bf16.msra.mxu0 %v3255
      %4218 = vmatprep.subr.bf16.mxu0 0
      %4219 = vmatpush1.bf16.msra.mxu0 %v3254
      %4220 = vmatprep.subr.bf16.mxu0 0
      %4221 = vmatpush1.bf16.msra.mxu0 %v3253
      %4222 = vmatprep.subr.bf16.mxu0 0
      %4223 = vmatpush2.bf16.msra.mxu0 %v3268
      %4224 = vmatprep.subr.bf16.mxu0 0
      %4225 = vmatpush2.bf16.msra.mxu0 %v3267
      %4226 = vmatprep.subr.bf16.mxu0 0
      %4227 = vmatpush2.bf16.msra.mxu0 %v3266
      %4228 = vmatprep.subr.bf16.mxu0 0
      %4229 = vmatpush2.bf16.msra.mxu0 %v3265
      %4230 = vmatprep.subr.bf16.mxu0 0
      %4231 = vmatpush2.bf16.msra.mxu0 %v3264
      %4232 = vmatprep.subr.bf16.mxu0 0
      %4233 = vmatpush2.bf16.msra.mxu0 %v3263
      %4234 = vmatprep.subr.bf16.mxu0 0
      %4235 = vmatpush2.bf16.msra.mxu0 %v3262
      %4236 = vmatprep.subr.bf16.mxu0 0
      %4237 = vmatpush2.bf16.msra.mxu0 %v3261
      %4238 = vmatprep.mubr.bf16.mxu0 %v1894
      %4239 = vmatmul.mubr.bf16.gmra.mxu0 %v1893
      %v4240 = vpop.f32.mrf.mxu0
      %v4241 = vadd.f32 %v4080, %v4240
      %v4242 = vpop.f32.mrf.mxu0
      %v4243 = vpop.f32.mrf.mxu0
      %v4244 = vadd.f32 %v4083, %v4243
      %v4245 = vpop.f32.mrf.mxu0
      %4246 = vmatprep.mubr.bf16.mxu0 %v1915
      %4247 = vmatmul.mubr.bf16.gmra.mxu0 %v1914
      %v4248 = vpop.f32.mrf.mxu0
      %v4249 = vadd.f32 %v4088, %v4248
      %v4250 = vpop.f32.mrf.mxu0
      %v4251 = vpop.f32.mrf.mxu0
      %v4252 = vadd.f32 %v4091, %v4251
      %v4253 = vpop.f32.mrf.mxu0
      %4254 = vmatprep.mubr.bf16.mxu0 %v1936
      %4255 = vmatmul.mubr.bf16.gmra.mxu0 %v1935
      %v4256 = vpop.f32.mrf.mxu0
      %v4257 = vadd.f32 %v4096, %v4256
      %v4258 = vpop.f32.mrf.mxu0
      %v4259 = vpop.f32.mrf.mxu0
      %v4260 = vadd.f32 %v4099, %v4259
      %v4261 = vpop.f32.mrf.mxu0
      %4262 = vmatprep.mubr.bf16.mxu0 %v1957
      %4263 = vmatmul.mubr.bf16.gmra.mxu0 %v1956
      %v4264 = vpop.f32.mrf.mxu0
      %v4265 = vadd.f32 %v4104, %v4264
      %v4266 = vpop.f32.mrf.mxu0
      %v4267 = vpop.f32.mrf.mxu0
      %v4268 = vadd.f32 %v4107, %v4267
      %v4269 = vpop.f32.mrf.mxu0
      %4270 = vmatprep.mubr.bf16.mxu0 %v1978
      %4271 = vmatmul.mubr.bf16.gmra.mxu0 %v1977
      %v4272 = vpop.f32.mrf.mxu0
      %v4273 = vadd.f32 %v4112, %v4272
      %v4274 = vpop.f32.mrf.mxu0
      %v4275 = vpop.f32.mrf.mxu0
      %v4276 = vadd.f32 %v4115, %v4275
      %v4277 = vpop.f32.mrf.mxu0
      %4278 = vmatprep.mubr.bf16.mxu0 %v1999
      %4279 = vmatmul.mubr.bf16.gmra.mxu0 %v1998
      %v4280 = vpop.f32.mrf.mxu0
      %v4281 = vadd.f32 %v4120, %v4280
      %v4282 = vpop.f32.mrf.mxu0
      %v4283 = vpop.f32.mrf.mxu0
      %v4284 = vadd.f32 %v4123, %v4283
      %v4285 = vpop.f32.mrf.mxu0
      %4286 = vmatprep.mubr.bf16.mxu0 %v2020
      %4287 = vmatmul.mubr.bf16.gmra.mxu0 %v2019
      %v4288 = vpop.f32.mrf.mxu0
      %v4289 = vadd.f32 %v4128, %v4288
      %v4290 = vpop.f32.mrf.mxu0
      %v4291 = vpop.f32.mrf.mxu0
      %v4292 = vadd.f32 %v4131, %v4291
      %v4293 = vpop.f32.mrf.mxu0
      %4294 = vmatprep.mubr.bf16.mxu0 %v2041
      %4295 = vmatmul.mubr.bf16.gmra.mxu0 %v2040
      %v4296 = vpop.f32.mrf.mxu0
      %v4297 = vadd.f32 %v4136, %v4296
      %v4298 = vpop.f32.mrf.mxu0
      %v4299 = vpop.f32.mrf.mxu0
      %v4300 = vadd.f32 %v4139, %v4299
      %v4301 = vpop.f32.mrf.mxu0
      %4302 = vmatprep.mubr.bf16.mxu0 %v2062
      %4303 = vmatmul.mubr.bf16.gmra.mxu0 %v2061
      %v4304 = vpop.f32.mrf.mxu0
      %v4305 = vadd.f32 %v4144, %v4304
      %v4306 = vpop.f32.mrf.mxu0
      %v4307 = vpop.f32.mrf.mxu0
      %v4308 = vadd.f32 %v4147, %v4307
      %v4309 = vpop.f32.mrf.mxu0
      %4310 = vmatprep.mubr.bf16.mxu0 %v2083
      %4311 = vmatmul.mubr.bf16.gmra.mxu0 %v2082
      %v4312 = vpop.f32.mrf.mxu0
      %v4313 = vadd.f32 %v4152, %v4312
      %v4314 = vpop.f32.mrf.mxu0
      %v4315 = vpop.f32.mrf.mxu0
      %v4316 = vadd.f32 %v4155, %v4315
      %v4317 = vpop.f32.mrf.mxu0
      %4318 = vmatprep.mubr.bf16.mxu0 %v2104
      %4319 = vmatmul.mubr.bf16.gmra.mxu0 %v2103
      %v4320 = vpop.f32.mrf.mxu0
      %v4321 = vadd.f32 %v4160, %v4320
      %v4322 = vpop.f32.mrf.mxu0
      %v4323 = vpop.f32.mrf.mxu0
      %v4324 = vadd.f32 %v4163, %v4323
      %v4325 = vpop.f32.mrf.mxu0
      %4326 = vmatprep.mubr.bf16.mxu0 %v2125
      %4327 = vmatmul.mubr.bf16.gmra.mxu0 %v2124
      %v4328 = vpop.f32.mrf.mxu0
      %v4329 = vadd.f32 %v4168, %v4328
      %v4330 = vpop.f32.mrf.mxu0
      %v4331 = vpop.f32.mrf.mxu0
      %v4332 = vadd.f32 %v4171, %v4331
      %v4333 = vpop.f32.mrf.mxu0
      %4334 = vmatprep.mubr.bf16.mxu0 %v2146
      %4335 = vmatmul.mubr.bf16.gmra.mxu0 %v2145
      %v4336 = vpop.f32.mrf.mxu0
      %v4337 = vadd.f32 %v4176, %v4336
      %v4338 = vpop.f32.mrf.mxu0
      %v4339 = vpop.f32.mrf.mxu0
      %v4340 = vadd.f32 %v4179, %v4339
      %v4341 = vpop.f32.mrf.mxu0
      %4342 = vmatprep.mubr.bf16.mxu0 %v2167
      %4343 = vmatmul.mubr.bf16.gmra.mxu0 %v2166
      %v4344 = vpop.f32.mrf.mxu0
      %v4345 = vadd.f32 %v4184, %v4344
      %v4346 = vpop.f32.mrf.mxu0
      %v4347 = vpop.f32.mrf.mxu0
      %v4348 = vadd.f32 %v4187, %v4347
      %v4349 = vpop.f32.mrf.mxu0
      %4350 = vmatprep.mubr.bf16.mxu0 %v2188
      %4351 = vmatmul.mubr.bf16.gmra.mxu0 %v2187
      %v4352 = vpop.f32.mrf.mxu0
      %v4353 = vadd.f32 %v4192, %v4352
      %v4354 = vpop.f32.mrf.mxu0
      %v4355 = vpop.f32.mrf.mxu0
      %v4356 = vadd.f32 %v4195, %v4355
      %v4357 = vpop.f32.mrf.mxu0
      %4358 = vmatprep.mubr.bf16.mxu0 %v2209
      %4359 = vmatmul.mubr.bf16.gmra.mxu0 %v2208
      %v4360 = vpop.f32.mrf.mxu0
      %v4361 = vadd.f32 %v4200, %v4360
      %v4362 = vpop.f32.mrf.mxu0
      %v4363 = vpop.f32.mrf.mxu0
      %v4364 = vadd.f32 %v4203, %v4363
      %v4365 = vpop.f32.mrf.mxu0
      %4366 = vdwg.mxu0
      %4367 = vmatprep.subr.bf16.mxu0 0
      %4368 = vmatpush1.bf16.msra.mxu0 %v3276
      %4369 = vmatprep.subr.bf16.mxu0 0
      %4370 = vmatpush1.bf16.msra.mxu0 %v3275
      %4371 = vmatprep.subr.bf16.mxu0 0
      %4372 = vmatpush1.bf16.msra.mxu0 %v3274
      %4373 = vmatprep.subr.bf16.mxu0 0
      %4374 = vmatpush1.bf16.msra.mxu0 %v3273
      %4375 = vmatprep.subr.bf16.mxu0 0
      %4376 = vmatpush1.bf16.msra.mxu0 %v3272
      %4377 = vmatprep.subr.bf16.mxu0 0
      %4378 = vmatpush1.bf16.msra.mxu0 %v3271
      %4379 = vmatprep.subr.bf16.mxu0 0
      %4380 = vmatpush1.bf16.msra.mxu0 %v3270
      %4381 = vmatprep.subr.bf16.mxu0 0
      %4382 = vmatpush1.bf16.msra.mxu0 %v3269
      %4383 = vmatprep.subr.bf16.mxu0 0
      %4384 = vmatpush2.bf16.msra.mxu0 %v3284
      %4385 = vmatprep.subr.bf16.mxu0 0
      %4386 = vmatpush2.bf16.msra.mxu0 %v3283
      %4387 = vmatprep.subr.bf16.mxu0 0
      %4388 = vmatpush2.bf16.msra.mxu0 %v3282
      %4389 = vmatprep.subr.bf16.mxu0 0
      %4390 = vmatpush2.bf16.msra.mxu0 %v3281
      %4391 = vmatprep.subr.bf16.mxu0 0
      %4392 = vmatpush2.bf16.msra.mxu0 %v3280
      %4393 = vmatprep.subr.bf16.mxu0 0
      %4394 = vmatpush2.bf16.msra.mxu0 %v3279
      %4395 = vmatprep.subr.bf16.mxu0 0
      %4396 = vmatpush2.bf16.msra.mxu0 %v3278
      %4397 = vmatprep.subr.bf16.mxu0 0
      %4398 = vmatpush2.bf16.msra.mxu0 %v3277
      %4399 = vmatprep.mubr.bf16.mxu0 %v1896
      %4400 = vmatmul.mubr.bf16.gmra.mxu0 %v1895
      %v4401 = vpop.f32.mrf.mxu0
      %v4402 = vadd.f32 %v4241, %v4401
      %v4403 = vpop.f32.mrf.mxu0
      %v4404 = vpop.f32.mrf.mxu0
      %v4405 = vadd.f32 %v4244, %v4404
      %v4406 = vpop.f32.mrf.mxu0
      %4407 = vmatprep.mubr.bf16.mxu0 %v1917
      %4408 = vmatmul.mubr.bf16.gmra.mxu0 %v1916
      %v4409 = vpop.f32.mrf.mxu0
      %v4410 = vadd.f32 %v4249, %v4409
      %v4411 = vpop.f32.mrf.mxu0
      %v4412 = vpop.f32.mrf.mxu0
      %v4413 = vadd.f32 %v4252, %v4412
      %v4414 = vpop.f32.mrf.mxu0
      %4415 = vmatprep.mubr.bf16.mxu0 %v1938
      %4416 = vmatmul.mubr.bf16.gmra.mxu0 %v1937
      %v4417 = vpop.f32.mrf.mxu0
      %v4418 = vadd.f32 %v4257, %v4417
      %v4419 = vpop.f32.mrf.mxu0
      %v4420 = vpop.f32.mrf.mxu0
      %v4421 = vadd.f32 %v4260, %v4420
      %v4422 = vpop.f32.mrf.mxu0
      %4423 = vmatprep.mubr.bf16.mxu0 %v1959
      %4424 = vmatmul.mubr.bf16.gmra.mxu0 %v1958
      %v4425 = vpop.f32.mrf.mxu0
      %v4426 = vadd.f32 %v4265, %v4425
      %v4427 = vpop.f32.mrf.mxu0
      %v4428 = vpop.f32.mrf.mxu0
      %v4429 = vadd.f32 %v4268, %v4428
      %v4430 = vpop.f32.mrf.mxu0
      %4431 = vmatprep.mubr.bf16.mxu0 %v1980
      %4432 = vmatmul.mubr.bf16.gmra.mxu0 %v1979
      %v4433 = vpop.f32.mrf.mxu0
      %v4434 = vadd.f32 %v4273, %v4433
      %v4435 = vpop.f32.mrf.mxu0
      %v4436 = vpop.f32.mrf.mxu0
      %v4437 = vadd.f32 %v4276, %v4436
      %v4438 = vpop.f32.mrf.mxu0
      %4439 = vmatprep.mubr.bf16.mxu0 %v2001
      %4440 = vmatmul.mubr.bf16.gmra.mxu0 %v2000
      %v4441 = vpop.f32.mrf.mxu0
      %v4442 = vadd.f32 %v4281, %v4441
      %v4443 = vpop.f32.mrf.mxu0
      %v4444 = vpop.f32.mrf.mxu0
      %v4445 = vadd.f32 %v4284, %v4444
      %v4446 = vpop.f32.mrf.mxu0
      %4447 = vmatprep.mubr.bf16.mxu0 %v2022
      %4448 = vmatmul.mubr.bf16.gmra.mxu0 %v2021
      %v4449 = vpop.f32.mrf.mxu0
      %v4450 = vadd.f32 %v4289, %v4449
      %v4451 = vpop.f32.mrf.mxu0
      %v4452 = vpop.f32.mrf.mxu0
      %v4453 = vadd.f32 %v4292, %v4452
      %v4454 = vpop.f32.mrf.mxu0
      %4455 = vmatprep.mubr.bf16.mxu0 %v2043
      %4456 = vmatmul.mubr.bf16.gmra.mxu0 %v2042
      %v4457 = vpop.f32.mrf.mxu0
      %v4458 = vadd.f32 %v4297, %v4457
      %v4459 = vpop.f32.mrf.mxu0
      %v4460 = vpop.f32.mrf.mxu0
      %v4461 = vadd.f32 %v4300, %v4460
      %v4462 = vpop.f32.mrf.mxu0
      %4463 = vmatprep.mubr.bf16.mxu0 %v2064
      %4464 = vmatmul.mubr.bf16.gmra.mxu0 %v2063
      %v4465 = vpop.f32.mrf.mxu0
      %v4466 = vadd.f32 %v4305, %v4465
      %v4467 = vpop.f32.mrf.mxu0
      %v4468 = vpop.f32.mrf.mxu0
      %v4469 = vadd.f32 %v4308, %v4468
      %v4470 = vpop.f32.mrf.mxu0
      %4471 = vmatprep.mubr.bf16.mxu0 %v2085
      %4472 = vmatmul.mubr.bf16.gmra.mxu0 %v2084
      %v4473 = vpop.f32.mrf.mxu0
      %v4474 = vadd.f32 %v4313, %v4473
      %v4475 = vpop.f32.mrf.mxu0
      %v4476 = vpop.f32.mrf.mxu0
      %v4477 = vadd.f32 %v4316, %v4476
      %v4478 = vpop.f32.mrf.mxu0
      %4479 = vmatprep.mubr.bf16.mxu0 %v2106
      %4480 = vmatmul.mubr.bf16.gmra.mxu0 %v2105
      %v4481 = vpop.f32.mrf.mxu0
      %v4482 = vadd.f32 %v4321, %v4481
      %v4483 = vpop.f32.mrf.mxu0
      %v4484 = vpop.f32.mrf.mxu0
      %v4485 = vadd.f32 %v4324, %v4484
      %v4486 = vpop.f32.mrf.mxu0
      %4487 = vmatprep.mubr.bf16.mxu0 %v2127
      %4488 = vmatmul.mubr.bf16.gmra.mxu0 %v2126
      %v4489 = vpop.f32.mrf.mxu0
      %v4490 = vadd.f32 %v4329, %v4489
      %v4491 = vpop.f32.mrf.mxu0
      %v4492 = vpop.f32.mrf.mxu0
      %v4493 = vadd.f32 %v4332, %v4492
      %v4494 = vpop.f32.mrf.mxu0
      %4495 = vmatprep.mubr.bf16.mxu0 %v2148
      %4496 = vmatmul.mubr.bf16.gmra.mxu0 %v2147
      %v4497 = vpop.f32.mrf.mxu0
      %v4498 = vadd.f32 %v4337, %v4497
      %v4499 = vpop.f32.mrf.mxu0
      %v4500 = vpop.f32.mrf.mxu0
      %v4501 = vadd.f32 %v4340, %v4500
      %v4502 = vpop.f32.mrf.mxu0
      %4503 = vmatprep.mubr.bf16.mxu0 %v2169
      %4504 = vmatmul.mubr.bf16.gmra.mxu0 %v2168
      %v4505 = vpop.f32.mrf.mxu0
      %v4506 = vadd.f32 %v4345, %v4505
      %v4507 = vpop.f32.mrf.mxu0
      %v4508 = vpop.f32.mrf.mxu0
      %v4509 = vadd.f32 %v4348, %v4508
      %v4510 = vpop.f32.mrf.mxu0
      %4511 = vmatprep.mubr.bf16.mxu0 %v2190
      %4512 = vmatmul.mubr.bf16.gmra.mxu0 %v2189
      %v4513 = vpop.f32.mrf.mxu0
      %v4514 = vadd.f32 %v4353, %v4513
      %v4515 = vpop.f32.mrf.mxu0
      %v4516 = vpop.f32.mrf.mxu0
      %v4517 = vadd.f32 %v4356, %v4516
      %v4518 = vpop.f32.mrf.mxu0
      %4519 = vmatprep.mubr.bf16.mxu0 %v2211
      %4520 = vmatmul.mubr.bf16.gmra.mxu0 %v2210
      %v4521 = vpop.f32.mrf.mxu0
      %v4522 = vadd.f32 %v4361, %v4521
      %v4523 = vpop.f32.mrf.mxu0
      %v4524 = vpop.f32.mrf.mxu0
      %v4525 = vadd.f32 %v4364, %v4524
      %v4526 = vpop.f32.mrf.mxu0
      %4527 = vdwg.mxu0
      %4528 = vmatprep.subr.bf16.mxu0 0
      %4529 = vmatpush1.bf16.msra.mxu0 %v3292
      %4530 = vmatprep.subr.bf16.mxu0 0
      %4531 = vmatpush1.bf16.msra.mxu0 %v3291
      %4532 = vmatprep.subr.bf16.mxu0 0
      %4533 = vmatpush1.bf16.msra.mxu0 %v3290
      %4534 = vmatprep.subr.bf16.mxu0 0
      %4535 = vmatpush1.bf16.msra.mxu0 %v3289
      %4536 = vmatprep.subr.bf16.mxu0 0
      %4537 = vmatpush1.bf16.msra.mxu0 %v3288
      %4538 = vmatprep.subr.bf16.mxu0 0
      %4539 = vmatpush1.bf16.msra.mxu0 %v3287
      %4540 = vmatprep.subr.bf16.mxu0 0
      %4541 = vmatpush1.bf16.msra.mxu0 %v3286
      %4542 = vmatprep.subr.bf16.mxu0 0
      %4543 = vmatpush1.bf16.msra.mxu0 %v3285
      %4544 = vmatprep.subr.bf16.mxu0 0
      %4545 = vmatpush2.bf16.msra.mxu0 %v3300
      %4546 = vmatprep.subr.bf16.mxu0 0
      %4547 = vmatpush2.bf16.msra.mxu0 %v3299
      %4548 = vmatprep.subr.bf16.mxu0 0
      %4549 = vmatpush2.bf16.msra.mxu0 %v3298
      %4550 = vmatprep.subr.bf16.mxu0 0
      %4551 = vmatpush2.bf16.msra.mxu0 %v3297
      %4552 = vmatprep.subr.bf16.mxu0 0
      %4553 = vmatpush2.bf16.msra.mxu0 %v3296
      %4554 = vmatprep.subr.bf16.mxu0 0
      %4555 = vmatpush2.bf16.msra.mxu0 %v3295
      %4556 = vmatprep.subr.bf16.mxu0 0
      %4557 = vmatpush2.bf16.msra.mxu0 %v3294
      %4558 = vmatprep.subr.bf16.mxu0 0
      %4559 = vmatpush2.bf16.msra.mxu0 %v3293
      %4560 = vmatprep.mubr.bf16.mxu0 %v1898
      %4561 = vmatmul.mubr.bf16.gmra.mxu0 %v1897
      %v4562 = vpop.f32.mrf.mxu0
      %v4563 = vadd.f32 %v4402, %v4562
      %v4564 = vpop.f32.mrf.mxu0
      %v4565 = vpop.f32.mrf.mxu0
      %v4566 = vadd.f32 %v4405, %v4565
      %v4567 = vpop.f32.mrf.mxu0
      %4568 = vmatprep.mubr.bf16.mxu0 %v1919
      %4569 = vmatmul.mubr.bf16.gmra.mxu0 %v1918
      %v4570 = vpop.f32.mrf.mxu0
      %v4571 = vadd.f32 %v4410, %v4570
      %v4572 = vpop.f32.mrf.mxu0
      %v4573 = vpop.f32.mrf.mxu0
      %v4574 = vadd.f32 %v4413, %v4573
      %v4575 = vpop.f32.mrf.mxu0
      %4576 = vmatprep.mubr.bf16.mxu0 %v1940
      %4577 = vmatmul.mubr.bf16.gmra.mxu0 %v1939
      %v4578 = vpop.f32.mrf.mxu0
      %v4579 = vadd.f32 %v4418, %v4578
      %v4580 = vpop.f32.mrf.mxu0
      %v4581 = vpop.f32.mrf.mxu0
      %v4582 = vadd.f32 %v4421, %v4581
      %v4583 = vpop.f32.mrf.mxu0
      %4584 = vmatprep.mubr.bf16.mxu0 %v1961
      %4585 = vmatmul.mubr.bf16.gmra.mxu0 %v1960
      %v4586 = vpop.f32.mrf.mxu0
      %v4587 = vadd.f32 %v4426, %v4586
      %v4588 = vpop.f32.mrf.mxu0
      %v4589 = vpop.f32.mrf.mxu0
      %v4590 = vadd.f32 %v4429, %v4589
      %v4591 = vpop.f32.mrf.mxu0
      %4592 = vmatprep.mubr.bf16.mxu0 %v1982
      %4593 = vmatmul.mubr.bf16.gmra.mxu0 %v1981
      %v4594 = vpop.f32.mrf.mxu0
      %v4595 = vadd.f32 %v4434, %v4594
      %v4596 = vpop.f32.mrf.mxu0
      %v4597 = vpop.f32.mrf.mxu0
      %v4598 = vadd.f32 %v4437, %v4597
      %v4599 = vpop.f32.mrf.mxu0
      %4600 = vmatprep.mubr.bf16.mxu0 %v2003
      %4601 = vmatmul.mubr.bf16.gmra.mxu0 %v2002
      %v4602 = vpop.f32.mrf.mxu0
      %v4603 = vadd.f32 %v4442, %v4602
      %v4604 = vpop.f32.mrf.mxu0
      %v4605 = vpop.f32.mrf.mxu0
      %v4606 = vadd.f32 %v4445, %v4605
      %v4607 = vpop.f32.mrf.mxu0
      %4608 = vmatprep.mubr.bf16.mxu0 %v2024
      %4609 = vmatmul.mubr.bf16.gmra.mxu0 %v2023
      %v4610 = vpop.f32.mrf.mxu0
      %v4611 = vadd.f32 %v4450, %v4610
      %v4612 = vpop.f32.mrf.mxu0
      %v4613 = vpop.f32.mrf.mxu0
      %v4614 = vadd.f32 %v4453, %v4613
      %v4615 = vpop.f32.mrf.mxu0
      %4616 = vmatprep.mubr.bf16.mxu0 %v2045
      %4617 = vmatmul.mubr.bf16.gmra.mxu0 %v2044
      %v4618 = vpop.f32.mrf.mxu0
      %v4619 = vadd.f32 %v4458, %v4618
      %v4620 = vpop.f32.mrf.mxu0
      %v4621 = vpop.f32.mrf.mxu0
      %v4622 = vadd.f32 %v4461, %v4621
      %v4623 = vpop.f32.mrf.mxu0
      %4624 = vmatprep.mubr.bf16.mxu0 %v2066
      %4625 = vmatmul.mubr.bf16.gmra.mxu0 %v2065
      %v4626 = vpop.f32.mrf.mxu0
      %v4627 = vadd.f32 %v4466, %v4626
      %v4628 = vpop.f32.mrf.mxu0
      %v4629 = vpop.f32.mrf.mxu0
      %v4630 = vadd.f32 %v4469, %v4629
      %v4631 = vpop.f32.mrf.mxu0
      %4632 = vmatprep.mubr.bf16.mxu0 %v2087
      %4633 = vmatmul.mubr.bf16.gmra.mxu0 %v2086
      %v4634 = vpop.f32.mrf.mxu0
      %v4635 = vadd.f32 %v4474, %v4634
      %v4636 = vpop.f32.mrf.mxu0
      %v4637 = vpop.f32.mrf.mxu0
      %v4638 = vadd.f32 %v4477, %v4637
      %v4639 = vpop.f32.mrf.mxu0
      %4640 = vmatprep.mubr.bf16.mxu0 %v2108
      %4641 = vmatmul.mubr.bf16.gmra.mxu0 %v2107
      %v4642 = vpop.f32.mrf.mxu0
      %v4643 = vadd.f32 %v4482, %v4642
      %v4644 = vpop.f32.mrf.mxu0
      %v4645 = vpop.f32.mrf.mxu0
      %v4646 = vadd.f32 %v4485, %v4645
      %v4647 = vpop.f32.mrf.mxu0
      %4648 = vmatprep.mubr.bf16.mxu0 %v2129
      %4649 = vmatmul.mubr.bf16.gmra.mxu0 %v2128
      %v4650 = vpop.f32.mrf.mxu0
      %v4651 = vadd.f32 %v4490, %v4650
      %v4652 = vpop.f32.mrf.mxu0
      %v4653 = vpop.f32.mrf.mxu0
      %v4654 = vadd.f32 %v4493, %v4653
      %v4655 = vpop.f32.mrf.mxu0
      %4656 = vmatprep.mubr.bf16.mxu0 %v2150
      %4657 = vmatmul.mubr.bf16.gmra.mxu0 %v2149
      %v4658 = vpop.f32.mrf.mxu0
      %v4659 = vadd.f32 %v4498, %v4658
      %v4660 = vpop.f32.mrf.mxu0
      %v4661 = vpop.f32.mrf.mxu0
      %v4662 = vadd.f32 %v4501, %v4661
      %v4663 = vpop.f32.mrf.mxu0
      %4664 = vmatprep.mubr.bf16.mxu0 %v2171
      %4665 = vmatmul.mubr.bf16.gmra.mxu0 %v2170
      %v4666 = vpop.f32.mrf.mxu0
      %v4667 = vadd.f32 %v4506, %v4666
      %v4668 = vpop.f32.mrf.mxu0
      %v4669 = vpop.f32.mrf.mxu0
      %v4670 = vadd.f32 %v4509, %v4669
      %v4671 = vpop.f32.mrf.mxu0
      %4672 = vmatprep.mubr.bf16.mxu0 %v2192
      %4673 = vmatmul.mubr.bf16.gmra.mxu0 %v2191
      %v4674 = vpop.f32.mrf.mxu0
      %v4675 = vadd.f32 %v4514, %v4674
      %v4676 = vpop.f32.mrf.mxu0
      %v4677 = vpop.f32.mrf.mxu0
      %v4678 = vadd.f32 %v4517, %v4677
      %v4679 = vpop.f32.mrf.mxu0
      %4680 = vmatprep.mubr.bf16.mxu0 %v2213
      %4681 = vmatmul.mubr.bf16.gmra.mxu0 %v2212
      %v4682 = vpop.f32.mrf.mxu0
      %v4683 = vadd.f32 %v4522, %v4682
      %v4684 = vpop.f32.mrf.mxu0
      %v4685 = vpop.f32.mrf.mxu0
      %v4686 = vadd.f32 %v4525, %v4685
      %v4687 = vpop.f32.mrf.mxu0
      %4688 = vdwg.mxu0
      %4689 = vmatprep.subr.bf16.mxu0 0
      %4690 = vmatpush1.bf16.msra.mxu0 %v3308
      %4691 = vmatprep.subr.bf16.mxu0 0
      %4692 = vmatpush1.bf16.msra.mxu0 %v3307
      %4693 = vmatprep.subr.bf16.mxu0 0
      %4694 = vmatpush1.bf16.msra.mxu0 %v3306
      %4695 = vmatprep.subr.bf16.mxu0 0
      %4696 = vmatpush1.bf16.msra.mxu0 %v3305
      %4697 = vmatprep.subr.bf16.mxu0 0
      %4698 = vmatpush1.bf16.msra.mxu0 %v3304
      %4699 = vmatprep.subr.bf16.mxu0 0
      %4700 = vmatpush1.bf16.msra.mxu0 %v3303
      %4701 = vmatprep.subr.bf16.mxu0 0
      %4702 = vmatpush1.bf16.msra.mxu0 %v3302
      %4703 = vmatprep.subr.bf16.mxu0 0
      %4704 = vmatpush1.bf16.msra.mxu0 %v3301
      %4705 = vmatprep.subr.bf16.mxu0 0
      %4706 = vmatpush2.bf16.msra.mxu0 %v3316
      %4707 = vmatprep.subr.bf16.mxu0 0
      %4708 = vmatpush2.bf16.msra.mxu0 %v3315
      %4709 = vmatprep.subr.bf16.mxu0 0
      %4710 = vmatpush2.bf16.msra.mxu0 %v3314
      %4711 = vmatprep.subr.bf16.mxu0 0
      %4712 = vmatpush2.bf16.msra.mxu0 %v3313
      %4713 = vmatprep.subr.bf16.mxu0 0
      %4714 = vmatpush2.bf16.msra.mxu0 %v3312
      %4715 = vmatprep.subr.bf16.mxu0 0
      %4716 = vmatpush2.bf16.msra.mxu0 %v3311
      %4717 = vmatprep.subr.bf16.mxu0 0
      %4718 = vmatpush2.bf16.msra.mxu0 %v3310
      %4719 = vmatprep.subr.bf16.mxu0 0
      %4720 = vmatpush2.bf16.msra.mxu0 %v3309
      %4721 = vmatprep.mubr.bf16.mxu0 %v1900
      %4722 = vmatmul.mubr.bf16.gmra.mxu0 %v1899
      %v4723 = vpop.f32.mrf.mxu0
      %v4724 = vadd.f32 %v4563, %v4723
      %v4725 = vpop.f32.mrf.mxu0
      %v4726 = vpop.f32.mrf.mxu0
      %v4727 = vadd.f32 %v4566, %v4726
      %v4728 = vpop.f32.mrf.mxu0
      %4729 = vmatprep.mubr.bf16.mxu0 %v1921
      %4730 = vmatmul.mubr.bf16.gmra.mxu0 %v1920
      %v4731 = vpop.f32.mrf.mxu0
      %v4732 = vadd.f32 %v4571, %v4731
      %v4733 = vpop.f32.mrf.mxu0
      %v4734 = vpop.f32.mrf.mxu0
      %v4735 = vadd.f32 %v4574, %v4734
      %v4736 = vpop.f32.mrf.mxu0
      %4737 = vmatprep.mubr.bf16.mxu0 %v1942
      %4738 = vmatmul.mubr.bf16.gmra.mxu0 %v1941
      %v4739 = vpop.f32.mrf.mxu0
      %v4740 = vadd.f32 %v4579, %v4739
      %v4741 = vpop.f32.mrf.mxu0
      %v4742 = vpop.f32.mrf.mxu0
      %v4743 = vadd.f32 %v4582, %v4742
      %v4744 = vpop.f32.mrf.mxu0
      %4745 = vmatprep.mubr.bf16.mxu0 %v1963
      %4746 = vmatmul.mubr.bf16.gmra.mxu0 %v1962
      %v4747 = vpop.f32.mrf.mxu0
      %v4748 = vadd.f32 %v4587, %v4747
      %v4749 = vpop.f32.mrf.mxu0
      %v4750 = vpop.f32.mrf.mxu0
      %v4751 = vadd.f32 %v4590, %v4750
      %v4752 = vpop.f32.mrf.mxu0
      %4753 = vmatprep.mubr.bf16.mxu0 %v1984
      %4754 = vmatmul.mubr.bf16.gmra.mxu0 %v1983
      %v4755 = vpop.f32.mrf.mxu0
      %v4756 = vadd.f32 %v4595, %v4755
      %v4757 = vpop.f32.mrf.mxu0
      %v4758 = vpop.f32.mrf.mxu0
      %v4759 = vadd.f32 %v4598, %v4758
      %v4760 = vpop.f32.mrf.mxu0
      %4761 = vmatprep.mubr.bf16.mxu0 %v2005
      %4762 = vmatmul.mubr.bf16.gmra.mxu0 %v2004
      %v4763 = vpop.f32.mrf.mxu0
      %v4764 = vadd.f32 %v4603, %v4763
      %v4765 = vpop.f32.mrf.mxu0
      %v4766 = vpop.f32.mrf.mxu0
      %v4767 = vadd.f32 %v4606, %v4766
      %v4768 = vpop.f32.mrf.mxu0
      %4769 = vmatprep.mubr.bf16.mxu0 %v2026
      %4770 = vmatmul.mubr.bf16.gmra.mxu0 %v2025
      %v4771 = vpop.f32.mrf.mxu0
      %v4772 = vadd.f32 %v4611, %v4771
      %v4773 = vpop.f32.mrf.mxu0
      %v4774 = vpop.f32.mrf.mxu0
      %v4775 = vadd.f32 %v4614, %v4774
      %v4776 = vpop.f32.mrf.mxu0
      %4777 = vmatprep.mubr.bf16.mxu0 %v2047
      %4778 = vmatmul.mubr.bf16.gmra.mxu0 %v2046
      %v4779 = vpop.f32.mrf.mxu0
      %v4780 = vadd.f32 %v4619, %v4779
      %v4781 = vpop.f32.mrf.mxu0
      %v4782 = vpop.f32.mrf.mxu0
      %v4783 = vadd.f32 %v4622, %v4782
      %v4784 = vpop.f32.mrf.mxu0
      %4785 = vmatprep.mubr.bf16.mxu0 %v2068
      %4786 = vmatmul.mubr.bf16.gmra.mxu0 %v2067
      %v4787 = vpop.f32.mrf.mxu0
      %v4788 = vadd.f32 %v4627, %v4787
      %v4789 = vpop.f32.mrf.mxu0
      %v4790 = vpop.f32.mrf.mxu0
      %v4791 = vadd.f32 %v4630, %v4790
      %v4792 = vpop.f32.mrf.mxu0
      %4793 = vmatprep.mubr.bf16.mxu0 %v2089
      %4794 = vmatmul.mubr.bf16.gmra.mxu0 %v2088
      %v4795 = vpop.f32.mrf.mxu0
      %v4796 = vadd.f32 %v4635, %v4795
      %v4797 = vpop.f32.mrf.mxu0
      %v4798 = vpop.f32.mrf.mxu0
      %v4799 = vadd.f32 %v4638, %v4798
      %v4800 = vpop.f32.mrf.mxu0
      %4801 = vmatprep.mubr.bf16.mxu0 %v2110
      %4802 = vmatmul.mubr.bf16.gmra.mxu0 %v2109
      %v4803 = vpop.f32.mrf.mxu0
      %v4804 = vadd.f32 %v4643, %v4803
      %v4805 = vpop.f32.mrf.mxu0
      %v4806 = vpop.f32.mrf.mxu0
      %v4807 = vadd.f32 %v4646, %v4806
      %v4808 = vpop.f32.mrf.mxu0
      %4809 = vmatprep.mubr.bf16.mxu0 %v2131
      %4810 = vmatmul.mubr.bf16.gmra.mxu0 %v2130
      %v4811 = vpop.f32.mrf.mxu0
      %v4812 = vadd.f32 %v4651, %v4811
      %v4813 = vpop.f32.mrf.mxu0
      %v4814 = vpop.f32.mrf.mxu0
      %v4815 = vadd.f32 %v4654, %v4814
      %v4816 = vpop.f32.mrf.mxu0
      %4817 = vmatprep.mubr.bf16.mxu0 %v2152
      %4818 = vmatmul.mubr.bf16.gmra.mxu0 %v2151
      %v4819 = vpop.f32.mrf.mxu0
      %v4820 = vadd.f32 %v4659, %v4819
      %v4821 = vpop.f32.mrf.mxu0
      %v4822 = vpop.f32.mrf.mxu0
      %v4823 = vadd.f32 %v4662, %v4822
      %v4824 = vpop.f32.mrf.mxu0
      %4825 = vmatprep.mubr.bf16.mxu0 %v2173
      %4826 = vmatmul.mubr.bf16.gmra.mxu0 %v2172
      %v4827 = vpop.f32.mrf.mxu0
      %v4828 = vadd.f32 %v4667, %v4827
      %v4829 = vpop.f32.mrf.mxu0
      %v4830 = vpop.f32.mrf.mxu0
      %v4831 = vadd.f32 %v4670, %v4830
      %v4832 = vpop.f32.mrf.mxu0
      %4833 = vmatprep.mubr.bf16.mxu0 %v2194
      %4834 = vmatmul.mubr.bf16.gmra.mxu0 %v2193
      %v4835 = vpop.f32.mrf.mxu0
      %v4836 = vadd.f32 %v4675, %v4835
      %v4837 = vpop.f32.mrf.mxu0
      %v4838 = vpop.f32.mrf.mxu0
      %v4839 = vadd.f32 %v4678, %v4838
      %v4840 = vpop.f32.mrf.mxu0
      %4841 = vmatprep.mubr.bf16.mxu0 %v2215
      %4842 = vmatmul.mubr.bf16.gmra.mxu0 %v2214
      %v4843 = vpop.f32.mrf.mxu0
      %v4844 = vadd.f32 %v4683, %v4843
      %v4845 = vpop.f32.mrf.mxu0
      %v4846 = vpop.f32.mrf.mxu0
      %v4847 = vadd.f32 %v4686, %v4846
      %v4848 = vpop.f32.mrf.mxu0
      %4849 = vdwg.mxu0
      %4850 = vmatprep.subr.bf16.mxu0 0
      %4851 = vmatpush1.bf16.msra.mxu0 %v3324
      %4852 = vmatprep.subr.bf16.mxu0 0
      %4853 = vmatpush1.bf16.msra.mxu0 %v3323
      %4854 = vmatprep.subr.bf16.mxu0 0
      %4855 = vmatpush1.bf16.msra.mxu0 %v3322
      %4856 = vmatprep.subr.bf16.mxu0 0
      %4857 = vmatpush1.bf16.msra.mxu0 %v3321
      %4858 = vmatprep.subr.bf16.mxu0 0
      %4859 = vmatpush1.bf16.msra.mxu0 %v3320
      %4860 = vmatprep.subr.bf16.mxu0 0
      %4861 = vmatpush1.bf16.msra.mxu0 %v3319
      %4862 = vmatprep.subr.bf16.mxu0 0
      %4863 = vmatpush1.bf16.msra.mxu0 %v3318
      %4864 = vmatprep.subr.bf16.mxu0 0
      %4865 = vmatpush1.bf16.msra.mxu0 %v3317
      %4866 = vmatprep.subr.bf16.mxu0 0
      %4867 = vmatpush2.bf16.msra.mxu0 %v3332
      %4868 = vmatprep.subr.bf16.mxu0 0
      %4869 = vmatpush2.bf16.msra.mxu0 %v3331
      %4870 = vmatprep.subr.bf16.mxu0 0
      %4871 = vmatpush2.bf16.msra.mxu0 %v3330
      %4872 = vmatprep.subr.bf16.mxu0 0
      %4873 = vmatpush2.bf16.msra.mxu0 %v3329
      %4874 = vmatprep.subr.bf16.mxu0 0
      %4875 = vmatpush2.bf16.msra.mxu0 %v3328
      %4876 = vmatprep.subr.bf16.mxu0 0
      %4877 = vmatpush2.bf16.msra.mxu0 %v3327
      %4878 = vmatprep.subr.bf16.mxu0 0
      %4879 = vmatpush2.bf16.msra.mxu0 %v3326
      %4880 = vmatprep.subr.bf16.mxu0 0
      %4881 = vmatpush2.bf16.msra.mxu0 %v3325
      %4882 = vmatprep.mubr.bf16.mxu0 %v1902
      %4883 = vmatmul.mubr.bf16.gmra.mxu0 %v1901
      %v4884 = vpop.f32.mrf.mxu0
      %v4885 = vadd.f32 %v4724, %v4884
      %v4886 = vpop.f32.mrf.mxu0
      %v4887 = vpop.f32.mrf.mxu0
      %v4888 = vadd.f32 %v4727, %v4887
      %v4889 = vpop.f32.mrf.mxu0
      %4890 = vmatprep.mubr.bf16.mxu0 %v1923
      %4891 = vmatmul.mubr.bf16.gmra.mxu0 %v1922
      %v4892 = vpop.f32.mrf.mxu0
      %v4893 = vadd.f32 %v4732, %v4892
      %v4894 = vpop.f32.mrf.mxu0
      %v4895 = vpop.f32.mrf.mxu0
      %v4896 = vadd.f32 %v4735, %v4895
      %v4897 = vpop.f32.mrf.mxu0
      %4898 = vmatprep.mubr.bf16.mxu0 %v1944
      %4899 = vmatmul.mubr.bf16.gmra.mxu0 %v1943
      %v4900 = vpop.f32.mrf.mxu0
      %v4901 = vadd.f32 %v4740, %v4900
      %v4902 = vpop.f32.mrf.mxu0
      %v4903 = vpop.f32.mrf.mxu0
      %v4904 = vadd.f32 %v4743, %v4903
      %v4905 = vpop.f32.mrf.mxu0
      %4906 = vmatprep.mubr.bf16.mxu0 %v1965
      %4907 = vmatmul.mubr.bf16.gmra.mxu0 %v1964
      %v4908 = vpop.f32.mrf.mxu0
      %v4909 = vadd.f32 %v4748, %v4908
      %v4910 = vpop.f32.mrf.mxu0
      %v4911 = vpop.f32.mrf.mxu0
      %v4912 = vadd.f32 %v4751, %v4911
      %v4913 = vpop.f32.mrf.mxu0
      %4914 = vmatprep.mubr.bf16.mxu0 %v1986
      %4915 = vmatmul.mubr.bf16.gmra.mxu0 %v1985
      %v4916 = vpop.f32.mrf.mxu0
      %v4917 = vadd.f32 %v4756, %v4916
      %v4918 = vpop.f32.mrf.mxu0
      %v4919 = vpop.f32.mrf.mxu0
      %v4920 = vadd.f32 %v4759, %v4919
      %v4921 = vpop.f32.mrf.mxu0
      %4922 = vmatprep.mubr.bf16.mxu0 %v2007
      %4923 = vmatmul.mubr.bf16.gmra.mxu0 %v2006
      %v4924 = vpop.f32.mrf.mxu0
      %v4925 = vadd.f32 %v4764, %v4924
      %v4926 = vpop.f32.mrf.mxu0
      %v4927 = vpop.f32.mrf.mxu0
      %v4928 = vadd.f32 %v4767, %v4927
      %v4929 = vpop.f32.mrf.mxu0
      %4930 = vmatprep.mubr.bf16.mxu0 %v2028
      %4931 = vmatmul.mubr.bf16.gmra.mxu0 %v2027
      %v4932 = vpop.f32.mrf.mxu0
      %v4933 = vadd.f32 %v4772, %v4932
      %v4934 = vpop.f32.mrf.mxu0
      %v4935 = vpop.f32.mrf.mxu0
      %v4936 = vadd.f32 %v4775, %v4935
      %v4937 = vpop.f32.mrf.mxu0
      %4938 = vmatprep.mubr.bf16.mxu0 %v2049
      %4939 = vmatmul.mubr.bf16.gmra.mxu0 %v2048
      %v4940 = vpop.f32.mrf.mxu0
      %v4941 = vadd.f32 %v4780, %v4940
      %v4942 = vpop.f32.mrf.mxu0
      %v4943 = vpop.f32.mrf.mxu0
      %v4944 = vadd.f32 %v4783, %v4943
      %v4945 = vpop.f32.mrf.mxu0
      %4946 = vmatprep.mubr.bf16.mxu0 %v2070
      %4947 = vmatmul.mubr.bf16.gmra.mxu0 %v2069
      %v4948 = vpop.f32.mrf.mxu0
      %v4949 = vadd.f32 %v4788, %v4948
      %v4950 = vpop.f32.mrf.mxu0
      %v4951 = vpop.f32.mrf.mxu0
      %v4952 = vadd.f32 %v4791, %v4951
      %v4953 = vpop.f32.mrf.mxu0
      %4954 = vmatprep.mubr.bf16.mxu0 %v2091
      %4955 = vmatmul.mubr.bf16.gmra.mxu0 %v2090
      %v4956 = vpop.f32.mrf.mxu0
      %v4957 = vadd.f32 %v4796, %v4956
      %v4958 = vpop.f32.mrf.mxu0
      %v4959 = vpop.f32.mrf.mxu0
      %v4960 = vadd.f32 %v4799, %v4959
      %v4961 = vpop.f32.mrf.mxu0
      %4962 = vmatprep.mubr.bf16.mxu0 %v2112
      %4963 = vmatmul.mubr.bf16.gmra.mxu0 %v2111
      %v4964 = vpop.f32.mrf.mxu0
      %v4965 = vadd.f32 %v4804, %v4964
      %v4966 = vpop.f32.mrf.mxu0
      %v4967 = vpop.f32.mrf.mxu0
      %v4968 = vadd.f32 %v4807, %v4967
      %v4969 = vpop.f32.mrf.mxu0
      %4970 = vmatprep.mubr.bf16.mxu0 %v2133
      %4971 = vmatmul.mubr.bf16.gmra.mxu0 %v2132
      %v4972 = vpop.f32.mrf.mxu0
      %v4973 = vadd.f32 %v4812, %v4972
      %v4974 = vpop.f32.mrf.mxu0
      %v4975 = vpop.f32.mrf.mxu0
      %v4976 = vadd.f32 %v4815, %v4975
      %v4977 = vpop.f32.mrf.mxu0
      %4978 = vmatprep.mubr.bf16.mxu0 %v2154
      %4979 = vmatmul.mubr.bf16.gmra.mxu0 %v2153
      %v4980 = vpop.f32.mrf.mxu0
      %v4981 = vadd.f32 %v4820, %v4980
      %v4982 = vpop.f32.mrf.mxu0
      %v4983 = vpop.f32.mrf.mxu0
      %v4984 = vadd.f32 %v4823, %v4983
      %v4985 = vpop.f32.mrf.mxu0
      %4986 = vmatprep.mubr.bf16.mxu0 %v2175
      %4987 = vmatmul.mubr.bf16.gmra.mxu0 %v2174
      %v4988 = vpop.f32.mrf.mxu0
      %v4989 = vadd.f32 %v4828, %v4988
      %v4990 = vpop.f32.mrf.mxu0
      %v4991 = vpop.f32.mrf.mxu0
      %v4992 = vadd.f32 %v4831, %v4991
      %v4993 = vpop.f32.mrf.mxu0
      %4994 = vmatprep.mubr.bf16.mxu0 %v2196
      %4995 = vmatmul.mubr.bf16.gmra.mxu0 %v2195
      %v4996 = vpop.f32.mrf.mxu0
      %v4997 = vadd.f32 %v4836, %v4996
      %v4998 = vpop.f32.mrf.mxu0
      %v4999 = vpop.f32.mrf.mxu0
      %v5000 = vadd.f32 %v4839, %v4999
      %v5001 = vpop.f32.mrf.mxu0
      %5002 = vmatprep.mubr.bf16.mxu0 %v2217
      %5003 = vmatmul.mubr.bf16.gmra.mxu0 %v2216
      %v5004 = vpop.f32.mrf.mxu0
      %v5005 = vadd.f32 %v4844, %v5004
      %v5006 = vpop.f32.mrf.mxu0
      %v5007 = vpop.f32.mrf.mxu0
      %v5008 = vadd.f32 %v4847, %v5007
      %v5009 = vpop.f32.mrf.mxu0
      %5010 = vdwg.mxu0
      %5011 = vmatprep.subr.bf16.mxu0 0
      %5012 = vmatpush1.bf16.msra.mxu0 %v3340
      %5013 = vmatprep.subr.bf16.mxu0 0
      %5014 = vmatpush1.bf16.msra.mxu0 %v3339
      %5015 = vmatprep.subr.bf16.mxu0 0
      %5016 = vmatpush1.bf16.msra.mxu0 %v3338
      %5017 = vmatprep.subr.bf16.mxu0 0
      %5018 = vmatpush1.bf16.msra.mxu0 %v3337
      %5019 = vmatprep.subr.bf16.mxu0 0
      %5020 = vmatpush1.bf16.msra.mxu0 %v3336
      %5021 = vmatprep.subr.bf16.mxu0 0
      %5022 = vmatpush1.bf16.msra.mxu0 %v3335
      %5023 = vmatprep.subr.bf16.mxu0 0
      %5024 = vmatpush1.bf16.msra.mxu0 %v3334
      %5025 = vmatprep.subr.bf16.mxu0 0
      %5026 = vmatpush1.bf16.msra.mxu0 %v3333
      %5027 = vmatprep.subr.bf16.mxu0 0
      %5028 = vmatpush2.bf16.msra.mxu0 %v3348
      %5029 = vmatprep.subr.bf16.mxu0 0
      %5030 = vmatpush2.bf16.msra.mxu0 %v3347
      %5031 = vmatprep.subr.bf16.mxu0 0
      %5032 = vmatpush2.bf16.msra.mxu0 %v3346
      %5033 = vmatprep.subr.bf16.mxu0 0
      %5034 = vmatpush2.bf16.msra.mxu0 %v3345
      %5035 = vmatprep.subr.bf16.mxu0 0
      %5036 = vmatpush2.bf16.msra.mxu0 %v3344
      %5037 = vmatprep.subr.bf16.mxu0 0
      %5038 = vmatpush2.bf16.msra.mxu0 %v3343
      %5039 = vmatprep.subr.bf16.mxu0 0
      %5040 = vmatpush2.bf16.msra.mxu0 %v3342
      %5041 = vmatprep.subr.bf16.mxu0 0
      %5042 = vmatpush2.bf16.msra.mxu0 %v3341
      %5043 = vmatprep.mubr.bf16.mxu0 %v1904
      %5044 = vmatmul.mubr.bf16.gmra.mxu0 %v1903
      %v5045 = vpop.f32.mrf.mxu0
      %v5046 = vadd.f32 %v4885, %v5045
      %v5047 = vpop.f32.mrf.mxu0
      %v5048 = vpop.f32.mrf.mxu0
      %v5049 = vadd.f32 %v4888, %v5048
      %v5050 = vpop.f32.mrf.mxu0
      %5051 = vmatprep.mubr.bf16.mxu0 %v1925
      %5052 = vmatmul.mubr.bf16.gmra.mxu0 %v1924
      %v5053 = vpop.f32.mrf.mxu0
      %v5054 = vadd.f32 %v4893, %v5053
      %v5055 = vpop.f32.mrf.mxu0
      %v5056 = vpop.f32.mrf.mxu0
      %v5057 = vadd.f32 %v4896, %v5056
      %v5058 = vpop.f32.mrf.mxu0
      %5059 = vmatprep.mubr.bf16.mxu0 %v1946
      %5060 = vmatmul.mubr.bf16.gmra.mxu0 %v1945
      %v5061 = vpop.f32.mrf.mxu0
      %v5062 = vadd.f32 %v4901, %v5061
      %v5063 = vpop.f32.mrf.mxu0
      %v5064 = vpop.f32.mrf.mxu0
      %v5065 = vadd.f32 %v4904, %v5064
      %v5066 = vpop.f32.mrf.mxu0
      %5067 = vmatprep.mubr.bf16.mxu0 %v1967
      %5068 = vmatmul.mubr.bf16.gmra.mxu0 %v1966
      %v5069 = vpop.f32.mrf.mxu0
      %v5070 = vadd.f32 %v4909, %v5069
      %v5071 = vpop.f32.mrf.mxu0
      %v5072 = vpop.f32.mrf.mxu0
      %v5073 = vadd.f32 %v4912, %v5072
      %v5074 = vpop.f32.mrf.mxu0
      %5075 = vmatprep.mubr.bf16.mxu0 %v1988
      %5076 = vmatmul.mubr.bf16.gmra.mxu0 %v1987
      %v5077 = vpop.f32.mrf.mxu0
      %v5078 = vadd.f32 %v4917, %v5077
      %v5079 = vpop.f32.mrf.mxu0
      %v5080 = vpop.f32.mrf.mxu0
      %v5081 = vadd.f32 %v4920, %v5080
      %v5082 = vpop.f32.mrf.mxu0
      %5083 = vmatprep.mubr.bf16.mxu0 %v2009
      %5084 = vmatmul.mubr.bf16.gmra.mxu0 %v2008
      %v5085 = vpop.f32.mrf.mxu0
      %v5086 = vadd.f32 %v4925, %v5085
      %v5087 = vpop.f32.mrf.mxu0
      %v5088 = vpop.f32.mrf.mxu0
      %v5089 = vadd.f32 %v4928, %v5088
      %v5090 = vpop.f32.mrf.mxu0
      %5091 = vmatprep.mubr.bf16.mxu0 %v2030
      %5092 = vmatmul.mubr.bf16.gmra.mxu0 %v2029
      %v5093 = vpop.f32.mrf.mxu0
      %v5094 = vadd.f32 %v4933, %v5093
      %v5095 = vpop.f32.mrf.mxu0
      %v5096 = vpop.f32.mrf.mxu0
      %v5097 = vadd.f32 %v4936, %v5096
      %v5098 = vpop.f32.mrf.mxu0
      %5099 = vmatprep.mubr.bf16.mxu0 %v2051
      %5100 = vmatmul.mubr.bf16.gmra.mxu0 %v2050
      %v5101 = vpop.f32.mrf.mxu0
      %v5102 = vadd.f32 %v4941, %v5101
      %v5103 = vpop.f32.mrf.mxu0
      %v5104 = vpop.f32.mrf.mxu0
      %v5105 = vadd.f32 %v4944, %v5104
      %v5106 = vpop.f32.mrf.mxu0
      %5107 = vmatprep.mubr.bf16.mxu0 %v2072
      %5108 = vmatmul.mubr.bf16.gmra.mxu0 %v2071
      %v5109 = vpop.f32.mrf.mxu0
      %v5110 = vadd.f32 %v4949, %v5109
      %v5111 = vpop.f32.mrf.mxu0
      %v5112 = vpop.f32.mrf.mxu0
      %v5113 = vadd.f32 %v4952, %v5112
      %v5114 = vpop.f32.mrf.mxu0
      %5115 = vmatprep.mubr.bf16.mxu0 %v2093
      %5116 = vmatmul.mubr.bf16.gmra.mxu0 %v2092
      %v5117 = vpop.f32.mrf.mxu0
      %v5118 = vadd.f32 %v4957, %v5117
      %v5119 = vpop.f32.mrf.mxu0
      %v5120 = vpop.f32.mrf.mxu0
      %v5121 = vadd.f32 %v4960, %v5120
      %v5122 = vpop.f32.mrf.mxu0
      %5123 = vmatprep.mubr.bf16.mxu0 %v2114
      %5124 = vmatmul.mubr.bf16.gmra.mxu0 %v2113
      %v5125 = vpop.f32.mrf.mxu0
      %v5126 = vadd.f32 %v4965, %v5125
      %v5127 = vpop.f32.mrf.mxu0
      %v5128 = vpop.f32.mrf.mxu0
      %v5129 = vadd.f32 %v4968, %v5128
      %v5130 = vpop.f32.mrf.mxu0
      %5131 = vmatprep.mubr.bf16.mxu0 %v2135
      %5132 = vmatmul.mubr.bf16.gmra.mxu0 %v2134
      %v5133 = vpop.f32.mrf.mxu0
      %v5134 = vadd.f32 %v4973, %v5133
      %v5135 = vpop.f32.mrf.mxu0
      %v5136 = vpop.f32.mrf.mxu0
      %v5137 = vadd.f32 %v4976, %v5136
      %v5138 = vpop.f32.mrf.mxu0
      %5139 = vmatprep.mubr.bf16.mxu0 %v2156
      %5140 = vmatmul.mubr.bf16.gmra.mxu0 %v2155
      %v5141 = vpop.f32.mrf.mxu0
      %v5142 = vadd.f32 %v4981, %v5141
      %v5143 = vpop.f32.mrf.mxu0
      %v5144 = vpop.f32.mrf.mxu0
      %v5145 = vadd.f32 %v4984, %v5144
      %v5146 = vpop.f32.mrf.mxu0
      %5147 = vmatprep.mubr.bf16.mxu0 %v2177
      %5148 = vmatmul.mubr.bf16.gmra.mxu0 %v2176
      %v5149 = vpop.f32.mrf.mxu0
      %v5150 = vadd.f32 %v4989, %v5149
      %v5151 = vpop.f32.mrf.mxu0
      %v5152 = vpop.f32.mrf.mxu0
      %v5153 = vadd.f32 %v4992, %v5152
      %v5154 = vpop.f32.mrf.mxu0
      %5155 = vmatprep.mubr.bf16.mxu0 %v2198
      %5156 = vmatmul.mubr.bf16.gmra.mxu0 %v2197
      %v5157 = vpop.f32.mrf.mxu0
      %v5158 = vadd.f32 %v4997, %v5157
      %v5159 = vpop.f32.mrf.mxu0
      %v5160 = vpop.f32.mrf.mxu0
      %v5161 = vadd.f32 %v5000, %v5160
      %v5162 = vpop.f32.mrf.mxu0
      %5163 = vmatprep.mubr.bf16.mxu0 %v2219
      %5164 = vmatmul.mubr.bf16.gmra.mxu0 %v2218
      %v5165 = vpop.f32.mrf.mxu0
      %v5166 = vadd.f32 %v5005, %v5165
      %v5167 = vpop.f32.mrf.mxu0
      %v5168 = vpop.f32.mrf.mxu0
      %v5169 = vadd.f32 %v5008, %v5168
      %v5170 = vpop.f32.mrf.mxu0
      %5171 = vdwg.mxu0
      %5172 = vmatprep.subr.bf16.mxu0 0
      %5173 = vmatpush1.bf16.msra.mxu0 0
      %5174 = vmatprep.subr.bf16.mxu0 0
      %5175 = vmatpush1.bf16.msra.mxu0 0
      %5176 = vmatprep.subr.bf16.mxu0 0
      %5177 = vmatpush1.bf16.msra.mxu0 0
      %5178 = vmatprep.subr.bf16.mxu0 0
      %5179 = vmatpush1.bf16.msra.mxu0 0
      %5180 = vmatprep.subr.bf16.mxu0 0
      %5181 = vmatpush1.bf16.msra.mxu0 0
      %5182 = vmatprep.subr.bf16.mxu0 0
      %5183 = vmatpush1.bf16.msra.mxu0 0
      %5184 = vmatprep.subr.bf16.mxu0 0
      %5185 = vmatpush1.bf16.msra.mxu0 %v3350
      %5186 = vmatprep.subr.bf16.mxu0 0
      %5187 = vmatpush1.bf16.msra.mxu0 %v3349
      %5188 = vmatprep.subr.bf16.mxu0 0
      %5189 = vmatpush2.bf16.msra.mxu0 0
      %5190 = vmatprep.subr.bf16.mxu0 0
      %5191 = vmatpush2.bf16.msra.mxu0 0
      %5192 = vmatprep.subr.bf16.mxu0 0
      %5193 = vmatpush2.bf16.msra.mxu0 0
      %5194 = vmatprep.subr.bf16.mxu0 0
      %5195 = vmatpush2.bf16.msra.mxu0 0
      %5196 = vmatprep.subr.bf16.mxu0 0
      %5197 = vmatpush2.bf16.msra.mxu0 0
      %5198 = vmatprep.subr.bf16.mxu0 0
      %5199 = vmatpush2.bf16.msra.mxu0 0
      %5200 = vmatprep.subr.bf16.mxu0 0
      %5201 = vmatpush2.bf16.msra.mxu0 0
      %5202 = vmatprep.subr.bf16.mxu0 0
      %5203 = vmatpush2.bf16.msra.mxu0 0
      %5204 = vmatprep.mubr.bf16.mxu0 0
      %5205 = vmatmul.mubr.bf16.gmra.mxu0 %v3515
      %v5206 = vpop.f32.mrf.mxu0
      %v5207 = vadd.f32 %v5046, %v5206
      %v5208 = vpop.f32.mrf.mxu0
      %v5209 = vpop.f32.mrf.mxu0
      %v5210 = vadd.f32 %v5049, %v5209
      %v5211 = vpop.f32.mrf.mxu0
      %5212 = vmatprep.mubr.bf16.mxu0 0
      %5213 = vmatmul.mubr.bf16.gmra.mxu0 %v3518
      %v5214 = vpop.f32.mrf.mxu0
      %v5215 = vadd.f32 %v5054, %v5214
      %v5216 = vpop.f32.mrf.mxu0
      %v5217 = vpop.f32.mrf.mxu0
      %v5218 = vadd.f32 %v5057, %v5217
      %v5219 = vpop.f32.mrf.mxu0
      %5220 = vmatprep.mubr.bf16.mxu0 0
      %5221 = vmatmul.mubr.bf16.gmra.mxu0 %v3521
      %v5222 = vpop.f32.mrf.mxu0
      %v5223 = vadd.f32 %v5062, %v5222
      %v5224 = vpop.f32.mrf.mxu0
      %v5225 = vpop.f32.mrf.mxu0
      %v5226 = vadd.f32 %v5065, %v5225
      %v5227 = vpop.f32.mrf.mxu0
      %5228 = vmatprep.mubr.bf16.mxu0 0
      %5229 = vmatmul.mubr.bf16.gmra.mxu0 %v3524
      %v5230 = vpop.f32.mrf.mxu0
      %v5231 = vadd.f32 %v5070, %v5230
      %v5232 = vpop.f32.mrf.mxu0
      %v5233 = vpop.f32.mrf.mxu0
      %v5234 = vadd.f32 %v5073, %v5233
      %v5235 = vpop.f32.mrf.mxu0
      %5236 = vmatprep.mubr.bf16.mxu0 0
      %5237 = vmatmul.mubr.bf16.gmra.mxu0 %v3527
      %v5238 = vpop.f32.mrf.mxu0
      %v5239 = vadd.f32 %v5078, %v5238
      %v5240 = vpop.f32.mrf.mxu0
      %v5241 = vpop.f32.mrf.mxu0
      %v5242 = vadd.f32 %v5081, %v5241
      %v5243 = vpop.f32.mrf.mxu0
      %5244 = vmatprep.mubr.bf16.mxu0 0
      %5245 = vmatmul.mubr.bf16.gmra.mxu0 %v3530
      %v5246 = vpop.f32.mrf.mxu0
      %v5247 = vadd.f32 %v5086, %v5246
      %v5248 = vpop.f32.mrf.mxu0
      %v5249 = vpop.f32.mrf.mxu0
      %v5250 = vadd.f32 %v5089, %v5249
      %v5251 = vpop.f32.mrf.mxu0
      %5252 = vmatprep.mubr.bf16.mxu0 0
      %5253 = vmatmul.mubr.bf16.gmra.mxu0 %v3533
      %v5254 = vpop.f32.mrf.mxu0
      %v5255 = vadd.f32 %v5094, %v5254
      %v5256 = vpop.f32.mrf.mxu0
      %v5257 = vpop.f32.mrf.mxu0
      %v5258 = vadd.f32 %v5097, %v5257
      %v5259 = vpop.f32.mrf.mxu0
      %5260 = vmatprep.mubr.bf16.mxu0 0
      %5261 = vmatmul.mubr.bf16.gmra.mxu0 %v3536
      %v5262 = vpop.f32.mrf.mxu0
      %v5263 = vadd.f32 %v5102, %v5262
      %v5264 = vpop.f32.mrf.mxu0
      %v5265 = vpop.f32.mrf.mxu0
      %v5266 = vadd.f32 %v5105, %v5265
      %v5267 = vpop.f32.mrf.mxu0
      %5268 = vmatprep.mubr.bf16.mxu0 0
      %5269 = vmatmul.mubr.bf16.gmra.mxu0 %v3539
      %v5270 = vpop.f32.mrf.mxu0
      %v5271 = vadd.f32 %v5110, %v5270
      %v5272 = vpop.f32.mrf.mxu0
      %v5273 = vpop.f32.mrf.mxu0
      %v5274 = vadd.f32 %v5113, %v5273
      %v5275 = vpop.f32.mrf.mxu0
      %5276 = vmatprep.mubr.bf16.mxu0 0
      %5277 = vmatmul.mubr.bf16.gmra.mxu0 %v3542
      %v5278 = vpop.f32.mrf.mxu0
      %v5279 = vadd.f32 %v5118, %v5278
      %v5280 = vpop.f32.mrf.mxu0
      %v5281 = vpop.f32.mrf.mxu0
      %v5282 = vadd.f32 %v5121, %v5281
      %v5283 = vpop.f32.mrf.mxu0
      %5284 = vmatprep.mubr.bf16.mxu0 0
      %5285 = vmatmul.mubr.bf16.gmra.mxu0 %v3545
      %v5286 = vpop.f32.mrf.mxu0
      %v5287 = vadd.f32 %v5126, %v5286
      %v5288 = vpop.f32.mrf.mxu0
      %v5289 = vpop.f32.mrf.mxu0
      %v5290 = vadd.f32 %v5129, %v5289
      %v5291 = vpop.f32.mrf.mxu0
      %5292 = vmatprep.mubr.bf16.mxu0 0
      %5293 = vmatmul.mubr.bf16.gmra.mxu0 %v3548
      %v5294 = vpop.f32.mrf.mxu0
      %v5295 = vadd.f32 %v5134, %v5294
      %v5296 = vpop.f32.mrf.mxu0
      %v5297 = vpop.f32.mrf.mxu0
      %v5298 = vadd.f32 %v5137, %v5297
      %v5299 = vpop.f32.mrf.mxu0
      %5300 = vmatprep.mubr.bf16.mxu0 0
      %5301 = vmatmul.mubr.bf16.gmra.mxu0 %v3551
      %v5302 = vpop.f32.mrf.mxu0
      %v5303 = vadd.f32 %v5142, %v5302
      %v5304 = vpop.f32.mrf.mxu0
      %v5305 = vpop.f32.mrf.mxu0
      %v5306 = vadd.f32 %v5145, %v5305
      %v5307 = vpop.f32.mrf.mxu0
      %5308 = vmatprep.mubr.bf16.mxu0 0
      %5309 = vmatmul.mubr.bf16.gmra.mxu0 %v3554
      %v5310 = vpop.f32.mrf.mxu0
      %v5311 = vadd.f32 %v5150, %v5310
      %v5312 = vpop.f32.mrf.mxu0
      %v5313 = vpop.f32.mrf.mxu0
      %v5314 = vadd.f32 %v5153, %v5313
      %v5315 = vpop.f32.mrf.mxu0
      %5316 = vmatprep.mubr.bf16.mxu0 0
      %5317 = vmatmul.mubr.bf16.gmra.mxu0 %v3557
      %v5318 = vpop.f32.mrf.mxu0
      %v5319 = vadd.f32 %v5158, %v5318
      %v5320 = vpop.f32.mrf.mxu0
      %v5321 = vpop.f32.mrf.mxu0
      %v5322 = vadd.f32 %v5161, %v5321
      %v5323 = vpop.f32.mrf.mxu0
      %5324 = vmatprep.mubr.bf16.mxu0 0
      %5325 = vmatmul.mubr.bf16.gmra.mxu0 %v3560
      %v5326 = vpop.f32.mrf.mxu0
      %v5327 = vadd.f32 %v5166, %v5326
      %v5328 = vpop.f32.mrf.mxu0
      %v5329 = vpop.f32.mrf.mxu0
      %v5330 = vadd.f32 %v5169, %v5329
      %v5331 = vpop.f32.mrf.mxu0
      %5332 = vdwg.mxu0
      %vm5333 = vcmask 23552
      %5334 = vst.msk [vmem:[%s175] sm:$0xff] %vm5333, %v5207
      %5335 = vst.msk [vmem:[%s175 + $0x8] sm:$0xff] %vm5333, %v5210
      %5336 = vst.msk [vmem:[%s175 + $0x10] sm:$0xff] %vm5333, %v5215
      %5337 = vst.msk [vmem:[%s175 + $0x18] sm:$0xff] %vm5333, %v5218
      %5338 = vst.msk [vmem:[%s175 + $0x20] sm:$0xff] %vm5333, %v5223
      %5339 = vst.msk [vmem:[%s175 + $0x28] sm:$0xff] %vm5333, %v5226
      %5340 = vst.msk [vmem:[%s175 + $0x30] sm:$0xff] %vm5333, %v5231
      %5341 = vst.msk [vmem:[%s175 + $0x38] sm:$0xff] %vm5333, %v5234
      %5342 = vst.msk [vmem:[%s175 + $0x40] sm:$0xff] %vm5333, %v5239
      %5343 = vst.msk [vmem:[%s175 + $0x48] sm:$0xff] %vm5333, %v5242
      %5344 = vst.msk [vmem:[%s175 + $0x50] sm:$0xff] %vm5333, %v5247
      %5345 = vst.msk [vmem:[%s175 + $0x58] sm:$0xff] %vm5333, %v5250
      %5346 = vst.msk [vmem:[%s175 + $0x60] sm:$0xff] %vm5333, %v5255
      %5347 = vst.msk [vmem:[%s175 + $0x68] sm:$0xff] %vm5333, %v5258
      %5348 = vst.msk [vmem:[%s175 + $0x70] sm:$0xff] %vm5333, %v5263
      %5349 = vst.msk [vmem:[%s175 + $0x78] sm:$0xff] %vm5333, %v5266
      %5350 = vst.msk [vmem:[%s175 + $0x80] sm:$0xff] %vm5333, %v5271
      %5351 = vst.msk [vmem:[%s175 + $0x88] sm:$0xff] %vm5333, %v5274
      %5352 = vst.msk [vmem:[%s175 + $0x90] sm:$0xff] %vm5333, %v5279
      %5353 = vst.msk [vmem:[%s175 + $0x98] sm:$0xff] %vm5333, %v5282
      %5354 = vst.msk [vmem:[%s175 + $0xa0] sm:$0xff] %vm5333, %v5287
      %5355 = vst.msk [vmem:[%s175 + $0xa8] sm:$0xff] %vm5333, %v5290
      %5356 = vst.msk [vmem:[%s175 + $0xb0] sm:$0xff] %vm5333, %v5295
      %5357 = vst.msk [vmem:[%s175 + $0xb8] sm:$0xff] %vm5333, %v5298
      %5358 = vst.msk [vmem:[%s175 + $0xc0] sm:$0xff] %vm5333, %v5303
      %5359 = vst.msk [vmem:[%s175 + $0xc8] sm:$0xff] %vm5333, %v5306
      %5360 = vst.msk [vmem:[%s175 + $0xd0] sm:$0xff] %vm5333, %v5311
      %5361 = vst.msk [vmem:[%s175 + $0xd8] sm:$0xff] %vm5333, %v5314
      %5362 = vst.msk [vmem:[%s175 + $0xe0] sm:$0xff] %vm5333, %v5319
      %5363 = vst.msk [vmem:[%s175 + $0xe8] sm:$0xff] %vm5333, %v5322
      %5364 = vst.msk [vmem:[%s175 + $0xf0] sm:$0xff] %vm5333, %v5327
      %5365 = vst.msk [vmem:[%s175 + $0xf8] sm:$0xff] %vm5333, %v5330
      %s5366 = smul.u32 32, %s14
      %p5367 = scmp.lt.s32.totalorder %s5366, 63
      %s5368 = scalar_select %p5367, %s5366, 63
      %s5369 = smul.addr %s5368, 8
      %s5370 = scalar_lea.vmem %s3, %s5369
      // Predicated region
      $region33: #{forward.61} parent=31 // pred_check
        %p5371 = pneg %p100
      $region34: #{forward.61} parent=31 // pred_check_branch
        %5373 = sbr.rel (%p5371) target = $region36
      $region35: #{forward.61} parent=31 // pred_region
        %s5374 = smul.u32 32, %s14
      $region36: #{forward.61} parent=31 // pred_fallthru
        _
    $region32: #{forward.61} parent=5 // pred_fallthru
      _
    %p5375 = scmp.le.s32.totalorder 2, %s9
    // Predicated region
    $region37: #{forward.61} parent=5 // pred_check
      %p5376 = pneg %p5375
    $region38: #{forward.61} parent=5 // pred_check_branch
      %5378 = sbr.rel (%p5376) target = $region40
    $region39: #{forward.61} parent=5 // pred_region
      %s5379 = ssub.s32 %s9, 2
      // Predicated region
      $region41: #{forward.61} parent=39 // pred_check
        %p5380 = pneg %p106
      $region42: #{forward.61} parent=39 // pred_check_branch
        %5382 = sbr.rel (%p5380) target = $region44
      $region43: #{forward.61} parent=39 // pred_region
        %s5383 = smul.u32 32, %s15
        %p5384 = scmp.lt.s32.totalorder %s5383, 63
        %s5385 = scalar_select %p5384, %s5383, 63
        %s5386 = smul.addr %s5385, 8
        %s5387 = scalar_lea.vmem %s3, %s5386
      $region44: #{forward.61} parent=39 // pred_fallthru
        _
    $region40: #{forward.61} parent=5 // pred_fallthru
      _
  $region6: #{forward.61} parent=0 // loop_footer
    %s13 = sadd.s32 1, %s9
  $region7: #{forward.61} parent=0 // loop_footer_branch
    %8 = sbr.rel target = $region3
  $region8: #{forward.61} parent=0 // loop_exit
    _

</llo_original>
